<compile_context>
chip_gen: v6e
topology: v6e:2x2x1
jax: 0.10.0
libtpu: 0.0.40
codegen_flags: <defaults>
</compile_context>

<pallas_src>
import functools

import jax
import jax.numpy as jnp
from jax import lax
from jax.experimental import pallas as pl
from jax.experimental.pallas import tpu as pltpu

# ----------------------------- model dims -----------------------------------
B = 2      # batch
Tx = 16    # encoder (input) length
D = 32     # hidden / embedding dim
V = 16     # output vocabulary (actions)
M = 4      # number of memory entries
Tm = 4     # per-memory-entry length
T = 8      # decode steps
MT = M * Tm
UNKID = 1


def _softmax_bias(scores, bias):
    """softmax(scores + additive_mask_bias); bias is 0 (keep) / -1e9 (masked)."""
    s = scores + bias
    s = s - jnp.max(s, axis=-1, keepdims=True)
    e = jnp.exp(s)
    return e * pl.reciprocal(jnp.sum(e, axis=-1, keepdims=True) + 1e-9, approx=True)


def _decoder_kernel(istraining,
                    toks_ref, xenc_ref, mkeys_ref, mencs_ref,
                    xbias_ref, mbias_ref, pis_ref,
                    Wemb_ref, We_ref, Ws_ref, Uzr_ref, Uh_ref, bzrh_ref,
                    Wout_ref, bout_ref,
                    out_ref, pred_ref=None):
    x_enc = xenc_ref[...]                         # (B, Tx, D)
    mkeys = mkeys_ref[...]                        # (B, MT, D)
    mencs = mencs_ref[...]                        # (B, MT, D)
    xbias = xbias_ref[...]                        # (B, Tx) additive mask bias
    mbias = mbias_ref[...]                        # (B, MT)

    Wemb = Wemb_ref[...]                          # (V, D)  mapper already folded in
    W_e, W_s = We_ref[...], Ws_ref[...]           # (D, 3D), (2D, 3D)  fused [Wz|Wr|Wh]
    U_zr, Uh = Uzr_ref[...], Uh_ref[...]          # (D, 2D), (D, D)    fused [Uz|Ur]
    b_zrh = bzrh_ref[...]                         # (1, 3D)
    Wout, bout = Wout_ref[...], bout_ref[...]     # (3D, V), (1, V)

    # state init (zeros; prev_inp_summ passed in)
    h = jnp.zeros((B, D), jnp.float32)
    inp_summ = pis_ref[...]                       # (B, D)
    mem_summ = jnp.zeros((B, D), jnp.float32)

    if istraining:
        # ---- DecoderInputLayer embedding, hoisted out of the recurrence ----
        # All teacher-forced inputs are known up front: one MXU matmul embeds
        # them all, and one more precomputes their gate contribution.
        iota_tbv = lax.broadcasted_iota(jnp.int32, (T * B, V), 1)
        onehot_all = (toks_ref[...] == iota_tbv).astype(jnp.float32)       # (T*B, V)
        emb_all = jnp.dot(onehot_all, Wemb,
                          preferred_element_type=jnp.float32)              # (T*B, D)
        gate_e_all = jnp.dot(emb_all, W_e,
                             preferred_element_type=jnp.float32) + b_zrh   # (T*B, 3D)
    else:
        iota_bv = lax.broadcasted_iota(jnp.int32, (B, V), 1)
        tok = toks_ref[...]                                                # (B, 1)

    # static unroll: T is tiny and keeps every lane-slice store offset static
    for t in range(T):
        if istraining:
            gate_e = gate_e_all[t * B:(t + 1) * B, :]                      # (B, 3D)
        else:
            # per-step DecoderInputLayer (token comes from previous argmax)
            onehot = (tok == iota_bv).astype(jnp.float32)                  # (B, V)
            emb = jnp.dot(onehot, Wemb, preferred_element_type=jnp.float32)
            gate_e = jnp.dot(emb, W_e, preferred_element_type=jnp.float32) + b_zrh

        # ---- fused GRU transition: inp = [emb, inp_summ, mem_summ] ----
        summ = jnp.concatenate([inp_summ, mem_summ], axis=-1)              # (B, 2D)
        gx = gate_e + jnp.dot(summ, W_s, preferred_element_type=jnp.float32)  # (B, 3D)
        u = jnp.dot(h, U_zr, preferred_element_type=jnp.float32)           # (B, 2D)
        z = jax.nn.sigmoid(gx[:, :D] + u[:, :D])
        r = jax.nn.sigmoid(gx[:, D:2 * D] + u[:, D:])
        hh = jnp.tanh(gx[:, 2 * D:] +
                      jnp.dot(r * h, Uh, preferred_element_type=jnp.float32))
        h = (1.0 - z) * h + z * hh                                          # (B, D)

        # ---- attention over encoder states (MXU contractions) ----
        h3 = h[:, None, :]                                                  # (B, 1, D)
        sc_x = jnp.einsum('bqd,bkd->bqk', h3, x_enc,
                          preferred_element_type=jnp.float32)[:, 0, :]      # (B, Tx)
        a_x = _softmax_bias(sc_x, xbias)
        inp_summ = jnp.einsum('bqk,bkd->bqd', a_x[:, None, :], x_enc,
                              preferred_element_type=jnp.float32)[:, 0, :]  # (B, D)

        # ---- attention over memory (keys score, encs are values) ----
        sc_m = jnp.einsum('bqd,bkd->bqk', h3, mkeys,
                          preferred_element_type=jnp.float32)[:, 0, :]      # (B, MT)
        a_m = _softmax_bias(sc_m, mbias)
        mem_summ = jnp.einsum('bqk,bkd->bqd', a_m[:, None, :], mencs,
                              preferred_element_type=jnp.float32)[:, 0, :]  # (B, D)

        # ---- output logits; accumulate into the lane-dense (B, T*V) slab ----
        feat = jnp.concatenate([h, inp_summ, mem_summ], axis=-1)            # (B, 3D)
        logits = jnp.dot(feat, Wout, preferred_element_type=jnp.float32) + bout
        out_ref[:, t * V:(t + 1) * V] = logits

        if not istraining:
            # greedy decode: argmax feeds the recurrence, so it must stay here
            mx = jnp.max(logits, axis=-1, keepdims=True)
            pred = jnp.min(jnp.where(logits == mx, iota_bv, V), axis=-1)    # (B,)
            pred_ref[t, :] = pred
            tok = pred[:, None]


def state_decoder_with_memory(params, x_enc, starttokens, y,
                              memids=None, memkeys=None, memencs=None,
                              xmask=None, memmask=None, prev_inp_summ=None,
                              istraining=True):
    """JAX wrapper -> (out (B,T,V), predactions (B,T))."""
    # TODO(synk): memids / copy-mechanism of the concrete parseq memory cell is
    # not specified in the provided source; memids are accepted but unused.
    del memids
    b, tx, d = x_enc.shape
    assert (b, tx, d) == (B, Tx, D)

    mkeys_flat = memkeys.reshape(B, MT, D).astype(jnp.float32)
    mencs_flat = memencs.reshape(B, MT, D).astype(jnp.float32)
    xmask_f = (jnp.ones((B, Tx), jnp.float32) if xmask is None
               else xmask.astype(jnp.float32))
    mmask_f = (jnp.ones((B, MT), jnp.float32) if memmask is None
               else memmask.reshape(B, MT).astype(jnp.float32))
    # additive mask biases hoisted out of the decode loop
    xbias = (xmask_f - 1.0) * 1e9
    mbias = (mmask_f - 1.0) * 1e9
    pis = (jnp.zeros((B, D), jnp.float32) if prev_inp_summ is None
           else prev_inp_summ.astype(jnp.float32))

    # DecoderInputLayer.mapper folded into the embedding table:
    # emb(mapper[id]) == (Wemb[mapper])[id]
    Wemb_eff = params["W_emb"][params["mapper"]].astype(jnp.float32)

    # fused GRU gate weights (done once here, not per step)
    W_zrh = jnp.concatenate([params["Wz"], params["Wr"], params["Wh"]], axis=1)  # (3D,3D)
    W_e = W_zrh[:D]          # rows acting on emb
    W_s = W_zrh[D:]          # rows acting on [inp_summ, mem_summ]
    U_zr = jnp.concatenate([params["Uz"], params["Ur"]], axis=1)                 # (D, 2D)
    b_zrh = jnp.concatenate([params["bz"], params["br"], params["bh"]], axis=1)  # (1, 3D)

    tok0 = starttokens.astype(jnp.int32).reshape(B, 1)
    if istraining:
        gold = y.astype(jnp.int32)
        toks = jnp.concatenate([tok0, gold[:, :T - 1]], axis=1)   # teacher forcing
        toks = toks.T.reshape(T * B, 1)                           # t-major rows
    else:
        toks = tok0

    inputs = (toks, x_enc.astype(jnp.float32), mkeys_flat, mencs_flat,
              xbias, mbias, pis,
              Wemb_eff, W_e, W_s, U_zr, params["Uh"], b_zrh,
              params["W_out"], params["b_out"])

    vmem = pl.BlockSpec(memory_space=pltpu.MemorySpace.VMEM)

    if istraining:
        out_flat = pl.pallas_call(
            functools.partial(_decoder_kernel, True),
            out_shape=jax.ShapeDtypeStruct((B, T * V), jnp.float32),
            in_specs=[vmem] * len(inputs),
            out_specs=vmem,
        )(*inputs)
        out = out_flat.reshape(B, T, V)                    # no transpose needed
        # argmax has no loop dependency under teacher forcing -> do it here
        predactions = jnp.argmax(out, axis=-1).astype(jnp.int32)
    else:
        out_flat, pred_tb = pl.pallas_call(
            functools.partial(_decoder_kernel, False),
            out_shape=(jax.ShapeDtypeStruct((B, T * V), jnp.float32),
                       jax.ShapeDtypeStruct((T, B), jnp.int32)),
            in_specs=[vmem] * len(inputs),
            out_specs=(vmem, vmem),
        )(*inputs)
        out = out_flat.reshape(B, T, V)
        predactions = pred_tb.T
    return out, predactions


def init_params(key, unktoks=frozenset({3}), unkid=UNKID):
    ks = jax.random.split(key, 12)

    def nrm(k, shape, scale=0.1):
        return (scale * jax.random.normal(k, shape)).astype(jnp.float32)

    din = 3 * D
    mapper = jnp.arange(V, dtype=jnp.int32)      # DecoderInputLayer unk remapping
    for u in sorted(unktoks):
        mapper = mapper.at[u].set(unkid)
    return {
        "mapper": mapper,
        "W_emb": nrm(ks[0], (V, D)),
        "Wz": nrm(ks[1], (din, D)), "Uz": nrm(ks[2], (D, D)),
        "bz": jnp.zeros((1, D), jnp.float32),
        "Wr": nrm(ks[3], (din, D)), "Ur": nrm(ks[4], (D, D)),
        "br": jnp.zeros((1, D), jnp.float32),
        "Wh": nrm(ks[5], (din, D)), "Uh": nrm(ks[6], (D, D)),
        "bh": jnp.zeros((1, D), jnp.float32),
        "W_out": nrm(ks[7], (3 * D, V)),
        "b_out": jnp.zeros((1, V), jnp.float32),
    }


if __name__ == "__main__":
    key = jax.random.PRNGKey(0)
    kp, kx, ky, kk, ke, km = jax.random.split(key, 6)

    params = init_params(kp)

    x_enc = jax.random.normal(kx, (B, Tx, D), jnp.float32)
    starttokens = jnp.zeros((B,), jnp.int32)
    y = jax.random.randint(ky, (B, T), 0, V, jnp.int32)
    memids = jax.random.randint(km, (B, M), 0, 100, jnp.int32)
    memkeys = jax.random.normal(kk, (B, M, Tm, D), jnp.float32)
    memencs = jax.random.normal(ke, (B, M, Tm, D), jnp.float32)
    xmask = jnp.concatenate(
        [jnp.ones((B, Tx - 4), jnp.float32), jnp.zeros((B, 4), jnp.float32)], axis=1)
    memmask = jnp.ones((B, M, Tm), jnp.float32)

    out, predactions = state_decoder_with_memory(
        params, x_enc, starttokens, y,
        memids=memids, memkeys=memkeys, memencs=memencs,
        xmask=xmask, memmask=memmask, istraining=True)

    jax.block_until_ready((out, predactions))
    assert out.shape == (B, T, V) and out.dtype == jnp.float32
    assert predactions.shape == (B, T)
    print("KERNEL_OK")
</pallas_src>

<mosaic_0001>
module attributes {stable_mosaic.version = 11 : i64} {
  func.func @_decoder_kernel(%arg0: memref<16x1xi32, #tpu.memory_space<vmem>>, %arg1: memref<2x16x32xf32, #tpu.memory_space<vmem>>, %arg2: memref<2x16x32xf32, #tpu.memory_space<vmem>>, %arg3: memref<2x16x32xf32, #tpu.memory_space<vmem>>, %arg4: memref<2x16xf32, #tpu.memory_space<vmem>>, %arg5: memref<2x16xf32, #tpu.memory_space<vmem>>, %arg6: memref<2x32xf32, #tpu.memory_space<vmem>>, %arg7: memref<16x32xf32, #tpu.memory_space<vmem>>, %arg8: memref<32x96xf32, #tpu.memory_space<vmem>>, %arg9: memref<64x96xf32, #tpu.memory_space<vmem>>, %arg10: memref<32x64xf32, #tpu.memory_space<vmem>>, %arg11: memref<32x32xf32, #tpu.memory_space<vmem>>, %arg12: memref<1x96xf32, #tpu.memory_space<vmem>>, %arg13: memref<96x16xf32, #tpu.memory_space<vmem>>, %arg14: memref<1x16xf32, #tpu.memory_space<vmem>>, %arg15: memref<2x128xf32, #tpu.memory_space<vmem>>) attributes {dimension_semantics = [], scalar_prefetch = 0 : i64, scratch_operands = 0 : i64, tpu.core_type = #tpu.core_type<tc>} {
    %c0 = arith.constant 0 : index
    %c0_0 = arith.constant 0 : index
    %c0_1 = arith.constant 0 : index
    %0 = vector.load %arg1[%c0, %c0_0, %c0_1] : memref<2x16x32xf32, #tpu.memory_space<vmem>>, vector<2x16x32xf32>
    %c0_2 = arith.constant 0 : index
    %c0_3 = arith.constant 0 : index
    %c0_4 = arith.constant 0 : index
    %1 = vector.load %arg2[%c0_2, %c0_3, %c0_4] : memref<2x16x32xf32, #tpu.memory_space<vmem>>, vector<2x16x32xf32>
    %c0_5 = arith.constant 0 : index
    %c0_6 = arith.constant 0 : index
    %c0_7 = arith.constant 0 : index
    %2 = vector.load %arg3[%c0_5, %c0_6, %c0_7] : memref<2x16x32xf32, #tpu.memory_space<vmem>>, vector<2x16x32xf32>
    %c0_8 = arith.constant 0 : index
    %c0_9 = arith.constant 0 : index
    %3 = vector.load %arg4[%c0_8, %c0_9] : memref<2x16xf32, #tpu.memory_space<vmem>>, vector<2x16xf32>
    %c0_10 = arith.constant 0 : index
    %c0_11 = arith.constant 0 : index
    %4 = vector.load %arg5[%c0_10, %c0_11] : memref<2x16xf32, #tpu.memory_space<vmem>>, vector<2x16xf32>
    %c0_12 = arith.constant 0 : index
    %c0_13 = arith.constant 0 : index
    %5 = vector.load %arg7[%c0_12, %c0_13] : memref<16x32xf32, #tpu.memory_space<vmem>>, vector<16x32xf32>
    %c0_14 = arith.constant 0 : index
    %c0_15 = arith.constant 0 : index
    %6 = vector.load %arg8[%c0_14, %c0_15] : memref<32x96xf32, #tpu.memory_space<vmem>>, vector<32x96xf32>
    %c0_16 = arith.constant 0 : index
    %c0_17 = arith.constant 0 : index
    %7 = vector.load %arg9[%c0_16, %c0_17] : memref<64x96xf32, #tpu.memory_space<vmem>>, vector<64x96xf32>
    %c0_18 = arith.constant 0 : index
    %c0_19 = arith.constant 0 : index
    %8 = vector.load %arg10[%c0_18, %c0_19] : memref<32x64xf32, #tpu.memory_space<vmem>>, vector<32x64xf32>
    %c0_20 = arith.constant 0 : index
    %c0_21 = arith.constant 0 : index
    %9 = vector.load %arg11[%c0_20, %c0_21] : memref<32x32xf32, #tpu.memory_space<vmem>>, vector<32x32xf32>
    %c0_22 = arith.constant 0 : index
    %c0_23 = arith.constant 0 : index
    %10 = vector.load %arg12[%c0_22, %c0_23] : memref<1x96xf32, #tpu.memory_space<vmem>>, vector<1x96xf32>
    %c0_24 = arith.constant 0 : index
    %c0_25 = arith.constant 0 : index
    %11 = vector.load %arg13[%c0_24, %c0_25] : memref<96x16xf32, #tpu.memory_space<vmem>>, vector<96x16xf32>
    %c0_26 = arith.constant 0 : index
    %c0_27 = arith.constant 0 : index
    %12 = vector.load %arg14[%c0_26, %c0_27] : memref<1x16xf32, #tpu.memory_space<vmem>>, vector<1x16xf32>
    %cst = arith.constant 0.000000e+00 : f32
    %13 = vector.broadcast %cst : f32 to vector<2x32xf32>
    %c0_28 = arith.constant 0 : index
    %c0_29 = arith.constant 0 : index
    %14 = vector.load %arg6[%c0_28, %c0_29] : memref<2x32xf32, #tpu.memory_space<vmem>>, vector<2x32xf32>
    %cst_30 = arith.constant 0.000000e+00 : f32
    %15 = vector.broadcast %cst_30 : f32 to vector<2x32xf32>
    %16 = tpu.iota {dimensions = array<i32: 1>} : vector<16x16xi32>
    %c0_31 = arith.constant 0 : index
    %c0_32 = arith.constant 0 : index
    %17 = vector.load %arg0[%c0_31, %c0_32] : memref<16x1xi32, #tpu.memory_space<vmem>>, vector<16x1xi32>
    %18 = vector.broadcast %17 : vector<16x1xi32> to vector<16x16xi32>
    %19 = arith.cmpi eq, %18, %16 : vector<16x16xi32>
    %20 = arith.extui %19 : vector<16x16xi1> to vector<16x16xi32>
    %21 = arith.sitofp %20 : vector<16x16xi32> to vector<16x16xf32>
    %cst_33 = arith.constant dense<0.000000e+00> : vector<16x32xf32>
    %22 = tpu.matmul %21, %5, %cst_33 {dimension_numbers = #tpu.dot_dimension_numbers<[1], [0], [0], [1], [0, 0, 1, 1], [], []>} : vector<16x16xf32>, vector<16x32xf32>, vector<16x32xf32> -> vector<16x32xf32>
    %cst_34 = arith.constant dense<0.000000e+00> : vector<16x96xf32>
    %23 = tpu.matmul %22, %6, %cst_34 {dimension_numbers = #tpu.dot_dimension_numbers<[1], [0], [0], [1], [0, 0, 1, 1], [], []>} : vector<16x32xf32>, vector<32x96xf32>, vector<16x96xf32> -> vector<16x96xf32>
    %24 = vector.broadcast %10 : vector<1x96xf32> to vector<16x96xf32>
    %25 = arith.addf %23, %24 : vector<16x96xf32>
    %26 = vector.extract_strided_slice %25 {offsets = [0, 0], sizes = [2, 96], strides = [1, 1]} : vector<16x96xf32> to vector<2x96xf32>
    %27 = tpu.concatenate %14, %15 in 1 : vector<2x32xf32>, vector<2x32xf32> -> vector<2x64xf32>
    %cst_35 = arith.constant dense<0.000000e+00> : vector<2x96xf32>
    %28 = tpu.matmul %27, %7, %cst_35 {dimension_numbers = #tpu.dot_dimension_numbers<[1], [0], [0], [1], [0, 0, 1, 1], [], []>} : vector<2x64xf32>, vector<64x96xf32>, vector<2x96xf32> -> vector<2x96xf32>
    %29 = arith.addf %26, %28 : vector<2x96xf32>
    %cst_36 = arith.constant dense<0.000000e+00> : vector<2x64xf32>
    %30 = tpu.matmul %13, %8, %cst_36 {dimension_numbers = #tpu.dot_dimension_numbers<[1], [0], [0], [1], [0, 0, 1, 1], [], []>} : vector<2x32xf32>, vector<32x64xf32>, vector<2x64xf32> -> vector<2x64xf32>
    %31 = vector.extract_strided_slice %29 {offsets = [0, 0], sizes = [2, 32], strides = [1, 1]} : vector<2x96xf32> to vector<2x32xf32>
    %32 = vector.extract_strided_slice %30 {offsets = [0, 0], sizes = [2, 32], strides = [1, 1]} : vector<2x64xf32> to vector<2x32xf32>
    %33 = arith.addf %31, %32 : vector<2x32xf32>
    %34 = arith.negf %33 : vector<2x32xf32>
    %35 = math.exp %34 : vector<2x32xf32>
    %cst_37 = arith.constant 1.000000e+00 : f32
    %36 = vector.broadcast %cst_37 : f32 to vector<2x32xf32>
    %37 = arith.addf %36, %35 : vector<2x32xf32>
    %38 = arith.divf %36, %37 : vector<2x32xf32>
    %39 = vector.extract_strided_slice %29 {offsets = [0, 32], sizes = [2, 32], strides = [1, 1]} : vector<2x96xf32> to vector<2x32xf32>
    %40 = vector.extract_strided_slice %30 {offsets = [0, 32], sizes = [2, 32], strides = [1, 1]} : vector<2x64xf32> to vector<2x32xf32>
    %41 = arith.addf %39, %40 : vector<2x32xf32>
    %42 = arith.negf %41 : vector<2x32xf32>
    %43 = math.exp %42 : vector<2x32xf32>
    %cst_38 = arith.constant 1.000000e+00 : f32
    %44 = vector.broadcast %cst_38 : f32 to vector<2x32xf32>
    %45 = arith.addf %44, %43 : vector<2x32xf32>
    %46 = arith.divf %44, %45 : vector<2x32xf32>
    %47 = vector.extract_strided_slice %29 {offsets = [0, 64], sizes = [2, 32], strides = [1, 1]} : vector<2x96xf32> to vector<2x32xf32>
    %48 = arith.mulf %46, %13 : vector<2x32xf32>
    %cst_39 = arith.constant dense<0.000000e+00> : vector<2x32xf32>
    %49 = tpu.matmul %48, %9, %cst_39 {dimension_numbers = #tpu.dot_dimension_numbers<[1], [0], [0], [1], [0, 0, 1, 1], [], []>} : vector<2x32xf32>, vector<32x32xf32>, vector<2x32xf32> -> vector<2x32xf32>
    %50 = arith.addf %47, %49 : vector<2x32xf32>
    %51 = math.tanh %50 : vector<2x32xf32>
    %cst_40 = arith.constant 1.000000e+00 : f32
    %52 = vector.broadcast %cst_40 : f32 to vector<2x32xf32>
    %53 = arith.subf %52, %38 : vector<2x32xf32>
    %54 = arith.mulf %53, %13 : vector<2x32xf32>
    %55 = arith.mulf %38, %51 : vector<2x32xf32>
    %56 = arith.addf %54, %55 : vector<2x32xf32>
    %57 = vector.shape_cast %56 : vector<2x32xf32> to vector<2x1x32xf32>
    "tpu.trace_start"() <{level = 10 : i32, message = "bqd,bkd->bqk"}> : () -> ()
    %cst_41 = arith.constant dense<0.000000e+00> : vector<2x1x16xf32>
    %58 = tpu.matmul %57, %0, %cst_41 {dimension_numbers = #tpu.dot_dimension_numbers<[2], [2], [1], [1], [0, 0, 0, 1, 1, 1], [0], [0]>} : vector<2x1x32xf32>, vector<2x16x32xf32>, vector<2x1x16xf32> -> vector<2x1x16xf32>
    "tpu.trace_stop"() : () -> ()
    %59 = vector.shape_cast %58 : vector<2x1x16xf32> to vector<2x16xf32>
    %60 = arith.addf %59, %3 : vector<2x16xf32>
    %cst_42 = arith.constant dense<0xFF800000> : vector<2xf32>
    %61 = vector.multi_reduction <maximumf>, %60, %cst_42 [1] : vector<2x16xf32> to vector<2xf32>
    %62 = vector.shape_cast %61 : vector<2xf32> to vector<2x1xf32>
    %63 = vector.broadcast %62 : vector<2x1xf32> to vector<2x16xf32>
    %64 = arith.subf %60, %63 : vector<2x16xf32>
    %65 = math.exp %64 : vector<2x16xf32>
    %cst_43 = arith.constant dense<0.000000e+00> : vector<2xf32>
    %66 = vector.multi_reduction <add>, %65, %cst_43 [1] : vector<2x16xf32> to vector<2xf32>
    %67 = vector.shape_cast %66 : vector<2xf32> to vector<2x1xf32>
    %cst_44 = arith.constant 9.99999971E-10 : f32
    %68 = vector.broadcast %cst_44 : f32 to vector<2x1xf32>
    %69 = arith.addf %67, %68 : vector<2x1xf32>
    %70 = tpu.reciprocal %69 {approx = true} : vector<2x1xf32> -> vector<2x1xf32>
    %71 = vector.broadcast %70 : vector<2x1xf32> to vector<2x16xf32>
    %72 = arith.mulf %65, %71 : vector<2x16xf32>
    %73 = vector.shape_cast %72 : vector<2x16xf32> to vector<2x1x16xf32>
    "tpu.trace_start"() <{level = 10 : i32, message = "bqk,bkd->bqd"}> : () -> ()
    %cst_45 = arith.constant dense<0.000000e+00> : vector<2x1x32xf32>
    %74 = tpu.matmul %73, %0, %cst_45 {dimension_numbers = #tpu.dot_dimension_numbers<[2], [1], [1], [2], [0, 0, 0, 1, 1, 2], [0], [0]>} : vector<2x1x16xf32>, vector<2x16x32xf32>, vector<2x1x32xf32> -> vector<2x1x32xf32>
    "tpu.trace_stop"() : () -> ()
    %75 = vector.shape_cast %74 : vector<2x1x32xf32> to vector<2x32xf32>
    "tpu.trace_start"() <{level = 10 : i32, message = "bqd,bkd->bqk"}> : () -> ()
    %cst_46 = arith.constant dense<0.000000e+00> : vector<2x1x16xf32>
    %76 = tpu.matmul %57, %1, %cst_46 {dimension_numbers = #tpu.dot_dimension_numbers<[2], [2], [1], [1], [0, 0, 0, 1, 1, 1], [0], [0]>} : vector<2x1x32xf32>, vector<2x16x32xf32>, vector<2x1x16xf32> -> vector<2x1x16xf32>
    "tpu.trace_stop"() : () -> ()
    %77 = vector.shape_cast %76 : vector<2x1x16xf32> to vector<2x16xf32>
    %78 = arith.addf %77, %4 : vector<2x16xf32>
    %cst_47 = arith.constant dense<0xFF800000> : vector<2xf32>
    %79 = vector.multi_reduction <maximumf>, %78, %cst_47 [1] : vector<2x16xf32> to vector<2xf32>
    %80 = vector.shape_cast %79 : vector<2xf32> to vector<2x1xf32>
    %81 = vector.broadcast %80 : vector<2x1xf32> to vector<2x16xf32>
    %82 = arith.subf %78, %81 : vector<2x16xf32>
    %83 = math.exp %82 : vector<2x16xf32>
    %cst_48 = arith.constant dense<0.000000e+00> : vector<2xf32>
    %84 = vector.multi_reduction <add>, %83, %cst_48 [1] : vector<2x16xf32> to vector<2xf32>
    %85 = vector.shape_cast %84 : vector<2xf32> to vector<2x1xf32>
    %cst_49 = arith.constant 9.99999971E-10 : f32
    %86 = vector.broadcast %cst_49 : f32 to vector<2x1xf32>
    %87 = arith.addf %85, %86 : vector<2x1xf32>
    %88 = tpu.reciprocal %87 {approx = true} : vector<2x1xf32> -> vector<2x1xf32>
    %89 = vector.broadcast %88 : vector<2x1xf32> to vector<2x16xf32>
    %90 = arith.mulf %83, %89 : vector<2x16xf32>
    %91 = vector.shape_cast %90 : vector<2x16xf32> to vector<2x1x16xf32>
    "tpu.trace_start"() <{level = 10 : i32, message = "bqk,bkd->bqd"}> : () -> ()
    %cst_50 = arith.constant dense<0.000000e+00> : vector<2x1x32xf32>
    %92 = tpu.matmul %91, %2, %cst_50 {dimension_numbers = #tpu.dot_dimension_numbers<[2], [1], [1], [2], [0, 0, 0, 1, 1, 2], [0], [0]>} : vector<2x1x16xf32>, vector<2x16x32xf32>, vector<2x1x32xf32> -> vector<2x1x32xf32>
    "tpu.trace_stop"() : () -> ()
    %93 = vector.shape_cast %92 : vector<2x1x32xf32> to vector<2x32xf32>
    %94 = tpu.concatenate %56, %75, %93 in 1 : vector<2x32xf32>, vector<2x32xf32>, vector<2x32xf32> -> vector<2x96xf32>
    %cst_51 = arith.constant dense<0.000000e+00> : vector<2x16xf32>
    %95 = tpu.matmul %94, %11, %cst_51 {dimension_numbers = #tpu.dot_dimension_numbers<[1], [0], [0], [1], [0, 0, 1, 1], [], []>} : vector<2x96xf32>, vector<96x16xf32>, vector<2x16xf32> -> vector<2x16xf32>
    %96 = vector.broadcast %12 : vector<1x16xf32> to vector<2x16xf32>
    %97 = arith.addf %95, %96 : vector<2x16xf32>
    %c0_52 = arith.constant 0 : index
    %c0_53 = arith.constant 0 : index
    %98 = vector.load %arg15[%c0_52, %c0_53] : memref<2x128xf32, #tpu.memory_space<vmem>>, vector<2x16xf32>
    tpu.vector_store %arg15[%c0_52, %c0_53], %97 {strides = array<i32>} : memref<2x128xf32, #tpu.memory_space<vmem>>, vector<2x16xf32>,
    %99 = vector.extract_strided_slice %25 {offsets = [2, 0], sizes = [2, 96], strides = [1, 1]} : vector<16x96xf32> to vector<2x96xf32>
    %100 = tpu.concatenate %75, %93 in 1 : vector<2x32xf32>, vector<2x32xf32> -> vector<2x64xf32>
    %cst_54 = arith.constant dense<0.000000e+00> : vector<2x96xf32>
    %101 = tpu.matmul %100, %7, %cst_54 {dimension_numbers = #tpu.dot_dimension_numbers<[1], [0], [0], [1], [0, 0, 1, 1], [], []>} : vector<2x64xf32>, vector<64x96xf32>, vector<2x96xf32> -> vector<2x96xf32>
    %102 = arith.addf %99, %101 : vector<2x96xf32>
    %cst_55 = arith.constant dense<0.000000e+00> : vector<2x64xf32>
    %103 = tpu.matmul %56, %8, %cst_55 {dimension_numbers = #tpu.dot_dimension_numbers<[1], [0], [0], [1], [0, 0, 1, 1], [], []>} : vector<2x32xf32>, vector<32x64xf32>, vector<2x64xf32> -> vector<2x64xf32>
    %104 = vector.extract_strided_slice %102 {offsets = [0, 0], sizes = [2, 32], strides = [1, 1]} : vector<2x96xf32> to vector<2x32xf32>
    %105 = vector.extract_strided_slice %103 {offsets = [0, 0], sizes = [2, 32], strides = [1, 1]} : vector<2x64xf32> to vector<2x32xf32>
    %106 = arith.addf %104, %105 : vector<2x32xf32>
    %107 = arith.negf %106 : vector<2x32xf32>
    %108 = math.exp %107 : vector<2x32xf32>
    %cst_56 = arith.constant 1.000000e+00 : f32
    %109 = vector.broadcast %cst_56 : f32 to vector<2x32xf32>
    %110 = arith.addf %109, %108 : vector<2x32xf32>
    %111 = arith.divf %109, %110 : vector<2x32xf32>
    %112 = vector.extract_strided_slice %102 {offsets = [0, 32], sizes = [2, 32], strides = [1, 1]} : vector<2x96xf32> to vector<2x32xf32>
    %113 = vector.extract_strided_slice %103 {offsets = [0, 32], sizes = [2, 32], strides = [1, 1]} : vector<2x64xf32> to vector<2x32xf32>
    %114 = arith.addf %112, %113 : vector<2x32xf32>
    %115 = arith.negf %114 : vector<2x32xf32>
    %116 = math.exp %115 : vector<2x32xf32>
    %cst_57 = arith.constant 1.000000e+00 : f32
    %117 = vector.broadcast %cst_57 : f32 to vector<2x32xf32>
    %118 = arith.addf %117, %116 : vector<2x32xf32>
    %119 = arith.divf %117, %118 : vector<2x32xf32>
    %120 = vector.extract_strided_slice %102 {offsets = [0, 64], sizes = [2, 32], strides = [1, 1]} : vector<2x96xf32> to vector<2x32xf32>
    %121 = arith.mulf %119, %56 : vector<2x32xf32>
    %cst_58 = arith.constant dense<0.000000e+00> : vector<2x32xf32>
    %122 = tpu.matmul %121, %9, %cst_58 {dimension_numbers = #tpu.dot_dimension_numbers<[1], [0], [0], [1], [0, 0, 1, 1], [], []>} : vector<2x32xf32>, vector<32x32xf32>, vector<2x32xf32> -> vector<2x32xf32>
    %123 = arith.addf %120, %122 : vector<2x32xf32>
    %124 = math.tanh %123 : vector<2x32xf32>
    %cst_59 = arith.constant 1.000000e+00 : f32
    %125 = vector.broadcast %cst_59 : f32 to vector<2x32xf32>
    %126 = arith.subf %125, %111 : vector<2x32xf32>
    %127 = arith.mulf %126, %56 : vector<2x32xf32>
    %128 = arith.mulf %111, %124 : vector<2x32xf32>
    %129 = arith.addf %127, %128 : vector<2x32xf32>
    %130 = vector.shape_cast %129 : vector<2x32xf32> to vector<2x1x32xf32>
    "tpu.trace_start"() <{level = 10 : i32, message = "bqd,bkd->bqk"}> : () -> ()
    %cst_60 = arith.constant dense<0.000000e+00> : vector<2x1x16xf32>
    %131 = tpu.matmul %130, %0, %cst_60 {dimension_numbers = #tpu.dot_dimension_numbers<[2], [2], [1], [1], [0, 0, 0, 1, 1, 1], [0], [0]>} : vector<2x1x32xf32>, vector<2x16x32xf32>, vector<2x1x16xf32> -> vector<2x1x16xf32>
    "tpu.trace_stop"() : () -> ()
    %132 = vector.shape_cast %131 : vector<2x1x16xf32> to vector<2x16xf32>
    %133 = arith.addf %132, %3 : vector<2x16xf32>
    %cst_61 = arith.constant dense<0xFF800000> : vector<2xf32>
    %134 = vector.multi_reduction <maximumf>, %133, %cst_61 [1] : vector<2x16xf32> to vector<2xf32>
    %135 = vector.shape_cast %134 : vector<2xf32> to vector<2x1xf32>
    %136 = vector.broadcast %135 : vector<2x1xf32> to vector<2x16xf32>
    %137 = arith.subf %133, %136 : vector<2x16xf32>
    %138 = math.exp %137 : vector<2x16xf32>
    %cst_62 = arith.constant dense<0.000000e+00> : vector<2xf32>
    %139 = vector.multi_reduction <add>, %138, %cst_62 [1] : vector<2x16xf32> to vector<2xf32>
    %140 = vector.shape_cast %139 : vector<2xf32> to vector<2x1xf32>
    %cst_63 = arith.constant 9.99999971E-10 : f32
    %141 = vector.broadcast %cst_63 : f32 to vector<2x1xf32>
    %142 = arith.addf %140, %141 : vector<2x1xf32>
    %143 = tpu.reciprocal %142 {approx = true} : vector<2x1xf32> -> vector<2x1xf32>
    %144 = vector.broadcast %143 : vector<2x1xf32> to vector<2x16xf32>
    %145 = arith.mulf %138, %144 : vector<2x16xf32>
    %146 = vector.shape_cast %145 : vector<2x16xf32> to vector<2x1x16xf32>
    "tpu.trace_start"() <{level = 10 : i32, message = "bqk,bkd->bqd"}> : () -> ()
    %cst_64 = arith.constant dense<0.000000e+00> : vector<2x1x32xf32>
    %147 = tpu.matmul %146, %0, %cst_64 {dimension_numbers = #tpu.dot_dimension_numbers<[2], [1], [1], [2], [0, 0, 0, 1, 1, 2], [0], [0]>} : vector<2x1x16xf32>, vector<2x16x32xf32>, vector<2x1x32xf32> -> vector<2x1x32xf32>
    "tpu.trace_stop"() : () -> ()
    %148 = vector.shape_cast %147 : vector<2x1x32xf32> to vector<2x32xf32>
    "tpu.trace_start"() <{level = 10 : i32, message = "bqd,bkd->bqk"}> : () -> ()
    %cst_65 = arith.constant dense<0.000000e+00> : vector<2x1x16xf32>
    %149 = tpu.matmul %130, %1, %cst_65 {dimension_numbers = #tpu.dot_dimension_numbers<[2], [2], [1], [1], [0, 0, 0, 1, 1, 1], [0], [0]>} : vector<2x1x32xf32>, vector<2x16x32xf32>, vector<2x1x16xf32> -> vector<2x1x16xf32>
    "tpu.trace_stop"() : () -> ()
    %150 = vector.shape_cast %149 : vector<2x1x16xf32> to vector<2x16xf32>
    %151 = arith.addf %150, %4 : vector<2x16xf32>
    %cst_66 = arith.constant dense<0xFF800000> : vector<2xf32>
    %152 = vector.multi_reduction <maximumf>, %151, %cst_66 [1] : vector<2x16xf32> to vector<2xf32>
    %153 = vector.shape_cast %152 : vector<2xf32> to vector<2x1xf32>
    %154 = vector.broadcast %153 : vector<2x1xf32> to vector<2x16xf32>
    %155 = arith.subf %151, %154 : vector<2x16xf32>
    %156 = math.exp %155 : vector<2x16xf32>
    %cst_67 = arith.constant dense<0.000000e+00> : vector<2xf32>
    %157 = vector.multi_reduction <add>, %156, %cst_67 [1] : vector<2x16xf32> to vector<2xf32>
    %158 = vector.shape_cast %157 : vector<2xf32> to vector<2x1xf32>
    %cst_68 = arith.constant 9.99999971E-10 : f32
    %159 = vector.broadcast %cst_68 : f32 to vector<2x1xf32>
    %160 = arith.addf %158, %159 : vector<2x1xf32>
    %161 = tpu.reciprocal %160 {approx = true} : vector<2x1xf32> -> vector<2x1xf32>
    %162 = vector.broadcast %161 : vector<2x1xf32> to vector<2x16xf32>
    %163 = arith.mulf %156, %162 : vector<2x16xf32>
    %164 = vector.shape_cast %163 : vector<2x16xf32> to vector<2x1x16xf32>
    "tpu.trace_start"() <{level = 10 : i32, message = "bqk,bkd->bqd"}> : () -> ()
    %cst_69 = arith.constant dense<0.000000e+00> : vector<2x1x32xf32>
    %165 = tpu.matmul %164, %2, %cst_69 {dimension_numbers = #tpu.dot_dimension_numbers<[2], [1], [1], [2], [0, 0, 0, 1, 1, 2], [0], [0]>} : vector<2x1x16xf32>, vector<2x16x32xf32>, vector<2x1x32xf32> -> vector<2x1x32xf32>
    "tpu.trace_stop"() : () -> ()
    %166 = vector.shape_cast %165 : vector<2x1x32xf32> to vector<2x32xf32>
    %167 = tpu.concatenate %129, %148, %166 in 1 : vector<2x32xf32>, vector<2x32xf32>, vector<2x32xf32> -> vector<2x96xf32>
    %cst_70 = arith.constant dense<0.000000e+00> : vector<2x16xf32>
    %168 = tpu.matmul %167, %11, %cst_70 {dimension_numbers = #tpu.dot_dimension_numbers<[1], [0], [0], [1], [0, 0, 1, 1], [], []>} : vector<2x96xf32>, vector<96x16xf32>, vector<2x16xf32> -> vector<2x16xf32>
    %169 = vector.broadcast %12 : vector<1x16xf32> to vector<2x16xf32>
    %170 = arith.addf %168, %169 : vector<2x16xf32>
    %c0_71 = arith.constant 0 : index
    %c16 = arith.constant 16 : index
    %171 = vector.load %arg15[%c0_71, %c16] : memref<2x128xf32, #tpu.memory_space<vmem>>, vector<2x16xf32>
    tpu.vector_store %arg15[%c0_71, %c16], %170 {strides = array<i32>} : memref<2x128xf32, #tpu.memory_space<vmem>>, vector<2x16xf32>,
    %172 = vector.extract_strided_slice %25 {offsets = [4, 0], sizes = [2, 96], strides = [1, 1]} : vector<16x96xf32> to vector<2x96xf32>
    %173 = tpu.concatenate %148, %166 in 1 : vector<2x32xf32>, vector<2x32xf32> -> vector<2x64xf32>
    %cst_72 = arith.constant dense<0.000000e+00> : vector<2x96xf32>
    %174 = tpu.matmul %173, %7, %cst_72 {dimension_numbers = #tpu.dot_dimension_numbers<[1], [0], [0], [1], [0, 0, 1, 1], [], []>} : vector<2x64xf32>, vector<64x96xf32>, vector<2x96xf32> -> vector<2x96xf32>
    %175 = arith.addf %172, %174 : vector<2x96xf32>
    %cst_73 = arith.constant dense<0.000000e+00> : vector<2x64xf32>
    %176 = tpu.matmul %129, %8, %cst_73 {dimension_numbers = #tpu.dot_dimension_numbers<[1], [0], [0], [1], [0, 0, 1, 1], [], []>} : vector<2x32xf32>, vector<32x64xf32>, vector<2x64xf32> -> vector<2x64xf32>
    %177 = vector.extract_strided_slice %175 {offsets = [0, 0], sizes = [2, 32], strides = [1, 1]} : vector<2x96xf32> to vector<2x32xf32>
    %178 = vector.extract_strided_slice %176 {offsets = [0, 0], sizes = [2, 32], strides = [1, 1]} : vector<2x64xf32> to vector<2x32xf32>
    %179 = arith.addf %177, %178 : vector<2x32xf32>
    %180 = arith.negf %179 : vector<2x32xf32>
    %181 = math.exp %180 : vector<2x32xf32>
    %cst_74 = arith.constant 1.000000e+00 : f32
    %182 = vector.broadcast %cst_74 : f32 to vector<2x32xf32>
    %183 = arith.addf %182, %181 : vector<2x32xf32>
    %184 = arith.divf %182, %183 : vector<2x32xf32>
    %185 = vector.extract_strided_slice %175 {offsets = [0, 32], sizes = [2, 32], strides = [1, 1]} : vector<2x96xf32> to vector<2x32xf32>
    %186 = vector.extract_strided_slice %176 {offsets = [0, 32], sizes = [2, 32], strides = [1, 1]} : vector<2x64xf32> to vector<2x32xf32>
    %187 = arith.addf %185, %186 : vector<2x32xf32>
    %188 = arith.negf %187 : vector<2x32xf32>
    %189 = math.exp %188 : vector<2x32xf32>
    %cst_75 = arith.constant 1.000000e+00 : f32
    %190 = vector.broadcast %cst_75 : f32 to vector<2x32xf32>
    %191 = arith.addf %190, %189 : vector<2x32xf32>
    %192 = arith.divf %190, %191 : vector<2x32xf32>
    %193 = vector.extract_strided_slice %175 {offsets = [0, 64], sizes = [2, 32], strides = [1, 1]} : vector<2x96xf32> to vector<2x32xf32>
    %194 = arith.mulf %192, %129 : vector<2x32xf32>
    %cst_76 = arith.constant dense<0.000000e+00> : vector<2x32xf32>
    %195 = tpu.matmul %194, %9, %cst_76 {dimension_numbers = #tpu.dot_dimension_numbers<[1], [0], [0], [1], [0, 0, 1, 1], [], []>} : vector<2x32xf32>, vector<32x32xf32>, vector<2x32xf32> -> vector<2x32xf32>
    %196 = arith.addf %193, %195 : vector<2x32xf32>
    %197 = math.tanh %196 : vector<2x32xf32>
    %cst_77 = arith.constant 1.000000e+00 : f32
    %198 = vector.broadcast %cst_77 : f32 to vector<2x32xf32>
    %199 = arith.subf %198, %184 : vector<2x32xf32>
    %200 = arith.mulf %199, %129 : vector<2x32xf32>
    %201 = arith.mulf %184, %197 : vector<2x32xf32>
    %202 = arith.addf %200, %201 : vector<2x32xf32>
    %203 = vector.shape_cast %202 : vector<2x32xf32> to vector<2x1x32xf32>
    "tpu.trace_start"() <{level = 10 : i32, message = "bqd,bkd->bqk"}> : () -> ()
    %cst_78 = arith.constant dense<0.000000e+00> : vector<2x1x16xf32>
    %204 = tpu.matmul %203, %0, %cst_78 {dimension_numbers = #tpu.dot_dimension_numbers<[2], [2], [1], [1], [0, 0, 0, 1, 1, 1], [0], [0]>} : vector<2x1x32xf32>, vector<2x16x32xf32>, vector<2x1x16xf32> -> vector<2x1x16xf32>
    "tpu.trace_stop"() : () -> ()
    %205 = vector.shape_cast %204 : vector<2x1x16xf32> to vector<2x16xf32>
    %206 = arith.addf %205, %3 : vector<2x16xf32>
    %cst_79 = arith.constant dense<0xFF800000> : vector<2xf32>
    %207 = vector.multi_reduction <maximumf>, %206, %cst_79 [1] : vector<2x16xf32> to vector<2xf32>
    %208 = vector.shape_cast %207 : vector<2xf32> to vector<2x1xf32>
    %209 = vector.broadcast %208 : vector<2x1xf32> to vector<2x16xf32>
    %210 = arith.subf %206, %209 : vector<2x16xf32>
    %211 = math.exp %210 : vector<2x16xf32>
    %cst_80 = arith.constant dense<0.000000e+00> : vector<2xf32>
    %212 = vector.multi_reduction <add>, %211, %cst_80 [1] : vector<2x16xf32> to vector<2xf32>
    %213 = vector.shape_cast %212 : vector<2xf32> to vector<2x1xf32>
    %cst_81 = arith.constant 9.99999971E-10 : f32
    %214 = vector.broadcast %cst_81 : f32 to vector<2x1xf32>
    %215 = arith.addf %213, %214 : vector<2x1xf32>
    %216 = tpu.reciprocal %215 {approx = true} : vector<2x1xf32> -> vector<2x1xf32>
    %217 = vector.broadcast %216 : vector<2x1xf32> to vector<2x16xf32>
    %218 = arith.mulf %211, %217 : vector<2x16xf32>
    %219 = vector.shape_cast %218 : vector<2x16xf32> to vector<2x1x16xf32>
    "tpu.trace_start"() <{level = 10 : i32, message = "bqk,bkd->bqd"}> : () -> ()
    %cst_82 = arith.constant dense<0.000000e+00> : vector<2x1x32xf32>
    %220 = tpu.matmul %219, %0, %cst_82 {dimension_numbers = #tpu.dot_dimension_numbers<[2], [1], [1], [2], [0, 0, 0, 1, 1, 2], [0], [0]>} : vector<2x1x16xf32>, vector<2x16x32xf32>, vector<2x1x32xf32> -> vector<2x1x32xf32>
    "tpu.trace_stop"() : () -> ()
    %221 = vector.shape_cast %220 : vector<2x1x32xf32> to vector<2x32xf32>
    "tpu.trace_start"() <{level = 10 : i32, message = "bqd,bkd->bqk"}> : () -> ()
    %cst_83 = arith.constant dense<0.000000e+00> : vector<2x1x16xf32>
    %222 = tpu.matmul %203, %1, %cst_83 {dimension_numbers = #tpu.dot_dimension_numbers<[2], [2], [1], [1], [0, 0, 0, 1, 1, 1], [0], [0]>} : vector<2x1x32xf32>, vector<2x16x32xf32>, vector<2x1x16xf32> -> vector<2x1x16xf32>
    "tpu.trace_stop"() : () -> ()
    %223 = vector.shape_cast %222 : vector<2x1x16xf32> to vector<2x16xf32>
    %224 = arith.addf %223, %4 : vector<2x16xf32>
    %cst_84 = arith.constant dense<0xFF800000> : vector<2xf32>
    %225 = vector.multi_reduction <maximumf>, %224, %cst_84 [1] : vector<2x16xf32> to vector<2xf32>
    %226 = vector.shape_cast %225 : vector<2xf32> to vector<2x1xf32>
    %227 = vector.broadcast %226 : vector<2x1xf32> to vector<2x16xf32>
    %228 = arith.subf %224, %227 : vector<2x16xf32>
    %229 = math.exp %228 : vector<2x16xf32>
    %cst_85 = arith.constant dense<0.000000e+00> : vector<2xf32>
    %230 = vector.multi_reduction <add>, %229, %cst_85 [1] : vector<2x16xf32> to vector<2xf32>
    %231 = vector.shape_cast %230 : vector<2xf32> to vector<2x1xf32>
    %cst_86 = arith.constant 9.99999971E-10 : f32
    %232 = vector.broadcast %cst_86 : f32 to vector<2x1xf32>
    %233 = arith.addf %231, %232 : vector<2x1xf32>
    %234 = tpu.reciprocal %233 {approx = true} : vector<2x1xf32> -> vector<2x1xf32>
    %235 = vector.broadcast %234 : vector<2x1xf32> to vector<2x16xf32>
    %236 = arith.mulf %229, %235 : vector<2x16xf32>
    %237 = vector.shape_cast %236 : vector<2x16xf32> to vector<2x1x16xf32>
    "tpu.trace_start"() <{level = 10 : i32, message = "bqk,bkd->bqd"}> : () -> ()
    %cst_87 = arith.constant dense<0.000000e+00> : vector<2x1x32xf32>
    %238 = tpu.matmul %237, %2, %cst_87 {dimension_numbers = #tpu.dot_dimension_numbers<[2], [1], [1], [2], [0, 0, 0, 1, 1, 2], [0], [0]>} : vector<2x1x16xf32>, vector<2x16x32xf32>, vector<2x1x32xf32> -> vector<2x1x32xf32>
    "tpu.trace_stop"() : () -> ()
    %239 = vector.shape_cast %238 : vector<2x1x32xf32> to vector<2x32xf32>
    %240 = tpu.concatenate %202, %221, %239 in 1 : vector<2x32xf32>, vector<2x32xf32>, vector<2x32xf32> -> vector<2x96xf32>
    %cst_88 = arith.constant dense<0.000000e+00> : vector<2x16xf32>
    %241 = tpu.matmul %240, %11, %cst_88 {dimension_numbers = #tpu.dot_dimension_numbers<[1], [0], [0], [1], [0, 0, 1, 1], [], []>} : vector<2x96xf32>, vector<96x16xf32>, vector<2x16xf32> -> vector<2x16xf32>
    %242 = vector.broadcast %12 : vector<1x16xf32> to vector<2x16xf32>
    %243 = arith.addf %241, %242 : vector<2x16xf32>
    %c0_89 = arith.constant 0 : index
    %c32 = arith.constant 32 : index
    %244 = vector.load %arg15[%c0_89, %c32] : memref<2x128xf32, #tpu.memory_space<vmem>>, vector<2x16xf32>
    tpu.vector_store %arg15[%c0_89, %c32], %243 {strides = array<i32>} : memref<2x128xf32, #tpu.memory_space<vmem>>, vector<2x16xf32>,
    %245 = vector.extract_strided_slice %25 {offsets = [6, 0], sizes = [2, 96], strides = [1, 1]} : vector<16x96xf32> to vector<2x96xf32>
    %246 = tpu.concatenate %221, %239 in 1 : vector<2x32xf32>, vector<2x32xf32> -> vector<2x64xf32>
    %cst_90 = arith.constant dense<0.000000e+00> : vector<2x96xf32>
    %247 = tpu.matmul %246, %7, %cst_90 {dimension_numbers = #tpu.dot_dimension_numbers<[1], [0], [0], [1], [0, 0, 1, 1], [], []>} : vector<2x64xf32>, vector<64x96xf32>, vector<2x96xf32> -> vector<2x96xf32>
    %248 = arith.addf %245, %247 : vector<2x96xf32>
    %cst_91 = arith.constant dense<0.000000e+00> : vector<2x64xf32>
    %249 = tpu.matmul %202, %8, %cst_91 {dimension_numbers = #tpu.dot_dimension_numbers<[1], [0], [0], [1], [0, 0, 1, 1], [], []>} : vector<2x32xf32>, vector<32x64xf32>, vector<2x64xf32> -> vector<2x64xf32>
    %250 = vector.extract_strided_slice %248 {offsets = [0, 0], sizes = [2, 32], strides = [1, 1]} : vector<2x96xf32> to vector<2x32xf32>
    %251 = vector.extract_strided_slice %249 {offsets = [0, 0], sizes = [2, 32], strides = [1, 1]} : vector<2x64xf32> to vector<2x32xf32>
    %252 = arith.addf %250, %251 : vector<2x32xf32>
    %253 = arith.negf %252 : vector<2x32xf32>
    %254 = math.exp %253 : vector<2x32xf32>
    %cst_92 = arith.constant 1.000000e+00 : f32
    %255 = vector.broadcast %cst_92 : f32 to vector<2x32xf32>
    %256 = arith.addf %255, %254 : vector<2x32xf32>
    %257 = arith.divf %255, %256 : vector<2x32xf32>
    %258 = vector.extract_strided_slice %248 {offsets = [0, 32], sizes = [2, 32], strides = [1, 1]} : vector<2x96xf32> to vector<2x32xf32>
    %259 = vector.extract_strided_slice %249 {offsets = [0, 32], sizes = [2, 32], strides = [1, 1]} : vector<2x64xf32> to vector<2x32xf32>
    %260 = arith.addf %258, %259 : vector<2x32xf32>
    %261 = arith.negf %260 : vector<2x32xf32>
    %262 = math.exp %261 : vector<2x32xf32>
    %cst_93 = arith.constant 1.000000e+00 : f32
    %263 = vector.broadcast %cst_93 : f32 to vector<2x32xf32>
    %264 = arith.addf %263, %262 : vector<2x32xf32>
    %265 = arith.divf %263, %264 : vector<2x32xf32>
    %266 = vector.extract_strided_slice %248 {offsets = [0, 64], sizes = [2, 32], strides = [1, 1]} : vector<2x96xf32> to vector<2x32xf32>
    %267 = arith.mulf %265, %202 : vector<2x32xf32>
    %cst_94 = arith.constant dense<0.000000e+00> : vector<2x32xf32>
    %268 = tpu.matmul %267, %9, %cst_94 {dimension_numbers = #tpu.dot_dimension_numbers<[1], [0], [0], [1], [0, 0, 1, 1], [], []>} : vector<2x32xf32>, vector<32x32xf32>, vector<2x32xf32> -> vector<2x32xf32>
    %269 = arith.addf %266, %268 : vector<2x32xf32>
    %270 = math.tanh %269 : vector<2x32xf32>
    %cst_95 = arith.constant 1.000000e+00 : f32
    %271 = vector.broadcast %cst_95 : f32 to vector<2x32xf32>
    %272 = arith.subf %271, %257 : vector<2x32xf32>
    %273 = arith.mulf %272, %202 : vector<2x32xf32>
    %274 = arith.mulf %257, %270 : vector<2x32xf32>
    %275 = arith.addf %273, %274 : vector<2x32xf32>
    %276 = vector.shape_cast %275 : vector<2x32xf32> to vector<2x1x32xf32>
    "tpu.trace_start"() <{level = 10 : i32, message = "bqd,bkd->bqk"}> : () -> ()
    %cst_96 = arith.constant dense<0.000000e+00> : vector<2x1x16xf32>
    %277 = tpu.matmul %276, %0, %cst_96 {dimension_numbers = #tpu.dot_dimension_numbers<[2], [2], [1], [1], [0, 0, 0, 1, 1, 1], [0], [0]>} : vector<2x1x32xf32>, vector<2x16x32xf32>, vector<2x1x16xf32> -> vector<2x1x16xf32>
    "tpu.trace_stop"() : () -> ()
    %278 = vector.shape_cast %277 : vector<2x1x16xf32> to vector<2x16xf32>
    %279 = arith.addf %278, %3 : vector<2x16xf32>
    %cst_97 = arith.constant dense<0xFF800000> : vector<2xf32>
    %280 = vector.multi_reduction <maximumf>, %279, %cst_97 [1] : vector<2x16xf32> to vector<2xf32>
    %281 = vector.shape_cast %280 : vector<2xf32> to vector<2x1xf32>
    %282 = vector.broadcast %281 : vector<2x1xf32> to vector<2x16xf32>
    %283 = arith.subf %279, %282 : vector<2x16xf32>
    %284 = math.exp %283 : vector<2x16xf32>
    %cst_98 = arith.constant dense<0.000000e+00> : vector<2xf32>
    %285 = vector.multi_reduction <add>, %284, %cst_98 [1] : vector<2x16xf32> to vector<2xf32>
    %286 = vector.shape_cast %285 : vector<2xf32> to vector<2x1xf32>
    %cst_99 = arith.constant 9.99999971E-10 : f32
    %287 = vector.broadcast %cst_99 : f32 to vector<2x1xf32>
    %288 = arith.addf %286, %287 : vector<2x1xf32>
    %289 = tpu.reciprocal %288 {approx = true} : vector<2x1xf32> -> vector<2x1xf32>
    %290 = vector.broadcast %289 : vector<2x1xf32> to vector<2x16xf32>
    %291 = arith.mulf %284, %290 : vector<2x16xf32>
    %292 = vector.shape_cast %291 : vector<2x16xf32> to vector<2x1x16xf32>
    "tpu.trace_start"() <{level = 10 : i32, message = "bqk,bkd->bqd"}> : () -> ()
    %cst_100 = arith.constant dense<0.000000e+00> : vector<2x1x32xf32>
    %293 = tpu.matmul %292, %0, %cst_100 {dimension_numbers = #tpu.dot_dimension_numbers<[2], [1], [1], [2], [0, 0, 0, 1, 1, 2], [0], [0]>} : vector<2x1x16xf32>, vector<2x16x32xf32>, vector<2x1x32xf32> -> vector<2x1x32xf32>
    "tpu.trace_stop"() : () -> ()
    %294 = vector.shape_cast %293 : vector<2x1x32xf32> to vector<2x32xf32>
    "tpu.trace_start"() <{level = 10 : i32, message = "bqd,bkd->bqk"}> : () -> ()
    %cst_101 = arith.constant dense<0.000000e+00> : vector<2x1x16xf32>
    %295 = tpu.matmul %276, %1, %cst_101 {dimension_numbers = #tpu.dot_dimension_numbers<[2], [2], [1], [1], [0, 0, 0, 1, 1, 1], [0], [0]>} : vector<2x1x32xf32>, vector<2x16x32xf32>, vector<2x1x16xf32> -> vector<2x1x16xf32>
    "tpu.trace_stop"() : () -> ()
    %296 = vector.shape_cast %295 : vector<2x1x16xf32> to vector<2x16xf32>
    %297 = arith.addf %296, %4 : vector<2x16xf32>
    %cst_102 = arith.constant dense<0xFF800000> : vector<2xf32>
    %298 = vector.multi_reduction <maximumf>, %297, %cst_102 [1] : vector<2x16xf32> to vector<2xf32>
    %299 = vector.shape_cast %298 : vector<2xf32> to vector<2x1xf32>
    %300 = vector.broadcast %299 : vector<2x1xf32> to vector<2x16xf32>
    %301 = arith.subf %297, %300 : vector<2x16xf32>
    %302 = math.exp %301 : vector<2x16xf32>
    %cst_103 = arith.constant dense<0.000000e+00> : vector<2xf32>
    %303 = vector.multi_reduction <add>, %302, %cst_103 [1] : vector<2x16xf32> to vector<2xf32>
    %304 = vector.shape_cast %303 : vector<2xf32> to vector<2x1xf32>
    %cst_104 = arith.constant 9.99999971E-10 : f32
    %305 = vector.broadcast %cst_104 : f32 to vector<2x1xf32>
    %306 = arith.addf %304, %305 : vector<2x1xf32>
    %307 = tpu.reciprocal %306 {approx = true} : vector<2x1xf32> -> vector<2x1xf32>
    %308 = vector.broadcast %307 : vector<2x1xf32> to vector<2x16xf32>
    %309 = arith.mulf %302, %308 : vector<2x16xf32>
    %310 = vector.shape_cast %309 : vector<2x16xf32> to vector<2x1x16xf32>
    "tpu.trace_start"() <{level = 10 : i32, message = "bqk,bkd->bqd"}> : () -> ()
    %cst_105 = arith.constant dense<0.000000e+00> : vector<2x1x32xf32>
    %311 = tpu.matmul %310, %2, %cst_105 {dimension_numbers = #tpu.dot_dimension_numbers<[2], [1], [1], [2], [0, 0, 0, 1, 1, 2], [0], [0]>} : vector<2x1x16xf32>, vector<2x16x32xf32>, vector<2x1x32xf32> -> vector<2x1x32xf32>
    "tpu.trace_stop"() : () -> ()
    %312 = vector.shape_cast %311 : vector<2x1x32xf32> to vector<2x32xf32>
    %313 = tpu.concatenate %275, %294, %312 in 1 : vector<2x32xf32>, vector<2x32xf32>, vector<2x32xf32> -> vector<2x96xf32>
    %cst_106 = arith.constant dense<0.000000e+00> : vector<2x16xf32>
    %314 = tpu.matmul %313, %11, %cst_106 {dimension_numbers = #tpu.dot_dimension_numbers<[1], [0], [0], [1], [0, 0, 1, 1], [], []>} : vector<2x96xf32>, vector<96x16xf32>, vector<2x16xf32> -> vector<2x16xf32>
    %315 = vector.broadcast %12 : vector<1x16xf32> to vector<2x16xf32>
    %316 = arith.addf %314, %315 : vector<2x16xf32>
    %c0_107 = arith.constant 0 : index
    %c48 = arith.constant 48 : index
    %317 = vector.load %arg15[%c0_107, %c48] : memref<2x128xf32, #tpu.memory_space<vmem>>, vector<2x16xf32>
    tpu.vector_store %arg15[%c0_107, %c48], %316 {strides = array<i32>} : memref<2x128xf32, #tpu.memory_space<vmem>>, vector<2x16xf32>,
    %318 = vector.extract_strided_slice %25 {offsets = [8, 0], sizes = [2, 96], strides = [1, 1]} : vector<16x96xf32> to vector<2x96xf32>
    %319 = tpu.concatenate %294, %312 in 1 : vector<2x32xf32>, vector<2x32xf32> -> vector<2x64xf32>
    %cst_108 = arith.constant dense<0.000000e+00> : vector<2x96xf32>
    %320 = tpu.matmul %319, %7, %cst_108 {dimension_numbers = #tpu.dot_dimension_numbers<[1], [0], [0], [1], [0, 0, 1, 1], [], []>} : vector<2x64xf32>, vector<64x96xf32>, vector<2x96xf32> -> vector<2x96xf32>
    %321 = arith.addf %318, %320 : vector<2x96xf32>
    %cst_109 = arith.constant dense<0.000000e+00> : vector<2x64xf32>
    %322 = tpu.matmul %275, %8, %cst_109 {dimension_numbers = #tpu.dot_dimension_numbers<[1], [0], [0], [1], [0, 0, 1, 1], [], []>} : vector<2x32xf32>, vector<32x64xf32>, vector<2x64xf32> -> vector<2x64xf32>
    %323 = vector.extract_strided_slice %321 {offsets = [0, 0], sizes = [2, 32], strides = [1, 1]} : vector<2x96xf32> to vector<2x32xf32>
    %324 = vector.extract_strided_slice %322 {offsets = [0, 0], sizes = [2, 32], strides = [1, 1]} : vector<2x64xf32> to vector<2x32xf32>
    %325 = arith.addf %323, %324 : vector<2x32xf32>
    %326 = arith.negf %325 : vector<2x32xf32>
    %327 = math.exp %326 : vector<2x32xf32>
    %cst_110 = arith.constant 1.000000e+00 : f32
    %328 = vector.broadcast %cst_110 : f32 to vector<2x32xf32>
    %329 = arith.addf %328, %327 : vector<2x32xf32>
    %330 = arith.divf %328, %329 : vector<2x32xf32>
    %331 = vector.extract_strided_slice %321 {offsets = [0, 32], sizes = [2, 32], strides = [1, 1]} : vector<2x96xf32> to vector<2x32xf32>
    %332 = vector.extract_strided_slice %322 {offsets = [0, 32], sizes = [2, 32], strides = [1, 1]} : vector<2x64xf32> to vector<2x32xf32>
    %333 = arith.addf %331, %332 : vector<2x32xf32>
    %334 = arith.negf %333 : vector<2x32xf32>
    %335 = math.exp %334 : vector<2x32xf32>
    %cst_111 = arith.constant 1.000000e+00 : f32
    %336 = vector.broadcast %cst_111 : f32 to vector<2x32xf32>
    %337 = arith.addf %336, %335 : vector<2x32xf32>
    %338 = arith.divf %336, %337 : vector<2x32xf32>
    %339 = vector.extract_strided_slice %321 {offsets = [0, 64], sizes = [2, 32], strides = [1, 1]} : vector<2x96xf32> to vector<2x32xf32>
    %340 = arith.mulf %338, %275 : vector<2x32xf32>
    %cst_112 = arith.constant dense<0.000000e+00> : vector<2x32xf32>
    %341 = tpu.matmul %340, %9, %cst_112 {dimension_numbers = #tpu.dot_dimension_numbers<[1], [0], [0], [1], [0, 0, 1, 1], [], []>} : vector<2x32xf32>, vector<32x32xf32>, vector<2x32xf32> -> vector<2x32xf32>
    %342 = arith.addf %339, %341 : vector<2x32xf32>
    %343 = math.tanh %342 : vector<2x32xf32>
    %cst_113 = arith.constant 1.000000e+00 : f32
    %344 = vector.broadcast %cst_113 : f32 to vector<2x32xf32>
    %345 = arith.subf %344, %330 : vector<2x32xf32>
    %346 = arith.mulf %345, %275 : vector<2x32xf32>
    %347 = arith.mulf %330, %343 : vector<2x32xf32>
    %348 = arith.addf %346, %347 : vector<2x32xf32>
    %349 = vector.shape_cast %348 : vector<2x32xf32> to vector<2x1x32xf32>
    "tpu.trace_start"() <{level = 10 : i32, message = "bqd,bkd->bqk"}> : () -> ()
    %cst_114 = arith.constant dense<0.000000e+00> : vector<2x1x16xf32>
    %350 = tpu.matmul %349, %0, %cst_114 {dimension_numbers = #tpu.dot_dimension_numbers<[2], [2], [1], [1], [0, 0, 0, 1, 1, 1], [0], [0]>} : vector<2x1x32xf32>, vector<2x16x32xf32>, vector<2x1x16xf32> -> vector<2x1x16xf32>
    "tpu.trace_stop"() : () -> ()
    %351 = vector.shape_cast %350 : vector<2x1x16xf32> to vector<2x16xf32>
    %352 = arith.addf %351, %3 : vector<2x16xf32>
    %cst_115 = arith.constant dense<0xFF800000> : vector<2xf32>
    %353 = vector.multi_reduction <maximumf>, %352, %cst_115 [1] : vector<2x16xf32> to vector<2xf32>
    %354 = vector.shape_cast %353 : vector<2xf32> to vector<2x1xf32>
    %355 = vector.broadcast %354 : vector<2x1xf32> to vector<2x16xf32>
    %356 = arith.subf %352, %355 : vector<2x16xf32>
    %357 = math.exp %356 : vector<2x16xf32>
    %cst_116 = arith.constant dense<0.000000e+00> : vector<2xf32>
    %358 = vector.multi_reduction <add>, %357, %cst_116 [1] : vector<2x16xf32> to vector<2xf32>
    %359 = vector.shape_cast %358 : vector<2xf32> to vector<2x1xf32>
    %cst_117 = arith.constant 9.99999971E-10 : f32
    %360 = vector.broadcast %cst_117 : f32 to vector<2x1xf32>
    %361 = arith.addf %359, %360 : vector<2x1xf32>
    %362 = tpu.reciprocal %361 {approx = true} : vector<2x1xf32> -> vector<2x1xf32>
    %363 = vector.broadcast %362 : vector<2x1xf32> to vector<2x16xf32>
    %364 = arith.mulf %357, %363 : vector<2x16xf32>
    %365 = vector.shape_cast %364 : vector<2x16xf32> to vector<2x1x16xf32>
    "tpu.trace_start"() <{level = 10 : i32, message = "bqk,bkd->bqd"}> : () -> ()
    %cst_118 = arith.constant dense<0.000000e+00> : vector<2x1x32xf32>
    %366 = tpu.matmul %365, %0, %cst_118 {dimension_numbers = #tpu.dot_dimension_numbers<[2], [1], [1], [2], [0, 0, 0, 1, 1, 2], [0], [0]>} : vector<2x1x16xf32>, vector<2x16x32xf32>, vector<2x1x32xf32> -> vector<2x1x32xf32>
    "tpu.trace_stop"() : () -> ()
    %367 = vector.shape_cast %366 : vector<2x1x32xf32> to vector<2x32xf32>
    "tpu.trace_start"() <{level = 10 : i32, message = "bqd,bkd->bqk"}> : () -> ()
    %cst_119 = arith.constant dense<0.000000e+00> : vector<2x1x16xf32>
    %368 = tpu.matmul %349, %1, %cst_119 {dimension_numbers = #tpu.dot_dimension_numbers<[2], [2], [1], [1], [0, 0, 0, 1, 1, 1], [0], [0]>} : vector<2x1x32xf32>, vector<2x16x32xf32>, vector<2x1x16xf32> -> vector<2x1x16xf32>
    "tpu.trace_stop"() : () -> ()
    %369 = vector.shape_cast %368 : vector<2x1x16xf32> to vector<2x16xf32>
    %370 = arith.addf %369, %4 : vector<2x16xf32>
    %cst_120 = arith.constant dense<0xFF800000> : vector<2xf32>
    %371 = vector.multi_reduction <maximumf>, %370, %cst_120 [1] : vector<2x16xf32> to vector<2xf32>
    %372 = vector.shape_cast %371 : vector<2xf32> to vector<2x1xf32>
    %373 = vector.broadcast %372 : vector<2x1xf32> to vector<2x16xf32>
    %374 = arith.subf %370, %373 : vector<2x16xf32>
    %375 = math.exp %374 : vector<2x16xf32>
    %cst_121 = arith.constant dense<0.000000e+00> : vector<2xf32>
    %376 = vector.multi_reduction <add>, %375, %cst_121 [1] : vector<2x16xf32> to vector<2xf32>
    %377 = vector.shape_cast %376 : vector<2xf32> to vector<2x1xf32>
    %cst_122 = arith.constant 9.99999971E-10 : f32
    %378 = vector.broadcast %cst_122 : f32 to vector<2x1xf32>
    %379 = arith.addf %377, %378 : vector<2x1xf32>
    %380 = tpu.reciprocal %379 {approx = true} : vector<2x1xf32> -> vector<2x1xf32>
    %381 = vector.broadcast %380 : vector<2x1xf32> to vector<2x16xf32>
    %382 = arith.mulf %375, %381 : vector<2x16xf32>
    %383 = vector.shape_cast %382 : vector<2x16xf32> to vector<2x1x16xf32>
    "tpu.trace_start"() <{level = 10 : i32, message = "bqk,bkd->bqd"}> : () -> ()
    %cst_123 = arith.constant dense<0.000000e+00> : vector<2x1x32xf32>
    %384 = tpu.matmul %383, %2, %cst_123 {dimension_numbers = #tpu.dot_dimension_numbers<[2], [1], [1], [2], [0, 0, 0, 1, 1, 2], [0], [0]>} : vector<2x1x16xf32>, vector<2x16x32xf32>, vector<2x1x32xf32> -> vector<2x1x32xf32>
    "tpu.trace_stop"() : () -> ()
    %385 = vector.shape_cast %384 : vector<2x1x32xf32> to vector<2x32xf32>
    %386 = tpu.concatenate %348, %367, %385 in 1 : vector<2x32xf32>, vector<2x32xf32>, vector<2x32xf32> -> vector<2x96xf32>
    %cst_124 = arith.constant dense<0.000000e+00> : vector<2x16xf32>
    %387 = tpu.matmul %386, %11, %cst_124 {dimension_numbers = #tpu.dot_dimension_numbers<[1], [0], [0], [1], [0, 0, 1, 1], [], []>} : vector<2x96xf32>, vector<96x16xf32>, vector<2x16xf32> -> vector<2x16xf32>
    %388 = vector.broadcast %12 : vector<1x16xf32> to vector<2x16xf32>
    %389 = arith.addf %387, %388 : vector<2x16xf32>
    %c0_125 = arith.constant 0 : index
    %c64 = arith.constant 64 : index
    %390 = vector.load %arg15[%c0_125, %c64] : memref<2x128xf32, #tpu.memory_space<vmem>>, vector<2x16xf32>
    tpu.vector_store %arg15[%c0_125, %c64], %389 {strides = array<i32>} : memref<2x128xf32, #tpu.memory_space<vmem>>, vector<2x16xf32>,
    %391 = vector.extract_strided_slice %25 {offsets = [10, 0], sizes = [2, 96], strides = [1, 1]} : vector<16x96xf32> to vector<2x96xf32>
    %392 = tpu.concatenate %367, %385 in 1 : vector<2x32xf32>, vector<2x32xf32> -> vector<2x64xf32>
    %cst_126 = arith.constant dense<0.000000e+00> : vector<2x96xf32>
    %393 = tpu.matmul %392, %7, %cst_126 {dimension_numbers = #tpu.dot_dimension_numbers<[1], [0], [0], [1], [0, 0, 1, 1], [], []>} : vector<2x64xf32>, vector<64x96xf32>, vector<2x96xf32> -> vector<2x96xf32>
    %394 = arith.addf %391, %393 : vector<2x96xf32>
    %cst_127 = arith.constant dense<0.000000e+00> : vector<2x64xf32>
    %395 = tpu.matmul %348, %8, %cst_127 {dimension_numbers = #tpu.dot_dimension_numbers<[1], [0], [0], [1], [0, 0, 1, 1], [], []>} : vector<2x32xf32>, vector<32x64xf32>, vector<2x64xf32> -> vector<2x64xf32>
    %396 = vector.extract_strided_slice %394 {offsets = [0, 0], sizes = [2, 32], strides = [1, 1]} : vector<2x96xf32> to vector<2x32xf32>
    %397 = vector.extract_strided_slice %395 {offsets = [0, 0], sizes = [2, 32], strides = [1, 1]} : vector<2x64xf32> to vector<2x32xf32>
    %398 = arith.addf %396, %397 : vector<2x32xf32>
    %399 = arith.negf %398 : vector<2x32xf32>
    %400 = math.exp %399 : vector<2x32xf32>
    %cst_128 = arith.constant 1.000000e+00 : f32
    %401 = vector.broadcast %cst_128 : f32 to vector<2x32xf32>
    %402 = arith.addf %401, %400 : vector<2x32xf32>
    %403 = arith.divf %401, %402 : vector<2x32xf32>
    %404 = vector.extract_strided_slice %394 {offsets = [0, 32], sizes = [2, 32], strides = [1, 1]} : vector<2x96xf32> to vector<2x32xf32>
    %405 = vector.extract_strided_slice %395 {offsets = [0, 32], sizes = [2, 32], strides = [1, 1]} : vector<2x64xf32> to vector<2x32xf32>
    %406 = arith.addf %404, %405 : vector<2x32xf32>
    %407 = arith.negf %406 : vector<2x32xf32>
    %408 = math.exp %407 : vector<2x32xf32>
    %cst_129 = arith.constant 1.000000e+00 : f32
    %409 = vector.broadcast %cst_129 : f32 to vector<2x32xf32>
    %410 = arith.addf %409, %408 : vector<2x32xf32>
    %411 = arith.divf %409, %410 : vector<2x32xf32>
    %412 = vector.extract_strided_slice %394 {offsets = [0, 64], sizes = [2, 32], strides = [1, 1]} : vector<2x96xf32> to vector<2x32xf32>
    %413 = arith.mulf %411, %348 : vector<2x32xf32>
    %cst_130 = arith.constant dense<0.000000e+00> : vector<2x32xf32>
    %414 = tpu.matmul %413, %9, %cst_130 {dimension_numbers = #tpu.dot_dimension_numbers<[1], [0], [0], [1], [0, 0, 1, 1], [], []>} : vector<2x32xf32>, vector<32x32xf32>, vector<2x32xf32> -> vector<2x32xf32>
    %415 = arith.addf %412, %414 : vector<2x32xf32>
    %416 = math.tanh %415 : vector<2x32xf32>
    %cst_131 = arith.constant 1.000000e+00 : f32
    %417 = vector.broadcast %cst_131 : f32 to vector<2x32xf32>
    %418 = arith.subf %417, %403 : vector<2x32xf32>
    %419 = arith.mulf %418, %348 : vector<2x32xf32>
    %420 = arith.mulf %403, %416 : vector<2x32xf32>
    %421 = arith.addf %419, %420 : vector<2x32xf32>
    %422 = vector.shape_cast %421 : vector<2x32xf32> to vector<2x1x32xf32>
    "tpu.trace_start"() <{level = 10 : i32, message = "bqd,bkd->bqk"}> : () -> ()
    %cst_132 = arith.constant dense<0.000000e+00> : vector<2x1x16xf32>
    %423 = tpu.matmul %422, %0, %cst_132 {dimension_numbers = #tpu.dot_dimension_numbers<[2], [2], [1], [1], [0, 0, 0, 1, 1, 1], [0], [0]>} : vector<2x1x32xf32>, vector<2x16x32xf32>, vector<2x1x16xf32> -> vector<2x1x16xf32>
    "tpu.trace_stop"() : () -> ()
    %424 = vector.shape_cast %423 : vector<2x1x16xf32> to vector<2x16xf32>
    %425 = arith.addf %424, %3 : vector<2x16xf32>
    %cst_133 = arith.constant dense<0xFF800000> : vector<2xf32>
    %426 = vector.multi_reduction <maximumf>, %425, %cst_133 [1] : vector<2x16xf32> to vector<2xf32>
    %427 = vector.shape_cast %426 : vector<2xf32> to vector<2x1xf32>
    %428 = vector.broadcast %427 : vector<2x1xf32> to vector<2x16xf32>
    %429 = arith.subf %425, %428 : vector<2x16xf32>
    %430 = math.exp %429 : vector<2x16xf32>
    %cst_134 = arith.constant dense<0.000000e+00> : vector<2xf32>
    %431 = vector.multi_reduction <add>, %430, %cst_134 [1] : vector<2x16xf32> to vector<2xf32>
    %432 = vector.shape_cast %431 : vector<2xf32> to vector<2x1xf32>
    %cst_135 = arith.constant 9.99999971E-10 : f32
    %433 = vector.broadcast %cst_135 : f32 to vector<2x1xf32>
    %434 = arith.addf %432, %433 : vector<2x1xf32>
    %435 = tpu.reciprocal %434 {approx = true} : vector<2x1xf32> -> vector<2x1xf32>
    %436 = vector.broadcast %435 : vector<2x1xf32> to vector<2x16xf32>
    %437 = arith.mulf %430, %436 : vector<2x16xf32>
    %438 = vector.shape_cast %437 : vector<2x16xf32> to vector<2x1x16xf32>
    "tpu.trace_start"() <{level = 10 : i32, message = "bqk,bkd->bqd"}> : () -> ()
    %cst_136 = arith.constant dense<0.000000e+00> : vector<2x1x32xf32>
    %439 = tpu.matmul %438, %0, %cst_136 {dimension_numbers = #tpu.dot_dimension_numbers<[2], [1], [1], [2], [0, 0, 0, 1, 1, 2], [0], [0]>} : vector<2x1x16xf32>, vector<2x16x32xf32>, vector<2x1x32xf32> -> vector<2x1x32xf32>
    "tpu.trace_stop"() : () -> ()
    %440 = vector.shape_cast %439 : vector<2x1x32xf32> to vector<2x32xf32>
    "tpu.trace_start"() <{level = 10 : i32, message = "bqd,bkd->bqk"}> : () -> ()
    %cst_137 = arith.constant dense<0.000000e+00> : vector<2x1x16xf32>
    %441 = tpu.matmul %422, %1, %cst_137 {dimension_numbers = #tpu.dot_dimension_numbers<[2], [2], [1], [1], [0, 0, 0, 1, 1, 1], [0], [0]>} : vector<2x1x32xf32>, vector<2x16x32xf32>, vector<2x1x16xf32> -> vector<2x1x16xf32>
    "tpu.trace_stop"() : () -> ()
    %442 = vector.shape_cast %441 : vector<2x1x16xf32> to vector<2x16xf32>
    %443 = arith.addf %442, %4 : vector<2x16xf32>
    %cst_138 = arith.constant dense<0xFF800000> : vector<2xf32>
    %444 = vector.multi_reduction <maximumf>, %443, %cst_138 [1] : vector<2x16xf32> to vector<2xf32>
    %445 = vector.shape_cast %444 : vector<2xf32> to vector<2x1xf32>
    %446 = vector.broadcast %445 : vector<2x1xf32> to vector<2x16xf32>
    %447 = arith.subf %443, %446 : vector<2x16xf32>
    %448 = math.exp %447 : vector<2x16xf32>
    %cst_139 = arith.constant dense<0.000000e+00> : vector<2xf32>
    %449 = vector.multi_reduction <add>, %448, %cst_139 [1] : vector<2x16xf32> to vector<2xf32>
    %450 = vector.shape_cast %449 : vector<2xf32> to vector<2x1xf32>
    %cst_140 = arith.constant 9.99999971E-10 : f32
    %451 = vector.broadcast %cst_140 : f32 to vector<2x1xf32>
    %452 = arith.addf %450, %451 : vector<2x1xf32>
    %453 = tpu.reciprocal %452 {approx = true} : vector<2x1xf32> -> vector<2x1xf32>
    %454 = vector.broadcast %453 : vector<2x1xf32> to vector<2x16xf32>
    %455 = arith.mulf %448, %454 : vector<2x16xf32>
    %456 = vector.shape_cast %455 : vector<2x16xf32> to vector<2x1x16xf32>
    "tpu.trace_start"() <{level = 10 : i32, message = "bqk,bkd->bqd"}> : () -> ()
    %cst_141 = arith.constant dense<0.000000e+00> : vector<2x1x32xf32>
    %457 = tpu.matmul %456, %2, %cst_141 {dimension_numbers = #tpu.dot_dimension_numbers<[2], [1], [1], [2], [0, 0, 0, 1, 1, 2], [0], [0]>} : vector<2x1x16xf32>, vector<2x16x32xf32>, vector<2x1x32xf32> -> vector<2x1x32xf32>
    "tpu.trace_stop"() : () -> ()
    %458 = vector.shape_cast %457 : vector<2x1x32xf32> to vector<2x32xf32>
    %459 = tpu.concatenate %421, %440, %458 in 1 : vector<2x32xf32>, vector<2x32xf32>, vector<2x32xf32> -> vector<2x96xf32>
    %cst_142 = arith.constant dense<0.000000e+00> : vector<2x16xf32>
    %460 = tpu.matmul %459, %11, %cst_142 {dimension_numbers = #tpu.dot_dimension_numbers<[1], [0], [0], [1], [0, 0, 1, 1], [], []>} : vector<2x96xf32>, vector<96x16xf32>, vector<2x16xf32> -> vector<2x16xf32>
    %461 = vector.broadcast %12 : vector<1x16xf32> to vector<2x16xf32>
    %462 = arith.addf %460, %461 : vector<2x16xf32>
    %c0_143 = arith.constant 0 : index
    %c80 = arith.constant 80 : index
    %463 = vector.load %arg15[%c0_143, %c80] : memref<2x128xf32, #tpu.memory_space<vmem>>, vector<2x16xf32>
    tpu.vector_store %arg15[%c0_143, %c80], %462 {strides = array<i32>} : memref<2x128xf32, #tpu.memory_space<vmem>>, vector<2x16xf32>,
    %464 = vector.extract_strided_slice %25 {offsets = [12, 0], sizes = [2, 96], strides = [1, 1]} : vector<16x96xf32> to vector<2x96xf32>
    %465 = tpu.concatenate %440, %458 in 1 : vector<2x32xf32>, vector<2x32xf32> -> vector<2x64xf32>
    %cst_144 = arith.constant dense<0.000000e+00> : vector<2x96xf32>
    %466 = tpu.matmul %465, %7, %cst_144 {dimension_numbers = #tpu.dot_dimension_numbers<[1], [0], [0], [1], [0, 0, 1, 1], [], []>} : vector<2x64xf32>, vector<64x96xf32>, vector<2x96xf32> -> vector<2x96xf32>
    %467 = arith.addf %464, %466 : vector<2x96xf32>
    %cst_145 = arith.constant dense<0.000000e+00> : vector<2x64xf32>
    %468 = tpu.matmul %421, %8, %cst_145 {dimension_numbers = #tpu.dot_dimension_numbers<[1], [0], [0], [1], [0, 0, 1, 1], [], []>} : vector<2x32xf32>, vector<32x64xf32>, vector<2x64xf32> -> vector<2x64xf32>
    %469 = vector.extract_strided_slice %467 {offsets = [0, 0], sizes = [2, 32], strides = [1, 1]} : vector<2x96xf32> to vector<2x32xf32>
    %470 = vector.extract_strided_slice %468 {offsets = [0, 0], sizes = [2, 32], strides = [1, 1]} : vector<2x64xf32> to vector<2x32xf32>
    %471 = arith.addf %469, %470 : vector<2x32xf32>
    %472 = arith.negf %471 : vector<2x32xf32>
    %473 = math.exp %472 : vector<2x32xf32>
    %cst_146 = arith.constant 1.000000e+00 : f32
    %474 = vector.broadcast %cst_146 : f32 to vector<2x32xf32>
    %475 = arith.addf %474, %473 : vector<2x32xf32>
    %476 = arith.divf %474, %475 : vector<2x32xf32>
    %477 = vector.extract_strided_slice %467 {offsets = [0, 32], sizes = [2, 32], strides = [1, 1]} : vector<2x96xf32> to vector<2x32xf32>
    %478 = vector.extract_strided_slice %468 {offsets = [0, 32], sizes = [2, 32], strides = [1, 1]} : vector<2x64xf32> to vector<2x32xf32>
    %479 = arith.addf %477, %478 : vector<2x32xf32>
    %480 = arith.negf %479 : vector<2x32xf32>
    %481 = math.exp %480 : vector<2x32xf32>
    %cst_147 = arith.constant 1.000000e+00 : f32
    %482 = vector.broadcast %cst_147 : f32 to vector<2x32xf32>
    %483 = arith.addf %482, %481 : vector<2x32xf32>
    %484 = arith.divf %482, %483 : vector<2x32xf32>
    %485 = vector.extract_strided_slice %467 {offsets = [0, 64], sizes = [2, 32], strides = [1, 1]} : vector<2x96xf32> to vector<2x32xf32>
    %486 = arith.mulf %484, %421 : vector<2x32xf32>
    %cst_148 = arith.constant dense<0.000000e+00> : vector<2x32xf32>
    %487 = tpu.matmul %486, %9, %cst_148 {dimension_numbers = #tpu.dot_dimension_numbers<[1], [0], [0], [1], [0, 0, 1, 1], [], []>} : vector<2x32xf32>, vector<32x32xf32>, vector<2x32xf32> -> vector<2x32xf32>
    %488 = arith.addf %485, %487 : vector<2x32xf32>
    %489 = math.tanh %488 : vector<2x32xf32>
    %cst_149 = arith.constant 1.000000e+00 : f32
    %490 = vector.broadcast %cst_149 : f32 to vector<2x32xf32>
    %491 = arith.subf %490, %476 : vector<2x32xf32>
    %492 = arith.mulf %491, %421 : vector<2x32xf32>
    %493 = arith.mulf %476, %489 : vector<2x32xf32>
    %494 = arith.addf %492, %493 : vector<2x32xf32>
    %495 = vector.shape_cast %494 : vector<2x32xf32> to vector<2x1x32xf32>
    "tpu.trace_start"() <{level = 10 : i32, message = "bqd,bkd->bqk"}> : () -> ()
    %cst_150 = arith.constant dense<0.000000e+00> : vector<2x1x16xf32>
    %496 = tpu.matmul %495, %0, %cst_150 {dimension_numbers = #tpu.dot_dimension_numbers<[2], [2], [1], [1], [0, 0, 0, 1, 1, 1], [0], [0]>} : vector<2x1x32xf32>, vector<2x16x32xf32>, vector<2x1x16xf32> -> vector<2x1x16xf32>
    "tpu.trace_stop"() : () -> ()
    %497 = vector.shape_cast %496 : vector<2x1x16xf32> to vector<2x16xf32>
    %498 = arith.addf %497, %3 : vector<2x16xf32>
    %cst_151 = arith.constant dense<0xFF800000> : vector<2xf32>
    %499 = vector.multi_reduction <maximumf>, %498, %cst_151 [1] : vector<2x16xf32> to vector<2xf32>
    %500 = vector.shape_cast %499 : vector<2xf32> to vector<2x1xf32>
    %501 = vector.broadcast %500 : vector<2x1xf32> to vector<2x16xf32>
    %502 = arith.subf %498, %501 : vector<2x16xf32>
    %503 = math.exp %502 : vector<2x16xf32>
    %cst_152 = arith.constant dense<0.000000e+00> : vector<2xf32>
    %504 = vector.multi_reduction <add>, %503, %cst_152 [1] : vector<2x16xf32> to vector<2xf32>
    %505 = vector.shape_cast %504 : vector<2xf32> to vector<2x1xf32>
    %cst_153 = arith.constant 9.99999971E-10 : f32
    %506 = vector.broadcast %cst_153 : f32 to vector<2x1xf32>
    %507 = arith.addf %505, %506 : vector<2x1xf32>
    %508 = tpu.reciprocal %507 {approx = true} : vector<2x1xf32> -> vector<2x1xf32>
    %509 = vector.broadcast %508 : vector<2x1xf32> to vector<2x16xf32>
    %510 = arith.mulf %503, %509 : vector<2x16xf32>
    %511 = vector.shape_cast %510 : vector<2x16xf32> to vector<2x1x16xf32>
    "tpu.trace_start"() <{level = 10 : i32, message = "bqk,bkd->bqd"}> : () -> ()
    %cst_154 = arith.constant dense<0.000000e+00> : vector<2x1x32xf32>
    %512 = tpu.matmul %511, %0, %cst_154 {dimension_numbers = #tpu.dot_dimension_numbers<[2], [1], [1], [2], [0, 0, 0, 1, 1, 2], [0], [0]>} : vector<2x1x16xf32>, vector<2x16x32xf32>, vector<2x1x32xf32> -> vector<2x1x32xf32>
    "tpu.trace_stop"() : () -> ()
    %513 = vector.shape_cast %512 : vector<2x1x32xf32> to vector<2x32xf32>
    "tpu.trace_start"() <{level = 10 : i32, message = "bqd,bkd->bqk"}> : () -> ()
    %cst_155 = arith.constant dense<0.000000e+00> : vector<2x1x16xf32>
    %514 = tpu.matmul %495, %1, %cst_155 {dimension_numbers = #tpu.dot_dimension_numbers<[2], [2], [1], [1], [0, 0, 0, 1, 1, 1], [0], [0]>} : vector<2x1x32xf32>, vector<2x16x32xf32>, vector<2x1x16xf32> -> vector<2x1x16xf32>
    "tpu.trace_stop"() : () -> ()
    %515 = vector.shape_cast %514 : vector<2x1x16xf32> to vector<2x16xf32>
    %516 = arith.addf %515, %4 : vector<2x16xf32>
    %cst_156 = arith.constant dense<0xFF800000> : vector<2xf32>
    %517 = vector.multi_reduction <maximumf>, %516, %cst_156 [1] : vector<2x16xf32> to vector<2xf32>
    %518 = vector.shape_cast %517 : vector<2xf32> to vector<2x1xf32>
    %519 = vector.broadcast %518 : vector<2x1xf32> to vector<2x16xf32>
    %520 = arith.subf %516, %519 : vector<2x16xf32>
    %521 = math.exp %520 : vector<2x16xf32>
    %cst_157 = arith.constant dense<0.000000e+00> : vector<2xf32>
    %522 = vector.multi_reduction <add>, %521, %cst_157 [1] : vector<2x16xf32> to vector<2xf32>
    %523 = vector.shape_cast %522 : vector<2xf32> to vector<2x1xf32>
    %cst_158 = arith.constant 9.99999971E-10 : f32
    %524 = vector.broadcast %cst_158 : f32 to vector<2x1xf32>
    %525 = arith.addf %523, %524 : vector<2x1xf32>
    %526 = tpu.reciprocal %525 {approx = true} : vector<2x1xf32> -> vector<2x1xf32>
    %527 = vector.broadcast %526 : vector<2x1xf32> to vector<2x16xf32>
    %528 = arith.mulf %521, %527 : vector<2x16xf32>
    %529 = vector.shape_cast %528 : vector<2x16xf32> to vector<2x1x16xf32>
    "tpu.trace_start"() <{level = 10 : i32, message = "bqk,bkd->bqd"}> : () -> ()
    %cst_159 = arith.constant dense<0.000000e+00> : vector<2x1x32xf32>
    %530 = tpu.matmul %529, %2, %cst_159 {dimension_numbers = #tpu.dot_dimension_numbers<[2], [1], [1], [2], [0, 0, 0, 1, 1, 2], [0], [0]>} : vector<2x1x16xf32>, vector<2x16x32xf32>, vector<2x1x32xf32> -> vector<2x1x32xf32>
    "tpu.trace_stop"() : () -> ()
    %531 = vector.shape_cast %530 : vector<2x1x32xf32> to vector<2x32xf32>
    %532 = tpu.concatenate %494, %513, %531 in 1 : vector<2x32xf32>, vector<2x32xf32>, vector<2x32xf32> -> vector<2x96xf32>
    %cst_160 = arith.constant dense<0.000000e+00> : vector<2x16xf32>
    %533 = tpu.matmul %532, %11, %cst_160 {dimension_numbers = #tpu.dot_dimension_numbers<[1], [0], [0], [1], [0, 0, 1, 1], [], []>} : vector<2x96xf32>, vector<96x16xf32>, vector<2x16xf32> -> vector<2x16xf32>
    %534 = vector.broadcast %12 : vector<1x16xf32> to vector<2x16xf32>
    %535 = arith.addf %533, %534 : vector<2x16xf32>
    %c0_161 = arith.constant 0 : index
    %c96 = arith.constant 96 : index
    %536 = vector.load %arg15[%c0_161, %c96] : memref<2x128xf32, #tpu.memory_space<vmem>>, vector<2x16xf32>
    tpu.vector_store %arg15[%c0_161, %c96], %535 {strides = array<i32>} : memref<2x128xf32, #tpu.memory_space<vmem>>, vector<2x16xf32>,
    %537 = vector.extract_strided_slice %25 {offsets = [14, 0], sizes = [2, 96], strides = [1, 1]} : vector<16x96xf32> to vector<2x96xf32>
    %538 = tpu.concatenate %513, %531 in 1 : vector<2x32xf32>, vector<2x32xf32> -> vector<2x64xf32>
    %cst_162 = arith.constant dense<0.000000e+00> : vector<2x96xf32>
    %539 = tpu.matmul %538, %7, %cst_162 {dimension_numbers = #tpu.dot_dimension_numbers<[1], [0], [0], [1], [0, 0, 1, 1], [], []>} : vector<2x64xf32>, vector<64x96xf32>, vector<2x96xf32> -> vector<2x96xf32>
    %540 = arith.addf %537, %539 : vector<2x96xf32>
    %cst_163 = arith.constant dense<0.000000e+00> : vector<2x64xf32>
    %541 = tpu.matmul %494, %8, %cst_163 {dimension_numbers = #tpu.dot_dimension_numbers<[1], [0], [0], [1], [0, 0, 1, 1], [], []>} : vector<2x32xf32>, vector<32x64xf32>, vector<2x64xf32> -> vector<2x64xf32>
    %542 = vector.extract_strided_slice %540 {offsets = [0, 0], sizes = [2, 32], strides = [1, 1]} : vector<2x96xf32> to vector<2x32xf32>
    %543 = vector.extract_strided_slice %541 {offsets = [0, 0], sizes = [2, 32], strides = [1, 1]} : vector<2x64xf32> to vector<2x32xf32>
    %544 = arith.addf %542, %543 : vector<2x32xf32>
    %545 = arith.negf %544 : vector<2x32xf32>
    %546 = math.exp %545 : vector<2x32xf32>
    %cst_164 = arith.constant 1.000000e+00 : f32
    %547 = vector.broadcast %cst_164 : f32 to vector<2x32xf32>
    %548 = arith.addf %547, %546 : vector<2x32xf32>
    %549 = arith.divf %547, %548 : vector<2x32xf32>
    %550 = vector.extract_strided_slice %540 {offsets = [0, 32], sizes = [2, 32], strides = [1, 1]} : vector<2x96xf32> to vector<2x32xf32>
    %551 = vector.extract_strided_slice %541 {offsets = [0, 32], sizes = [2, 32], strides = [1, 1]} : vector<2x64xf32> to vector<2x32xf32>
    %552 = arith.addf %550, %551 : vector<2x32xf32>
    %553 = arith.negf %552 : vector<2x32xf32>
    %554 = math.exp %553 : vector<2x32xf32>
    %cst_165 = arith.constant 1.000000e+00 : f32
    %555 = vector.broadcast %cst_165 : f32 to vector<2x32xf32>
    %556 = arith.addf %555, %554 : vector<2x32xf32>
    %557 = arith.divf %555, %556 : vector<2x32xf32>
    %558 = vector.extract_strided_slice %540 {offsets = [0, 64], sizes = [2, 32], strides = [1, 1]} : vector<2x96xf32> to vector<2x32xf32>
    %559 = arith.mulf %557, %494 : vector<2x32xf32>
    %cst_166 = arith.constant dense<0.000000e+00> : vector<2x32xf32>
    %560 = tpu.matmul %559, %9, %cst_166 {dimension_numbers = #tpu.dot_dimension_numbers<[1], [0], [0], [1], [0, 0, 1, 1], [], []>} : vector<2x32xf32>, vector<32x32xf32>, vector<2x32xf32> -> vector<2x32xf32>
    %561 = arith.addf %558, %560 : vector<2x32xf32>
    %562 = math.tanh %561 : vector<2x32xf32>
    %cst_167 = arith.constant 1.000000e+00 : f32
    %563 = vector.broadcast %cst_167 : f32 to vector<2x32xf32>
    %564 = arith.subf %563, %549 : vector<2x32xf32>
    %565 = arith.mulf %564, %494 : vector<2x32xf32>
    %566 = arith.mulf %549, %562 : vector<2x32xf32>
    %567 = arith.addf %565, %566 : vector<2x32xf32>
    %568 = vector.shape_cast %567 : vector<2x32xf32> to vector<2x1x32xf32>
    "tpu.trace_start"() <{level = 10 : i32, message = "bqd,bkd->bqk"}> : () -> ()
    %cst_168 = arith.constant dense<0.000000e+00> : vector<2x1x16xf32>
    %569 = tpu.matmul %568, %0, %cst_168 {dimension_numbers = #tpu.dot_dimension_numbers<[2], [2], [1], [1], [0, 0, 0, 1, 1, 1], [0], [0]>} : vector<2x1x32xf32>, vector<2x16x32xf32>, vector<2x1x16xf32> -> vector<2x1x16xf32>
    "tpu.trace_stop"() : () -> ()
    %570 = vector.shape_cast %569 : vector<2x1x16xf32> to vector<2x16xf32>
    %571 = arith.addf %570, %3 : vector<2x16xf32>
    %cst_169 = arith.constant dense<0xFF800000> : vector<2xf32>
    %572 = vector.multi_reduction <maximumf>, %571, %cst_169 [1] : vector<2x16xf32> to vector<2xf32>
    %573 = vector.shape_cast %572 : vector<2xf32> to vector<2x1xf32>
    %574 = vector.broadcast %573 : vector<2x1xf32> to vector<2x16xf32>
    %575 = arith.subf %571, %574 : vector<2x16xf32>
    %576 = math.exp %575 : vector<2x16xf32>
    %cst_170 = arith.constant dense<0.000000e+00> : vector<2xf32>
    %577 = vector.multi_reduction <add>, %576, %cst_170 [1] : vector<2x16xf32> to vector<2xf32>
    %578 = vector.shape_cast %577 : vector<2xf32> to vector<2x1xf32>
    %cst_171 = arith.constant 9.99999971E-10 : f32
    %579 = vector.broadcast %cst_171 : f32 to vector<2x1xf32>
    %580 = arith.addf %578, %579 : vector<2x1xf32>
    %581 = tpu.reciprocal %580 {approx = true} : vector<2x1xf32> -> vector<2x1xf32>
    %582 = vector.broadcast %581 : vector<2x1xf32> to vector<2x16xf32>
    %583 = arith.mulf %576, %582 : vector<2x16xf32>
    %584 = vector.shape_cast %583 : vector<2x16xf32> to vector<2x1x16xf32>
    "tpu.trace_start"() <{level = 10 : i32, message = "bqk,bkd->bqd"}> : () -> ()
    %cst_172 = arith.constant dense<0.000000e+00> : vector<2x1x32xf32>
    %585 = tpu.matmul %584, %0, %cst_172 {dimension_numbers = #tpu.dot_dimension_numbers<[2], [1], [1], [2], [0, 0, 0, 1, 1, 2], [0], [0]>} : vector<2x1x16xf32>, vector<2x16x32xf32>, vector<2x1x32xf32> -> vector<2x1x32xf32>
    "tpu.trace_stop"() : () -> ()
    %586 = vector.shape_cast %585 : vector<2x1x32xf32> to vector<2x32xf32>
    "tpu.trace_start"() <{level = 10 : i32, message = "bqd,bkd->bqk"}> : () -> ()
    %cst_173 = arith.constant dense<0.000000e+00> : vector<2x1x16xf32>
    %587 = tpu.matmul %568, %1, %cst_173 {dimension_numbers = #tpu.dot_dimension_numbers<[2], [2], [1], [1], [0, 0, 0, 1, 1, 1], [0], [0]>} : vector<2x1x32xf32>, vector<2x16x32xf32>, vector<2x1x16xf32> -> vector<2x1x16xf32>
    "tpu.trace_stop"() : () -> ()
    %588 = vector.shape_cast %587 : vector<2x1x16xf32> to vector<2x16xf32>
    %589 = arith.addf %588, %4 : vector<2x16xf32>
    %cst_174 = arith.constant dense<0xFF800000> : vector<2xf32>
    %590 = vector.multi_reduction <maximumf>, %589, %cst_174 [1] : vector<2x16xf32> to vector<2xf32>
    %591 = vector.shape_cast %590 : vector<2xf32> to vector<2x1xf32>
    %592 = vector.broadcast %591 : vector<2x1xf32> to vector<2x16xf32>
    %593 = arith.subf %589, %592 : vector<2x16xf32>
    %594 = math.exp %593 : vector<2x16xf32>
    %cst_175 = arith.constant dense<0.000000e+00> : vector<2xf32>
    %595 = vector.multi_reduction <add>, %594, %cst_175 [1] : vector<2x16xf32> to vector<2xf32>
    %596 = vector.shape_cast %595 : vector<2xf32> to vector<2x1xf32>
    %cst_176 = arith.constant 9.99999971E-10 : f32
    %597 = vector.broadcast %cst_176 : f32 to vector<2x1xf32>
    %598 = arith.addf %596, %597 : vector<2x1xf32>
    %599 = tpu.reciprocal %598 {approx = true} : vector<2x1xf32> -> vector<2x1xf32>
    %600 = vector.broadcast %599 : vector<2x1xf32> to vector<2x16xf32>
    %601 = arith.mulf %594, %600 : vector<2x16xf32>
    %602 = vector.shape_cast %601 : vector<2x16xf32> to vector<2x1x16xf32>
    "tpu.trace_start"() <{level = 10 : i32, message = "bqk,bkd->bqd"}> : () -> ()
    %cst_177 = arith.constant dense<0.000000e+00> : vector<2x1x32xf32>
    %603 = tpu.matmul %602, %2, %cst_177 {dimension_numbers = #tpu.dot_dimension_numbers<[2], [1], [1], [2], [0, 0, 0, 1, 1, 2], [0], [0]>} : vector<2x1x16xf32>, vector<2x16x32xf32>, vector<2x1x32xf32> -> vector<2x1x32xf32>
    "tpu.trace_stop"() : () -> ()
    %604 = vector.shape_cast %603 : vector<2x1x32xf32> to vector<2x32xf32>
    %605 = tpu.concatenate %567, %586, %604 in 1 : vector<2x32xf32>, vector<2x32xf32>, vector<2x32xf32> -> vector<2x96xf32>
    %cst_178 = arith.constant dense<0.000000e+00> : vector<2x16xf32>
    %606 = tpu.matmul %605, %11, %cst_178 {dimension_numbers = #tpu.dot_dimension_numbers<[1], [0], [0], [1], [0, 0, 1, 1], [], []>} : vector<2x96xf32>, vector<96x16xf32>, vector<2x16xf32> -> vector<2x16xf32>
    %607 = vector.broadcast %12 : vector<1x16xf32> to vector<2x16xf32>
    %608 = arith.addf %606, %607 : vector<2x16xf32>
    %c0_179 = arith.constant 0 : index
    %c112 = arith.constant 112 : index
    %609 = vector.load %arg15[%c0_179, %c112] : memref<2x128xf32, #tpu.memory_space<vmem>>, vector<2x16xf32>
    tpu.vector_store %arg15[%c0_179, %c112], %608 {strides = array<i32>} : memref<2x128xf32, #tpu.memory_space<vmem>>, vector<2x16xf32>,
    return
  }
}

</mosaic_0001>

<llo_original>
// kernel: tpu_custom_call.1
$region0: #{tpu_custom_call.1}
  #allocation0 [shape = 'u32[]', space=smem, size = 0x4, offset = 0x4, fixed_abs, tag = 'smem constant byte address 0x4 - core index']
  #allocation1 [shape = 'u32[144,128]{1,0:T(1,128)}', space=vmem, size = 0x12000, scoped, tag = 'internal scratch']
  %s0 = inlined_call_operand.vmem [shape: s32[16,1], index: 0, kind: input, shape index: {}]
  %s1 = inlined_call_operand.vmem [shape: f32[2,16,32], index: 1, kind: input, shape index: {}]
  %s2 = inlined_call_operand.vmem [shape: f32[2,16,32], index: 2, kind: input, shape index: {}]
  %s3 = inlined_call_operand.hbm [shape: f32[2,16,32], index: 3, kind: input, shape index: {}]
  %s4 = inlined_call_operand.hbm [shape: f32[2,16], index: 4, kind: input, shape index: {}]
  %s5 = inlined_call_operand.hbm [shape: f32[2,16], index: 5, kind: input, shape index: {}]
  %s6 = inlined_call_operand.hbm [shape: f32[2,32], index: 6, kind: input, shape index: {}]
  %s7 = inlined_call_operand.hbm [shape: f32[16,32], index: 7, kind: input, shape index: {}]
  %s8 = inlined_call_operand.hbm [shape: f32[32,96], index: 8, kind: input, shape index: {}]
  %s9 = inlined_call_operand.vmem [shape: f32[64,96], index: 9, kind: input, shape index: {}]
  %s10 = inlined_call_operand.hbm [shape: f32[32,64], index: 10, kind: input, shape index: {}]
  %s11 = inlined_call_operand.hbm [shape: f32[32,32], index: 11, kind: input, shape index: {}]
  %s12 = inlined_call_operand.vmem [shape: f32[1,96], index: 12, kind: input, shape index: {}]
  %s13 = inlined_call_operand.vmem [shape: f32[96,16], index: 13, kind: input, shape index: {}]
  %s14 = inlined_call_operand.vmem [shape: f32[1,16], index: 14, kind: input, shape index: {}]
  %s15 = inlined_call_operand.hbm [shape: f32[2,128], index: 15, kind: output, shape index: {}]
  %s16 = sld [smem:[#allocation0]]
  $region102: #{tpu_custom_call.1} parent=0
    _
  %s18 = ssub.s32 1, %s16
  %s19 = scalar_select 0, %s18, %s16
  $region1: #{tpu_custom_call.1} parent=0
    #allocation2 [shape = 'u8[16384]{0}', space=vmem, size = 0x4000, scoped, tag = 'input window, operand 3, single buffered']
    #allocation3 [shape = 's32[1]{0}', space=sflag, size = 0x4, scoped, tag = 'scoped memory for tpu_custom_call.1']
    #allocation4 [shape = 's32[1]{0}', space=sflag, size = 0x4, scoped, tag = 'scoped memory for tpu_custom_call.1']
    #allocation5 [shape = 'u8[1024]{0}', space=vmem, size = 0x400, scoped, tag = 'input window, operand 4, single buffered']
    #allocation6 [shape = 's32[1]{0}', space=sflag, size = 0x4, scoped, tag = 'scoped memory for tpu_custom_call.1']
    #allocation7 [shape = 'u8[1024]{0}', space=vmem, size = 0x400, scoped, tag = 'input window, operand 5, single buffered']
    #allocation8 [shape = 'u8[1024]{0}', space=vmem, size = 0x400, scoped, tag = 'input window, operand 6, single buffered']
    #allocation9 [shape = 's32[1]{0}', space=sflag, size = 0x4, scoped, tag = 'scoped memory for tpu_custom_call.1']
    #allocation10 [shape = 'u8[8192]{0}', space=vmem, size = 0x2000, scoped, tag = 'input window, operand 7, single buffered']
    #allocation11 [shape = 'u8[16384]{0}', space=vmem, size = 0x4000, scoped, tag = 'input window, operand 8, single buffered']
    #allocation12 [shape = 's32[1]{0}', space=sflag, size = 0x4, scoped, tag = 'scoped memory for tpu_custom_call.1']
    #allocation13 [shape = 'u8[16384]{0}', space=vmem, size = 0x4000, scoped, tag = 'input window, operand 10, single buffered']
    #allocation14 [shape = 'u8[16384]{0}', space=vmem, size = 0x4000, scoped, tag = 'input window, operand 11, single buffered']
    #allocation15 [shape = 's32[1]{0}', space=sflag, size = 0x4, scoped, tag = 'scoped memory for tpu_custom_call.1']
    #allocation16 [shape = 'u8[1024]{0}', space=vmem, size = 0x400, scoped, tag = 'output window, operand 0, single buffered']
    %20 = vsyncpa [#allocation3], 0
    %21 = vsyncpa [#allocation6], 0
    %22 = vsyncpa [#allocation9], 0
    %23 = vsyncpa [#allocation12], 0
    %24 = vsyncpa [#allocation15], 0
    %25 = vsyncpa [#allocation4], 0
    // Predicated region
    $region2: #{tpu_custom_call.1} parent=1 // pred_check
      _
    $region3: #{tpu_custom_call.1} parent=1 // pred_check_branch
      %27 = sbr.rel (0) target = $region5
    $region4: #{tpu_custom_call.1} parent=1 // pred_region
      _
    $region5: #{tpu_custom_call.1} parent=1 // pred_fallthru
      _
    // Predicated region
    $region6: #{tpu_custom_call.1} parent=1 // pred_check
      _
    $region7: #{tpu_custom_call.1} parent=1 // pred_check_branch
      %29 = sbr.rel (0) target = $region9
    $region8: #{tpu_custom_call.1} parent=1 // pred_region
      _
    $region9: #{tpu_custom_call.1} parent=1 // pred_fallthru
      _
    // Predicated region
    $region10: #{tpu_custom_call.1} parent=1 // pred_check
      _
    $region11: #{tpu_custom_call.1} parent=1 // pred_check_branch
      %31 = sbr.rel (0) target = $region13
    $region12: #{tpu_custom_call.1} parent=1 // pred_region
      _
    $region13: #{tpu_custom_call.1} parent=1 // pred_fallthru
      _
    // Predicated region
    $region14: #{tpu_custom_call.1} parent=1 // pred_check
      _
    $region15: #{tpu_custom_call.1} parent=1 // pred_check_branch
      %33 = sbr.rel (0) target = $region17
    $region16: #{tpu_custom_call.1} parent=1 // pred_region
      %s35 = ssub.s32 512, 512
      %36 = vsyncadd [#allocation3], %s35
      %s37 = sshll.u32 [#allocation2], 4
      %s38 = int_to_ptr.vmem [resolvable:$true] %s37
      %43 = dma.hbm_to_vmem [thread:$0]  %s3, 512, %s38, [#allocation3], 128, 128, 8
    $region17: #{tpu_custom_call.1} parent=1 // pred_fallthru
      _
    // Predicated region
    $region18: #{tpu_custom_call.1} parent=1 // pred_check
      _
    $region19: #{tpu_custom_call.1} parent=1 // pred_check_branch
      %45 = sbr.rel (0) target = $region21
    $region20: #{tpu_custom_call.1} parent=1 // pred_region
      %s47 = ssub.s32 32, 32
      %48 = vsyncadd [#allocation6], %s47
      %s50 = sshll.u32 [#allocation5], 4
      %s51 = int_to_ptr.vmem [resolvable:$true] %s50
      %53 = dma.hbm_to_vmem [thread:$0]  %s4, 32, %s51, [#allocation6]
    $region21: #{tpu_custom_call.1} parent=1 // pred_fallthru
      _
    // Predicated region
    $region22: #{tpu_custom_call.1} parent=1 // pred_check
      _
    $region23: #{tpu_custom_call.1} parent=1 // pred_check_branch
      %55 = sbr.rel (0) target = $region25
    $region24: #{tpu_custom_call.1} parent=1 // pred_region
      %s57 = ssub.s32 32, 32
      %58 = vsyncadd [#allocation6], %s57
      %s60 = sshll.u32 [#allocation7], 4
      %s61 = int_to_ptr.vmem [resolvable:$true] %s60
      %63 = dma.hbm_to_vmem [thread:$0]  %s5, 32, %s61, [#allocation6]
    $region25: #{tpu_custom_call.1} parent=1 // pred_fallthru
      _
    // Predicated region
    $region26: #{tpu_custom_call.1} parent=1 // pred_check
      _
    $region27: #{tpu_custom_call.1} parent=1 // pred_check_branch
      %65 = sbr.rel (0) target = $region29
    $region28: #{tpu_custom_call.1} parent=1 // pred_region
      %s67 = ssub.s32 32, 32
      %68 = vsyncadd [#allocation9], %s67
      %s70 = sshll.u32 [#allocation8], 4
      %s71 = int_to_ptr.vmem [resolvable:$true] %s70
      %73 = dma.hbm_to_vmem [thread:$0]  %s6, 32, %s71, [#allocation9]
    $region29: #{tpu_custom_call.1} parent=1 // pred_fallthru
      _
    // Predicated region
    $region30: #{tpu_custom_call.1} parent=1 // pred_check
      _
    $region31: #{tpu_custom_call.1} parent=1 // pred_check_branch
      %75 = sbr.rel (0) target = $region33
    $region32: #{tpu_custom_call.1} parent=1 // pred_region
      %s77 = ssub.s32 256, 256
      %78 = vsyncadd [#allocation9], %s77
      %s79 = sshll.u32 [#allocation10], 4
      %s80 = int_to_ptr.vmem [resolvable:$true] %s79
      %85 = dma.hbm_to_vmem [thread:$0]  %s7, 256, %s80, [#allocation9], 128, 128, 8
    $region33: #{tpu_custom_call.1} parent=1 // pred_fallthru
      _
    // Predicated region
    $region34: #{tpu_custom_call.1} parent=1 // pred_check
      _
    $region35: #{tpu_custom_call.1} parent=1 // pred_check_branch
      %87 = sbr.rel (0) target = $region37
    $region36: #{tpu_custom_call.1} parent=1 // pred_region
      %s89 = ssub.s32 512, 512
      %90 = vsyncadd [#allocation12], %s89
      %s91 = sshll.u32 [#allocation11], 4
      %s92 = int_to_ptr.vmem [resolvable:$true] %s91
      %97 = dma.hbm_to_vmem [thread:$0]  %s8, 512, %s92, [#allocation12], 128, 128, 8
    $region37: #{tpu_custom_call.1} parent=1 // pred_fallthru
      _
    // Predicated region
    $region38: #{tpu_custom_call.1} parent=1 // pred_check
      _
    $region39: #{tpu_custom_call.1} parent=1 // pred_check_branch
      %99 = sbr.rel (0) target = $region41
    $region40: #{tpu_custom_call.1} parent=1 // pred_region
      _
    $region41: #{tpu_custom_call.1} parent=1 // pred_fallthru
      _
    // Predicated region
    $region42: #{tpu_custom_call.1} parent=1 // pred_check
      _
    $region43: #{tpu_custom_call.1} parent=1 // pred_check_branch
      %101 = sbr.rel (0) target = $region45
    $region44: #{tpu_custom_call.1} parent=1 // pred_region
      %s103 = ssub.s32 512, 512
      %104 = vsyncadd [#allocation12], %s103
      %s105 = sshll.u32 [#allocation13], 4
      %s106 = int_to_ptr.vmem [resolvable:$true] %s105
      %111 = dma.hbm_to_vmem [thread:$0]  %s10, 512, %s106, [#allocation12], 128, 128, 8
    $region45: #{tpu_custom_call.1} parent=1 // pred_fallthru
      _
    // Predicated region
    $region46: #{tpu_custom_call.1} parent=1 // pred_check
      _
    $region47: #{tpu_custom_call.1} parent=1 // pred_check_branch
      %113 = sbr.rel (0) target = $region49
    $region48: #{tpu_custom_call.1} parent=1 // pred_region
      %s115 = ssub.s32 512, 512
      %116 = vsyncadd [#allocation15], %s115
      %s117 = sshll.u32 [#allocation14], 4
      %s118 = int_to_ptr.vmem [resolvable:$true] %s117
      %123 = dma.hbm_to_vmem [thread:$0]  %s11, 512, %s118, [#allocation15], 128, 128, 8
    $region49: #{tpu_custom_call.1} parent=1 // pred_fallthru
      _
    // Predicated region
    $region50: #{tpu_custom_call.1} parent=1 // pred_check
      _
    $region51: #{tpu_custom_call.1} parent=1 // pred_check_branch
      %125 = sbr.rel (0) target = $region53
    $region52: #{tpu_custom_call.1} parent=1 // pred_region
      _
    $region53: #{tpu_custom_call.1} parent=1 // pred_fallthru
      _
    // Predicated region
    $region54: #{tpu_custom_call.1} parent=1 // pred_check
      _
    $region55: #{tpu_custom_call.1} parent=1 // pred_check_branch
      %127 = sbr.rel (0) target = $region57
    $region56: #{tpu_custom_call.1} parent=1 // pred_region
      _
    $region57: #{tpu_custom_call.1} parent=1 // pred_fallthru
      _
    // Predicated region
    $region58: #{tpu_custom_call.1} parent=1 // pred_check
      _
    $region59: #{tpu_custom_call.1} parent=1 // pred_check_branch
      %129 = sbr.rel (0) target = $region61
    $region60: #{tpu_custom_call.1} parent=1 // pred_region
      _
    $region61: #{tpu_custom_call.1} parent=1 // pred_fallthru
      _
    // Predicated region
    $region62: #{tpu_custom_call.1} parent=1 // pred_check
      _
    $region63: #{tpu_custom_call.1} parent=1 // pred_check_branch
      %131 = sbr.rel (0) target = $region65
    $region64: #{tpu_custom_call.1} parent=1 // pred_region
      %132 = dma.done [#allocation3], 512
    $region65: #{tpu_custom_call.1} parent=1 // pred_fallthru
      _
    // Predicated region
    $region66: #{tpu_custom_call.1} parent=1 // pred_check
      _
    $region67: #{tpu_custom_call.1} parent=1 // pred_check_branch
      %134 = sbr.rel (0) target = $region69
    $region68: #{tpu_custom_call.1} parent=1 // pred_region
      %135 = dma.done [#allocation6], 32
    $region69: #{tpu_custom_call.1} parent=1 // pred_fallthru
      _
    // Predicated region
    $region70: #{tpu_custom_call.1} parent=1 // pred_check
      _
    $region71: #{tpu_custom_call.1} parent=1 // pred_check_branch
      %137 = sbr.rel (0) target = $region73
    $region72: #{tpu_custom_call.1} parent=1 // pred_region
      %138 = dma.done [#allocation6], 32
    $region73: #{tpu_custom_call.1} parent=1 // pred_fallthru
      _
    // Predicated region
    $region74: #{tpu_custom_call.1} parent=1 // pred_check
      _
    $region75: #{tpu_custom_call.1} parent=1 // pred_check_branch
      %140 = sbr.rel (0) target = $region77
    $region76: #{tpu_custom_call.1} parent=1 // pred_region
      %141 = dma.done [#allocation9], 32
    $region77: #{tpu_custom_call.1} parent=1 // pred_fallthru
      _
    // Predicated region
    $region78: #{tpu_custom_call.1} parent=1 // pred_check
      _
    $region79: #{tpu_custom_call.1} parent=1 // pred_check_branch
      %143 = sbr.rel (0) target = $region81
    $region80: #{tpu_custom_call.1} parent=1 // pred_region
      %144 = dma.done [#allocation9], 256
    $region81: #{tpu_custom_call.1} parent=1 // pred_fallthru
      _
    // Predicated region
    $region82: #{tpu_custom_call.1} parent=1 // pred_check
      _
    $region83: #{tpu_custom_call.1} parent=1 // pred_check_branch
      %146 = sbr.rel (0) target = $region85
    $region84: #{tpu_custom_call.1} parent=1 // pred_region
      %147 = dma.done [#allocation12], 512
    $region85: #{tpu_custom_call.1} parent=1 // pred_fallthru
      _
    // Predicated region
    $region86: #{tpu_custom_call.1} parent=1 // pred_check
      _
    $region87: #{tpu_custom_call.1} parent=1 // pred_check_branch
      %149 = sbr.rel (0) target = $region89
    $region88: #{tpu_custom_call.1} parent=1 // pred_region
      %150 = dma.done [#allocation12], 512
    $region89: #{tpu_custom_call.1} parent=1 // pred_fallthru
      _
    // Predicated region
    $region90: #{tpu_custom_call.1} parent=1 // pred_check
      _
    $region91: #{tpu_custom_call.1} parent=1 // pred_check_branch
      %152 = sbr.rel (0) target = $region93
    $region92: #{tpu_custom_call.1} parent=1 // pred_region
      %153 = dma.done [#allocation15], 512
    $region93: #{tpu_custom_call.1} parent=1 // pred_fallthru
      _
    %v154 = vld [vmem:[%s1] sm:$0xff]
    %v155 = vld [vmem:[%s1 + $0x8] sm:$0xff]
    %v156 = vld [vmem:[%s1 + $0x10] sm:$0xff]
    %v157 = vld [vmem:[%s1 + $0x18] sm:$0xff]
    %v158 = vld [vmem:[%s2] sm:$0xff]
    %v159 = vld [vmem:[%s2 + $0x8] sm:$0xff]
    %v160 = vld [vmem:[%s2 + $0x10] sm:$0xff]
    %v161 = vld [vmem:[%s2 + $0x18] sm:$0xff]
    %v162 = vld [vmem:[#allocation2] sm:$0xff]
    %v163 = vld [vmem:[#allocation2 + $0x8] sm:$0xff]
    %v164 = vld [vmem:[#allocation2 + $0x10] sm:$0xff]
    %v165 = vld [vmem:[#allocation2 + $0x18] sm:$0xff]
    %v166 = vld [vmem:[#allocation5] sm:$0x3]
    %v167 = vld [vmem:[#allocation7] sm:$0x3]
    %v168 = vld [vmem:[#allocation10] sm:$0xff]
    %v169 = vld [vmem:[#allocation10 + $0x8] sm:$0xff]
    %v170 = vld [vmem:[#allocation11] sm:$0xff]
    %v171 = vld [vmem:[#allocation11 + $0x8] sm:$0xff]
    %v172 = vld [vmem:[#allocation11 + $0x10] sm:$0xff]
    %v173 = vld [vmem:[#allocation11 + $0x18] sm:$0xff]
    %v174 = vld [vmem:[%s9] sm:$0xff]
    %v175 = vld [vmem:[%s9 + $0x8] sm:$0xff]
    %v176 = vld [vmem:[%s9 + $0x10] sm:$0xff]
    %v177 = vld [vmem:[%s9 + $0x18] sm:$0xff]
    %v178 = vld [vmem:[%s9 + $0x20] sm:$0xff]
    %v179 = vld [vmem:[%s9 + $0x28] sm:$0xff]
    %v180 = vld [vmem:[%s9 + $0x30] sm:$0xff]
    %v181 = vld [vmem:[%s9 + $0x38] sm:$0xff]
    %v182 = vld [vmem:[#allocation13] sm:$0xff]
    %v183 = vld [vmem:[#allocation13 + $0x8] sm:$0xff]
    %v184 = vld [vmem:[#allocation13 + $0x10] sm:$0xff]
    %v185 = vld [vmem:[#allocation13 + $0x18] sm:$0xff]
    %v186 = vld [vmem:[#allocation14] sm:$0xff]
    %v187 = vld [vmem:[#allocation14 + $0x8] sm:$0xff]
    %v188 = vld [vmem:[#allocation14 + $0x10] sm:$0xff]
    %v189 = vld [vmem:[#allocation14 + $0x18] sm:$0xff]
    %v190 = vld [vmem:[%s12] sm:$0x1]
    %v191 = vld [vmem:[%s13] sm:$0xff]
    %v192 = vld [vmem:[%s13 + $0x8] sm:$0xff]
    %v193 = vld [vmem:[%s13 + $0x10] sm:$0xff]
    %v194 = vld [vmem:[%s13 + $0x18] sm:$0xff]
    %v195 = vld [vmem:[%s13 + $0x20] sm:$0xff]
    %v196 = vld [vmem:[%s13 + $0x28] sm:$0xff]
    %v197 = vld [vmem:[%s13 + $0x30] sm:$0xff]
    %v198 = vld [vmem:[%s13 + $0x38] sm:$0xff]
    %v199 = vld [vmem:[%s13 + $0x40] sm:$0xff]
    %v200 = vld [vmem:[%s13 + $0x48] sm:$0xff]
    %v201 = vld [vmem:[%s13 + $0x50] sm:$0xff]
    %v202 = vld [vmem:[%s13 + $0x58] sm:$0xff]
    %v203 = vld [vmem:[%s14] sm:$0x1]
    %v204 = vld [vmem:[#allocation8] sm:$0x3]
    %v205 = vlaneseq
    %v206 = vand.u32 %v205, 127
    %v207 = vld [vmem:[%s0] sm:$0xff]
    %v208 = vld [vmem:[%s0 + $0x8] sm:$0xff]
    %209 = vset.pattern.permute.xlu0 0
    %210 = vperm.xlu0 %209, %v207
    %v211 = vpop.permute.xlu0 %210
    %212 = vset.pattern.permute.xlu0 0
    %213 = vperm.xlu0 %212, %v208
    %v214 = vpop.permute.xlu0 %213
    %vm215 = vcmp.eq.s32.totalorder %v211, %v206
    %vm216 = vcmp.eq.s32.totalorder %v214, %v206
    %v217 = vsel %vm215, 1, 0
    %v218 = vsel %vm216, 1, 0
    %v219 = vcvt.s32.f32 %v217
    %v220 = vcvt.s32.f32 %v218
    %vm221 = vcmask 130048
    %v223 = vsel %vm221, %v219, 0
    %v226 = vsel %vm221, %v220, 0
    %228 = vmatprep.subr.mxu0 0.0
    %229 = vmatpush1.msra.mxu0 0.0
    %230 = vmatprep.subr.mxu0 0.0
    %231 = vmatpush1.msra.mxu0 0.0
    %232 = vmatprep.subr.mxu0 0.0
    %233 = vmatpush1.msra.mxu0 0.0
    %234 = vmatprep.subr.mxu0 0.0
    %235 = vmatpush1.msra.mxu0 0.0
    %236 = vmatprep.subr.mxu0 0.0
    %237 = vmatpush1.msra.mxu0 0.0
    %238 = vmatprep.subr.mxu0 0.0
    %239 = vmatpush1.msra.mxu0 0.0
    %240 = vmatprep.subr.mxu0 0.0
    %241 = vmatpush1.msra.mxu0 0.0
    %242 = vmatprep.subr.mxu0 0.0
    %243 = vmatpush1.msra.mxu0 0.0
    %244 = vmatprep.subr.mxu0 0.0
    %245 = vmatpush1.msra.mxu0 0.0
    %246 = vmatprep.subr.mxu0 0.0
    %247 = vmatpush1.msra.mxu0 0.0
    %248 = vmatprep.subr.mxu0 0.0
    %249 = vmatpush1.msra.mxu0 0.0
    %250 = vmatprep.subr.mxu0 0.0
    %251 = vmatpush1.msra.mxu0 0.0
    %252 = vmatprep.subr.mxu0 0.0
    %253 = vmatpush1.msra.mxu0 0.0
    %254 = vmatprep.subr.mxu0 0.0
    %255 = vmatpush1.msra.mxu0 0.0
    %256 = vmatprep.subr.mxu0 0.0
    %257 = vmatpush1.msra.mxu0 %v169
    %258 = vmatprep.subr.mxu0 0.0
    %259 = vmatpush1.msra.mxu0 %v168
    %260 = vmatprep.subr.mxu0 0.0
    %261 = vmatpush2.msra.mxu0 0.0
    %262 = vmatprep.subr.mxu0 0.0
    %263 = vmatpush2.msra.mxu0 0.0
    %264 = vmatprep.subr.mxu0 0.0
    %265 = vmatpush2.msra.mxu0 0.0
    %266 = vmatprep.subr.mxu0 0.0
    %267 = vmatpush2.msra.mxu0 0.0
    %268 = vmatprep.subr.mxu0 0.0
    %269 = vmatpush2.msra.mxu0 0.0
    %270 = vmatprep.subr.mxu0 0.0
    %271 = vmatpush2.msra.mxu0 0.0
    %272 = vmatprep.subr.mxu0 0.0
    %273 = vmatpush2.msra.mxu0 0.0
    %274 = vmatprep.subr.mxu0 0.0
    %275 = vmatpush2.msra.mxu0 0.0
    %276 = vmatprep.subr.mxu0 0.0
    %277 = vmatpush2.msra.mxu0 0.0
    %278 = vmatprep.subr.mxu0 0.0
    %279 = vmatpush2.msra.mxu0 0.0
    %280 = vmatprep.subr.mxu0 0.0
    %281 = vmatpush2.msra.mxu0 0.0
    %282 = vmatprep.subr.mxu0 0.0
    %283 = vmatpush2.msra.mxu0 0.0
    %284 = vmatprep.subr.mxu0 0.0
    %285 = vmatpush2.msra.mxu0 0.0
    %286 = vmatprep.subr.mxu0 0.0
    %287 = vmatpush2.msra.mxu0 0.0
    %288 = vmatprep.subr.mxu0 0.0
    %289 = vmatpush2.msra.mxu0 0.0
    %290 = vmatprep.subr.mxu0 0.0
    %291 = vmatpush2.msra.mxu0 0.0
    %292 = vmatprep.mubr.f32.mxu0 0.0
    %293 = vmatmul.mubr.f32.gmra.mxu0 %v223
    %v294 = vpop.f32.mrf.mxu0
    %v295 = vadd.f32 0.0, %v294
    %v296 = vpop.f32.mrf.mxu0
    %297 = vmatprep.mubr.f32.mxu0 0.0
    %298 = vmatmul.mubr.f32.gmra.mxu0 %v226
    %v299 = vpop.f32.mrf.mxu0
    %v300 = vadd.f32 0.0, %v299
    %v301 = vpop.f32.mrf.mxu0
    %302 = vdwg.mxu0
    %v304 = vlaneseq
    %v305 = vshrl.u32 %v304, 7
    %v306 = vsub.s32 0, %v305
    %v307 = vrot.slane %v190, %v306
    %vm309 = vcmask 261120
    %v311 = vsel %vm309, %v295, 0
    %v314 = vsel %vm309, %v300, 0
    %316 = vmatprep.subr.mxu0 0.0
    %317 = vmatpush1.msra.mxu0 0.0
    %318 = vmatprep.subr.mxu0 0.0
    %319 = vmatpush1.msra.mxu0 0.0
    %320 = vmatprep.subr.mxu0 0.0
    %321 = vmatpush1.msra.mxu0 0.0
    %322 = vmatprep.subr.mxu0 0.0
    %323 = vmatpush1.msra.mxu0 0.0
    %324 = vmatprep.subr.mxu0 0.0
    %325 = vmatpush1.msra.mxu0 0.0
    %326 = vmatprep.subr.mxu0 0.0
    %327 = vmatpush1.msra.mxu0 0.0
    %328 = vmatprep.subr.mxu0 0.0
    %329 = vmatpush1.msra.mxu0 0.0
    %330 = vmatprep.subr.mxu0 0.0
    %331 = vmatpush1.msra.mxu0 0.0
    %332 = vmatprep.subr.mxu0 0.0
    %333 = vmatpush1.msra.mxu0 0.0
    %334 = vmatprep.subr.mxu0 0.0
    %335 = vmatpush1.msra.mxu0 0.0
    %336 = vmatprep.subr.mxu0 0.0
    %337 = vmatpush1.msra.mxu0 0.0
    %338 = vmatprep.subr.mxu0 0.0
    %339 = vmatpush1.msra.mxu0 0.0
    %340 = vmatprep.subr.mxu0 0.0
    %341 = vmatpush1.msra.mxu0 %v173
    %342 = vmatprep.subr.mxu0 0.0
    %343 = vmatpush1.msra.mxu0 %v172
    %344 = vmatprep.subr.mxu0 0.0
    %345 = vmatpush1.msra.mxu0 %v171
    %346 = vmatprep.subr.mxu0 0.0
    %347 = vmatpush1.msra.mxu0 %v170
    %348 = vmatprep.subr.mxu0 0.0
    %349 = vmatpush2.msra.mxu0 0.0
    %350 = vmatprep.subr.mxu0 0.0
    %351 = vmatpush2.msra.mxu0 0.0
    %352 = vmatprep.subr.mxu0 0.0
    %353 = vmatpush2.msra.mxu0 0.0
    %354 = vmatprep.subr.mxu0 0.0
    %355 = vmatpush2.msra.mxu0 0.0
    %356 = vmatprep.subr.mxu0 0.0
    %357 = vmatpush2.msra.mxu0 0.0
    %358 = vmatprep.subr.mxu0 0.0
    %359 = vmatpush2.msra.mxu0 0.0
    %360 = vmatprep.subr.mxu0 0.0
    %361 = vmatpush2.msra.mxu0 0.0
    %362 = vmatprep.subr.mxu0 0.0
    %363 = vmatpush2.msra.mxu0 0.0
    %364 = vmatprep.subr.mxu0 0.0
    %365 = vmatpush2.msra.mxu0 0.0
    %366 = vmatprep.subr.mxu0 0.0
    %367 = vmatpush2.msra.mxu0 0.0
    %368 = vmatprep.subr.mxu0 0.0
    %369 = vmatpush2.msra.mxu0 0.0
    %370 = vmatprep.subr.mxu0 0.0
    %371 = vmatpush2.msra.mxu0 0.0
    %372 = vmatprep.subr.mxu0 0.0
    %373 = vmatpush2.msra.mxu0 0.0
    %374 = vmatprep.subr.mxu0 0.0
    %375 = vmatpush2.msra.mxu0 0.0
    %376 = vmatprep.subr.mxu0 0.0
    %377 = vmatpush2.msra.mxu0 0.0
    %378 = vmatprep.subr.mxu0 0.0
    %379 = vmatpush2.msra.mxu0 0.0
    %380 = vmatprep.mubr.f32.mxu0 0.0
    %381 = vmatmul.mubr.f32.gmra.mxu0 %v311
    %v382 = vpop.f32.mrf.mxu0
    %v383 = vadd.f32 %v307, %v382
    %v384 = vpop.f32.mrf.mxu0
    %385 = vmatprep.mubr.f32.mxu0 0.0
    %386 = vmatmul.mubr.f32.gmra.mxu0 %v314
    %v387 = vpop.f32.mrf.mxu0
    %v388 = vadd.f32 %v307, %v387
    %v389 = vpop.f32.mrf.mxu0
    %390 = vdwg.mxu0
    %v391 = vsel %vm309, %v204, 0.0
    %vm392 = vcmask 523264
    %v394 = vsel %vm392, %v391, 0
    %396 = vmatprep.subr.mxu0 0.0
    %397 = vmatpush1.msra.mxu0 0.0
    %398 = vmatprep.subr.mxu0 0.0
    %399 = vmatpush1.msra.mxu0 0.0
    %400 = vmatprep.subr.mxu0 0.0
    %401 = vmatpush1.msra.mxu0 0.0
    %402 = vmatprep.subr.mxu0 0.0
    %403 = vmatpush1.msra.mxu0 0.0
    %404 = vmatprep.subr.mxu0 0.0
    %405 = vmatpush1.msra.mxu0 0.0
    %406 = vmatprep.subr.mxu0 0.0
    %407 = vmatpush1.msra.mxu0 0.0
    %408 = vmatprep.subr.mxu0 0.0
    %409 = vmatpush1.msra.mxu0 0.0
    %410 = vmatprep.subr.mxu0 0.0
    %411 = vmatpush1.msra.mxu0 0.0
    %412 = vmatprep.subr.mxu0 0.0
    %413 = vmatpush1.msra.mxu0 %v181
    %414 = vmatprep.subr.mxu0 0.0
    %415 = vmatpush1.msra.mxu0 %v180
    %416 = vmatprep.subr.mxu0 0.0
    %417 = vmatpush1.msra.mxu0 %v179
    %418 = vmatprep.subr.mxu0 0.0
    %419 = vmatpush1.msra.mxu0 %v178
    %420 = vmatprep.subr.mxu0 0.0
    %421 = vmatpush1.msra.mxu0 %v177
    %422 = vmatprep.subr.mxu0 0.0
    %423 = vmatpush1.msra.mxu0 %v176
    %424 = vmatprep.subr.mxu0 0.0
    %425 = vmatpush1.msra.mxu0 %v175
    %426 = vmatprep.subr.mxu0 0.0
    %427 = vmatpush1.msra.mxu0 %v174
    %428 = vmatprep.subr.mxu0 0.0
    %429 = vmatpush2.msra.mxu0 0.0
    %430 = vmatprep.subr.mxu0 0.0
    %431 = vmatpush2.msra.mxu0 0.0
    %432 = vmatprep.subr.mxu0 0.0
    %433 = vmatpush2.msra.mxu0 0.0
    %434 = vmatprep.subr.mxu0 0.0
    %435 = vmatpush2.msra.mxu0 0.0
    %436 = vmatprep.subr.mxu0 0.0
    %437 = vmatpush2.msra.mxu0 0.0
    %438 = vmatprep.subr.mxu0 0.0
    %439 = vmatpush2.msra.mxu0 0.0
    %440 = vmatprep.subr.mxu0 0.0
    %441 = vmatpush2.msra.mxu0 0.0
    %442 = vmatprep.subr.mxu0 0.0
    %443 = vmatpush2.msra.mxu0 0.0
    %444 = vmatprep.subr.mxu0 0.0
    %445 = vmatpush2.msra.mxu0 0.0
    %446 = vmatprep.subr.mxu0 0.0
    %447 = vmatpush2.msra.mxu0 0.0
    %448 = vmatprep.subr.mxu0 0.0
    %449 = vmatpush2.msra.mxu0 0.0
    %450 = vmatprep.subr.mxu0 0.0
    %451 = vmatpush2.msra.mxu0 0.0
    %452 = vmatprep.subr.mxu0 0.0
    %453 = vmatpush2.msra.mxu0 0.0
    %454 = vmatprep.subr.mxu0 0.0
    %455 = vmatpush2.msra.mxu0 0.0
    %456 = vmatprep.subr.mxu0 0.0
    %457 = vmatpush2.msra.mxu0 0.0
    %458 = vmatprep.subr.mxu0 0.0
    %459 = vmatpush2.msra.mxu0 0.0
    %460 = vmatprep.mubr.f32.mxu0 0.0
    %461 = vmatmul.mubr.f32.gmra.mxu0 %v394
    %v462 = vpop.f32.mrf.mxu0
    %v463 = vadd.f32 0.0, %v462
    %v464 = vpop.f32.mrf.mxu0
    %465 = vdwg.mxu0
    %v466 = vadd.f32 %v383, %v463
    %v468 = vsel %vm309, 0.0, 0
    %470 = vmatprep.subr.mxu0 0.0
    %471 = vmatpush1.msra.mxu0 0.0
    %472 = vmatprep.subr.mxu0 0.0
    %473 = vmatpush1.msra.mxu0 0.0
    %474 = vmatprep.subr.mxu0 0.0
    %475 = vmatpush1.msra.mxu0 0.0
    %476 = vmatprep.subr.mxu0 0.0
    %477 = vmatpush1.msra.mxu0 0.0
    %478 = vmatprep.subr.mxu0 0.0
    %479 = vmatpush1.msra.mxu0 0.0
    %480 = vmatprep.subr.mxu0 0.0
    %481 = vmatpush1.msra.mxu0 0.0
    %482 = vmatprep.subr.mxu0 0.0
    %483 = vmatpush1.msra.mxu0 0.0
    %484 = vmatprep.subr.mxu0 0.0
    %485 = vmatpush1.msra.mxu0 0.0
    %486 = vmatprep.subr.mxu0 0.0
    %487 = vmatpush1.msra.mxu0 0.0
    %488 = vmatprep.subr.mxu0 0.0
    %489 = vmatpush1.msra.mxu0 0.0
    %490 = vmatprep.subr.mxu0 0.0
    %491 = vmatpush1.msra.mxu0 0.0
    %492 = vmatprep.subr.mxu0 0.0
    %493 = vmatpush1.msra.mxu0 0.0
    %494 = vmatprep.subr.mxu0 0.0
    %495 = vmatpush1.msra.mxu0 %v185
    %496 = vmatprep.subr.mxu0 0.0
    %497 = vmatpush1.msra.mxu0 %v184
    %498 = vmatprep.subr.mxu0 0.0
    %499 = vmatpush1.msra.mxu0 %v183
    %500 = vmatprep.subr.mxu0 0.0
    %501 = vmatpush1.msra.mxu0 %v182
    %502 = vmatprep.subr.mxu0 0.0
    %503 = vmatpush2.msra.mxu0 0.0
    %504 = vmatprep.subr.mxu0 0.0
    %505 = vmatpush2.msra.mxu0 0.0
    %506 = vmatprep.subr.mxu0 0.0
    %507 = vmatpush2.msra.mxu0 0.0
    %508 = vmatprep.subr.mxu0 0.0
    %509 = vmatpush2.msra.mxu0 0.0
    %510 = vmatprep.subr.mxu0 0.0
    %511 = vmatpush2.msra.mxu0 0.0
    %512 = vmatprep.subr.mxu0 0.0
    %513 = vmatpush2.msra.mxu0 0.0
    %514 = vmatprep.subr.mxu0 0.0
    %515 = vmatpush2.msra.mxu0 0.0
    %516 = vmatprep.subr.mxu0 0.0
    %517 = vmatpush2.msra.mxu0 0.0
    %518 = vmatprep.subr.mxu0 0.0
    %519 = vmatpush2.msra.mxu0 0.0
    %520 = vmatprep.subr.mxu0 0.0
    %521 = vmatpush2.msra.mxu0 0.0
    %522 = vmatprep.subr.mxu0 0.0
    %523 = vmatpush2.msra.mxu0 0.0
    %524 = vmatprep.subr.mxu0 0.0
    %525 = vmatpush2.msra.mxu0 0.0
    %526 = vmatprep.subr.mxu0 0.0
    %527 = vmatpush2.msra.mxu0 0.0
    %528 = vmatprep.subr.mxu0 0.0
    %529 = vmatpush2.msra.mxu0 0.0
    %530 = vmatprep.subr.mxu0 0.0
    %531 = vmatpush2.msra.mxu0 0.0
    %532 = vmatprep.subr.mxu0 0.0
    %533 = vmatpush2.msra.mxu0 0.0
    %534 = vmatprep.mubr.f32.mxu0 0.0
    %535 = vmatmul.mubr.f32.gmra.mxu0 %v468
    %v536 = vpop.f32.mrf.mxu0
    %v537 = vadd.f32 0.0, %v536
    %v538 = vpop.f32.mrf.mxu0
    %539 = vdwg.mxu0
    %v540 = vadd.f32 %v466, %v537
    %v541 = vxor.u32 %v540, 2147483648
    %v542 = vmul.f32 %v541, 1.442695
    %v543 = vpow.pop %v542
    %v544 = vadd.f32 %v543, 1.0
    %v545 = vrcp.pop %v544
    %v546 = vmul.f32 1.0, %v545
    %v547 = vmul.f32 %v546, 0.0
    %549 = vrot.lane.b32.xlu0 %v547, 96
    %v550 = vpop.permute.xlu0 %549
    %v551 = vsel %vm309, %v550, 0
    %553 = vmatprep.subr.mxu0 0.0
    %554 = vmatpush1.msra.mxu0 0.0
    %555 = vmatprep.subr.mxu0 0.0
    %556 = vmatpush1.msra.mxu0 0.0
    %557 = vmatprep.subr.mxu0 0.0
    %558 = vmatpush1.msra.mxu0 0.0
    %559 = vmatprep.subr.mxu0 0.0
    %560 = vmatpush1.msra.mxu0 0.0
    %561 = vmatprep.subr.mxu0 0.0
    %562 = vmatpush1.msra.mxu0 0.0
    %563 = vmatprep.subr.mxu0 0.0
    %564 = vmatpush1.msra.mxu0 0.0
    %565 = vmatprep.subr.mxu0 0.0
    %566 = vmatpush1.msra.mxu0 0.0
    %567 = vmatprep.subr.mxu0 0.0
    %568 = vmatpush1.msra.mxu0 0.0
    %569 = vmatprep.subr.mxu0 0.0
    %570 = vmatpush1.msra.mxu0 0.0
    %571 = vmatprep.subr.mxu0 0.0
    %572 = vmatpush1.msra.mxu0 0.0
    %573 = vmatprep.subr.mxu0 0.0
    %574 = vmatpush1.msra.mxu0 0.0
    %575 = vmatprep.subr.mxu0 0.0
    %576 = vmatpush1.msra.mxu0 0.0
    %577 = vmatprep.subr.mxu0 0.0
    %578 = vmatpush1.msra.mxu0 %v189
    %579 = vmatprep.subr.mxu0 0.0
    %580 = vmatpush1.msra.mxu0 %v188
    %581 = vmatprep.subr.mxu0 0.0
    %582 = vmatpush1.msra.mxu0 %v187
    %583 = vmatprep.subr.mxu0 0.0
    %584 = vmatpush1.msra.mxu0 %v186
    %585 = vmatprep.subr.mxu0 0.0
    %586 = vmatpush2.msra.mxu0 0.0
    %587 = vmatprep.subr.mxu0 0.0
    %588 = vmatpush2.msra.mxu0 0.0
    %589 = vmatprep.subr.mxu0 0.0
    %590 = vmatpush2.msra.mxu0 0.0
    %591 = vmatprep.subr.mxu0 0.0
    %592 = vmatpush2.msra.mxu0 0.0
    %593 = vmatprep.subr.mxu0 0.0
    %594 = vmatpush2.msra.mxu0 0.0
    %595 = vmatprep.subr.mxu0 0.0
    %596 = vmatpush2.msra.mxu0 0.0
    %597 = vmatprep.subr.mxu0 0.0
    %598 = vmatpush2.msra.mxu0 0.0
    %599 = vmatprep.subr.mxu0 0.0
    %600 = vmatpush2.msra.mxu0 0.0
    %601 = vmatprep.subr.mxu0 0.0
    %602 = vmatpush2.msra.mxu0 0.0
    %603 = vmatprep.subr.mxu0 0.0
    %604 = vmatpush2.msra.mxu0 0.0
    %605 = vmatprep.subr.mxu0 0.0
    %606 = vmatpush2.msra.mxu0 0.0
    %607 = vmatprep.subr.mxu0 0.0
    %608 = vmatpush2.msra.mxu0 0.0
    %609 = vmatprep.subr.mxu0 0.0
    %610 = vmatpush2.msra.mxu0 0.0
    %611 = vmatprep.subr.mxu0 0.0
    %612 = vmatpush2.msra.mxu0 0.0
    %613 = vmatprep.subr.mxu0 0.0
    %614 = vmatpush2.msra.mxu0 0.0
    %615 = vmatprep.subr.mxu0 0.0
    %616 = vmatpush2.msra.mxu0 0.0
    %617 = vmatprep.mubr.f32.mxu0 0.0
    %618 = vmatmul.mubr.f32.gmra.mxu0 %v551
    %v619 = vpop.f32.mrf.mxu0
    %v620 = vadd.f32 0.0, %v619
    %v621 = vpop.f32.mrf.mxu0
    %622 = vdwg.mxu0
    %624 = vrot.lane.b32.xlu0 %v620, 64
    %v625 = vpop.permute.xlu0 %624
    %v627 = vadd.f32 %v466, %v625
    %v628 = vtanh.pop %v627
    %v629 = vsub.f32 1.0, %v546
    %v630 = vmul.f32 %v629, 0.0
    %632 = vrot.lane.b32.xlu0 %v628, 64
    %v633 = vpop.permute.xlu0 %632
    %v635 = vmul.f32 %v546, %v633
    %v636 = vadd.f32 %v630, %v635
    %v639 = vunpack.c.l.s4 1966171168
    %v640 = vunpack.c.0.s8 %v639
    %v641 = vlaneseq
    %v642 = vshrl.u32 %v641, 7
    %v643 = vsub.s32 %v640, %v642
    %v644 = vrot.slane %v636, %v643
    %v645 = vcombine.high %v644, %v644
    %v647 = vunpack.c.l.s4 1966171168
    %v648 = vunpack.c.0.s8 %v647
    %v649 = vlaneseq
    %v650 = vshrl.u32 %v649, 7
    %v651 = vsub.s32 %v648, %v650
    %v652 = vrot.slane %v644, %v651
    %v654 = vunpack.c.l.s4 1966171168
    %v655 = vunpack.c.0.s8 %v654
    %v656 = vlaneseq
    %v657 = vshrl.u32 %v656, 7
    %v658 = vsub.s32 %v655, %v657
    %v659 = vrot.slane %v645, %v658
    %v660 = vsel %vm309, %v652, 0
    %v663 = vsel %vm309, %v154, 0
    %v666 = vsel %vm309, %v155, 0
    %668 = vmatprep.subr.mxu0 0.0
    %669 = vmatpush1.xpose.msra.mxu0 0.0
    %670 = vmatprep.subr.mxu0 0.0
    %671 = vmatpush1.xpose.msra.mxu0 0.0
    %672 = vmatprep.subr.mxu0 0.0
    %673 = vmatpush1.xpose.msra.mxu0 0.0
    %674 = vmatprep.subr.mxu0 0.0
    %675 = vmatpush1.xpose.msra.mxu0 0.0
    %676 = vmatprep.subr.mxu0 0.0
    %677 = vmatpush1.xpose.msra.mxu0 0.0
    %678 = vmatprep.subr.mxu0 0.0
    %679 = vmatpush1.xpose.msra.mxu0 0.0
    %680 = vmatprep.subr.mxu0 0.0
    %681 = vmatpush1.xpose.msra.mxu0 0.0
    %682 = vmatprep.subr.mxu0 0.0
    %683 = vmatpush1.xpose.msra.mxu0 0.0
    %684 = vmatprep.subr.mxu0 0.0
    %685 = vmatpush1.xpose.msra.mxu0 0.0
    %686 = vmatprep.subr.mxu0 0.0
    %687 = vmatpush1.xpose.msra.mxu0 0.0
    %688 = vmatprep.subr.mxu0 0.0
    %689 = vmatpush1.xpose.msra.mxu0 0.0
    %690 = vmatprep.subr.mxu0 0.0
    %691 = vmatpush1.xpose.msra.mxu0 0.0
    %692 = vmatprep.subr.mxu0 0.0
    %693 = vmatpush1.xpose.msra.mxu0 0.0
    %694 = vmatprep.subr.mxu0 0.0
    %695 = vmatpush1.xpose.msra.mxu0 0.0
    %696 = vmatprep.subr.mxu0 0.0
    %697 = vmatpush1.xpose.msra.mxu0 %v666
    %698 = vmatprep.subr.mxu0 0.0
    %699 = vmatpush1.xpose.msra.mxu0 %v663
    %700 = vmatprep.subr.mxu0 0.0
    %701 = vmatpush2.xpose.msra.mxu0 0.0
    %702 = vmatprep.subr.mxu0 0.0
    %703 = vmatpush2.xpose.msra.mxu0 0.0
    %704 = vmatprep.subr.mxu0 0.0
    %705 = vmatpush2.xpose.msra.mxu0 0.0
    %706 = vmatprep.subr.mxu0 0.0
    %707 = vmatpush2.xpose.msra.mxu0 0.0
    %708 = vmatprep.subr.mxu0 0.0
    %709 = vmatpush2.xpose.msra.mxu0 0.0
    %710 = vmatprep.subr.mxu0 0.0
    %711 = vmatpush2.xpose.msra.mxu0 0.0
    %712 = vmatprep.subr.mxu0 0.0
    %713 = vmatpush2.xpose.msra.mxu0 0.0
    %714 = vmatprep.subr.mxu0 0.0
    %715 = vmatpush2.xpose.msra.mxu0 0.0
    %716 = vmatprep.subr.mxu0 0.0
    %717 = vmatpush2.xpose.msra.mxu0 0.0
    %718 = vmatprep.subr.mxu0 0.0
    %719 = vmatpush2.xpose.msra.mxu0 0.0
    %720 = vmatprep.subr.mxu0 0.0
    %721 = vmatpush2.xpose.msra.mxu0 0.0
    %722 = vmatprep.subr.mxu0 0.0
    %723 = vmatpush2.xpose.msra.mxu0 0.0
    %724 = vmatprep.subr.mxu0 0.0
    %725 = vmatpush2.xpose.msra.mxu0 0.0
    %726 = vmatprep.subr.mxu0 0.0
    %727 = vmatpush2.xpose.msra.mxu0 0.0
    %728 = vmatprep.subr.mxu0 0.0
    %729 = vmatpush2.xpose.msra.mxu0 0.0
    %730 = vmatprep.subr.mxu0 0.0
    %731 = vmatpush2.xpose.msra.mxu0 0.0
    %732 = vmatprep.mubr.f32.mxu0 0.0
    %733 = vmatmul.mubr.f32.gmra.mxu0 %v660
    %v734 = vpop.f32.mrf.mxu0
    %v735 = vadd.f32 0.0, %v734
    %v736 = vpop.f32.mrf.mxu0
    %737 = vdwg.mxu0
    %v738 = vsel %vm309, %v659, 0
    %v741 = vsel %vm309, %v156, 0
    %v744 = vsel %vm309, %v157, 0
    %746 = vmatprep.subr.mxu0 0.0
    %747 = vmatpush1.xpose.msra.mxu0 0.0
    %748 = vmatprep.subr.mxu0 0.0
    %749 = vmatpush1.xpose.msra.mxu0 0.0
    %750 = vmatprep.subr.mxu0 0.0
    %751 = vmatpush1.xpose.msra.mxu0 0.0
    %752 = vmatprep.subr.mxu0 0.0
    %753 = vmatpush1.xpose.msra.mxu0 0.0
    %754 = vmatprep.subr.mxu0 0.0
    %755 = vmatpush1.xpose.msra.mxu0 0.0
    %756 = vmatprep.subr.mxu0 0.0
    %757 = vmatpush1.xpose.msra.mxu0 0.0
    %758 = vmatprep.subr.mxu0 0.0
    %759 = vmatpush1.xpose.msra.mxu0 0.0
    %760 = vmatprep.subr.mxu0 0.0
    %761 = vmatpush1.xpose.msra.mxu0 0.0
    %762 = vmatprep.subr.mxu0 0.0
    %763 = vmatpush1.xpose.msra.mxu0 0.0
    %764 = vmatprep.subr.mxu0 0.0
    %765 = vmatpush1.xpose.msra.mxu0 0.0
    %766 = vmatprep.subr.mxu0 0.0
    %767 = vmatpush1.xpose.msra.mxu0 0.0
    %768 = vmatprep.subr.mxu0 0.0
    %769 = vmatpush1.xpose.msra.mxu0 0.0
    %770 = vmatprep.subr.mxu0 0.0
    %771 = vmatpush1.xpose.msra.mxu0 0.0
    %772 = vmatprep.subr.mxu0 0.0
    %773 = vmatpush1.xpose.msra.mxu0 0.0
    %774 = vmatprep.subr.mxu0 0.0
    %775 = vmatpush1.xpose.msra.mxu0 %v744
    %776 = vmatprep.subr.mxu0 0.0
    %777 = vmatpush1.xpose.msra.mxu0 %v741
    %778 = vmatprep.subr.mxu0 0.0
    %779 = vmatpush2.xpose.msra.mxu0 0.0
    %780 = vmatprep.subr.mxu0 0.0
    %781 = vmatpush2.xpose.msra.mxu0 0.0
    %782 = vmatprep.subr.mxu0 0.0
    %783 = vmatpush2.xpose.msra.mxu0 0.0
    %784 = vmatprep.subr.mxu0 0.0
    %785 = vmatpush2.xpose.msra.mxu0 0.0
    %786 = vmatprep.subr.mxu0 0.0
    %787 = vmatpush2.xpose.msra.mxu0 0.0
    %788 = vmatprep.subr.mxu0 0.0
    %789 = vmatpush2.xpose.msra.mxu0 0.0
    %790 = vmatprep.subr.mxu0 0.0
    %791 = vmatpush2.xpose.msra.mxu0 0.0
    %792 = vmatprep.subr.mxu0 0.0
    %793 = vmatpush2.xpose.msra.mxu0 0.0
    %794 = vmatprep.subr.mxu0 0.0
    %795 = vmatpush2.xpose.msra.mxu0 0.0
    %796 = vmatprep.subr.mxu0 0.0
    %797 = vmatpush2.xpose.msra.mxu0 0.0
    %798 = vmatprep.subr.mxu0 0.0
    %799 = vmatpush2.xpose.msra.mxu0 0.0
    %800 = vmatprep.subr.mxu0 0.0
    %801 = vmatpush2.xpose.msra.mxu0 0.0
    %802 = vmatprep.subr.mxu0 0.0
    %803 = vmatpush2.xpose.msra.mxu0 0.0
    %804 = vmatprep.subr.mxu0 0.0
    %805 = vmatpush2.xpose.msra.mxu0 0.0
    %806 = vmatprep.subr.mxu0 0.0
    %807 = vmatpush2.xpose.msra.mxu0 0.0
    %808 = vmatprep.subr.mxu0 0.0
    %809 = vmatpush2.xpose.msra.mxu0 0.0
    %810 = vmatprep.mubr.f32.mxu0 0.0
    %811 = vmatmul.mubr.f32.gmra.mxu0 %v738
    %v812 = vpop.f32.mrf.mxu0
    %v813 = vadd.f32 0.0, %v812
    %v814 = vpop.f32.mrf.mxu0
    %815 = vdwg.mxu0
    %v817 = vrot.slane %v166, 1
    %v820 = vadd.f32 %v735, %v166
    %v821 = vadd.f32 %v813, %v817
    %v824 = vrot.slane %v821, 7
    %vm825 = vcmask 1041409
    %v826 = vsel %vm825, %v824, %v820
    %vm828 = vcmask 123904
    %v829 = vsel %vm828, %v826, -inf
    %830 = vmax.xlane.f32.xlu0 %v829
    %v831 = vpop.xlane.xlu0 %830
    %v833 = vrot.slane %v831, 1
    %v836 = vsub.f32 %v820, %v831
    %v837 = vsub.f32 %v821, %v833
    %v838 = vmul.f32 %v836, 1.442695
    %v839 = vpow.pop %v838
    %v840 = vmul.f32 %v837, 1.442695
    %v841 = vpow.pop %v840
    %v844 = vrot.slane %v841, 7
    %v845 = vsel %vm825, %v844, %v839
    %v847 = vsel %vm828, %v845, 0.0
    %848 = vadd.xlane.f32.xlu0 %v847
    %v849 = vpop.xlane.xlu0 %848
    %v850 = vadd.f32 %v849, 1e-09
    %v851 = vrcp.pop %v850
    %v853 = vrot.slane %v851, 1
    %v856 = vmul.f32 %v839, %v851
    %v857 = vmul.f32 %v841, %v853
    %v859 = vsel %vm221, %v856, 0
    %861 = vmatprep.subr.mxu0 0.0
    %862 = vmatpush1.msra.mxu0 0.0
    %863 = vmatprep.subr.mxu0 0.0
    %864 = vmatpush1.msra.mxu0 0.0
    %865 = vmatprep.subr.mxu0 0.0
    %866 = vmatpush1.msra.mxu0 0.0
    %867 = vmatprep.subr.mxu0 0.0
    %868 = vmatpush1.msra.mxu0 0.0
    %869 = vmatprep.subr.mxu0 0.0
    %870 = vmatpush1.msra.mxu0 0.0
    %871 = vmatprep.subr.mxu0 0.0
    %872 = vmatpush1.msra.mxu0 0.0
    %873 = vmatprep.subr.mxu0 0.0
    %874 = vmatpush1.msra.mxu0 0.0
    %875 = vmatprep.subr.mxu0 0.0
    %876 = vmatpush1.msra.mxu0 0.0
    %877 = vmatprep.subr.mxu0 0.0
    %878 = vmatpush1.msra.mxu0 0.0
    %879 = vmatprep.subr.mxu0 0.0
    %880 = vmatpush1.msra.mxu0 0.0
    %881 = vmatprep.subr.mxu0 0.0
    %882 = vmatpush1.msra.mxu0 0.0
    %883 = vmatprep.subr.mxu0 0.0
    %884 = vmatpush1.msra.mxu0 0.0
    %885 = vmatprep.subr.mxu0 0.0
    %886 = vmatpush1.msra.mxu0 0.0
    %887 = vmatprep.subr.mxu0 0.0
    %888 = vmatpush1.msra.mxu0 0.0
    %889 = vmatprep.subr.mxu0 0.0
    %890 = vmatpush1.msra.mxu0 %v155
    %891 = vmatprep.subr.mxu0 0.0
    %892 = vmatpush1.msra.mxu0 %v154
    %893 = vmatprep.subr.mxu0 0.0
    %894 = vmatpush2.msra.mxu0 0.0
    %895 = vmatprep.subr.mxu0 0.0
    %896 = vmatpush2.msra.mxu0 0.0
    %897 = vmatprep.subr.mxu0 0.0
    %898 = vmatpush2.msra.mxu0 0.0
    %899 = vmatprep.subr.mxu0 0.0
    %900 = vmatpush2.msra.mxu0 0.0
    %901 = vmatprep.subr.mxu0 0.0
    %902 = vmatpush2.msra.mxu0 0.0
    %903 = vmatprep.subr.mxu0 0.0
    %904 = vmatpush2.msra.mxu0 0.0
    %905 = vmatprep.subr.mxu0 0.0
    %906 = vmatpush2.msra.mxu0 0.0
    %907 = vmatprep.subr.mxu0 0.0
    %908 = vmatpush2.msra.mxu0 0.0
    %909 = vmatprep.subr.mxu0 0.0
    %910 = vmatpush2.msra.mxu0 0.0
    %911 = vmatprep.subr.mxu0 0.0
    %912 = vmatpush2.msra.mxu0 0.0
    %913 = vmatprep.subr.mxu0 0.0
    %914 = vmatpush2.msra.mxu0 0.0
    %915 = vmatprep.subr.mxu0 0.0
    %916 = vmatpush2.msra.mxu0 0.0
    %917 = vmatprep.subr.mxu0 0.0
    %918 = vmatpush2.msra.mxu0 0.0
    %919 = vmatprep.subr.mxu0 0.0
    %920 = vmatpush2.msra.mxu0 0.0
    %921 = vmatprep.subr.mxu0 0.0
    %922 = vmatpush2.msra.mxu0 0.0
    %923 = vmatprep.subr.mxu0 0.0
    %924 = vmatpush2.msra.mxu0 0.0
    %925 = vmatprep.mubr.f32.mxu0 0.0
    %926 = vmatmul.mubr.f32.gmra.mxu0 %v859
    %v927 = vpop.f32.mrf.mxu0
    %v928 = vadd.f32 0.0, %v927
    %v929 = vpop.f32.mrf.mxu0
    %930 = vdwg.mxu0
    %v932 = vsel %vm221, %v857, 0
    %934 = vmatprep.subr.mxu0 0.0
    %935 = vmatpush1.msra.mxu0 0.0
    %936 = vmatprep.subr.mxu0 0.0
    %937 = vmatpush1.msra.mxu0 0.0
    %938 = vmatprep.subr.mxu0 0.0
    %939 = vmatpush1.msra.mxu0 0.0
    %940 = vmatprep.subr.mxu0 0.0
    %941 = vmatpush1.msra.mxu0 0.0
    %942 = vmatprep.subr.mxu0 0.0
    %943 = vmatpush1.msra.mxu0 0.0
    %944 = vmatprep.subr.mxu0 0.0
    %945 = vmatpush1.msra.mxu0 0.0
    %946 = vmatprep.subr.mxu0 0.0
    %947 = vmatpush1.msra.mxu0 0.0
    %948 = vmatprep.subr.mxu0 0.0
    %949 = vmatpush1.msra.mxu0 0.0
    %950 = vmatprep.subr.mxu0 0.0
    %951 = vmatpush1.msra.mxu0 0.0
    %952 = vmatprep.subr.mxu0 0.0
    %953 = vmatpush1.msra.mxu0 0.0
    %954 = vmatprep.subr.mxu0 0.0
    %955 = vmatpush1.msra.mxu0 0.0
    %956 = vmatprep.subr.mxu0 0.0
    %957 = vmatpush1.msra.mxu0 0.0
    %958 = vmatprep.subr.mxu0 0.0
    %959 = vmatpush1.msra.mxu0 0.0
    %960 = vmatprep.subr.mxu0 0.0
    %961 = vmatpush1.msra.mxu0 0.0
    %962 = vmatprep.subr.mxu0 0.0
    %963 = vmatpush1.msra.mxu0 %v157
    %964 = vmatprep.subr.mxu0 0.0
    %965 = vmatpush1.msra.mxu0 %v156
    %966 = vmatprep.subr.mxu0 0.0
    %967 = vmatpush2.msra.mxu0 0.0
    %968 = vmatprep.subr.mxu0 0.0
    %969 = vmatpush2.msra.mxu0 0.0
    %970 = vmatprep.subr.mxu0 0.0
    %971 = vmatpush2.msra.mxu0 0.0
    %972 = vmatprep.subr.mxu0 0.0
    %973 = vmatpush2.msra.mxu0 0.0
    %974 = vmatprep.subr.mxu0 0.0
    %975 = vmatpush2.msra.mxu0 0.0
    %976 = vmatprep.subr.mxu0 0.0
    %977 = vmatpush2.msra.mxu0 0.0
    %978 = vmatprep.subr.mxu0 0.0
    %979 = vmatpush2.msra.mxu0 0.0
    %980 = vmatprep.subr.mxu0 0.0
    %981 = vmatpush2.msra.mxu0 0.0
    %982 = vmatprep.subr.mxu0 0.0
    %983 = vmatpush2.msra.mxu0 0.0
    %984 = vmatprep.subr.mxu0 0.0
    %985 = vmatpush2.msra.mxu0 0.0
    %986 = vmatprep.subr.mxu0 0.0
    %987 = vmatpush2.msra.mxu0 0.0
    %988 = vmatprep.subr.mxu0 0.0
    %989 = vmatpush2.msra.mxu0 0.0
    %990 = vmatprep.subr.mxu0 0.0
    %991 = vmatpush2.msra.mxu0 0.0
    %992 = vmatprep.subr.mxu0 0.0
    %993 = vmatpush2.msra.mxu0 0.0
    %994 = vmatprep.subr.mxu0 0.0
    %995 = vmatpush2.msra.mxu0 0.0
    %996 = vmatprep.subr.mxu0 0.0
    %997 = vmatpush2.msra.mxu0 0.0
    %998 = vmatprep.mubr.f32.mxu0 0.0
    %999 = vmatmul.mubr.f32.gmra.mxu0 %v932
    %v1000 = vpop.f32.mrf.mxu0
    %v1001 = vadd.f32 0.0, %v1000
    %v1002 = vpop.f32.mrf.mxu0
    %1003 = vdwg.mxu0
    %v1005 = vsel %vm309, %v158, 0
    %v1008 = vsel %vm309, %v159, 0
    %1010 = vmatprep.subr.mxu0 0.0
    %1011 = vmatpush1.xpose.msra.mxu0 0.0
    %1012 = vmatprep.subr.mxu0 0.0
    %1013 = vmatpush1.xpose.msra.mxu0 0.0
    %1014 = vmatprep.subr.mxu0 0.0
    %1015 = vmatpush1.xpose.msra.mxu0 0.0
    %1016 = vmatprep.subr.mxu0 0.0
    %1017 = vmatpush1.xpose.msra.mxu0 0.0
    %1018 = vmatprep.subr.mxu0 0.0
    %1019 = vmatpush1.xpose.msra.mxu0 0.0
    %1020 = vmatprep.subr.mxu0 0.0
    %1021 = vmatpush1.xpose.msra.mxu0 0.0
    %1022 = vmatprep.subr.mxu0 0.0
    %1023 = vmatpush1.xpose.msra.mxu0 0.0
    %1024 = vmatprep.subr.mxu0 0.0
    %1025 = vmatpush1.xpose.msra.mxu0 0.0
    %1026 = vmatprep.subr.mxu0 0.0
    %1027 = vmatpush1.xpose.msra.mxu0 0.0
    %1028 = vmatprep.subr.mxu0 0.0
    %1029 = vmatpush1.xpose.msra.mxu0 0.0
    %1030 = vmatprep.subr.mxu0 0.0
    %1031 = vmatpush1.xpose.msra.mxu0 0.0
    %1032 = vmatprep.subr.mxu0 0.0
    %1033 = vmatpush1.xpose.msra.mxu0 0.0
    %1034 = vmatprep.subr.mxu0 0.0
    %1035 = vmatpush1.xpose.msra.mxu0 0.0
    %1036 = vmatprep.subr.mxu0 0.0
    %1037 = vmatpush1.xpose.msra.mxu0 0.0
    %1038 = vmatprep.subr.mxu0 0.0
    %1039 = vmatpush1.xpose.msra.mxu0 %v1008
    %1040 = vmatprep.subr.mxu0 0.0
    %1041 = vmatpush1.xpose.msra.mxu0 %v1005
    %1042 = vmatprep.subr.mxu0 0.0
    %1043 = vmatpush2.xpose.msra.mxu0 0.0
    %1044 = vmatprep.subr.mxu0 0.0
    %1045 = vmatpush2.xpose.msra.mxu0 0.0
    %1046 = vmatprep.subr.mxu0 0.0
    %1047 = vmatpush2.xpose.msra.mxu0 0.0
    %1048 = vmatprep.subr.mxu0 0.0
    %1049 = vmatpush2.xpose.msra.mxu0 0.0
    %1050 = vmatprep.subr.mxu0 0.0
    %1051 = vmatpush2.xpose.msra.mxu0 0.0
    %1052 = vmatprep.subr.mxu0 0.0
    %1053 = vmatpush2.xpose.msra.mxu0 0.0
    %1054 = vmatprep.subr.mxu0 0.0
    %1055 = vmatpush2.xpose.msra.mxu0 0.0
    %1056 = vmatprep.subr.mxu0 0.0
    %1057 = vmatpush2.xpose.msra.mxu0 0.0
    %1058 = vmatprep.subr.mxu0 0.0
    %1059 = vmatpush2.xpose.msra.mxu0 0.0
    %1060 = vmatprep.subr.mxu0 0.0
    %1061 = vmatpush2.xpose.msra.mxu0 0.0
    %1062 = vmatprep.subr.mxu0 0.0
    %1063 = vmatpush2.xpose.msra.mxu0 0.0
    %1064 = vmatprep.subr.mxu0 0.0
    %1065 = vmatpush2.xpose.msra.mxu0 0.0
    %1066 = vmatprep.subr.mxu0 0.0
    %1067 = vmatpush2.xpose.msra.mxu0 0.0
    %1068 = vmatprep.subr.mxu0 0.0
    %1069 = vmatpush2.xpose.msra.mxu0 0.0
    %1070 = vmatprep.subr.mxu0 0.0
    %1071 = vmatpush2.xpose.msra.mxu0 0.0
    %1072 = vmatprep.subr.mxu0 0.0
    %1073 = vmatpush2.xpose.msra.mxu0 0.0
    %1074 = vmatprep.mubr.f32.mxu0 0.0
    %1075 = vmatmul.mubr.f32.gmra.mxu0 %v660
    %v1076 = vpop.f32.mrf.mxu0
    %v1077 = vadd.f32 0.0, %v1076
    %v1078 = vpop.f32.mrf.mxu0
    %1079 = vdwg.mxu0
    %v1081 = vsel %vm309, %v160, 0
    %v1084 = vsel %vm309, %v161, 0
    %1086 = vmatprep.subr.mxu0 0.0
    %1087 = vmatpush1.xpose.msra.mxu0 0.0
    %1088 = vmatprep.subr.mxu0 0.0
    %1089 = vmatpush1.xpose.msra.mxu0 0.0
    %1090 = vmatprep.subr.mxu0 0.0
    %1091 = vmatpush1.xpose.msra.mxu0 0.0
    %1092 = vmatprep.subr.mxu0 0.0
    %1093 = vmatpush1.xpose.msra.mxu0 0.0
    %1094 = vmatprep.subr.mxu0 0.0
    %1095 = vmatpush1.xpose.msra.mxu0 0.0
    %1096 = vmatprep.subr.mxu0 0.0
    %1097 = vmatpush1.xpose.msra.mxu0 0.0
    %1098 = vmatprep.subr.mxu0 0.0
    %1099 = vmatpush1.xpose.msra.mxu0 0.0
    %1100 = vmatprep.subr.mxu0 0.0
    %1101 = vmatpush1.xpose.msra.mxu0 0.0
    %1102 = vmatprep.subr.mxu0 0.0
    %1103 = vmatpush1.xpose.msra.mxu0 0.0
    %1104 = vmatprep.subr.mxu0 0.0
    %1105 = vmatpush1.xpose.msra.mxu0 0.0
    %1106 = vmatprep.subr.mxu0 0.0
    %1107 = vmatpush1.xpose.msra.mxu0 0.0
    %1108 = vmatprep.subr.mxu0 0.0
    %1109 = vmatpush1.xpose.msra.mxu0 0.0
    %1110 = vmatprep.subr.mxu0 0.0
    %1111 = vmatpush1.xpose.msra.mxu0 0.0
    %1112 = vmatprep.subr.mxu0 0.0
    %1113 = vmatpush1.xpose.msra.mxu0 0.0
    %1114 = vmatprep.subr.mxu0 0.0
    %1115 = vmatpush1.xpose.msra.mxu0 %v1084
    %1116 = vmatprep.subr.mxu0 0.0
    %1117 = vmatpush1.xpose.msra.mxu0 %v1081
    %1118 = vmatprep.subr.mxu0 0.0
    %1119 = vmatpush2.xpose.msra.mxu0 0.0
    %1120 = vmatprep.subr.mxu0 0.0
    %1121 = vmatpush2.xpose.msra.mxu0 0.0
    %1122 = vmatprep.subr.mxu0 0.0
    %1123 = vmatpush2.xpose.msra.mxu0 0.0
    %1124 = vmatprep.subr.mxu0 0.0
    %1125 = vmatpush2.xpose.msra.mxu0 0.0
    %1126 = vmatprep.subr.mxu0 0.0
    %1127 = vmatpush2.xpose.msra.mxu0 0.0
    %1128 = vmatprep.subr.mxu0 0.0
    %1129 = vmatpush2.xpose.msra.mxu0 0.0
    %1130 = vmatprep.subr.mxu0 0.0
    %1131 = vmatpush2.xpose.msra.mxu0 0.0
    %1132 = vmatprep.subr.mxu0 0.0
    %1133 = vmatpush2.xpose.msra.mxu0 0.0
    %1134 = vmatprep.subr.mxu0 0.0
    %1135 = vmatpush2.xpose.msra.mxu0 0.0
    %1136 = vmatprep.subr.mxu0 0.0
    %1137 = vmatpush2.xpose.msra.mxu0 0.0
    %1138 = vmatprep.subr.mxu0 0.0
    %1139 = vmatpush2.xpose.msra.mxu0 0.0
    %1140 = vmatprep.subr.mxu0 0.0
    %1141 = vmatpush2.xpose.msra.mxu0 0.0
    %1142 = vmatprep.subr.mxu0 0.0
    %1143 = vmatpush2.xpose.msra.mxu0 0.0
    %1144 = vmatprep.subr.mxu0 0.0
    %1145 = vmatpush2.xpose.msra.mxu0 0.0
    %1146 = vmatprep.subr.mxu0 0.0
    %1147 = vmatpush2.xpose.msra.mxu0 0.0
    %1148 = vmatprep.subr.mxu0 0.0
    %1149 = vmatpush2.xpose.msra.mxu0 0.0
    %1150 = vmatprep.mubr.f32.mxu0 0.0
    %1151 = vmatmul.mubr.f32.gmra.mxu0 %v738
    %v1152 = vpop.f32.mrf.mxu0
    %v1153 = vadd.f32 0.0, %v1152
    %v1154 = vpop.f32.mrf.mxu0
    %1155 = vdwg.mxu0
    %v1157 = vrot.slane %v167, 1
    %v1160 = vadd.f32 %v1077, %v167
    %v1161 = vadd.f32 %v1153, %v1157
    %v1164 = vrot.slane %v1161, 7
    %v1165 = vsel %vm825, %v1164, %v1160
    %v1167 = vsel %vm828, %v1165, -inf
    %1168 = vmax.xlane.f32.xlu0 %v1167
    %v1169 = vpop.xlane.xlu0 %1168
    %v1171 = vrot.slane %v1169, 1
    %v1174 = vsub.f32 %v1160, %v1169
    %v1175 = vsub.f32 %v1161, %v1171
    %v1176 = vmul.f32 %v1174, 1.442695
    %v1177 = vpow.pop %v1176
    %v1178 = vmul.f32 %v1175, 1.442695
    %v1179 = vpow.pop %v1178
    %v1182 = vrot.slane %v1179, 7
    %v1183 = vsel %vm825, %v1182, %v1177
    %v1185 = vsel %vm828, %v1183, 0.0
    %1186 = vadd.xlane.f32.xlu0 %v1185
    %v1187 = vpop.xlane.xlu0 %1186
    %v1188 = vadd.f32 %v1187, 1e-09
    %v1189 = vrcp.pop %v1188
    %v1191 = vrot.slane %v1189, 1
    %v1194 = vmul.f32 %v1177, %v1189
    %v1195 = vmul.f32 %v1179, %v1191
    %v1197 = vsel %vm221, %v1194, 0
    %1199 = vmatprep.subr.mxu0 0.0
    %1200 = vmatpush1.msra.mxu0 0.0
    %1201 = vmatprep.subr.mxu0 0.0
    %1202 = vmatpush1.msra.mxu0 0.0
    %1203 = vmatprep.subr.mxu0 0.0
    %1204 = vmatpush1.msra.mxu0 0.0
    %1205 = vmatprep.subr.mxu0 0.0
    %1206 = vmatpush1.msra.mxu0 0.0
    %1207 = vmatprep.subr.mxu0 0.0
    %1208 = vmatpush1.msra.mxu0 0.0
    %1209 = vmatprep.subr.mxu0 0.0
    %1210 = vmatpush1.msra.mxu0 0.0
    %1211 = vmatprep.subr.mxu0 0.0
    %1212 = vmatpush1.msra.mxu0 0.0
    %1213 = vmatprep.subr.mxu0 0.0
    %1214 = vmatpush1.msra.mxu0 0.0
    %1215 = vmatprep.subr.mxu0 0.0
    %1216 = vmatpush1.msra.mxu0 0.0
    %1217 = vmatprep.subr.mxu0 0.0
    %1218 = vmatpush1.msra.mxu0 0.0
    %1219 = vmatprep.subr.mxu0 0.0
    %1220 = vmatpush1.msra.mxu0 0.0
    %1221 = vmatprep.subr.mxu0 0.0
    %1222 = vmatpush1.msra.mxu0 0.0
    %1223 = vmatprep.subr.mxu0 0.0
    %1224 = vmatpush1.msra.mxu0 0.0
    %1225 = vmatprep.subr.mxu0 0.0
    %1226 = vmatpush1.msra.mxu0 0.0
    %1227 = vmatprep.subr.mxu0 0.0
    %1228 = vmatpush1.msra.mxu0 %v163
    %1229 = vmatprep.subr.mxu0 0.0
    %1230 = vmatpush1.msra.mxu0 %v162
    %1231 = vmatprep.subr.mxu0 0.0
    %1232 = vmatpush2.msra.mxu0 0.0
    %1233 = vmatprep.subr.mxu0 0.0
    %1234 = vmatpush2.msra.mxu0 0.0
    %1235 = vmatprep.subr.mxu0 0.0
    %1236 = vmatpush2.msra.mxu0 0.0
    %1237 = vmatprep.subr.mxu0 0.0
    %1238 = vmatpush2.msra.mxu0 0.0
    %1239 = vmatprep.subr.mxu0 0.0
    %1240 = vmatpush2.msra.mxu0 0.0
    %1241 = vmatprep.subr.mxu0 0.0
    %1242 = vmatpush2.msra.mxu0 0.0
    %1243 = vmatprep.subr.mxu0 0.0
    %1244 = vmatpush2.msra.mxu0 0.0
    %1245 = vmatprep.subr.mxu0 0.0
    %1246 = vmatpush2.msra.mxu0 0.0
    %1247 = vmatprep.subr.mxu0 0.0
    %1248 = vmatpush2.msra.mxu0 0.0
    %1249 = vmatprep.subr.mxu0 0.0
    %1250 = vmatpush2.msra.mxu0 0.0
    %1251 = vmatprep.subr.mxu0 0.0
    %1252 = vmatpush2.msra.mxu0 0.0
    %1253 = vmatprep.subr.mxu0 0.0
    %1254 = vmatpush2.msra.mxu0 0.0
    %1255 = vmatprep.subr.mxu0 0.0
    %1256 = vmatpush2.msra.mxu0 0.0
    %1257 = vmatprep.subr.mxu0 0.0
    %1258 = vmatpush2.msra.mxu0 0.0
    %1259 = vmatprep.subr.mxu0 0.0
    %1260 = vmatpush2.msra.mxu0 0.0
    %1261 = vmatprep.subr.mxu0 0.0
    %1262 = vmatpush2.msra.mxu0 0.0
    %1263 = vmatprep.mubr.f32.mxu0 0.0
    %1264 = vmatmul.mubr.f32.gmra.mxu0 %v1197
    %v1265 = vpop.f32.mrf.mxu0
    %v1266 = vadd.f32 0.0, %v1265
    %v1267 = vpop.f32.mrf.mxu0
    %1268 = vdwg.mxu0
    %v1270 = vsel %vm221, %v1195, 0
    %1272 = vmatprep.subr.mxu0 0.0
    %1273 = vmatpush1.msra.mxu0 0.0
    %1274 = vmatprep.subr.mxu0 0.0
    %1275 = vmatpush1.msra.mxu0 0.0
    %1276 = vmatprep.subr.mxu0 0.0
    %1277 = vmatpush1.msra.mxu0 0.0
    %1278 = vmatprep.subr.mxu0 0.0
    %1279 = vmatpush1.msra.mxu0 0.0
    %1280 = vmatprep.subr.mxu0 0.0
    %1281 = vmatpush1.msra.mxu0 0.0
    %1282 = vmatprep.subr.mxu0 0.0
    %1283 = vmatpush1.msra.mxu0 0.0
    %1284 = vmatprep.subr.mxu0 0.0
    %1285 = vmatpush1.msra.mxu0 0.0
    %1286 = vmatprep.subr.mxu0 0.0
    %1287 = vmatpush1.msra.mxu0 0.0
    %1288 = vmatprep.subr.mxu0 0.0
    %1289 = vmatpush1.msra.mxu0 0.0
    %1290 = vmatprep.subr.mxu0 0.0
    %1291 = vmatpush1.msra.mxu0 0.0
    %1292 = vmatprep.subr.mxu0 0.0
    %1293 = vmatpush1.msra.mxu0 0.0
    %1294 = vmatprep.subr.mxu0 0.0
    %1295 = vmatpush1.msra.mxu0 0.0
    %1296 = vmatprep.subr.mxu0 0.0
    %1297 = vmatpush1.msra.mxu0 0.0
    %1298 = vmatprep.subr.mxu0 0.0
    %1299 = vmatpush1.msra.mxu0 0.0
    %1300 = vmatprep.subr.mxu0 0.0
    %1301 = vmatpush1.msra.mxu0 %v165
    %1302 = vmatprep.subr.mxu0 0.0
    %1303 = vmatpush1.msra.mxu0 %v164
    %1304 = vmatprep.subr.mxu0 0.0
    %1305 = vmatpush2.msra.mxu0 0.0
    %1306 = vmatprep.subr.mxu0 0.0
    %1307 = vmatpush2.msra.mxu0 0.0
    %1308 = vmatprep.subr.mxu0 0.0
    %1309 = vmatpush2.msra.mxu0 0.0
    %1310 = vmatprep.subr.mxu0 0.0
    %1311 = vmatpush2.msra.mxu0 0.0
    %1312 = vmatprep.subr.mxu0 0.0
    %1313 = vmatpush2.msra.mxu0 0.0
    %1314 = vmatprep.subr.mxu0 0.0
    %1315 = vmatpush2.msra.mxu0 0.0
    %1316 = vmatprep.subr.mxu0 0.0
    %1317 = vmatpush2.msra.mxu0 0.0
    %1318 = vmatprep.subr.mxu0 0.0
    %1319 = vmatpush2.msra.mxu0 0.0
    %1320 = vmatprep.subr.mxu0 0.0
    %1321 = vmatpush2.msra.mxu0 0.0
    %1322 = vmatprep.subr.mxu0 0.0
    %1323 = vmatpush2.msra.mxu0 0.0
    %1324 = vmatprep.subr.mxu0 0.0
    %1325 = vmatpush2.msra.mxu0 0.0
    %1326 = vmatprep.subr.mxu0 0.0
    %1327 = vmatpush2.msra.mxu0 0.0
    %1328 = vmatprep.subr.mxu0 0.0
    %1329 = vmatpush2.msra.mxu0 0.0
    %1330 = vmatprep.subr.mxu0 0.0
    %1331 = vmatpush2.msra.mxu0 0.0
    %1332 = vmatprep.subr.mxu0 0.0
    %1333 = vmatpush2.msra.mxu0 0.0
    %1334 = vmatprep.subr.mxu0 0.0
    %1335 = vmatpush2.msra.mxu0 0.0
    %1336 = vmatprep.mubr.f32.mxu0 0.0
    %1337 = vmatmul.mubr.f32.gmra.mxu0 %v1270
    %v1338 = vpop.f32.mrf.mxu0
    %v1339 = vadd.f32 0.0, %v1338
    %v1340 = vpop.f32.mrf.mxu0
    %1341 = vdwg.mxu0
    %v1344 = vrot.slane %v1001, 7
    %v1345 = vsel %vm825, %v1344, %v928
    %1346 = vrot.lane.b32.xlu0 %v1345, 32
    %v1347 = vpop.permute.xlu0 %1346
    %v1351 = vrot.slane %v1339, 7
    %v1352 = vsel %vm825, %v1351, %v1266
    %1353 = vrot.lane.b32.xlu0 %v1352, 64
    %v1354 = vpop.permute.xlu0 %1353
    %v1356 = vsel %vm309, %v636, %v1347
    %v1357 = vsel %vm392, %v1356, %v1354
    %v1359 = vlaneseq
    %v1360 = vshrl.u32 %v1359, 7
    %v1361 = vsub.s32 0, %v1360
    %v1362 = vrot.slane %v203, %v1361
    %vm1364 = vcmask 785408
    %v1366 = vsel %vm1364, %v1357, 0
    %1368 = vmatprep.subr.mxu0 0.0
    %1369 = vmatpush1.msra.mxu0 0.0
    %1370 = vmatprep.subr.mxu0 0.0
    %1371 = vmatpush1.msra.mxu0 0.0
    %1372 = vmatprep.subr.mxu0 0.0
    %1373 = vmatpush1.msra.mxu0 0.0
    %1374 = vmatprep.subr.mxu0 0.0
    %1375 = vmatpush1.msra.mxu0 0.0
    %1376 = vmatprep.subr.mxu0 0.0
    %1377 = vmatpush1.msra.mxu0 %v202
    %1378 = vmatprep.subr.mxu0 0.0
    %1379 = vmatpush1.msra.mxu0 %v201
    %1380 = vmatprep.subr.mxu0 0.0
    %1381 = vmatpush1.msra.mxu0 %v200
    %1382 = vmatprep.subr.mxu0 0.0
    %1383 = vmatpush1.msra.mxu0 %v199
    %1384 = vmatprep.subr.mxu0 0.0
    %1385 = vmatpush1.msra.mxu0 %v198
    %1386 = vmatprep.subr.mxu0 0.0
    %1387 = vmatpush1.msra.mxu0 %v197
    %1388 = vmatprep.subr.mxu0 0.0
    %1389 = vmatpush1.msra.mxu0 %v196
    %1390 = vmatprep.subr.mxu0 0.0
    %1391 = vmatpush1.msra.mxu0 %v195
    %1392 = vmatprep.subr.mxu0 0.0
    %1393 = vmatpush1.msra.mxu0 %v194
    %1394 = vmatprep.subr.mxu0 0.0
    %1395 = vmatpush1.msra.mxu0 %v193
    %1396 = vmatprep.subr.mxu0 0.0
    %1397 = vmatpush1.msra.mxu0 %v192
    %1398 = vmatprep.subr.mxu0 0.0
    %1399 = vmatpush1.msra.mxu0 %v191
    %1400 = vmatprep.subr.mxu0 0.0
    %1401 = vmatpush2.msra.mxu0 0.0
    %1402 = vmatprep.subr.mxu0 0.0
    %1403 = vmatpush2.msra.mxu0 0.0
    %1404 = vmatprep.subr.mxu0 0.0
    %1405 = vmatpush2.msra.mxu0 0.0
    %1406 = vmatprep.subr.mxu0 0.0
    %1407 = vmatpush2.msra.mxu0 0.0
    %1408 = vmatprep.subr.mxu0 0.0
    %1409 = vmatpush2.msra.mxu0 0.0
    %1410 = vmatprep.subr.mxu0 0.0
    %1411 = vmatpush2.msra.mxu0 0.0
    %1412 = vmatprep.subr.mxu0 0.0
    %1413 = vmatpush2.msra.mxu0 0.0
    %1414 = vmatprep.subr.mxu0 0.0
    %1415 = vmatpush2.msra.mxu0 0.0
    %1416 = vmatprep.subr.mxu0 0.0
    %1417 = vmatpush2.msra.mxu0 0.0
    %1418 = vmatprep.subr.mxu0 0.0
    %1419 = vmatpush2.msra.mxu0 0.0
    %1420 = vmatprep.subr.mxu0 0.0
    %1421 = vmatpush2.msra.mxu0 0.0
    %1422 = vmatprep.subr.mxu0 0.0
    %1423 = vmatpush2.msra.mxu0 0.0
    %1424 = vmatprep.subr.mxu0 0.0
    %1425 = vmatpush2.msra.mxu0 0.0
    %1426 = vmatprep.subr.mxu0 0.0
    %1427 = vmatpush2.msra.mxu0 0.0
    %1428 = vmatprep.subr.mxu0 0.0
    %1429 = vmatpush2.msra.mxu0 0.0
    %1430 = vmatprep.subr.mxu0 0.0
    %1431 = vmatpush2.msra.mxu0 0.0
    %1432 = vmatprep.mubr.f32.mxu0 0.0
    %1433 = vmatmul.mubr.f32.gmra.mxu0 %v1366
    %v1434 = vpop.f32.mrf.mxu0
    %v1435 = vadd.f32 %v1362, %v1434
    %v1436 = vpop.f32.mrf.mxu0
    %1437 = vdwg.mxu0
    %1438 = vst.msk [vmem:[#allocation16] sm:$0x3] %vm828, %v1435
    %1440 = vrot.lane.b32.xlu0 %v1352, 32
    %v1441 = vpop.permute.xlu0 %1440
    %v1443 = vsel %vm309, %v1345, %v1441
    %v1445 = vsel %vm392, %v1443, 0
    %1447 = vmatprep.subr.mxu0 0.0
    %1448 = vmatpush1.msra.mxu0 0.0
    %1449 = vmatprep.subr.mxu0 0.0
    %1450 = vmatpush1.msra.mxu0 0.0
    %1451 = vmatprep.subr.mxu0 0.0
    %1452 = vmatpush1.msra.mxu0 0.0
    %1453 = vmatprep.subr.mxu0 0.0
    %1454 = vmatpush1.msra.mxu0 0.0
    %1455 = vmatprep.subr.mxu0 0.0
    %1456 = vmatpush1.msra.mxu0 0.0
    %1457 = vmatprep.subr.mxu0 0.0
    %1458 = vmatpush1.msra.mxu0 0.0
    %1459 = vmatprep.subr.mxu0 0.0
    %1460 = vmatpush1.msra.mxu0 0.0
    %1461 = vmatprep.subr.mxu0 0.0
    %1462 = vmatpush1.msra.mxu0 0.0
    %1463 = vmatprep.subr.mxu0 0.0
    %1464 = vmatpush1.msra.mxu0 %v181
    %1465 = vmatprep.subr.mxu0 0.0
    %1466 = vmatpush1.msra.mxu0 %v180
    %1467 = vmatprep.subr.mxu0 0.0
    %1468 = vmatpush1.msra.mxu0 %v179
    %1469 = vmatprep.subr.mxu0 0.0
    %1470 = vmatpush1.msra.mxu0 %v178
    %1471 = vmatprep.subr.mxu0 0.0
    %1472 = vmatpush1.msra.mxu0 %v177
    %1473 = vmatprep.subr.mxu0 0.0
    %1474 = vmatpush1.msra.mxu0 %v176
    %1475 = vmatprep.subr.mxu0 0.0
    %1476 = vmatpush1.msra.mxu0 %v175
    %1477 = vmatprep.subr.mxu0 0.0
    %1478 = vmatpush1.msra.mxu0 %v174
    %1479 = vmatprep.subr.mxu0 0.0
    %1480 = vmatpush2.msra.mxu0 0.0
    %1481 = vmatprep.subr.mxu0 0.0
    %1482 = vmatpush2.msra.mxu0 0.0
    %1483 = vmatprep.subr.mxu0 0.0
    %1484 = vmatpush2.msra.mxu0 0.0
    %1485 = vmatprep.subr.mxu0 0.0
    %1486 = vmatpush2.msra.mxu0 0.0
    %1487 = vmatprep.subr.mxu0 0.0
    %1488 = vmatpush2.msra.mxu0 0.0
    %1489 = vmatprep.subr.mxu0 0.0
    %1490 = vmatpush2.msra.mxu0 0.0
    %1491 = vmatprep.subr.mxu0 0.0
    %1492 = vmatpush2.msra.mxu0 0.0
    %1493 = vmatprep.subr.mxu0 0.0
    %1494 = vmatpush2.msra.mxu0 0.0
    %1495 = vmatprep.subr.mxu0 0.0
    %1496 = vmatpush2.msra.mxu0 0.0
    %1497 = vmatprep.subr.mxu0 0.0
    %1498 = vmatpush2.msra.mxu0 0.0
    %1499 = vmatprep.subr.mxu0 0.0
    %1500 = vmatpush2.msra.mxu0 0.0
    %1501 = vmatprep.subr.mxu0 0.0
    %1502 = vmatpush2.msra.mxu0 0.0
    %1503 = vmatprep.subr.mxu0 0.0
    %1504 = vmatpush2.msra.mxu0 0.0
    %1505 = vmatprep.subr.mxu0 0.0
    %1506 = vmatpush2.msra.mxu0 0.0
    %1507 = vmatprep.subr.mxu0 0.0
    %1508 = vmatpush2.msra.mxu0 0.0
    %1509 = vmatprep.subr.mxu0 0.0
    %1510 = vmatpush2.msra.mxu0 0.0
    %1511 = vmatprep.mubr.f32.mxu0 0.0
    %1512 = vmatmul.mubr.f32.gmra.mxu0 %v1445
    %v1513 = vpop.f32.mrf.mxu0
    %v1514 = vadd.f32 0.0, %v1513
    %v1515 = vpop.f32.mrf.mxu0
    %1516 = vdwg.mxu0
    %v1518 = vrot.slane %v1514, 6
    %v1520 = vadd.f32 %v383, %v1518
    %v1521 = vsel %vm309, %v636, 0
    %1523 = vmatprep.subr.mxu0 0.0
    %1524 = vmatpush1.msra.mxu0 0.0
    %1525 = vmatprep.subr.mxu0 0.0
    %1526 = vmatpush1.msra.mxu0 0.0
    %1527 = vmatprep.subr.mxu0 0.0
    %1528 = vmatpush1.msra.mxu0 0.0
    %1529 = vmatprep.subr.mxu0 0.0
    %1530 = vmatpush1.msra.mxu0 0.0
    %1531 = vmatprep.subr.mxu0 0.0
    %1532 = vmatpush1.msra.mxu0 0.0
    %1533 = vmatprep.subr.mxu0 0.0
    %1534 = vmatpush1.msra.mxu0 0.0
    %1535 = vmatprep.subr.mxu0 0.0
    %1536 = vmatpush1.msra.mxu0 0.0
    %1537 = vmatprep.subr.mxu0 0.0
    %1538 = vmatpush1.msra.mxu0 0.0
    %1539 = vmatprep.subr.mxu0 0.0
    %1540 = vmatpush1.msra.mxu0 0.0
    %1541 = vmatprep.subr.mxu0 0.0
    %1542 = vmatpush1.msra.mxu0 0.0
    %1543 = vmatprep.subr.mxu0 0.0
    %1544 = vmatpush1.msra.mxu0 0.0
    %1545 = vmatprep.subr.mxu0 0.0
    %1546 = vmatpush1.msra.mxu0 0.0
    %1547 = vmatprep.subr.mxu0 0.0
    %1548 = vmatpush1.msra.mxu0 %v185
    %1549 = vmatprep.subr.mxu0 0.0
    %1550 = vmatpush1.msra.mxu0 %v184
    %1551 = vmatprep.subr.mxu0 0.0
    %1552 = vmatpush1.msra.mxu0 %v183
    %1553 = vmatprep.subr.mxu0 0.0
    %1554 = vmatpush1.msra.mxu0 %v182
    %1555 = vmatprep.subr.mxu0 0.0
    %1556 = vmatpush2.msra.mxu0 0.0
    %1557 = vmatprep.subr.mxu0 0.0
    %1558 = vmatpush2.msra.mxu0 0.0
    %1559 = vmatprep.subr.mxu0 0.0
    %1560 = vmatpush2.msra.mxu0 0.0
    %1561 = vmatprep.subr.mxu0 0.0
    %1562 = vmatpush2.msra.mxu0 0.0
    %1563 = vmatprep.subr.mxu0 0.0
    %1564 = vmatpush2.msra.mxu0 0.0
    %1565 = vmatprep.subr.mxu0 0.0
    %1566 = vmatpush2.msra.mxu0 0.0
    %1567 = vmatprep.subr.mxu0 0.0
    %1568 = vmatpush2.msra.mxu0 0.0
    %1569 = vmatprep.subr.mxu0 0.0
    %1570 = vmatpush2.msra.mxu0 0.0
    %1571 = vmatprep.subr.mxu0 0.0
    %1572 = vmatpush2.msra.mxu0 0.0
    %1573 = vmatprep.subr.mxu0 0.0
    %1574 = vmatpush2.msra.mxu0 0.0
    %1575 = vmatprep.subr.mxu0 0.0
    %1576 = vmatpush2.msra.mxu0 0.0
    %1577 = vmatprep.subr.mxu0 0.0
    %1578 = vmatpush2.msra.mxu0 0.0
    %1579 = vmatprep.subr.mxu0 0.0
    %1580 = vmatpush2.msra.mxu0 0.0
    %1581 = vmatprep.subr.mxu0 0.0
    %1582 = vmatpush2.msra.mxu0 0.0
    %1583 = vmatprep.subr.mxu0 0.0
    %1584 = vmatpush2.msra.mxu0 0.0
    %1585 = vmatprep.subr.mxu0 0.0
    %1586 = vmatpush2.msra.mxu0 0.0
    %1587 = vmatprep.mubr.f32.mxu0 0.0
    %1588 = vmatmul.mubr.f32.gmra.mxu0 %v1521
    %v1589 = vpop.f32.mrf.mxu0
    %v1590 = vadd.f32 0.0, %v1589
    %v1591 = vpop.f32.mrf.mxu0
    %1592 = vdwg.mxu0
    %v1594 = vrot.slane %v1590, 6
    %v1596 = vadd.f32 %v1520, %v1594
    %v1597 = vxor.u32 %v1596, 2147483648
    %v1598 = vmul.f32 %v1597, 1.442695
    %v1599 = vpow.pop %v1598
    %v1600 = vadd.f32 %v1599, 1.0
    %v1601 = vrcp.pop %v1600
    %v1602 = vmul.f32 1.0, %v1601
    %v1603 = vrot.slane %v636, 6
    %1604 = vrot.lane.b32.xlu0 %v1603, 32
    %v1605 = vpop.permute.xlu0 %1604
    %v1607 = vmul.f32 %v1602, %v1605
    %v1609 = vrot.slane %v1607, 2
    %1610 = vrot.lane.b32.xlu0 %v1609, 96
    %v1611 = vpop.permute.xlu0 %1610
    %v1612 = vsel %vm309, %v1611, 0
    %1614 = vmatprep.subr.mxu0 0.0
    %1615 = vmatpush1.msra.mxu0 0.0
    %1616 = vmatprep.subr.mxu0 0.0
    %1617 = vmatpush1.msra.mxu0 0.0
    %1618 = vmatprep.subr.mxu0 0.0
    %1619 = vmatpush1.msra.mxu0 0.0
    %1620 = vmatprep.subr.mxu0 0.0
    %1621 = vmatpush1.msra.mxu0 0.0
    %1622 = vmatprep.subr.mxu0 0.0
    %1623 = vmatpush1.msra.mxu0 0.0
    %1624 = vmatprep.subr.mxu0 0.0
    %1625 = vmatpush1.msra.mxu0 0.0
    %1626 = vmatprep.subr.mxu0 0.0
    %1627 = vmatpush1.msra.mxu0 0.0
    %1628 = vmatprep.subr.mxu0 0.0
    %1629 = vmatpush1.msra.mxu0 0.0
    %1630 = vmatprep.subr.mxu0 0.0
    %1631 = vmatpush1.msra.mxu0 0.0
    %1632 = vmatprep.subr.mxu0 0.0
    %1633 = vmatpush1.msra.mxu0 0.0
    %1634 = vmatprep.subr.mxu0 0.0
    %1635 = vmatpush1.msra.mxu0 0.0
    %1636 = vmatprep.subr.mxu0 0.0
    %1637 = vmatpush1.msra.mxu0 0.0
    %1638 = vmatprep.subr.mxu0 0.0
    %1639 = vmatpush1.msra.mxu0 %v189
    %1640 = vmatprep.subr.mxu0 0.0
    %1641 = vmatpush1.msra.mxu0 %v188
    %1642 = vmatprep.subr.mxu0 0.0
    %1643 = vmatpush1.msra.mxu0 %v187
    %1644 = vmatprep.subr.mxu0 0.0
    %1645 = vmatpush1.msra.mxu0 %v186
    %1646 = vmatprep.subr.mxu0 0.0
    %1647 = vmatpush2.msra.mxu0 0.0
    %1648 = vmatprep.subr.mxu0 0.0
    %1649 = vmatpush2.msra.mxu0 0.0
    %1650 = vmatprep.subr.mxu0 0.0
    %1651 = vmatpush2.msra.mxu0 0.0
    %1652 = vmatprep.subr.mxu0 0.0
    %1653 = vmatpush2.msra.mxu0 0.0
    %1654 = vmatprep.subr.mxu0 0.0
    %1655 = vmatpush2.msra.mxu0 0.0
    %1656 = vmatprep.subr.mxu0 0.0
    %1657 = vmatpush2.msra.mxu0 0.0
    %1658 = vmatprep.subr.mxu0 0.0
    %1659 = vmatpush2.msra.mxu0 0.0
    %1660 = vmatprep.subr.mxu0 0.0
    %1661 = vmatpush2.msra.mxu0 0.0
    %1662 = vmatprep.subr.mxu0 0.0
    %1663 = vmatpush2.msra.mxu0 0.0
    %1664 = vmatprep.subr.mxu0 0.0
    %1665 = vmatpush2.msra.mxu0 0.0
    %1666 = vmatprep.subr.mxu0 0.0
    %1667 = vmatpush2.msra.mxu0 0.0
    %1668 = vmatprep.subr.mxu0 0.0
    %1669 = vmatpush2.msra.mxu0 0.0
    %1670 = vmatprep.subr.mxu0 0.0
    %1671 = vmatpush2.msra.mxu0 0.0
    %1672 = vmatprep.subr.mxu0 0.0
    %1673 = vmatpush2.msra.mxu0 0.0
    %1674 = vmatprep.subr.mxu0 0.0
    %1675 = vmatpush2.msra.mxu0 0.0
    %1676 = vmatprep.subr.mxu0 0.0
    %1677 = vmatpush2.msra.mxu0 0.0
    %1678 = vmatprep.mubr.f32.mxu0 0.0
    %1679 = vmatmul.mubr.f32.gmra.mxu0 %v1612
    %v1680 = vpop.f32.mrf.mxu0
    %v1681 = vadd.f32 0.0, %v1680
    %v1682 = vpop.f32.mrf.mxu0
    %1683 = vdwg.mxu0
    %v1685 = vrot.slane %v1681, 6
    %1686 = vrot.lane.b32.xlu0 %v1685, 64
    %v1687 = vpop.permute.xlu0 %1686
    %v1689 = vadd.f32 %v1520, %v1687
    %v1690 = vtanh.pop %v1689
    %v1691 = vsub.f32 1.0, %v1602
    %v1693 = vmul.f32 %v1691, %v1603
    %1695 = vrot.lane.b32.xlu0 %v1690, 64
    %v1696 = vpop.permute.xlu0 %1695
    %v1698 = vmul.f32 %v1602, %v1696
    %v1699 = vadd.f32 %v1693, %v1698
    %v1702 = vunpack.c.l.s4 1966171168
    %v1703 = vunpack.c.0.s8 %v1702
    %v1704 = vlaneseq
    %v1705 = vshrl.u32 %v1704, 7
    %v1706 = vsub.s32 %v1703, %v1705
    %v1707 = vrot.slane %v1699, %v1706
    %v1708 = vcombine.high %v1707, %v1707
    %v1710 = vunpack.c.l.s4 1966171168
    %v1711 = vunpack.c.0.s8 %v1710
    %v1712 = vlaneseq
    %v1713 = vshrl.u32 %v1712, 7
    %v1714 = vsub.s32 %v1711, %v1713
    %v1715 = vrot.slane %v1707, %v1714
    %v1717 = vunpack.c.l.s4 1966171168
    %v1718 = vunpack.c.0.s8 %v1717
    %v1719 = vlaneseq
    %v1720 = vshrl.u32 %v1719, 7
    %v1721 = vsub.s32 %v1718, %v1720
    %v1722 = vrot.slane %v1708, %v1721
    %v1723 = vcombine.high %v1715, %v1715
    %v1724 = vcombine.high %v1722, %v1722
    %v1725 = vsel %vm309, %v1723, 0
    %1727 = vmatprep.subr.mxu0 0.0
    %1728 = vmatpush1.xpose.msra.mxu0 0.0
    %1729 = vmatprep.subr.mxu0 0.0
    %1730 = vmatpush1.xpose.msra.mxu0 0.0
    %1731 = vmatprep.subr.mxu0 0.0
    %1732 = vmatpush1.xpose.msra.mxu0 0.0
    %1733 = vmatprep.subr.mxu0 0.0
    %1734 = vmatpush1.xpose.msra.mxu0 0.0
    %1735 = vmatprep.subr.mxu0 0.0
    %1736 = vmatpush1.xpose.msra.mxu0 0.0
    %1737 = vmatprep.subr.mxu0 0.0
    %1738 = vmatpush1.xpose.msra.mxu0 0.0
    %1739 = vmatprep.subr.mxu0 0.0
    %1740 = vmatpush1.xpose.msra.mxu0 0.0
    %1741 = vmatprep.subr.mxu0 0.0
    %1742 = vmatpush1.xpose.msra.mxu0 0.0
    %1743 = vmatprep.subr.mxu0 0.0
    %1744 = vmatpush1.xpose.msra.mxu0 0.0
    %1745 = vmatprep.subr.mxu0 0.0
    %1746 = vmatpush1.xpose.msra.mxu0 0.0
    %1747 = vmatprep.subr.mxu0 0.0
    %1748 = vmatpush1.xpose.msra.mxu0 0.0
    %1749 = vmatprep.subr.mxu0 0.0
    %1750 = vmatpush1.xpose.msra.mxu0 0.0
    %1751 = vmatprep.subr.mxu0 0.0
    %1752 = vmatpush1.xpose.msra.mxu0 0.0
    %1753 = vmatprep.subr.mxu0 0.0
    %1754 = vmatpush1.xpose.msra.mxu0 0.0
    %1755 = vmatprep.subr.mxu0 0.0
    %1756 = vmatpush1.xpose.msra.mxu0 %v666
    %1757 = vmatprep.subr.mxu0 0.0
    %1758 = vmatpush1.xpose.msra.mxu0 %v663
    %1759 = vmatprep.subr.mxu0 0.0
    %1760 = vmatpush2.xpose.msra.mxu0 0.0
    %1761 = vmatprep.subr.mxu0 0.0
    %1762 = vmatpush2.xpose.msra.mxu0 0.0
    %1763 = vmatprep.subr.mxu0 0.0
    %1764 = vmatpush2.xpose.msra.mxu0 0.0
    %1765 = vmatprep.subr.mxu0 0.0
    %1766 = vmatpush2.xpose.msra.mxu0 0.0
    %1767 = vmatprep.subr.mxu0 0.0
    %1768 = vmatpush2.xpose.msra.mxu0 0.0
    %1769 = vmatprep.subr.mxu0 0.0
    %1770 = vmatpush2.xpose.msra.mxu0 0.0
    %1771 = vmatprep.subr.mxu0 0.0
    %1772 = vmatpush2.xpose.msra.mxu0 0.0
    %1773 = vmatprep.subr.mxu0 0.0
    %1774 = vmatpush2.xpose.msra.mxu0 0.0
    %1775 = vmatprep.subr.mxu0 0.0
    %1776 = vmatpush2.xpose.msra.mxu0 0.0
    %1777 = vmatprep.subr.mxu0 0.0
    %1778 = vmatpush2.xpose.msra.mxu0 0.0
    %1779 = vmatprep.subr.mxu0 0.0
    %1780 = vmatpush2.xpose.msra.mxu0 0.0
    %1781 = vmatprep.subr.mxu0 0.0
    %1782 = vmatpush2.xpose.msra.mxu0 0.0
    %1783 = vmatprep.subr.mxu0 0.0
    %1784 = vmatpush2.xpose.msra.mxu0 0.0
    %1785 = vmatprep.subr.mxu0 0.0
    %1786 = vmatpush2.xpose.msra.mxu0 0.0
    %1787 = vmatprep.subr.mxu0 0.0
    %1788 = vmatpush2.xpose.msra.mxu0 0.0
    %1789 = vmatprep.subr.mxu0 0.0
    %1790 = vmatpush2.xpose.msra.mxu0 0.0
    %1791 = vmatprep.mubr.f32.mxu0 0.0
    %1792 = vmatmul.mubr.f32.gmra.mxu0 %v1725
    %v1793 = vpop.f32.mrf.mxu0
    %v1794 = vadd.f32 0.0, %v1793
    %v1795 = vpop.f32.mrf.mxu0
    %1796 = vdwg.mxu0
    %v1797 = vsel %vm309, %v1724, 0
    %1799 = vmatprep.subr.mxu0 0.0
    %1800 = vmatpush1.xpose.msra.mxu0 0.0
    %1801 = vmatprep.subr.mxu0 0.0
    %1802 = vmatpush1.xpose.msra.mxu0 0.0
    %1803 = vmatprep.subr.mxu0 0.0
    %1804 = vmatpush1.xpose.msra.mxu0 0.0
    %1805 = vmatprep.subr.mxu0 0.0
    %1806 = vmatpush1.xpose.msra.mxu0 0.0
    %1807 = vmatprep.subr.mxu0 0.0
    %1808 = vmatpush1.xpose.msra.mxu0 0.0
    %1809 = vmatprep.subr.mxu0 0.0
    %1810 = vmatpush1.xpose.msra.mxu0 0.0
    %1811 = vmatprep.subr.mxu0 0.0
    %1812 = vmatpush1.xpose.msra.mxu0 0.0
    %1813 = vmatprep.subr.mxu0 0.0
    %1814 = vmatpush1.xpose.msra.mxu0 0.0
    %1815 = vmatprep.subr.mxu0 0.0
    %1816 = vmatpush1.xpose.msra.mxu0 0.0
    %1817 = vmatprep.subr.mxu0 0.0
    %1818 = vmatpush1.xpose.msra.mxu0 0.0
    %1819 = vmatprep.subr.mxu0 0.0
    %1820 = vmatpush1.xpose.msra.mxu0 0.0
    %1821 = vmatprep.subr.mxu0 0.0
    %1822 = vmatpush1.xpose.msra.mxu0 0.0
    %1823 = vmatprep.subr.mxu0 0.0
    %1824 = vmatpush1.xpose.msra.mxu0 0.0
    %1825 = vmatprep.subr.mxu0 0.0
    %1826 = vmatpush1.xpose.msra.mxu0 0.0
    %1827 = vmatprep.subr.mxu0 0.0
    %1828 = vmatpush1.xpose.msra.mxu0 %v744
    %1829 = vmatprep.subr.mxu0 0.0
    %1830 = vmatpush1.xpose.msra.mxu0 %v741
    %1831 = vmatprep.subr.mxu0 0.0
    %1832 = vmatpush2.xpose.msra.mxu0 0.0
    %1833 = vmatprep.subr.mxu0 0.0
    %1834 = vmatpush2.xpose.msra.mxu0 0.0
    %1835 = vmatprep.subr.mxu0 0.0
    %1836 = vmatpush2.xpose.msra.mxu0 0.0
    %1837 = vmatprep.subr.mxu0 0.0
    %1838 = vmatpush2.xpose.msra.mxu0 0.0
    %1839 = vmatprep.subr.mxu0 0.0
    %1840 = vmatpush2.xpose.msra.mxu0 0.0
    %1841 = vmatprep.subr.mxu0 0.0
    %1842 = vmatpush2.xpose.msra.mxu0 0.0
    %1843 = vmatprep.subr.mxu0 0.0
    %1844 = vmatpush2.xpose.msra.mxu0 0.0
    %1845 = vmatprep.subr.mxu0 0.0
    %1846 = vmatpush2.xpose.msra.mxu0 0.0
    %1847 = vmatprep.subr.mxu0 0.0
    %1848 = vmatpush2.xpose.msra.mxu0 0.0
    %1849 = vmatprep.subr.mxu0 0.0
    %1850 = vmatpush2.xpose.msra.mxu0 0.0
    %1851 = vmatprep.subr.mxu0 0.0
    %1852 = vmatpush2.xpose.msra.mxu0 0.0
    %1853 = vmatprep.subr.mxu0 0.0
    %1854 = vmatpush2.xpose.msra.mxu0 0.0
    %1855 = vmatprep.subr.mxu0 0.0
    %1856 = vmatpush2.xpose.msra.mxu0 0.0
    %1857 = vmatprep.subr.mxu0 0.0
    %1858 = vmatpush2.xpose.msra.mxu0 0.0
    %1859 = vmatprep.subr.mxu0 0.0
    %1860 = vmatpush2.xpose.msra.mxu0 0.0
    %1861 = vmatprep.subr.mxu0 0.0
    %1862 = vmatpush2.xpose.msra.mxu0 0.0
    %1863 = vmatprep.mubr.f32.mxu0 0.0
    %1864 = vmatmul.mubr.f32.gmra.mxu0 %v1797
    %v1865 = vpop.f32.mrf.mxu0
    %v1866 = vadd.f32 0.0, %v1865
    %v1867 = vpop.f32.mrf.mxu0
    %1868 = vdwg.mxu0
    %v1869 = vadd.f32 %v1794, %v166
    %v1870 = vadd.f32 %v1866, %v817
    %v1873 = vrot.slane %v1870, 7
    %v1874 = vsel %vm825, %v1873, %v1869
    %v1876 = vsel %vm828, %v1874, -inf
    %1877 = vmax.xlane.f32.xlu0 %v1876
    %v1878 = vpop.xlane.xlu0 %1877
    %v1880 = vrot.slane %v1878, 1
    %v1883 = vsub.f32 %v1869, %v1878
    %v1884 = vsub.f32 %v1870, %v1880
    %v1885 = vmul.f32 %v1883, 1.442695
    %v1886 = vpow.pop %v1885
    %v1887 = vmul.f32 %v1884, 1.442695
    %v1888 = vpow.pop %v1887
    %v1891 = vrot.slane %v1888, 7
    %v1892 = vsel %vm825, %v1891, %v1886
    %v1894 = vsel %vm828, %v1892, 0.0
    %1895 = vadd.xlane.f32.xlu0 %v1894
    %v1896 = vpop.xlane.xlu0 %1895
    %v1897 = vadd.f32 %v1896, 1e-09
    %v1898 = vrcp.pop %v1897
    %v1900 = vrot.slane %v1898, 1
    %v1903 = vmul.f32 %v1886, %v1898
    %v1904 = vmul.f32 %v1888, %v1900
    %v1906 = vsel %vm221, %v1903, 0
    %1908 = vmatprep.subr.mxu0 0.0
    %1909 = vmatpush1.msra.mxu0 0.0
    %1910 = vmatprep.subr.mxu0 0.0
    %1911 = vmatpush1.msra.mxu0 0.0
    %1912 = vmatprep.subr.mxu0 0.0
    %1913 = vmatpush1.msra.mxu0 0.0
    %1914 = vmatprep.subr.mxu0 0.0
    %1915 = vmatpush1.msra.mxu0 0.0
    %1916 = vmatprep.subr.mxu0 0.0
    %1917 = vmatpush1.msra.mxu0 0.0
    %1918 = vmatprep.subr.mxu0 0.0
    %1919 = vmatpush1.msra.mxu0 0.0
    %1920 = vmatprep.subr.mxu0 0.0
    %1921 = vmatpush1.msra.mxu0 0.0
    %1922 = vmatprep.subr.mxu0 0.0
    %1923 = vmatpush1.msra.mxu0 0.0
    %1924 = vmatprep.subr.mxu0 0.0
    %1925 = vmatpush1.msra.mxu0 0.0
    %1926 = vmatprep.subr.mxu0 0.0
    %1927 = vmatpush1.msra.mxu0 0.0
    %1928 = vmatprep.subr.mxu0 0.0
    %1929 = vmatpush1.msra.mxu0 0.0
    %1930 = vmatprep.subr.mxu0 0.0
    %1931 = vmatpush1.msra.mxu0 0.0
    %1932 = vmatprep.subr.mxu0 0.0
    %1933 = vmatpush1.msra.mxu0 0.0
    %1934 = vmatprep.subr.mxu0 0.0
    %1935 = vmatpush1.msra.mxu0 0.0
    %1936 = vmatprep.subr.mxu0 0.0
    %1937 = vmatpush1.msra.mxu0 %v155
    %1938 = vmatprep.subr.mxu0 0.0
    %1939 = vmatpush1.msra.mxu0 %v154
    %1940 = vmatprep.subr.mxu0 0.0
    %1941 = vmatpush2.msra.mxu0 0.0
    %1942 = vmatprep.subr.mxu0 0.0
    %1943 = vmatpush2.msra.mxu0 0.0
    %1944 = vmatprep.subr.mxu0 0.0
    %1945 = vmatpush2.msra.mxu0 0.0
    %1946 = vmatprep.subr.mxu0 0.0
    %1947 = vmatpush2.msra.mxu0 0.0
    %1948 = vmatprep.subr.mxu0 0.0
    %1949 = vmatpush2.msra.mxu0 0.0
    %1950 = vmatprep.subr.mxu0 0.0
    %1951 = vmatpush2.msra.mxu0 0.0
    %1952 = vmatprep.subr.mxu0 0.0
    %1953 = vmatpush2.msra.mxu0 0.0
    %1954 = vmatprep.subr.mxu0 0.0
    %1955 = vmatpush2.msra.mxu0 0.0
    %1956 = vmatprep.subr.mxu0 0.0
    %1957 = vmatpush2.msra.mxu0 0.0
    %1958 = vmatprep.subr.mxu0 0.0
    %1959 = vmatpush2.msra.mxu0 0.0
    %1960 = vmatprep.subr.mxu0 0.0
    %1961 = vmatpush2.msra.mxu0 0.0
    %1962 = vmatprep.subr.mxu0 0.0
    %1963 = vmatpush2.msra.mxu0 0.0
    %1964 = vmatprep.subr.mxu0 0.0
    %1965 = vmatpush2.msra.mxu0 0.0
    %1966 = vmatprep.subr.mxu0 0.0
    %1967 = vmatpush2.msra.mxu0 0.0
    %1968 = vmatprep.subr.mxu0 0.0
    %1969 = vmatpush2.msra.mxu0 0.0
    %1970 = vmatprep.subr.mxu0 0.0
    %1971 = vmatpush2.msra.mxu0 0.0
    %1972 = vmatprep.mubr.f32.mxu0 0.0
    %1973 = vmatmul.mubr.f32.gmra.mxu0 %v1906
    %v1974 = vpop.f32.mrf.mxu0
    %v1975 = vadd.f32 0.0, %v1974
    %v1976 = vpop.f32.mrf.mxu0
    %1977 = vdwg.mxu0
    %v1979 = vsel %vm221, %v1904, 0
    %1981 = vmatprep.subr.mxu0 0.0
    %1982 = vmatpush1.msra.mxu0 0.0
    %1983 = vmatprep.subr.mxu0 0.0
    %1984 = vmatpush1.msra.mxu0 0.0
    %1985 = vmatprep.subr.mxu0 0.0
    %1986 = vmatpush1.msra.mxu0 0.0
    %1987 = vmatprep.subr.mxu0 0.0
    %1988 = vmatpush1.msra.mxu0 0.0
    %1989 = vmatprep.subr.mxu0 0.0
    %1990 = vmatpush1.msra.mxu0 0.0
    %1991 = vmatprep.subr.mxu0 0.0
    %1992 = vmatpush1.msra.mxu0 0.0
    %1993 = vmatprep.subr.mxu0 0.0
    %1994 = vmatpush1.msra.mxu0 0.0
    %1995 = vmatprep.subr.mxu0 0.0
    %1996 = vmatpush1.msra.mxu0 0.0
    %1997 = vmatprep.subr.mxu0 0.0
    %1998 = vmatpush1.msra.mxu0 0.0
    %1999 = vmatprep.subr.mxu0 0.0
    %2000 = vmatpush1.msra.mxu0 0.0
    %2001 = vmatprep.subr.mxu0 0.0
    %2002 = vmatpush1.msra.mxu0 0.0
    %2003 = vmatprep.subr.mxu0 0.0
    %2004 = vmatpush1.msra.mxu0 0.0
    %2005 = vmatprep.subr.mxu0 0.0
    %2006 = vmatpush1.msra.mxu0 0.0
    %2007 = vmatprep.subr.mxu0 0.0
    %2008 = vmatpush1.msra.mxu0 0.0
    %2009 = vmatprep.subr.mxu0 0.0
    %2010 = vmatpush1.msra.mxu0 %v157
    %2011 = vmatprep.subr.mxu0 0.0
    %2012 = vmatpush1.msra.mxu0 %v156
    %2013 = vmatprep.subr.mxu0 0.0
    %2014 = vmatpush2.msra.mxu0 0.0
    %2015 = vmatprep.subr.mxu0 0.0
    %2016 = vmatpush2.msra.mxu0 0.0
    %2017 = vmatprep.subr.mxu0 0.0
    %2018 = vmatpush2.msra.mxu0 0.0
    %2019 = vmatprep.subr.mxu0 0.0
    %2020 = vmatpush2.msra.mxu0 0.0
    %2021 = vmatprep.subr.mxu0 0.0
    %2022 = vmatpush2.msra.mxu0 0.0
    %2023 = vmatprep.subr.mxu0 0.0
    %2024 = vmatpush2.msra.mxu0 0.0
    %2025 = vmatprep.subr.mxu0 0.0
    %2026 = vmatpush2.msra.mxu0 0.0
    %2027 = vmatprep.subr.mxu0 0.0
    %2028 = vmatpush2.msra.mxu0 0.0
    %2029 = vmatprep.subr.mxu0 0.0
    %2030 = vmatpush2.msra.mxu0 0.0
    %2031 = vmatprep.subr.mxu0 0.0
    %2032 = vmatpush2.msra.mxu0 0.0
    %2033 = vmatprep.subr.mxu0 0.0
    %2034 = vmatpush2.msra.mxu0 0.0
    %2035 = vmatprep.subr.mxu0 0.0
    %2036 = vmatpush2.msra.mxu0 0.0
    %2037 = vmatprep.subr.mxu0 0.0
    %2038 = vmatpush2.msra.mxu0 0.0
    %2039 = vmatprep.subr.mxu0 0.0
    %2040 = vmatpush2.msra.mxu0 0.0
    %2041 = vmatprep.subr.mxu0 0.0
    %2042 = vmatpush2.msra.mxu0 0.0
    %2043 = vmatprep.subr.mxu0 0.0
    %2044 = vmatpush2.msra.mxu0 0.0
    %2045 = vmatprep.mubr.f32.mxu0 0.0
    %2046 = vmatmul.mubr.f32.gmra.mxu0 %v1979
    %v2047 = vpop.f32.mrf.mxu0
    %v2048 = vadd.f32 0.0, %v2047
    %v2049 = vpop.f32.mrf.mxu0
    %2050 = vdwg.mxu0
    %2051 = vmatprep.subr.mxu0 0.0
    %2052 = vmatpush1.xpose.msra.mxu0 0.0
    %2053 = vmatprep.subr.mxu0 0.0
    %2054 = vmatpush1.xpose.msra.mxu0 0.0
    %2055 = vmatprep.subr.mxu0 0.0
    %2056 = vmatpush1.xpose.msra.mxu0 0.0
    %2057 = vmatprep.subr.mxu0 0.0
    %2058 = vmatpush1.xpose.msra.mxu0 0.0
    %2059 = vmatprep.subr.mxu0 0.0
    %2060 = vmatpush1.xpose.msra.mxu0 0.0
    %2061 = vmatprep.subr.mxu0 0.0
    %2062 = vmatpush1.xpose.msra.mxu0 0.0
    %2063 = vmatprep.subr.mxu0 0.0
    %2064 = vmatpush1.xpose.msra.mxu0 0.0
    %2065 = vmatprep.subr.mxu0 0.0
    %2066 = vmatpush1.xpose.msra.mxu0 0.0
    %2067 = vmatprep.subr.mxu0 0.0
    %2068 = vmatpush1.xpose.msra.mxu0 0.0
    %2069 = vmatprep.subr.mxu0 0.0
    %2070 = vmatpush1.xpose.msra.mxu0 0.0
    %2071 = vmatprep.subr.mxu0 0.0
    %2072 = vmatpush1.xpose.msra.mxu0 0.0
    %2073 = vmatprep.subr.mxu0 0.0
    %2074 = vmatpush1.xpose.msra.mxu0 0.0
    %2075 = vmatprep.subr.mxu0 0.0
    %2076 = vmatpush1.xpose.msra.mxu0 0.0
    %2077 = vmatprep.subr.mxu0 0.0
    %2078 = vmatpush1.xpose.msra.mxu0 0.0
    %2079 = vmatprep.subr.mxu0 0.0
    %2080 = vmatpush1.xpose.msra.mxu0 %v1008
    %2081 = vmatprep.subr.mxu0 0.0
    %2082 = vmatpush1.xpose.msra.mxu0 %v1005
    %2083 = vmatprep.subr.mxu0 0.0
    %2084 = vmatpush2.xpose.msra.mxu0 0.0
    %2085 = vmatprep.subr.mxu0 0.0
    %2086 = vmatpush2.xpose.msra.mxu0 0.0
    %2087 = vmatprep.subr.mxu0 0.0
    %2088 = vmatpush2.xpose.msra.mxu0 0.0
    %2089 = vmatprep.subr.mxu0 0.0
    %2090 = vmatpush2.xpose.msra.mxu0 0.0
    %2091 = vmatprep.subr.mxu0 0.0
    %2092 = vmatpush2.xpose.msra.mxu0 0.0
    %2093 = vmatprep.subr.mxu0 0.0
    %2094 = vmatpush2.xpose.msra.mxu0 0.0
    %2095 = vmatprep.subr.mxu0 0.0
    %2096 = vmatpush2.xpose.msra.mxu0 0.0
    %2097 = vmatprep.subr.mxu0 0.0
    %2098 = vmatpush2.xpose.msra.mxu0 0.0
    %2099 = vmatprep.subr.mxu0 0.0
    %2100 = vmatpush2.xpose.msra.mxu0 0.0
    %2101 = vmatprep.subr.mxu0 0.0
    %2102 = vmatpush2.xpose.msra.mxu0 0.0
    %2103 = vmatprep.subr.mxu0 0.0
    %2104 = vmatpush2.xpose.msra.mxu0 0.0
    %2105 = vmatprep.subr.mxu0 0.0
    %2106 = vmatpush2.xpose.msra.mxu0 0.0
    %2107 = vmatprep.subr.mxu0 0.0
    %2108 = vmatpush2.xpose.msra.mxu0 0.0
    %2109 = vmatprep.subr.mxu0 0.0
    %2110 = vmatpush2.xpose.msra.mxu0 0.0
    %2111 = vmatprep.subr.mxu0 0.0
    %2112 = vmatpush2.xpose.msra.mxu0 0.0
    %2113 = vmatprep.subr.mxu0 0.0
    %2114 = vmatpush2.xpose.msra.mxu0 0.0
    %2115 = vmatprep.mubr.f32.mxu0 0.0
    %2116 = vmatmul.mubr.f32.gmra.mxu0 %v1725
    %v2117 = vpop.f32.mrf.mxu0
    %v2118 = vadd.f32 0.0, %v2117
    %v2119 = vpop.f32.mrf.mxu0
    %2120 = vdwg.mxu0
    %2121 = vmatprep.subr.mxu0 0.0
    %2122 = vmatpush1.xpose.msra.mxu0 0.0
    %2123 = vmatprep.subr.mxu0 0.0
    %2124 = vmatpush1.xpose.msra.mxu0 0.0
    %2125 = vmatprep.subr.mxu0 0.0
    %2126 = vmatpush1.xpose.msra.mxu0 0.0
    %2127 = vmatprep.subr.mxu0 0.0
    %2128 = vmatpush1.xpose.msra.mxu0 0.0
    %2129 = vmatprep.subr.mxu0 0.0
    %2130 = vmatpush1.xpose.msra.mxu0 0.0
    %2131 = vmatprep.subr.mxu0 0.0
    %2132 = vmatpush1.xpose.msra.mxu0 0.0
    %2133 = vmatprep.subr.mxu0 0.0
    %2134 = vmatpush1.xpose.msra.mxu0 0.0
    %2135 = vmatprep.subr.mxu0 0.0
    %2136 = vmatpush1.xpose.msra.mxu0 0.0
    %2137 = vmatprep.subr.mxu0 0.0
    %2138 = vmatpush1.xpose.msra.mxu0 0.0
    %2139 = vmatprep.subr.mxu0 0.0
    %2140 = vmatpush1.xpose.msra.mxu0 0.0
    %2141 = vmatprep.subr.mxu0 0.0
    %2142 = vmatpush1.xpose.msra.mxu0 0.0
    %2143 = vmatprep.subr.mxu0 0.0
    %2144 = vmatpush1.xpose.msra.mxu0 0.0
    %2145 = vmatprep.subr.mxu0 0.0
    %2146 = vmatpush1.xpose.msra.mxu0 0.0
    %2147 = vmatprep.subr.mxu0 0.0
    %2148 = vmatpush1.xpose.msra.mxu0 0.0
    %2149 = vmatprep.subr.mxu0 0.0
    %2150 = vmatpush1.xpose.msra.mxu0 %v1084
    %2151 = vmatprep.subr.mxu0 0.0
    %2152 = vmatpush1.xpose.msra.mxu0 %v1081
    %2153 = vmatprep.subr.mxu0 0.0
    %2154 = vmatpush2.xpose.msra.mxu0 0.0
    %2155 = vmatprep.subr.mxu0 0.0
    %2156 = vmatpush2.xpose.msra.mxu0 0.0
    %2157 = vmatprep.subr.mxu0 0.0
    %2158 = vmatpush2.xpose.msra.mxu0 0.0
    %2159 = vmatprep.subr.mxu0 0.0
    %2160 = vmatpush2.xpose.msra.mxu0 0.0
    %2161 = vmatprep.subr.mxu0 0.0
    %2162 = vmatpush2.xpose.msra.mxu0 0.0
    %2163 = vmatprep.subr.mxu0 0.0
    %2164 = vmatpush2.xpose.msra.mxu0 0.0
    %2165 = vmatprep.subr.mxu0 0.0
    %2166 = vmatpush2.xpose.msra.mxu0 0.0
    %2167 = vmatprep.subr.mxu0 0.0
    %2168 = vmatpush2.xpose.msra.mxu0 0.0
    %2169 = vmatprep.subr.mxu0 0.0
    %2170 = vmatpush2.xpose.msra.mxu0 0.0
    %2171 = vmatprep.subr.mxu0 0.0
    %2172 = vmatpush2.xpose.msra.mxu0 0.0
    %2173 = vmatprep.subr.mxu0 0.0
    %2174 = vmatpush2.xpose.msra.mxu0 0.0
    %2175 = vmatprep.subr.mxu0 0.0
    %2176 = vmatpush2.xpose.msra.mxu0 0.0
    %2177 = vmatprep.subr.mxu0 0.0
    %2178 = vmatpush2.xpose.msra.mxu0 0.0
    %2179 = vmatprep.subr.mxu0 0.0
    %2180 = vmatpush2.xpose.msra.mxu0 0.0
    %2181 = vmatprep.subr.mxu0 0.0
    %2182 = vmatpush2.xpose.msra.mxu0 0.0
    %2183 = vmatprep.subr.mxu0 0.0
    %2184 = vmatpush2.xpose.msra.mxu0 0.0
    %2185 = vmatprep.mubr.f32.mxu0 0.0
    %2186 = vmatmul.mubr.f32.gmra.mxu0 %v1797
    %v2187 = vpop.f32.mrf.mxu0
    %v2188 = vadd.f32 0.0, %v2187
    %v2189 = vpop.f32.mrf.mxu0
    %2190 = vdwg.mxu0
    %v2191 = vadd.f32 %v2118, %v167
    %v2192 = vadd.f32 %v2188, %v1157
    %v2195 = vrot.slane %v2192, 7
    %v2196 = vsel %vm825, %v2195, %v2191
    %v2198 = vsel %vm828, %v2196, -inf
    %2199 = vmax.xlane.f32.xlu0 %v2198
    %v2200 = vpop.xlane.xlu0 %2199
    %v2202 = vrot.slane %v2200, 1
    %v2205 = vsub.f32 %v2191, %v2200
    %v2206 = vsub.f32 %v2192, %v2202
    %v2207 = vmul.f32 %v2205, 1.442695
    %v2208 = vpow.pop %v2207
    %v2209 = vmul.f32 %v2206, 1.442695
    %v2210 = vpow.pop %v2209
    %v2213 = vrot.slane %v2210, 7
    %v2214 = vsel %vm825, %v2213, %v2208
    %v2216 = vsel %vm828, %v2214, 0.0
    %2217 = vadd.xlane.f32.xlu0 %v2216
    %v2218 = vpop.xlane.xlu0 %2217
    %v2219 = vadd.f32 %v2218, 1e-09
    %v2220 = vrcp.pop %v2219
    %v2222 = vrot.slane %v2220, 1
    %v2225 = vmul.f32 %v2208, %v2220
    %v2226 = vmul.f32 %v2210, %v2222
    %v2228 = vsel %vm221, %v2225, 0
    %2230 = vmatprep.subr.mxu0 0.0
    %2231 = vmatpush1.msra.mxu0 0.0
    %2232 = vmatprep.subr.mxu0 0.0
    %2233 = vmatpush1.msra.mxu0 0.0
    %2234 = vmatprep.subr.mxu0 0.0
    %2235 = vmatpush1.msra.mxu0 0.0
    %2236 = vmatprep.subr.mxu0 0.0
    %2237 = vmatpush1.msra.mxu0 0.0
    %2238 = vmatprep.subr.mxu0 0.0
    %2239 = vmatpush1.msra.mxu0 0.0
    %2240 = vmatprep.subr.mxu0 0.0
    %2241 = vmatpush1.msra.mxu0 0.0
    %2242 = vmatprep.subr.mxu0 0.0
    %2243 = vmatpush1.msra.mxu0 0.0
    %2244 = vmatprep.subr.mxu0 0.0
    %2245 = vmatpush1.msra.mxu0 0.0
    %2246 = vmatprep.subr.mxu0 0.0
    %2247 = vmatpush1.msra.mxu0 0.0
    %2248 = vmatprep.subr.mxu0 0.0
    %2249 = vmatpush1.msra.mxu0 0.0
    %2250 = vmatprep.subr.mxu0 0.0
    %2251 = vmatpush1.msra.mxu0 0.0
    %2252 = vmatprep.subr.mxu0 0.0
    %2253 = vmatpush1.msra.mxu0 0.0
    %2254 = vmatprep.subr.mxu0 0.0
    %2255 = vmatpush1.msra.mxu0 0.0
    %2256 = vmatprep.subr.mxu0 0.0
    %2257 = vmatpush1.msra.mxu0 0.0
    %2258 = vmatprep.subr.mxu0 0.0
    %2259 = vmatpush1.msra.mxu0 %v163
    %2260 = vmatprep.subr.mxu0 0.0
    %2261 = vmatpush1.msra.mxu0 %v162
    %2262 = vmatprep.subr.mxu0 0.0
    %2263 = vmatpush2.msra.mxu0 0.0
    %2264 = vmatprep.subr.mxu0 0.0
    %2265 = vmatpush2.msra.mxu0 0.0
    %2266 = vmatprep.subr.mxu0 0.0
    %2267 = vmatpush2.msra.mxu0 0.0
    %2268 = vmatprep.subr.mxu0 0.0
    %2269 = vmatpush2.msra.mxu0 0.0
    %2270 = vmatprep.subr.mxu0 0.0
    %2271 = vmatpush2.msra.mxu0 0.0
    %2272 = vmatprep.subr.mxu0 0.0
    %2273 = vmatpush2.msra.mxu0 0.0
    %2274 = vmatprep.subr.mxu0 0.0
    %2275 = vmatpush2.msra.mxu0 0.0
    %2276 = vmatprep.subr.mxu0 0.0
    %2277 = vmatpush2.msra.mxu0 0.0
    %2278 = vmatprep.subr.mxu0 0.0
    %2279 = vmatpush2.msra.mxu0 0.0
    %2280 = vmatprep.subr.mxu0 0.0
    %2281 = vmatpush2.msra.mxu0 0.0
    %2282 = vmatprep.subr.mxu0 0.0
    %2283 = vmatpush2.msra.mxu0 0.0
    %2284 = vmatprep.subr.mxu0 0.0
    %2285 = vmatpush2.msra.mxu0 0.0
    %2286 = vmatprep.subr.mxu0 0.0
    %2287 = vmatpush2.msra.mxu0 0.0
    %2288 = vmatprep.subr.mxu0 0.0
    %2289 = vmatpush2.msra.mxu0 0.0
    %2290 = vmatprep.subr.mxu0 0.0
    %2291 = vmatpush2.msra.mxu0 0.0
    %2292 = vmatprep.subr.mxu0 0.0
    %2293 = vmatpush2.msra.mxu0 0.0
    %2294 = vmatprep.mubr.f32.mxu0 0.0
    %2295 = vmatmul.mubr.f32.gmra.mxu0 %v2228
    %v2296 = vpop.f32.mrf.mxu0
    %v2297 = vadd.f32 0.0, %v2296
    %v2298 = vpop.f32.mrf.mxu0
    %2299 = vdwg.mxu0
    %v2301 = vsel %vm221, %v2226, 0
    %2303 = vmatprep.subr.mxu0 0.0
    %2304 = vmatpush1.msra.mxu0 0.0
    %2305 = vmatprep.subr.mxu0 0.0
    %2306 = vmatpush1.msra.mxu0 0.0
    %2307 = vmatprep.subr.mxu0 0.0
    %2308 = vmatpush1.msra.mxu0 0.0
    %2309 = vmatprep.subr.mxu0 0.0
    %2310 = vmatpush1.msra.mxu0 0.0
    %2311 = vmatprep.subr.mxu0 0.0
    %2312 = vmatpush1.msra.mxu0 0.0
    %2313 = vmatprep.subr.mxu0 0.0
    %2314 = vmatpush1.msra.mxu0 0.0
    %2315 = vmatprep.subr.mxu0 0.0
    %2316 = vmatpush1.msra.mxu0 0.0
    %2317 = vmatprep.subr.mxu0 0.0
    %2318 = vmatpush1.msra.mxu0 0.0
    %2319 = vmatprep.subr.mxu0 0.0
    %2320 = vmatpush1.msra.mxu0 0.0
    %2321 = vmatprep.subr.mxu0 0.0
    %2322 = vmatpush1.msra.mxu0 0.0
    %2323 = vmatprep.subr.mxu0 0.0
    %2324 = vmatpush1.msra.mxu0 0.0
    %2325 = vmatprep.subr.mxu0 0.0
    %2326 = vmatpush1.msra.mxu0 0.0
    %2327 = vmatprep.subr.mxu0 0.0
    %2328 = vmatpush1.msra.mxu0 0.0
    %2329 = vmatprep.subr.mxu0 0.0
    %2330 = vmatpush1.msra.mxu0 0.0
    %2331 = vmatprep.subr.mxu0 0.0
    %2332 = vmatpush1.msra.mxu0 %v165
    %2333 = vmatprep.subr.mxu0 0.0
    %2334 = vmatpush1.msra.mxu0 %v164
    %2335 = vmatprep.subr.mxu0 0.0
    %2336 = vmatpush2.msra.mxu0 0.0
    %2337 = vmatprep.subr.mxu0 0.0
    %2338 = vmatpush2.msra.mxu0 0.0
    %2339 = vmatprep.subr.mxu0 0.0
    %2340 = vmatpush2.msra.mxu0 0.0
    %2341 = vmatprep.subr.mxu0 0.0
    %2342 = vmatpush2.msra.mxu0 0.0
    %2343 = vmatprep.subr.mxu0 0.0
    %2344 = vmatpush2.msra.mxu0 0.0
    %2345 = vmatprep.subr.mxu0 0.0
    %2346 = vmatpush2.msra.mxu0 0.0
    %2347 = vmatprep.subr.mxu0 0.0
    %2348 = vmatpush2.msra.mxu0 0.0
    %2349 = vmatprep.subr.mxu0 0.0
    %2350 = vmatpush2.msra.mxu0 0.0
    %2351 = vmatprep.subr.mxu0 0.0
    %2352 = vmatpush2.msra.mxu0 0.0
    %2353 = vmatprep.subr.mxu0 0.0
    %2354 = vmatpush2.msra.mxu0 0.0
    %2355 = vmatprep.subr.mxu0 0.0
    %2356 = vmatpush2.msra.mxu0 0.0
    %2357 = vmatprep.subr.mxu0 0.0
    %2358 = vmatpush2.msra.mxu0 0.0
    %2359 = vmatprep.subr.mxu0 0.0
    %2360 = vmatpush2.msra.mxu0 0.0
    %2361 = vmatprep.subr.mxu0 0.0
    %2362 = vmatpush2.msra.mxu0 0.0
    %2363 = vmatprep.subr.mxu0 0.0
    %2364 = vmatpush2.msra.mxu0 0.0
    %2365 = vmatprep.subr.mxu0 0.0
    %2366 = vmatpush2.msra.mxu0 0.0
    %2367 = vmatprep.mubr.f32.mxu0 0.0
    %2368 = vmatmul.mubr.f32.gmra.mxu0 %v2301
    %v2369 = vpop.f32.mrf.mxu0
    %v2370 = vadd.f32 0.0, %v2369
    %v2371 = vpop.f32.mrf.mxu0
    %2372 = vdwg.mxu0
    %v2375 = vrot.slane %v1975, 6
    %v2376 = vrot.slane %v2048, 5
    %vm2377 = vcmask 1043459
    %v2378 = vsel %vm2377, %v2376, %v2375
    %2379 = vrot.lane.b32.xlu0 %v2378, 32
    %v2380 = vpop.permute.xlu0 %2379
    %v2384 = vrot.slane %v2297, 6
    %v2385 = vrot.slane %v2370, 5
    %v2386 = vsel %vm2377, %v2385, %v2384
    %2387 = vrot.lane.b32.xlu0 %v2386, 64
    %v2388 = vpop.permute.xlu0 %2387
    %v2390 = vsel %vm309, %v1699, %v2380
    %v2391 = vsel %vm392, %v2390, %v2388
    %v2393 = vrot.slane %v2391, 2
    %v2394 = vsel %vm1364, %v2393, 0
    %2396 = vmatprep.subr.mxu0 0.0
    %2397 = vmatpush1.msra.mxu0 0.0
    %2398 = vmatprep.subr.mxu0 0.0
    %2399 = vmatpush1.msra.mxu0 0.0
    %2400 = vmatprep.subr.mxu0 0.0
    %2401 = vmatpush1.msra.mxu0 0.0
    %2402 = vmatprep.subr.mxu0 0.0
    %2403 = vmatpush1.msra.mxu0 0.0
    %2404 = vmatprep.subr.mxu0 0.0
    %2405 = vmatpush1.msra.mxu0 %v202
    %2406 = vmatprep.subr.mxu0 0.0
    %2407 = vmatpush1.msra.mxu0 %v201
    %2408 = vmatprep.subr.mxu0 0.0
    %2409 = vmatpush1.msra.mxu0 %v200
    %2410 = vmatprep.subr.mxu0 0.0
    %2411 = vmatpush1.msra.mxu0 %v199
    %2412 = vmatprep.subr.mxu0 0.0
    %2413 = vmatpush1.msra.mxu0 %v198
    %2414 = vmatprep.subr.mxu0 0.0
    %2415 = vmatpush1.msra.mxu0 %v197
    %2416 = vmatprep.subr.mxu0 0.0
    %2417 = vmatpush1.msra.mxu0 %v196
    %2418 = vmatprep.subr.mxu0 0.0
    %2419 = vmatpush1.msra.mxu0 %v195
    %2420 = vmatprep.subr.mxu0 0.0
    %2421 = vmatpush1.msra.mxu0 %v194
    %2422 = vmatprep.subr.mxu0 0.0
    %2423 = vmatpush1.msra.mxu0 %v193
    %2424 = vmatprep.subr.mxu0 0.0
    %2425 = vmatpush1.msra.mxu0 %v192
    %2426 = vmatprep.subr.mxu0 0.0
    %2427 = vmatpush1.msra.mxu0 %v191
    %2428 = vmatprep.subr.mxu0 0.0
    %2429 = vmatpush2.msra.mxu0 0.0
    %2430 = vmatprep.subr.mxu0 0.0
    %2431 = vmatpush2.msra.mxu0 0.0
    %2432 = vmatprep.subr.mxu0 0.0
    %2433 = vmatpush2.msra.mxu0 0.0
    %2434 = vmatprep.subr.mxu0 0.0
    %2435 = vmatpush2.msra.mxu0 0.0
    %2436 = vmatprep.subr.mxu0 0.0
    %2437 = vmatpush2.msra.mxu0 0.0
    %2438 = vmatprep.subr.mxu0 0.0
    %2439 = vmatpush2.msra.mxu0 0.0
    %2440 = vmatprep.subr.mxu0 0.0
    %2441 = vmatpush2.msra.mxu0 0.0
    %2442 = vmatprep.subr.mxu0 0.0
    %2443 = vmatpush2.msra.mxu0 0.0
    %2444 = vmatprep.subr.mxu0 0.0
    %2445 = vmatpush2.msra.mxu0 0.0
    %2446 = vmatprep.subr.mxu0 0.0
    %2447 = vmatpush2.msra.mxu0 0.0
    %2448 = vmatprep.subr.mxu0 0.0
    %2449 = vmatpush2.msra.mxu0 0.0
    %2450 = vmatprep.subr.mxu0 0.0
    %2451 = vmatpush2.msra.mxu0 0.0
    %2452 = vmatprep.subr.mxu0 0.0
    %2453 = vmatpush2.msra.mxu0 0.0
    %2454 = vmatprep.subr.mxu0 0.0
    %2455 = vmatpush2.msra.mxu0 0.0
    %2456 = vmatprep.subr.mxu0 0.0
    %2457 = vmatpush2.msra.mxu0 0.0
    %2458 = vmatprep.subr.mxu0 0.0
    %2459 = vmatpush2.msra.mxu0 0.0
    %2460 = vmatprep.mubr.f32.mxu0 0.0
    %2461 = vmatmul.mubr.f32.gmra.mxu0 %v2394
    %v2462 = vpop.f32.mrf.mxu0
    %v2463 = vadd.f32 %v1362, %v2462
    %v2464 = vpop.f32.mrf.mxu0
    %2465 = vdwg.mxu0
    %2467 = vrot.lane.b32.xlu0 %v2463, 16
    %v2468 = vpop.permute.xlu0 %2467
    %vm2470 = vcmask 255104
    %2471 = vst.msk [vmem:[#allocation16] sm:$0x3] %vm2470, %v2468
    %v2472 = vrot.slane %v2048, 7
    %v2473 = vsel %vm825, %v2472, %v1975
    %v2475 = vrot.slane %v2370, 7
    %v2476 = vsel %vm825, %v2475, %v2297
    %2477 = vrot.lane.b32.xlu0 %v2476, 32
    %v2478 = vpop.permute.xlu0 %2477
    %v2480 = vsel %vm309, %v2473, %v2478
    %v2482 = vsel %vm392, %v2480, 0
    %2484 = vmatprep.subr.mxu0 0.0
    %2485 = vmatpush1.msra.mxu0 0.0
    %2486 = vmatprep.subr.mxu0 0.0
    %2487 = vmatpush1.msra.mxu0 0.0
    %2488 = vmatprep.subr.mxu0 0.0
    %2489 = vmatpush1.msra.mxu0 0.0
    %2490 = vmatprep.subr.mxu0 0.0
    %2491 = vmatpush1.msra.mxu0 0.0
    %2492 = vmatprep.subr.mxu0 0.0
    %2493 = vmatpush1.msra.mxu0 0.0
    %2494 = vmatprep.subr.mxu0 0.0
    %2495 = vmatpush1.msra.mxu0 0.0
    %2496 = vmatprep.subr.mxu0 0.0
    %2497 = vmatpush1.msra.mxu0 0.0
    %2498 = vmatprep.subr.mxu0 0.0
    %2499 = vmatpush1.msra.mxu0 0.0
    %2500 = vmatprep.subr.mxu0 0.0
    %2501 = vmatpush1.msra.mxu0 %v181
    %2502 = vmatprep.subr.mxu0 0.0
    %2503 = vmatpush1.msra.mxu0 %v180
    %2504 = vmatprep.subr.mxu0 0.0
    %2505 = vmatpush1.msra.mxu0 %v179
    %2506 = vmatprep.subr.mxu0 0.0
    %2507 = vmatpush1.msra.mxu0 %v178
    %2508 = vmatprep.subr.mxu0 0.0
    %2509 = vmatpush1.msra.mxu0 %v177
    %2510 = vmatprep.subr.mxu0 0.0
    %2511 = vmatpush1.msra.mxu0 %v176
    %2512 = vmatprep.subr.mxu0 0.0
    %2513 = vmatpush1.msra.mxu0 %v175
    %2514 = vmatprep.subr.mxu0 0.0
    %2515 = vmatpush1.msra.mxu0 %v174
    %2516 = vmatprep.subr.mxu0 0.0
    %2517 = vmatpush2.msra.mxu0 0.0
    %2518 = vmatprep.subr.mxu0 0.0
    %2519 = vmatpush2.msra.mxu0 0.0
    %2520 = vmatprep.subr.mxu0 0.0
    %2521 = vmatpush2.msra.mxu0 0.0
    %2522 = vmatprep.subr.mxu0 0.0
    %2523 = vmatpush2.msra.mxu0 0.0
    %2524 = vmatprep.subr.mxu0 0.0
    %2525 = vmatpush2.msra.mxu0 0.0
    %2526 = vmatprep.subr.mxu0 0.0
    %2527 = vmatpush2.msra.mxu0 0.0
    %2528 = vmatprep.subr.mxu0 0.0
    %2529 = vmatpush2.msra.mxu0 0.0
    %2530 = vmatprep.subr.mxu0 0.0
    %2531 = vmatpush2.msra.mxu0 0.0
    %2532 = vmatprep.subr.mxu0 0.0
    %2533 = vmatpush2.msra.mxu0 0.0
    %2534 = vmatprep.subr.mxu0 0.0
    %2535 = vmatpush2.msra.mxu0 0.0
    %2536 = vmatprep.subr.mxu0 0.0
    %2537 = vmatpush2.msra.mxu0 0.0
    %2538 = vmatprep.subr.mxu0 0.0
    %2539 = vmatpush2.msra.mxu0 0.0
    %2540 = vmatprep.subr.mxu0 0.0
    %2541 = vmatpush2.msra.mxu0 0.0
    %2542 = vmatprep.subr.mxu0 0.0
    %2543 = vmatpush2.msra.mxu0 0.0
    %2544 = vmatprep.subr.mxu0 0.0
    %2545 = vmatpush2.msra.mxu0 0.0
    %2546 = vmatprep.subr.mxu0 0.0
    %2547 = vmatpush2.msra.mxu0 0.0
    %2548 = vmatprep.mubr.f32.mxu0 0.0
    %2549 = vmatmul.mubr.f32.gmra.mxu0 %v2482
    %v2550 = vpop.f32.mrf.mxu0
    %v2551 = vadd.f32 0.0, %v2550
    %v2552 = vpop.f32.mrf.mxu0
    %2553 = vdwg.mxu0
    %v2555 = vrot.slane %v2551, 4
    %v2557 = vadd.f32 %v383, %v2555
    %v2558 = vrot.slane %v1699, 2
    %v2559 = vsel %vm309, %v2558, 0
    %2561 = vmatprep.subr.mxu0 0.0
    %2562 = vmatpush1.msra.mxu0 0.0
    %2563 = vmatprep.subr.mxu0 0.0
    %2564 = vmatpush1.msra.mxu0 0.0
    %2565 = vmatprep.subr.mxu0 0.0
    %2566 = vmatpush1.msra.mxu0 0.0
    %2567 = vmatprep.subr.mxu0 0.0
    %2568 = vmatpush1.msra.mxu0 0.0
    %2569 = vmatprep.subr.mxu0 0.0
    %2570 = vmatpush1.msra.mxu0 0.0
    %2571 = vmatprep.subr.mxu0 0.0
    %2572 = vmatpush1.msra.mxu0 0.0
    %2573 = vmatprep.subr.mxu0 0.0
    %2574 = vmatpush1.msra.mxu0 0.0
    %2575 = vmatprep.subr.mxu0 0.0
    %2576 = vmatpush1.msra.mxu0 0.0
    %2577 = vmatprep.subr.mxu0 0.0
    %2578 = vmatpush1.msra.mxu0 0.0
    %2579 = vmatprep.subr.mxu0 0.0
    %2580 = vmatpush1.msra.mxu0 0.0
    %2581 = vmatprep.subr.mxu0 0.0
    %2582 = vmatpush1.msra.mxu0 0.0
    %2583 = vmatprep.subr.mxu0 0.0
    %2584 = vmatpush1.msra.mxu0 0.0
    %2585 = vmatprep.subr.mxu0 0.0
    %2586 = vmatpush1.msra.mxu0 %v185
    %2587 = vmatprep.subr.mxu0 0.0
    %2588 = vmatpush1.msra.mxu0 %v184
    %2589 = vmatprep.subr.mxu0 0.0
    %2590 = vmatpush1.msra.mxu0 %v183
    %2591 = vmatprep.subr.mxu0 0.0
    %2592 = vmatpush1.msra.mxu0 %v182
    %2593 = vmatprep.subr.mxu0 0.0
    %2594 = vmatpush2.msra.mxu0 0.0
    %2595 = vmatprep.subr.mxu0 0.0
    %2596 = vmatpush2.msra.mxu0 0.0
    %2597 = vmatprep.subr.mxu0 0.0
    %2598 = vmatpush2.msra.mxu0 0.0
    %2599 = vmatprep.subr.mxu0 0.0
    %2600 = vmatpush2.msra.mxu0 0.0
    %2601 = vmatprep.subr.mxu0 0.0
    %2602 = vmatpush2.msra.mxu0 0.0
    %2603 = vmatprep.subr.mxu0 0.0
    %2604 = vmatpush2.msra.mxu0 0.0
    %2605 = vmatprep.subr.mxu0 0.0
    %2606 = vmatpush2.msra.mxu0 0.0
    %2607 = vmatprep.subr.mxu0 0.0
    %2608 = vmatpush2.msra.mxu0 0.0
    %2609 = vmatprep.subr.mxu0 0.0
    %2610 = vmatpush2.msra.mxu0 0.0
    %2611 = vmatprep.subr.mxu0 0.0
    %2612 = vmatpush2.msra.mxu0 0.0
    %2613 = vmatprep.subr.mxu0 0.0
    %2614 = vmatpush2.msra.mxu0 0.0
    %2615 = vmatprep.subr.mxu0 0.0
    %2616 = vmatpush2.msra.mxu0 0.0
    %2617 = vmatprep.subr.mxu0 0.0
    %2618 = vmatpush2.msra.mxu0 0.0
    %2619 = vmatprep.subr.mxu0 0.0
    %2620 = vmatpush2.msra.mxu0 0.0
    %2621 = vmatprep.subr.mxu0 0.0
    %2622 = vmatpush2.msra.mxu0 0.0
    %2623 = vmatprep.subr.mxu0 0.0
    %2624 = vmatpush2.msra.mxu0 0.0
    %2625 = vmatprep.mubr.f32.mxu0 0.0
    %2626 = vmatmul.mubr.f32.gmra.mxu0 %v2559
    %v2627 = vpop.f32.mrf.mxu0
    %v2628 = vadd.f32 0.0, %v2627
    %v2629 = vpop.f32.mrf.mxu0
    %2630 = vdwg.mxu0
    %v2632 = vrot.slane %v2628, 4
    %v2634 = vadd.f32 %v2557, %v2632
    %v2635 = vxor.u32 %v2634, 2147483648
    %v2636 = vmul.f32 %v2635, 1.442695
    %v2637 = vpow.pop %v2636
    %v2638 = vadd.f32 %v2637, 1.0
    %v2639 = vrcp.pop %v2638
    %v2640 = vmul.f32 1.0, %v2639
    %v2641 = vrot.slane %v1699, 6
    %2642 = vrot.lane.b32.xlu0 %v2641, 32
    %v2643 = vpop.permute.xlu0 %2642
    %v2645 = vmul.f32 %v2640, %v2643
    %v2647 = vrot.slane %v2645, 4
    %2648 = vrot.lane.b32.xlu0 %v2647, 96
    %v2649 = vpop.permute.xlu0 %2648
    %v2650 = vsel %vm309, %v2649, 0
    %2652 = vmatprep.subr.mxu0 0.0
    %2653 = vmatpush1.msra.mxu0 0.0
    %2654 = vmatprep.subr.mxu0 0.0
    %2655 = vmatpush1.msra.mxu0 0.0
    %2656 = vmatprep.subr.mxu0 0.0
    %2657 = vmatpush1.msra.mxu0 0.0
    %2658 = vmatprep.subr.mxu0 0.0
    %2659 = vmatpush1.msra.mxu0 0.0
    %2660 = vmatprep.subr.mxu0 0.0
    %2661 = vmatpush1.msra.mxu0 0.0
    %2662 = vmatprep.subr.mxu0 0.0
    %2663 = vmatpush1.msra.mxu0 0.0
    %2664 = vmatprep.subr.mxu0 0.0
    %2665 = vmatpush1.msra.mxu0 0.0
    %2666 = vmatprep.subr.mxu0 0.0
    %2667 = vmatpush1.msra.mxu0 0.0
    %2668 = vmatprep.subr.mxu0 0.0
    %2669 = vmatpush1.msra.mxu0 0.0
    %2670 = vmatprep.subr.mxu0 0.0
    %2671 = vmatpush1.msra.mxu0 0.0
    %2672 = vmatprep.subr.mxu0 0.0
    %2673 = vmatpush1.msra.mxu0 0.0
    %2674 = vmatprep.subr.mxu0 0.0
    %2675 = vmatpush1.msra.mxu0 0.0
    %2676 = vmatprep.subr.mxu0 0.0
    %2677 = vmatpush1.msra.mxu0 %v189
    %2678 = vmatprep.subr.mxu0 0.0
    %2679 = vmatpush1.msra.mxu0 %v188
    %2680 = vmatprep.subr.mxu0 0.0
    %2681 = vmatpush1.msra.mxu0 %v187
    %2682 = vmatprep.subr.mxu0 0.0
    %2683 = vmatpush1.msra.mxu0 %v186
    %2684 = vmatprep.subr.mxu0 0.0
    %2685 = vmatpush2.msra.mxu0 0.0
    %2686 = vmatprep.subr.mxu0 0.0
    %2687 = vmatpush2.msra.mxu0 0.0
    %2688 = vmatprep.subr.mxu0 0.0
    %2689 = vmatpush2.msra.mxu0 0.0
    %2690 = vmatprep.subr.mxu0 0.0
    %2691 = vmatpush2.msra.mxu0 0.0
    %2692 = vmatprep.subr.mxu0 0.0
    %2693 = vmatpush2.msra.mxu0 0.0
    %2694 = vmatprep.subr.mxu0 0.0
    %2695 = vmatpush2.msra.mxu0 0.0
    %2696 = vmatprep.subr.mxu0 0.0
    %2697 = vmatpush2.msra.mxu0 0.0
    %2698 = vmatprep.subr.mxu0 0.0
    %2699 = vmatpush2.msra.mxu0 0.0
    %2700 = vmatprep.subr.mxu0 0.0
    %2701 = vmatpush2.msra.mxu0 0.0
    %2702 = vmatprep.subr.mxu0 0.0
    %2703 = vmatpush2.msra.mxu0 0.0
    %2704 = vmatprep.subr.mxu0 0.0
    %2705 = vmatpush2.msra.mxu0 0.0
    %2706 = vmatprep.subr.mxu0 0.0
    %2707 = vmatpush2.msra.mxu0 0.0
    %2708 = vmatprep.subr.mxu0 0.0
    %2709 = vmatpush2.msra.mxu0 0.0
    %2710 = vmatprep.subr.mxu0 0.0
    %2711 = vmatpush2.msra.mxu0 0.0
    %2712 = vmatprep.subr.mxu0 0.0
    %2713 = vmatpush2.msra.mxu0 0.0
    %2714 = vmatprep.subr.mxu0 0.0
    %2715 = vmatpush2.msra.mxu0 0.0
    %2716 = vmatprep.mubr.f32.mxu0 0.0
    %2717 = vmatmul.mubr.f32.gmra.mxu0 %v2650
    %v2718 = vpop.f32.mrf.mxu0
    %v2719 = vadd.f32 0.0, %v2718
    %v2720 = vpop.f32.mrf.mxu0
    %2721 = vdwg.mxu0
    %v2723 = vrot.slane %v2719, 4
    %2724 = vrot.lane.b32.xlu0 %v2723, 64
    %v2725 = vpop.permute.xlu0 %2724
    %v2727 = vadd.f32 %v2557, %v2725
    %v2728 = vtanh.pop %v2727
    %v2729 = vsub.f32 1.0, %v2640
    %v2731 = vmul.f32 %v2729, %v2641
    %2733 = vrot.lane.b32.xlu0 %v2728, 64
    %v2734 = vpop.permute.xlu0 %2733
    %v2736 = vmul.f32 %v2640, %v2734
    %v2737 = vadd.f32 %v2731, %v2736
    %v2739 = vcombine.high %v2737, %v2737
    %v2741 = vunpack.c.l.s4 1966171168
    %v2742 = vunpack.c.0.s8 %v2741
    %v2743 = vlaneseq
    %v2744 = vshrl.u32 %v2743, 7
    %v2745 = vsub.s32 %v2742, %v2744
    %v2746 = vrot.slane %v2739, %v2745
    %v2747 = vcombine.high %v2746, %v2746
    %v2749 = vunpack.c.l.s4 1966171168
    %v2750 = vunpack.c.0.s8 %v2749
    %v2751 = vlaneseq
    %v2752 = vshrl.u32 %v2751, 7
    %v2753 = vsub.s32 %v2750, %v2752
    %v2754 = vrot.slane %v2746, %v2753
    %v2756 = vunpack.c.l.s4 1966171168
    %v2757 = vunpack.c.0.s8 %v2756
    %v2758 = vlaneseq
    %v2759 = vshrl.u32 %v2758, 7
    %v2760 = vsub.s32 %v2757, %v2759
    %v2761 = vrot.slane %v2747, %v2760
    %v2762 = vsel %vm309, %v2754, 0
    %2764 = vmatprep.subr.mxu0 0.0
    %2765 = vmatpush1.xpose.msra.mxu0 0.0
    %2766 = vmatprep.subr.mxu0 0.0
    %2767 = vmatpush1.xpose.msra.mxu0 0.0
    %2768 = vmatprep.subr.mxu0 0.0
    %2769 = vmatpush1.xpose.msra.mxu0 0.0
    %2770 = vmatprep.subr.mxu0 0.0
    %2771 = vmatpush1.xpose.msra.mxu0 0.0
    %2772 = vmatprep.subr.mxu0 0.0
    %2773 = vmatpush1.xpose.msra.mxu0 0.0
    %2774 = vmatprep.subr.mxu0 0.0
    %2775 = vmatpush1.xpose.msra.mxu0 0.0
    %2776 = vmatprep.subr.mxu0 0.0
    %2777 = vmatpush1.xpose.msra.mxu0 0.0
    %2778 = vmatprep.subr.mxu0 0.0
    %2779 = vmatpush1.xpose.msra.mxu0 0.0
    %2780 = vmatprep.subr.mxu0 0.0
    %2781 = vmatpush1.xpose.msra.mxu0 0.0
    %2782 = vmatprep.subr.mxu0 0.0
    %2783 = vmatpush1.xpose.msra.mxu0 0.0
    %2784 = vmatprep.subr.mxu0 0.0
    %2785 = vmatpush1.xpose.msra.mxu0 0.0
    %2786 = vmatprep.subr.mxu0 0.0
    %2787 = vmatpush1.xpose.msra.mxu0 0.0
    %2788 = vmatprep.subr.mxu0 0.0
    %2789 = vmatpush1.xpose.msra.mxu0 0.0
    %2790 = vmatprep.subr.mxu0 0.0
    %2791 = vmatpush1.xpose.msra.mxu0 0.0
    %2792 = vmatprep.subr.mxu0 0.0
    %2793 = vmatpush1.xpose.msra.mxu0 %v666
    %2794 = vmatprep.subr.mxu0 0.0
    %2795 = vmatpush1.xpose.msra.mxu0 %v663
    %2796 = vmatprep.subr.mxu0 0.0
    %2797 = vmatpush2.xpose.msra.mxu0 0.0
    %2798 = vmatprep.subr.mxu0 0.0
    %2799 = vmatpush2.xpose.msra.mxu0 0.0
    %2800 = vmatprep.subr.mxu0 0.0
    %2801 = vmatpush2.xpose.msra.mxu0 0.0
    %2802 = vmatprep.subr.mxu0 0.0
    %2803 = vmatpush2.xpose.msra.mxu0 0.0
    %2804 = vmatprep.subr.mxu0 0.0
    %2805 = vmatpush2.xpose.msra.mxu0 0.0
    %2806 = vmatprep.subr.mxu0 0.0
    %2807 = vmatpush2.xpose.msra.mxu0 0.0
    %2808 = vmatprep.subr.mxu0 0.0
    %2809 = vmatpush2.xpose.msra.mxu0 0.0
    %2810 = vmatprep.subr.mxu0 0.0
    %2811 = vmatpush2.xpose.msra.mxu0 0.0
    %2812 = vmatprep.subr.mxu0 0.0
    %2813 = vmatpush2.xpose.msra.mxu0 0.0
    %2814 = vmatprep.subr.mxu0 0.0
    %2815 = vmatpush2.xpose.msra.mxu0 0.0
    %2816 = vmatprep.subr.mxu0 0.0
    %2817 = vmatpush2.xpose.msra.mxu0 0.0
    %2818 = vmatprep.subr.mxu0 0.0
    %2819 = vmatpush2.xpose.msra.mxu0 0.0
    %2820 = vmatprep.subr.mxu0 0.0
    %2821 = vmatpush2.xpose.msra.mxu0 0.0
    %2822 = vmatprep.subr.mxu0 0.0
    %2823 = vmatpush2.xpose.msra.mxu0 0.0
    %2824 = vmatprep.subr.mxu0 0.0
    %2825 = vmatpush2.xpose.msra.mxu0 0.0
    %2826 = vmatprep.subr.mxu0 0.0
    %2827 = vmatpush2.xpose.msra.mxu0 0.0
    %2828 = vmatprep.mubr.f32.mxu0 0.0
    %2829 = vmatmul.mubr.f32.gmra.mxu0 %v2762
    %v2830 = vpop.f32.mrf.mxu0
    %v2831 = vadd.f32 0.0, %v2830
    %v2832 = vpop.f32.mrf.mxu0
    %2833 = vdwg.mxu0
    %v2834 = vsel %vm309, %v2761, 0
    %2836 = vmatprep.subr.mxu0 0.0
    %2837 = vmatpush1.xpose.msra.mxu0 0.0
    %2838 = vmatprep.subr.mxu0 0.0
    %2839 = vmatpush1.xpose.msra.mxu0 0.0
    %2840 = vmatprep.subr.mxu0 0.0
    %2841 = vmatpush1.xpose.msra.mxu0 0.0
    %2842 = vmatprep.subr.mxu0 0.0
    %2843 = vmatpush1.xpose.msra.mxu0 0.0
    %2844 = vmatprep.subr.mxu0 0.0
    %2845 = vmatpush1.xpose.msra.mxu0 0.0
    %2846 = vmatprep.subr.mxu0 0.0
    %2847 = vmatpush1.xpose.msra.mxu0 0.0
    %2848 = vmatprep.subr.mxu0 0.0
    %2849 = vmatpush1.xpose.msra.mxu0 0.0
    %2850 = vmatprep.subr.mxu0 0.0
    %2851 = vmatpush1.xpose.msra.mxu0 0.0
    %2852 = vmatprep.subr.mxu0 0.0
    %2853 = vmatpush1.xpose.msra.mxu0 0.0
    %2854 = vmatprep.subr.mxu0 0.0
    %2855 = vmatpush1.xpose.msra.mxu0 0.0
    %2856 = vmatprep.subr.mxu0 0.0
    %2857 = vmatpush1.xpose.msra.mxu0 0.0
    %2858 = vmatprep.subr.mxu0 0.0
    %2859 = vmatpush1.xpose.msra.mxu0 0.0
    %2860 = vmatprep.subr.mxu0 0.0
    %2861 = vmatpush1.xpose.msra.mxu0 0.0
    %2862 = vmatprep.subr.mxu0 0.0
    %2863 = vmatpush1.xpose.msra.mxu0 0.0
    %2864 = vmatprep.subr.mxu0 0.0
    %2865 = vmatpush1.xpose.msra.mxu0 %v744
    %2866 = vmatprep.subr.mxu0 0.0
    %2867 = vmatpush1.xpose.msra.mxu0 %v741
    %2868 = vmatprep.subr.mxu0 0.0
    %2869 = vmatpush2.xpose.msra.mxu0 0.0
    %2870 = vmatprep.subr.mxu0 0.0
    %2871 = vmatpush2.xpose.msra.mxu0 0.0
    %2872 = vmatprep.subr.mxu0 0.0
    %2873 = vmatpush2.xpose.msra.mxu0 0.0
    %2874 = vmatprep.subr.mxu0 0.0
    %2875 = vmatpush2.xpose.msra.mxu0 0.0
    %2876 = vmatprep.subr.mxu0 0.0
    %2877 = vmatpush2.xpose.msra.mxu0 0.0
    %2878 = vmatprep.subr.mxu0 0.0
    %2879 = vmatpush2.xpose.msra.mxu0 0.0
    %2880 = vmatprep.subr.mxu0 0.0
    %2881 = vmatpush2.xpose.msra.mxu0 0.0
    %2882 = vmatprep.subr.mxu0 0.0
    %2883 = vmatpush2.xpose.msra.mxu0 0.0
    %2884 = vmatprep.subr.mxu0 0.0
    %2885 = vmatpush2.xpose.msra.mxu0 0.0
    %2886 = vmatprep.subr.mxu0 0.0
    %2887 = vmatpush2.xpose.msra.mxu0 0.0
    %2888 = vmatprep.subr.mxu0 0.0
    %2889 = vmatpush2.xpose.msra.mxu0 0.0
    %2890 = vmatprep.subr.mxu0 0.0
    %2891 = vmatpush2.xpose.msra.mxu0 0.0
    %2892 = vmatprep.subr.mxu0 0.0
    %2893 = vmatpush2.xpose.msra.mxu0 0.0
    %2894 = vmatprep.subr.mxu0 0.0
    %2895 = vmatpush2.xpose.msra.mxu0 0.0
    %2896 = vmatprep.subr.mxu0 0.0
    %2897 = vmatpush2.xpose.msra.mxu0 0.0
    %2898 = vmatprep.subr.mxu0 0.0
    %2899 = vmatpush2.xpose.msra.mxu0 0.0
    %2900 = vmatprep.mubr.f32.mxu0 0.0
    %2901 = vmatmul.mubr.f32.gmra.mxu0 %v2834
    %v2902 = vpop.f32.mrf.mxu0
    %v2903 = vadd.f32 0.0, %v2902
    %v2904 = vpop.f32.mrf.mxu0
    %2905 = vdwg.mxu0
    %v2906 = vadd.f32 %v2831, %v166
    %v2907 = vadd.f32 %v2903, %v817
    %v2910 = vrot.slane %v2907, 7
    %v2911 = vsel %vm825, %v2910, %v2906
    %v2913 = vsel %vm828, %v2911, -inf
    %2914 = vmax.xlane.f32.xlu0 %v2913
    %v2915 = vpop.xlane.xlu0 %2914
    %v2917 = vrot.slane %v2915, 1
    %v2920 = vsub.f32 %v2906, %v2915
    %v2921 = vsub.f32 %v2907, %v2917
    %v2922 = vmul.f32 %v2920, 1.442695
    %v2923 = vpow.pop %v2922
    %v2924 = vmul.f32 %v2921, 1.442695
    %v2925 = vpow.pop %v2924
    %v2928 = vrot.slane %v2925, 7
    %v2929 = vsel %vm825, %v2928, %v2923
    %v2931 = vsel %vm828, %v2929, 0.0
    %2932 = vadd.xlane.f32.xlu0 %v2931
    %v2933 = vpop.xlane.xlu0 %2932
    %v2934 = vadd.f32 %v2933, 1e-09
    %v2935 = vrcp.pop %v2934
    %v2937 = vrot.slane %v2935, 1
    %v2940 = vmul.f32 %v2923, %v2935
    %v2941 = vmul.f32 %v2925, %v2937
    %v2943 = vsel %vm221, %v2940, 0
    %2945 = vmatprep.subr.mxu0 0.0
    %2946 = vmatpush1.msra.mxu0 0.0
    %2947 = vmatprep.subr.mxu0 0.0
    %2948 = vmatpush1.msra.mxu0 0.0
    %2949 = vmatprep.subr.mxu0 0.0
    %2950 = vmatpush1.msra.mxu0 0.0
    %2951 = vmatprep.subr.mxu0 0.0
    %2952 = vmatpush1.msra.mxu0 0.0
    %2953 = vmatprep.subr.mxu0 0.0
    %2954 = vmatpush1.msra.mxu0 0.0
    %2955 = vmatprep.subr.mxu0 0.0
    %2956 = vmatpush1.msra.mxu0 0.0
    %2957 = vmatprep.subr.mxu0 0.0
    %2958 = vmatpush1.msra.mxu0 0.0
    %2959 = vmatprep.subr.mxu0 0.0
    %2960 = vmatpush1.msra.mxu0 0.0
    %2961 = vmatprep.subr.mxu0 0.0
    %2962 = vmatpush1.msra.mxu0 0.0
    %2963 = vmatprep.subr.mxu0 0.0
    %2964 = vmatpush1.msra.mxu0 0.0
    %2965 = vmatprep.subr.mxu0 0.0
    %2966 = vmatpush1.msra.mxu0 0.0
    %2967 = vmatprep.subr.mxu0 0.0
    %2968 = vmatpush1.msra.mxu0 0.0
    %2969 = vmatprep.subr.mxu0 0.0
    %2970 = vmatpush1.msra.mxu0 0.0
    %2971 = vmatprep.subr.mxu0 0.0
    %2972 = vmatpush1.msra.mxu0 0.0
    %2973 = vmatprep.subr.mxu0 0.0
    %2974 = vmatpush1.msra.mxu0 %v155
    %2975 = vmatprep.subr.mxu0 0.0
    %2976 = vmatpush1.msra.mxu0 %v154
    %2977 = vmatprep.subr.mxu0 0.0
    %2978 = vmatpush2.msra.mxu0 0.0
    %2979 = vmatprep.subr.mxu0 0.0
    %2980 = vmatpush2.msra.mxu0 0.0
    %2981 = vmatprep.subr.mxu0 0.0
    %2982 = vmatpush2.msra.mxu0 0.0
    %2983 = vmatprep.subr.mxu0 0.0
    %2984 = vmatpush2.msra.mxu0 0.0
    %2985 = vmatprep.subr.mxu0 0.0
    %2986 = vmatpush2.msra.mxu0 0.0
    %2987 = vmatprep.subr.mxu0 0.0
    %2988 = vmatpush2.msra.mxu0 0.0
    %2989 = vmatprep.subr.mxu0 0.0
    %2990 = vmatpush2.msra.mxu0 0.0
    %2991 = vmatprep.subr.mxu0 0.0
    %2992 = vmatpush2.msra.mxu0 0.0
    %2993 = vmatprep.subr.mxu0 0.0
    %2994 = vmatpush2.msra.mxu0 0.0
    %2995 = vmatprep.subr.mxu0 0.0
    %2996 = vmatpush2.msra.mxu0 0.0
    %2997 = vmatprep.subr.mxu0 0.0
    %2998 = vmatpush2.msra.mxu0 0.0
    %2999 = vmatprep.subr.mxu0 0.0
    %3000 = vmatpush2.msra.mxu0 0.0
    %3001 = vmatprep.subr.mxu0 0.0
    %3002 = vmatpush2.msra.mxu0 0.0
    %3003 = vmatprep.subr.mxu0 0.0
    %3004 = vmatpush2.msra.mxu0 0.0
    %3005 = vmatprep.subr.mxu0 0.0
    %3006 = vmatpush2.msra.mxu0 0.0
    %3007 = vmatprep.subr.mxu0 0.0
    %3008 = vmatpush2.msra.mxu0 0.0
    %3009 = vmatprep.mubr.f32.mxu0 0.0
    %3010 = vmatmul.mubr.f32.gmra.mxu0 %v2943
    %v3011 = vpop.f32.mrf.mxu0
    %v3012 = vadd.f32 0.0, %v3011
    %v3013 = vpop.f32.mrf.mxu0
    %3014 = vdwg.mxu0
    %v3016 = vsel %vm221, %v2941, 0
    %3018 = vmatprep.subr.mxu0 0.0
    %3019 = vmatpush1.msra.mxu0 0.0
    %3020 = vmatprep.subr.mxu0 0.0
    %3021 = vmatpush1.msra.mxu0 0.0
    %3022 = vmatprep.subr.mxu0 0.0
    %3023 = vmatpush1.msra.mxu0 0.0
    %3024 = vmatprep.subr.mxu0 0.0
    %3025 = vmatpush1.msra.mxu0 0.0
    %3026 = vmatprep.subr.mxu0 0.0
    %3027 = vmatpush1.msra.mxu0 0.0
    %3028 = vmatprep.subr.mxu0 0.0
    %3029 = vmatpush1.msra.mxu0 0.0
    %3030 = vmatprep.subr.mxu0 0.0
    %3031 = vmatpush1.msra.mxu0 0.0
    %3032 = vmatprep.subr.mxu0 0.0
    %3033 = vmatpush1.msra.mxu0 0.0
    %3034 = vmatprep.subr.mxu0 0.0
    %3035 = vmatpush1.msra.mxu0 0.0
    %3036 = vmatprep.subr.mxu0 0.0
    %3037 = vmatpush1.msra.mxu0 0.0
    %3038 = vmatprep.subr.mxu0 0.0
    %3039 = vmatpush1.msra.mxu0 0.0
    %3040 = vmatprep.subr.mxu0 0.0
    %3041 = vmatpush1.msra.mxu0 0.0
    %3042 = vmatprep.subr.mxu0 0.0
    %3043 = vmatpush1.msra.mxu0 0.0
    %3044 = vmatprep.subr.mxu0 0.0
    %3045 = vmatpush1.msra.mxu0 0.0
    %3046 = vmatprep.subr.mxu0 0.0
    %3047 = vmatpush1.msra.mxu0 %v157
    %3048 = vmatprep.subr.mxu0 0.0
    %3049 = vmatpush1.msra.mxu0 %v156
    %3050 = vmatprep.subr.mxu0 0.0
    %3051 = vmatpush2.msra.mxu0 0.0
    %3052 = vmatprep.subr.mxu0 0.0
    %3053 = vmatpush2.msra.mxu0 0.0
    %3054 = vmatprep.subr.mxu0 0.0
    %3055 = vmatpush2.msra.mxu0 0.0
    %3056 = vmatprep.subr.mxu0 0.0
    %3057 = vmatpush2.msra.mxu0 0.0
    %3058 = vmatprep.subr.mxu0 0.0
    %3059 = vmatpush2.msra.mxu0 0.0
    %3060 = vmatprep.subr.mxu0 0.0
    %3061 = vmatpush2.msra.mxu0 0.0
    %3062 = vmatprep.subr.mxu0 0.0
    %3063 = vmatpush2.msra.mxu0 0.0
    %3064 = vmatprep.subr.mxu0 0.0
    %3065 = vmatpush2.msra.mxu0 0.0
    %3066 = vmatprep.subr.mxu0 0.0
    %3067 = vmatpush2.msra.mxu0 0.0
    %3068 = vmatprep.subr.mxu0 0.0
    %3069 = vmatpush2.msra.mxu0 0.0
    %3070 = vmatprep.subr.mxu0 0.0
    %3071 = vmatpush2.msra.mxu0 0.0
    %3072 = vmatprep.subr.mxu0 0.0
    %3073 = vmatpush2.msra.mxu0 0.0
    %3074 = vmatprep.subr.mxu0 0.0
    %3075 = vmatpush2.msra.mxu0 0.0
    %3076 = vmatprep.subr.mxu0 0.0
    %3077 = vmatpush2.msra.mxu0 0.0
    %3078 = vmatprep.subr.mxu0 0.0
    %3079 = vmatpush2.msra.mxu0 0.0
    %3080 = vmatprep.subr.mxu0 0.0
    %3081 = vmatpush2.msra.mxu0 0.0
    %3082 = vmatprep.mubr.f32.mxu0 0.0
    %3083 = vmatmul.mubr.f32.gmra.mxu0 %v3016
    %v3084 = vpop.f32.mrf.mxu0
    %v3085 = vadd.f32 0.0, %v3084
    %v3086 = vpop.f32.mrf.mxu0
    %3087 = vdwg.mxu0
    %3088 = vmatprep.subr.mxu0 0.0
    %3089 = vmatpush1.xpose.msra.mxu0 0.0
    %3090 = vmatprep.subr.mxu0 0.0
    %3091 = vmatpush1.xpose.msra.mxu0 0.0
    %3092 = vmatprep.subr.mxu0 0.0
    %3093 = vmatpush1.xpose.msra.mxu0 0.0
    %3094 = vmatprep.subr.mxu0 0.0
    %3095 = vmatpush1.xpose.msra.mxu0 0.0
    %3096 = vmatprep.subr.mxu0 0.0
    %3097 = vmatpush1.xpose.msra.mxu0 0.0
    %3098 = vmatprep.subr.mxu0 0.0
    %3099 = vmatpush1.xpose.msra.mxu0 0.0
    %3100 = vmatprep.subr.mxu0 0.0
    %3101 = vmatpush1.xpose.msra.mxu0 0.0
    %3102 = vmatprep.subr.mxu0 0.0
    %3103 = vmatpush1.xpose.msra.mxu0 0.0
    %3104 = vmatprep.subr.mxu0 0.0
    %3105 = vmatpush1.xpose.msra.mxu0 0.0
    %3106 = vmatprep.subr.mxu0 0.0
    %3107 = vmatpush1.xpose.msra.mxu0 0.0
    %3108 = vmatprep.subr.mxu0 0.0
    %3109 = vmatpush1.xpose.msra.mxu0 0.0
    %3110 = vmatprep.subr.mxu0 0.0
    %3111 = vmatpush1.xpose.msra.mxu0 0.0
    %3112 = vmatprep.subr.mxu0 0.0
    %3113 = vmatpush1.xpose.msra.mxu0 0.0
    %3114 = vmatprep.subr.mxu0 0.0
    %3115 = vmatpush1.xpose.msra.mxu0 0.0
    %3116 = vmatprep.subr.mxu0 0.0
    %3117 = vmatpush1.xpose.msra.mxu0 %v1008
    %3118 = vmatprep.subr.mxu0 0.0
    %3119 = vmatpush1.xpose.msra.mxu0 %v1005
    %3120 = vmatprep.subr.mxu0 0.0
    %3121 = vmatpush2.xpose.msra.mxu0 0.0
    %3122 = vmatprep.subr.mxu0 0.0
    %3123 = vmatpush2.xpose.msra.mxu0 0.0
    %3124 = vmatprep.subr.mxu0 0.0
    %3125 = vmatpush2.xpose.msra.mxu0 0.0
    %3126 = vmatprep.subr.mxu0 0.0
    %3127 = vmatpush2.xpose.msra.mxu0 0.0
    %3128 = vmatprep.subr.mxu0 0.0
    %3129 = vmatpush2.xpose.msra.mxu0 0.0
    %3130 = vmatprep.subr.mxu0 0.0
    %3131 = vmatpush2.xpose.msra.mxu0 0.0
    %3132 = vmatprep.subr.mxu0 0.0
    %3133 = vmatpush2.xpose.msra.mxu0 0.0
    %3134 = vmatprep.subr.mxu0 0.0
    %3135 = vmatpush2.xpose.msra.mxu0 0.0
    %3136 = vmatprep.subr.mxu0 0.0
    %3137 = vmatpush2.xpose.msra.mxu0 0.0
    %3138 = vmatprep.subr.mxu0 0.0
    %3139 = vmatpush2.xpose.msra.mxu0 0.0
    %3140 = vmatprep.subr.mxu0 0.0
    %3141 = vmatpush2.xpose.msra.mxu0 0.0
    %3142 = vmatprep.subr.mxu0 0.0
    %3143 = vmatpush2.xpose.msra.mxu0 0.0
    %3144 = vmatprep.subr.mxu0 0.0
    %3145 = vmatpush2.xpose.msra.mxu0 0.0
    %3146 = vmatprep.subr.mxu0 0.0
    %3147 = vmatpush2.xpose.msra.mxu0 0.0
    %3148 = vmatprep.subr.mxu0 0.0
    %3149 = vmatpush2.xpose.msra.mxu0 0.0
    %3150 = vmatprep.subr.mxu0 0.0
    %3151 = vmatpush2.xpose.msra.mxu0 0.0
    %3152 = vmatprep.mubr.f32.mxu0 0.0
    %3153 = vmatmul.mubr.f32.gmra.mxu0 %v2762
    %v3154 = vpop.f32.mrf.mxu0
    %v3155 = vadd.f32 0.0, %v3154
    %v3156 = vpop.f32.mrf.mxu0
    %3157 = vdwg.mxu0
    %3158 = vmatprep.subr.mxu0 0.0
    %3159 = vmatpush1.xpose.msra.mxu0 0.0
    %3160 = vmatprep.subr.mxu0 0.0
    %3161 = vmatpush1.xpose.msra.mxu0 0.0
    %3162 = vmatprep.subr.mxu0 0.0
    %3163 = vmatpush1.xpose.msra.mxu0 0.0
    %3164 = vmatprep.subr.mxu0 0.0
    %3165 = vmatpush1.xpose.msra.mxu0 0.0
    %3166 = vmatprep.subr.mxu0 0.0
    %3167 = vmatpush1.xpose.msra.mxu0 0.0
    %3168 = vmatprep.subr.mxu0 0.0
    %3169 = vmatpush1.xpose.msra.mxu0 0.0
    %3170 = vmatprep.subr.mxu0 0.0
    %3171 = vmatpush1.xpose.msra.mxu0 0.0
    %3172 = vmatprep.subr.mxu0 0.0
    %3173 = vmatpush1.xpose.msra.mxu0 0.0
    %3174 = vmatprep.subr.mxu0 0.0
    %3175 = vmatpush1.xpose.msra.mxu0 0.0
    %3176 = vmatprep.subr.mxu0 0.0
    %3177 = vmatpush1.xpose.msra.mxu0 0.0
    %3178 = vmatprep.subr.mxu0 0.0
    %3179 = vmatpush1.xpose.msra.mxu0 0.0
    %3180 = vmatprep.subr.mxu0 0.0
    %3181 = vmatpush1.xpose.msra.mxu0 0.0
    %3182 = vmatprep.subr.mxu0 0.0
    %3183 = vmatpush1.xpose.msra.mxu0 0.0
    %3184 = vmatprep.subr.mxu0 0.0
    %3185 = vmatpush1.xpose.msra.mxu0 0.0
    %3186 = vmatprep.subr.mxu0 0.0
    %3187 = vmatpush1.xpose.msra.mxu0 %v1084
    %3188 = vmatprep.subr.mxu0 0.0
    %3189 = vmatpush1.xpose.msra.mxu0 %v1081
    %3190 = vmatprep.subr.mxu0 0.0
    %3191 = vmatpush2.xpose.msra.mxu0 0.0
    %3192 = vmatprep.subr.mxu0 0.0
    %3193 = vmatpush2.xpose.msra.mxu0 0.0
    %3194 = vmatprep.subr.mxu0 0.0
    %3195 = vmatpush2.xpose.msra.mxu0 0.0
    %3196 = vmatprep.subr.mxu0 0.0
    %3197 = vmatpush2.xpose.msra.mxu0 0.0
    %3198 = vmatprep.subr.mxu0 0.0
    %3199 = vmatpush2.xpose.msra.mxu0 0.0
    %3200 = vmatprep.subr.mxu0 0.0
    %3201 = vmatpush2.xpose.msra.mxu0 0.0
    %3202 = vmatprep.subr.mxu0 0.0
    %3203 = vmatpush2.xpose.msra.mxu0 0.0
    %3204 = vmatprep.subr.mxu0 0.0
    %3205 = vmatpush2.xpose.msra.mxu0 0.0
    %3206 = vmatprep.subr.mxu0 0.0
    %3207 = vmatpush2.xpose.msra.mxu0 0.0
    %3208 = vmatprep.subr.mxu0 0.0
    %3209 = vmatpush2.xpose.msra.mxu0 0.0
    %3210 = vmatprep.subr.mxu0 0.0
    %3211 = vmatpush2.xpose.msra.mxu0 0.0
    %3212 = vmatprep.subr.mxu0 0.0
    %3213 = vmatpush2.xpose.msra.mxu0 0.0
    %3214 = vmatprep.subr.mxu0 0.0
    %3215 = vmatpush2.xpose.msra.mxu0 0.0
    %3216 = vmatprep.subr.mxu0 0.0
    %3217 = vmatpush2.xpose.msra.mxu0 0.0
    %3218 = vmatprep.subr.mxu0 0.0
    %3219 = vmatpush2.xpose.msra.mxu0 0.0
    %3220 = vmatprep.subr.mxu0 0.0
    %3221 = vmatpush2.xpose.msra.mxu0 0.0
    %3222 = vmatprep.mubr.f32.mxu0 0.0
    %3223 = vmatmul.mubr.f32.gmra.mxu0 %v2834
    %v3224 = vpop.f32.mrf.mxu0
    %v3225 = vadd.f32 0.0, %v3224
    %v3226 = vpop.f32.mrf.mxu0
    %3227 = vdwg.mxu0
    %v3228 = vadd.f32 %v3155, %v167
    %v3229 = vadd.f32 %v3225, %v1157
    %v3232 = vrot.slane %v3229, 7
    %v3233 = vsel %vm825, %v3232, %v3228
    %v3235 = vsel %vm828, %v3233, -inf
    %3236 = vmax.xlane.f32.xlu0 %v3235
    %v3237 = vpop.xlane.xlu0 %3236
    %v3239 = vrot.slane %v3237, 1
    %v3242 = vsub.f32 %v3228, %v3237
    %v3243 = vsub.f32 %v3229, %v3239
    %v3244 = vmul.f32 %v3242, 1.442695
    %v3245 = vpow.pop %v3244
    %v3246 = vmul.f32 %v3243, 1.442695
    %v3247 = vpow.pop %v3246
    %v3250 = vrot.slane %v3247, 7
    %v3251 = vsel %vm825, %v3250, %v3245
    %v3253 = vsel %vm828, %v3251, 0.0
    %3254 = vadd.xlane.f32.xlu0 %v3253
    %v3255 = vpop.xlane.xlu0 %3254
    %v3256 = vadd.f32 %v3255, 1e-09
    %v3257 = vrcp.pop %v3256
    %v3259 = vrot.slane %v3257, 1
    %v3262 = vmul.f32 %v3245, %v3257
    %v3263 = vmul.f32 %v3247, %v3259
    %v3265 = vsel %vm221, %v3262, 0
    %3267 = vmatprep.subr.mxu0 0.0
    %3268 = vmatpush1.msra.mxu0 0.0
    %3269 = vmatprep.subr.mxu0 0.0
    %3270 = vmatpush1.msra.mxu0 0.0
    %3271 = vmatprep.subr.mxu0 0.0
    %3272 = vmatpush1.msra.mxu0 0.0
    %3273 = vmatprep.subr.mxu0 0.0
    %3274 = vmatpush1.msra.mxu0 0.0
    %3275 = vmatprep.subr.mxu0 0.0
    %3276 = vmatpush1.msra.mxu0 0.0
    %3277 = vmatprep.subr.mxu0 0.0
    %3278 = vmatpush1.msra.mxu0 0.0
    %3279 = vmatprep.subr.mxu0 0.0
    %3280 = vmatpush1.msra.mxu0 0.0
    %3281 = vmatprep.subr.mxu0 0.0
    %3282 = vmatpush1.msra.mxu0 0.0
    %3283 = vmatprep.subr.mxu0 0.0
    %3284 = vmatpush1.msra.mxu0 0.0
    %3285 = vmatprep.subr.mxu0 0.0
    %3286 = vmatpush1.msra.mxu0 0.0
    %3287 = vmatprep.subr.mxu0 0.0
    %3288 = vmatpush1.msra.mxu0 0.0
    %3289 = vmatprep.subr.mxu0 0.0
    %3290 = vmatpush1.msra.mxu0 0.0
    %3291 = vmatprep.subr.mxu0 0.0
    %3292 = vmatpush1.msra.mxu0 0.0
    %3293 = vmatprep.subr.mxu0 0.0
    %3294 = vmatpush1.msra.mxu0 0.0
    %3295 = vmatprep.subr.mxu0 0.0
    %3296 = vmatpush1.msra.mxu0 %v163
    %3297 = vmatprep.subr.mxu0 0.0
    %3298 = vmatpush1.msra.mxu0 %v162
    %3299 = vmatprep.subr.mxu0 0.0
    %3300 = vmatpush2.msra.mxu0 0.0
    %3301 = vmatprep.subr.mxu0 0.0
    %3302 = vmatpush2.msra.mxu0 0.0
    %3303 = vmatprep.subr.mxu0 0.0
    %3304 = vmatpush2.msra.mxu0 0.0
    %3305 = vmatprep.subr.mxu0 0.0
    %3306 = vmatpush2.msra.mxu0 0.0
    %3307 = vmatprep.subr.mxu0 0.0
    %3308 = vmatpush2.msra.mxu0 0.0
    %3309 = vmatprep.subr.mxu0 0.0
    %3310 = vmatpush2.msra.mxu0 0.0
    %3311 = vmatprep.subr.mxu0 0.0
    %3312 = vmatpush2.msra.mxu0 0.0
    %3313 = vmatprep.subr.mxu0 0.0
    %3314 = vmatpush2.msra.mxu0 0.0
    %3315 = vmatprep.subr.mxu0 0.0
    %3316 = vmatpush2.msra.mxu0 0.0
    %3317 = vmatprep.subr.mxu0 0.0
    %3318 = vmatpush2.msra.mxu0 0.0
    %3319 = vmatprep.subr.mxu0 0.0
    %3320 = vmatpush2.msra.mxu0 0.0
    %3321 = vmatprep.subr.mxu0 0.0
    %3322 = vmatpush2.msra.mxu0 0.0
    %3323 = vmatprep.subr.mxu0 0.0
    %3324 = vmatpush2.msra.mxu0 0.0
    %3325 = vmatprep.subr.mxu0 0.0
    %3326 = vmatpush2.msra.mxu0 0.0
    %3327 = vmatprep.subr.mxu0 0.0
    %3328 = vmatpush2.msra.mxu0 0.0
    %3329 = vmatprep.subr.mxu0 0.0
    %3330 = vmatpush2.msra.mxu0 0.0
    %3331 = vmatprep.mubr.f32.mxu0 0.0
    %3332 = vmatmul.mubr.f32.gmra.mxu0 %v3265
    %v3333 = vpop.f32.mrf.mxu0
    %v3334 = vadd.f32 0.0, %v3333
    %v3335 = vpop.f32.mrf.mxu0
    %3336 = vdwg.mxu0
    %v3338 = vsel %vm221, %v3263, 0
    %3340 = vmatprep.subr.mxu0 0.0
    %3341 = vmatpush1.msra.mxu0 0.0
    %3342 = vmatprep.subr.mxu0 0.0
    %3343 = vmatpush1.msra.mxu0 0.0
    %3344 = vmatprep.subr.mxu0 0.0
    %3345 = vmatpush1.msra.mxu0 0.0
    %3346 = vmatprep.subr.mxu0 0.0
    %3347 = vmatpush1.msra.mxu0 0.0
    %3348 = vmatprep.subr.mxu0 0.0
    %3349 = vmatpush1.msra.mxu0 0.0
    %3350 = vmatprep.subr.mxu0 0.0
    %3351 = vmatpush1.msra.mxu0 0.0
    %3352 = vmatprep.subr.mxu0 0.0
    %3353 = vmatpush1.msra.mxu0 0.0
    %3354 = vmatprep.subr.mxu0 0.0
    %3355 = vmatpush1.msra.mxu0 0.0
    %3356 = vmatprep.subr.mxu0 0.0
    %3357 = vmatpush1.msra.mxu0 0.0
    %3358 = vmatprep.subr.mxu0 0.0
    %3359 = vmatpush1.msra.mxu0 0.0
    %3360 = vmatprep.subr.mxu0 0.0
    %3361 = vmatpush1.msra.mxu0 0.0
    %3362 = vmatprep.subr.mxu0 0.0
    %3363 = vmatpush1.msra.mxu0 0.0
    %3364 = vmatprep.subr.mxu0 0.0
    %3365 = vmatpush1.msra.mxu0 0.0
    %3366 = vmatprep.subr.mxu0 0.0
    %3367 = vmatpush1.msra.mxu0 0.0
    %3368 = vmatprep.subr.mxu0 0.0
    %3369 = vmatpush1.msra.mxu0 %v165
    %3370 = vmatprep.subr.mxu0 0.0
    %3371 = vmatpush1.msra.mxu0 %v164
    %3372 = vmatprep.subr.mxu0 0.0
    %3373 = vmatpush2.msra.mxu0 0.0
    %3374 = vmatprep.subr.mxu0 0.0
    %3375 = vmatpush2.msra.mxu0 0.0
    %3376 = vmatprep.subr.mxu0 0.0
    %3377 = vmatpush2.msra.mxu0 0.0
    %3378 = vmatprep.subr.mxu0 0.0
    %3379 = vmatpush2.msra.mxu0 0.0
    %3380 = vmatprep.subr.mxu0 0.0
    %3381 = vmatpush2.msra.mxu0 0.0
    %3382 = vmatprep.subr.mxu0 0.0
    %3383 = vmatpush2.msra.mxu0 0.0
    %3384 = vmatprep.subr.mxu0 0.0
    %3385 = vmatpush2.msra.mxu0 0.0
    %3386 = vmatprep.subr.mxu0 0.0
    %3387 = vmatpush2.msra.mxu0 0.0
    %3388 = vmatprep.subr.mxu0 0.0
    %3389 = vmatpush2.msra.mxu0 0.0
    %3390 = vmatprep.subr.mxu0 0.0
    %3391 = vmatpush2.msra.mxu0 0.0
    %3392 = vmatprep.subr.mxu0 0.0
    %3393 = vmatpush2.msra.mxu0 0.0
    %3394 = vmatprep.subr.mxu0 0.0
    %3395 = vmatpush2.msra.mxu0 0.0
    %3396 = vmatprep.subr.mxu0 0.0
    %3397 = vmatpush2.msra.mxu0 0.0
    %3398 = vmatprep.subr.mxu0 0.0
    %3399 = vmatpush2.msra.mxu0 0.0
    %3400 = vmatprep.subr.mxu0 0.0
    %3401 = vmatpush2.msra.mxu0 0.0
    %3402 = vmatprep.subr.mxu0 0.0
    %3403 = vmatpush2.msra.mxu0 0.0
    %3404 = vmatprep.mubr.f32.mxu0 0.0
    %3405 = vmatmul.mubr.f32.gmra.mxu0 %v3338
    %v3406 = vpop.f32.mrf.mxu0
    %v3407 = vadd.f32 0.0, %v3406
    %v3408 = vpop.f32.mrf.mxu0
    %3409 = vdwg.mxu0
    %v3412 = vrot.slane %v3012, 4
    %v3413 = vrot.slane %v3085, 3
    %vm3414 = vcmask 1045509
    %v3415 = vsel %vm3414, %v3413, %v3412
    %3416 = vrot.lane.b32.xlu0 %v3415, 32
    %v3417 = vpop.permute.xlu0 %3416
    %v3421 = vrot.slane %v3334, 4
    %v3422 = vrot.slane %v3407, 3
    %v3423 = vsel %vm3414, %v3422, %v3421
    %3424 = vrot.lane.b32.xlu0 %v3423, 64
    %v3425 = vpop.permute.xlu0 %3424
    %v3427 = vsel %vm309, %v2737, %v3417
    %v3428 = vsel %vm392, %v3427, %v3425
    %v3430 = vrot.slane %v3428, 4
    %v3431 = vsel %vm1364, %v3430, 0
    %3433 = vmatprep.subr.mxu0 0.0
    %3434 = vmatpush1.msra.mxu0 0.0
    %3435 = vmatprep.subr.mxu0 0.0
    %3436 = vmatpush1.msra.mxu0 0.0
    %3437 = vmatprep.subr.mxu0 0.0
    %3438 = vmatpush1.msra.mxu0 0.0
    %3439 = vmatprep.subr.mxu0 0.0
    %3440 = vmatpush1.msra.mxu0 0.0
    %3441 = vmatprep.subr.mxu0 0.0
    %3442 = vmatpush1.msra.mxu0 %v202
    %3443 = vmatprep.subr.mxu0 0.0
    %3444 = vmatpush1.msra.mxu0 %v201
    %3445 = vmatprep.subr.mxu0 0.0
    %3446 = vmatpush1.msra.mxu0 %v200
    %3447 = vmatprep.subr.mxu0 0.0
    %3448 = vmatpush1.msra.mxu0 %v199
    %3449 = vmatprep.subr.mxu0 0.0
    %3450 = vmatpush1.msra.mxu0 %v198
    %3451 = vmatprep.subr.mxu0 0.0
    %3452 = vmatpush1.msra.mxu0 %v197
    %3453 = vmatprep.subr.mxu0 0.0
    %3454 = vmatpush1.msra.mxu0 %v196
    %3455 = vmatprep.subr.mxu0 0.0
    %3456 = vmatpush1.msra.mxu0 %v195
    %3457 = vmatprep.subr.mxu0 0.0
    %3458 = vmatpush1.msra.mxu0 %v194
    %3459 = vmatprep.subr.mxu0 0.0
    %3460 = vmatpush1.msra.mxu0 %v193
    %3461 = vmatprep.subr.mxu0 0.0
    %3462 = vmatpush1.msra.mxu0 %v192
    %3463 = vmatprep.subr.mxu0 0.0
    %3464 = vmatpush1.msra.mxu0 %v191
    %3465 = vmatprep.subr.mxu0 0.0
    %3466 = vmatpush2.msra.mxu0 0.0
    %3467 = vmatprep.subr.mxu0 0.0
    %3468 = vmatpush2.msra.mxu0 0.0
    %3469 = vmatprep.subr.mxu0 0.0
    %3470 = vmatpush2.msra.mxu0 0.0
    %3471 = vmatprep.subr.mxu0 0.0
    %3472 = vmatpush2.msra.mxu0 0.0
    %3473 = vmatprep.subr.mxu0 0.0
    %3474 = vmatpush2.msra.mxu0 0.0
    %3475 = vmatprep.subr.mxu0 0.0
    %3476 = vmatpush2.msra.mxu0 0.0
    %3477 = vmatprep.subr.mxu0 0.0
    %3478 = vmatpush2.msra.mxu0 0.0
    %3479 = vmatprep.subr.mxu0 0.0
    %3480 = vmatpush2.msra.mxu0 0.0
    %3481 = vmatprep.subr.mxu0 0.0
    %3482 = vmatpush2.msra.mxu0 0.0
    %3483 = vmatprep.subr.mxu0 0.0
    %3484 = vmatpush2.msra.mxu0 0.0
    %3485 = vmatprep.subr.mxu0 0.0
    %3486 = vmatpush2.msra.mxu0 0.0
    %3487 = vmatprep.subr.mxu0 0.0
    %3488 = vmatpush2.msra.mxu0 0.0
    %3489 = vmatprep.subr.mxu0 0.0
    %3490 = vmatpush2.msra.mxu0 0.0
    %3491 = vmatprep.subr.mxu0 0.0
    %3492 = vmatpush2.msra.mxu0 0.0
    %3493 = vmatprep.subr.mxu0 0.0
    %3494 = vmatpush2.msra.mxu0 0.0
    %3495 = vmatprep.subr.mxu0 0.0
    %3496 = vmatpush2.msra.mxu0 0.0
    %3497 = vmatprep.mubr.f32.mxu0 0.0
    %3498 = vmatmul.mubr.f32.gmra.mxu0 %v3431
    %v3499 = vpop.f32.mrf.mxu0
    %v3500 = vadd.f32 %v1362, %v3499
    %v3501 = vpop.f32.mrf.mxu0
    %3502 = vdwg.mxu0
    %3504 = vrot.lane.b32.xlu0 %v3500, 32
    %v3505 = vpop.permute.xlu0 %3504
    %vm3507 = vcmask 386304
    %3508 = vst.msk [vmem:[#allocation16] sm:$0x3] %vm3507, %v3505
    %v3509 = vrot.slane %v3085, 7
    %v3510 = vsel %vm825, %v3509, %v3012
    %v3512 = vrot.slane %v3407, 7
    %v3513 = vsel %vm825, %v3512, %v3334
    %3514 = vrot.lane.b32.xlu0 %v3513, 32
    %v3515 = vpop.permute.xlu0 %3514
    %v3517 = vsel %vm309, %v3510, %v3515
    %v3519 = vsel %vm392, %v3517, 0
    %3521 = vmatprep.subr.mxu0 0.0
    %3522 = vmatpush1.msra.mxu0 0.0
    %3523 = vmatprep.subr.mxu0 0.0
    %3524 = vmatpush1.msra.mxu0 0.0
    %3525 = vmatprep.subr.mxu0 0.0
    %3526 = vmatpush1.msra.mxu0 0.0
    %3527 = vmatprep.subr.mxu0 0.0
    %3528 = vmatpush1.msra.mxu0 0.0
    %3529 = vmatprep.subr.mxu0 0.0
    %3530 = vmatpush1.msra.mxu0 0.0
    %3531 = vmatprep.subr.mxu0 0.0
    %3532 = vmatpush1.msra.mxu0 0.0
    %3533 = vmatprep.subr.mxu0 0.0
    %3534 = vmatpush1.msra.mxu0 0.0
    %3535 = vmatprep.subr.mxu0 0.0
    %3536 = vmatpush1.msra.mxu0 0.0
    %3537 = vmatprep.subr.mxu0 0.0
    %3538 = vmatpush1.msra.mxu0 %v181
    %3539 = vmatprep.subr.mxu0 0.0
    %3540 = vmatpush1.msra.mxu0 %v180
    %3541 = vmatprep.subr.mxu0 0.0
    %3542 = vmatpush1.msra.mxu0 %v179
    %3543 = vmatprep.subr.mxu0 0.0
    %3544 = vmatpush1.msra.mxu0 %v178
    %3545 = vmatprep.subr.mxu0 0.0
    %3546 = vmatpush1.msra.mxu0 %v177
    %3547 = vmatprep.subr.mxu0 0.0
    %3548 = vmatpush1.msra.mxu0 %v176
    %3549 = vmatprep.subr.mxu0 0.0
    %3550 = vmatpush1.msra.mxu0 %v175
    %3551 = vmatprep.subr.mxu0 0.0
    %3552 = vmatpush1.msra.mxu0 %v174
    %3553 = vmatprep.subr.mxu0 0.0
    %3554 = vmatpush2.msra.mxu0 0.0
    %3555 = vmatprep.subr.mxu0 0.0
    %3556 = vmatpush2.msra.mxu0 0.0
    %3557 = vmatprep.subr.mxu0 0.0
    %3558 = vmatpush2.msra.mxu0 0.0
    %3559 = vmatprep.subr.mxu0 0.0
    %3560 = vmatpush2.msra.mxu0 0.0
    %3561 = vmatprep.subr.mxu0 0.0
    %3562 = vmatpush2.msra.mxu0 0.0
    %3563 = vmatprep.subr.mxu0 0.0
    %3564 = vmatpush2.msra.mxu0 0.0
    %3565 = vmatprep.subr.mxu0 0.0
    %3566 = vmatpush2.msra.mxu0 0.0
    %3567 = vmatprep.subr.mxu0 0.0
    %3568 = vmatpush2.msra.mxu0 0.0
    %3569 = vmatprep.subr.mxu0 0.0
    %3570 = vmatpush2.msra.mxu0 0.0
    %3571 = vmatprep.subr.mxu0 0.0
    %3572 = vmatpush2.msra.mxu0 0.0
    %3573 = vmatprep.subr.mxu0 0.0
    %3574 = vmatpush2.msra.mxu0 0.0
    %3575 = vmatprep.subr.mxu0 0.0
    %3576 = vmatpush2.msra.mxu0 0.0
    %3577 = vmatprep.subr.mxu0 0.0
    %3578 = vmatpush2.msra.mxu0 0.0
    %3579 = vmatprep.subr.mxu0 0.0
    %3580 = vmatpush2.msra.mxu0 0.0
    %3581 = vmatprep.subr.mxu0 0.0
    %3582 = vmatpush2.msra.mxu0 0.0
    %3583 = vmatprep.subr.mxu0 0.0
    %3584 = vmatpush2.msra.mxu0 0.0
    %3585 = vmatprep.mubr.f32.mxu0 0.0
    %3586 = vmatmul.mubr.f32.gmra.mxu0 %v3519
    %v3587 = vpop.f32.mrf.mxu0
    %v3588 = vadd.f32 0.0, %v3587
    %v3589 = vpop.f32.mrf.mxu0
    %3590 = vdwg.mxu0
    %v3592 = vrot.slane %v3588, 2
    %v3594 = vadd.f32 %v383, %v3592
    %v3595 = vrot.slane %v2737, 4
    %v3596 = vsel %vm309, %v3595, 0
    %3598 = vmatprep.subr.mxu0 0.0
    %3599 = vmatpush1.msra.mxu0 0.0
    %3600 = vmatprep.subr.mxu0 0.0
    %3601 = vmatpush1.msra.mxu0 0.0
    %3602 = vmatprep.subr.mxu0 0.0
    %3603 = vmatpush1.msra.mxu0 0.0
    %3604 = vmatprep.subr.mxu0 0.0
    %3605 = vmatpush1.msra.mxu0 0.0
    %3606 = vmatprep.subr.mxu0 0.0
    %3607 = vmatpush1.msra.mxu0 0.0
    %3608 = vmatprep.subr.mxu0 0.0
    %3609 = vmatpush1.msra.mxu0 0.0
    %3610 = vmatprep.subr.mxu0 0.0
    %3611 = vmatpush1.msra.mxu0 0.0
    %3612 = vmatprep.subr.mxu0 0.0
    %3613 = vmatpush1.msra.mxu0 0.0
    %3614 = vmatprep.subr.mxu0 0.0
    %3615 = vmatpush1.msra.mxu0 0.0
    %3616 = vmatprep.subr.mxu0 0.0
    %3617 = vmatpush1.msra.mxu0 0.0
    %3618 = vmatprep.subr.mxu0 0.0
    %3619 = vmatpush1.msra.mxu0 0.0
    %3620 = vmatprep.subr.mxu0 0.0
    %3621 = vmatpush1.msra.mxu0 0.0
    %3622 = vmatprep.subr.mxu0 0.0
    %3623 = vmatpush1.msra.mxu0 %v185
    %3624 = vmatprep.subr.mxu0 0.0
    %3625 = vmatpush1.msra.mxu0 %v184
    %3626 = vmatprep.subr.mxu0 0.0
    %3627 = vmatpush1.msra.mxu0 %v183
    %3628 = vmatprep.subr.mxu0 0.0
    %3629 = vmatpush1.msra.mxu0 %v182
    %3630 = vmatprep.subr.mxu0 0.0
    %3631 = vmatpush2.msra.mxu0 0.0
    %3632 = vmatprep.subr.mxu0 0.0
    %3633 = vmatpush2.msra.mxu0 0.0
    %3634 = vmatprep.subr.mxu0 0.0
    %3635 = vmatpush2.msra.mxu0 0.0
    %3636 = vmatprep.subr.mxu0 0.0
    %3637 = vmatpush2.msra.mxu0 0.0
    %3638 = vmatprep.subr.mxu0 0.0
    %3639 = vmatpush2.msra.mxu0 0.0
    %3640 = vmatprep.subr.mxu0 0.0
    %3641 = vmatpush2.msra.mxu0 0.0
    %3642 = vmatprep.subr.mxu0 0.0
    %3643 = vmatpush2.msra.mxu0 0.0
    %3644 = vmatprep.subr.mxu0 0.0
    %3645 = vmatpush2.msra.mxu0 0.0
    %3646 = vmatprep.subr.mxu0 0.0
    %3647 = vmatpush2.msra.mxu0 0.0
    %3648 = vmatprep.subr.mxu0 0.0
    %3649 = vmatpush2.msra.mxu0 0.0
    %3650 = vmatprep.subr.mxu0 0.0
    %3651 = vmatpush2.msra.mxu0 0.0
    %3652 = vmatprep.subr.mxu0 0.0
    %3653 = vmatpush2.msra.mxu0 0.0
    %3654 = vmatprep.subr.mxu0 0.0
    %3655 = vmatpush2.msra.mxu0 0.0
    %3656 = vmatprep.subr.mxu0 0.0
    %3657 = vmatpush2.msra.mxu0 0.0
    %3658 = vmatprep.subr.mxu0 0.0
    %3659 = vmatpush2.msra.mxu0 0.0
    %3660 = vmatprep.subr.mxu0 0.0
    %3661 = vmatpush2.msra.mxu0 0.0
    %3662 = vmatprep.mubr.f32.mxu0 0.0
    %3663 = vmatmul.mubr.f32.gmra.mxu0 %v3596
    %v3664 = vpop.f32.mrf.mxu0
    %v3665 = vadd.f32 0.0, %v3664
    %v3666 = vpop.f32.mrf.mxu0
    %3667 = vdwg.mxu0
    %v3669 = vrot.slane %v3665, 2
    %v3671 = vadd.f32 %v3594, %v3669
    %v3672 = vxor.u32 %v3671, 2147483648
    %v3673 = vmul.f32 %v3672, 1.442695
    %v3674 = vpow.pop %v3673
    %v3675 = vadd.f32 %v3674, 1.0
    %v3676 = vrcp.pop %v3675
    %v3677 = vmul.f32 1.0, %v3676
    %v3678 = vrot.slane %v2737, 6
    %3679 = vrot.lane.b32.xlu0 %v3678, 32
    %v3680 = vpop.permute.xlu0 %3679
    %v3682 = vmul.f32 %v3677, %v3680
    %v3684 = vrot.slane %v3682, 6
    %3685 = vrot.lane.b32.xlu0 %v3684, 96
    %v3686 = vpop.permute.xlu0 %3685
    %v3687 = vsel %vm309, %v3686, 0
    %3689 = vmatprep.subr.mxu0 0.0
    %3690 = vmatpush1.msra.mxu0 0.0
    %3691 = vmatprep.subr.mxu0 0.0
    %3692 = vmatpush1.msra.mxu0 0.0
    %3693 = vmatprep.subr.mxu0 0.0
    %3694 = vmatpush1.msra.mxu0 0.0
    %3695 = vmatprep.subr.mxu0 0.0
    %3696 = vmatpush1.msra.mxu0 0.0
    %3697 = vmatprep.subr.mxu0 0.0
    %3698 = vmatpush1.msra.mxu0 0.0
    %3699 = vmatprep.subr.mxu0 0.0
    %3700 = vmatpush1.msra.mxu0 0.0
    %3701 = vmatprep.subr.mxu0 0.0
    %3702 = vmatpush1.msra.mxu0 0.0
    %3703 = vmatprep.subr.mxu0 0.0
    %3704 = vmatpush1.msra.mxu0 0.0
    %3705 = vmatprep.subr.mxu0 0.0
    %3706 = vmatpush1.msra.mxu0 0.0
    %3707 = vmatprep.subr.mxu0 0.0
    %3708 = vmatpush1.msra.mxu0 0.0
    %3709 = vmatprep.subr.mxu0 0.0
    %3710 = vmatpush1.msra.mxu0 0.0
    %3711 = vmatprep.subr.mxu0 0.0
    %3712 = vmatpush1.msra.mxu0 0.0
    %3713 = vmatprep.subr.mxu0 0.0
    %3714 = vmatpush1.msra.mxu0 %v189
    %3715 = vmatprep.subr.mxu0 0.0
    %3716 = vmatpush1.msra.mxu0 %v188
    %3717 = vmatprep.subr.mxu0 0.0
    %3718 = vmatpush1.msra.mxu0 %v187
    %3719 = vmatprep.subr.mxu0 0.0
    %3720 = vmatpush1.msra.mxu0 %v186
    %3721 = vmatprep.subr.mxu0 0.0
    %3722 = vmatpush2.msra.mxu0 0.0
    %3723 = vmatprep.subr.mxu0 0.0
    %3724 = vmatpush2.msra.mxu0 0.0
    %3725 = vmatprep.subr.mxu0 0.0
    %3726 = vmatpush2.msra.mxu0 0.0
    %3727 = vmatprep.subr.mxu0 0.0
    %3728 = vmatpush2.msra.mxu0 0.0
    %3729 = vmatprep.subr.mxu0 0.0
    %3730 = vmatpush2.msra.mxu0 0.0
    %3731 = vmatprep.subr.mxu0 0.0
    %3732 = vmatpush2.msra.mxu0 0.0
    %3733 = vmatprep.subr.mxu0 0.0
    %3734 = vmatpush2.msra.mxu0 0.0
    %3735 = vmatprep.subr.mxu0 0.0
    %3736 = vmatpush2.msra.mxu0 0.0
    %3737 = vmatprep.subr.mxu0 0.0
    %3738 = vmatpush2.msra.mxu0 0.0
    %3739 = vmatprep.subr.mxu0 0.0
    %3740 = vmatpush2.msra.mxu0 0.0
    %3741 = vmatprep.subr.mxu0 0.0
    %3742 = vmatpush2.msra.mxu0 0.0
    %3743 = vmatprep.subr.mxu0 0.0
    %3744 = vmatpush2.msra.mxu0 0.0
    %3745 = vmatprep.subr.mxu0 0.0
    %3746 = vmatpush2.msra.mxu0 0.0
    %3747 = vmatprep.subr.mxu0 0.0
    %3748 = vmatpush2.msra.mxu0 0.0
    %3749 = vmatprep.subr.mxu0 0.0
    %3750 = vmatpush2.msra.mxu0 0.0
    %3751 = vmatprep.subr.mxu0 0.0
    %3752 = vmatpush2.msra.mxu0 0.0
    %3753 = vmatprep.mubr.f32.mxu0 0.0
    %3754 = vmatmul.mubr.f32.gmra.mxu0 %v3687
    %v3755 = vpop.f32.mrf.mxu0
    %v3756 = vadd.f32 0.0, %v3755
    %v3757 = vpop.f32.mrf.mxu0
    %3758 = vdwg.mxu0
    %v3760 = vrot.slane %v3756, 2
    %3761 = vrot.lane.b32.xlu0 %v3760, 64
    %v3762 = vpop.permute.xlu0 %3761
    %v3764 = vadd.f32 %v3594, %v3762
    %v3765 = vtanh.pop %v3764
    %v3766 = vsub.f32 1.0, %v3677
    %v3768 = vmul.f32 %v3766, %v3678
    %3770 = vrot.lane.b32.xlu0 %v3765, 64
    %v3771 = vpop.permute.xlu0 %3770
    %v3773 = vmul.f32 %v3677, %v3771
    %v3774 = vadd.f32 %v3768, %v3773
    %v3776 = vcombine.high %v3774, %v3774
    %v3778 = vunpack.c.l.s4 1966171168
    %v3779 = vunpack.c.0.s8 %v3778
    %v3780 = vlaneseq
    %v3781 = vshrl.u32 %v3780, 7
    %v3782 = vsub.s32 %v3779, %v3781
    %v3783 = vrot.slane %v3776, %v3782
    %v3784 = vcombine.high %v3783, %v3783
    %v3786 = vunpack.c.l.s4 1966171168
    %v3787 = vunpack.c.0.s8 %v3786
    %v3788 = vlaneseq
    %v3789 = vshrl.u32 %v3788, 7
    %v3790 = vsub.s32 %v3787, %v3789
    %v3791 = vrot.slane %v3783, %v3790
    %v3793 = vunpack.c.l.s4 1966171168
    %v3794 = vunpack.c.0.s8 %v3793
    %v3795 = vlaneseq
    %v3796 = vshrl.u32 %v3795, 7
    %v3797 = vsub.s32 %v3794, %v3796
    %v3798 = vrot.slane %v3784, %v3797
    %v3799 = vcombine.high %v3791, %v3791
    %v3800 = vcombine.high %v3798, %v3798
    %v3801 = vsel %vm309, %v3799, 0
    %3803 = vmatprep.subr.mxu0 0.0
    %3804 = vmatpush1.xpose.msra.mxu0 0.0
    %3805 = vmatprep.subr.mxu0 0.0
    %3806 = vmatpush1.xpose.msra.mxu0 0.0
    %3807 = vmatprep.subr.mxu0 0.0
    %3808 = vmatpush1.xpose.msra.mxu0 0.0
    %3809 = vmatprep.subr.mxu0 0.0
    %3810 = vmatpush1.xpose.msra.mxu0 0.0
    %3811 = vmatprep.subr.mxu0 0.0
    %3812 = vmatpush1.xpose.msra.mxu0 0.0
    %3813 = vmatprep.subr.mxu0 0.0
    %3814 = vmatpush1.xpose.msra.mxu0 0.0
    %3815 = vmatprep.subr.mxu0 0.0
    %3816 = vmatpush1.xpose.msra.mxu0 0.0
    %3817 = vmatprep.subr.mxu0 0.0
    %3818 = vmatpush1.xpose.msra.mxu0 0.0
    %3819 = vmatprep.subr.mxu0 0.0
    %3820 = vmatpush1.xpose.msra.mxu0 0.0
    %3821 = vmatprep.subr.mxu0 0.0
    %3822 = vmatpush1.xpose.msra.mxu0 0.0
    %3823 = vmatprep.subr.mxu0 0.0
    %3824 = vmatpush1.xpose.msra.mxu0 0.0
    %3825 = vmatprep.subr.mxu0 0.0
    %3826 = vmatpush1.xpose.msra.mxu0 0.0
    %3827 = vmatprep.subr.mxu0 0.0
    %3828 = vmatpush1.xpose.msra.mxu0 0.0
    %3829 = vmatprep.subr.mxu0 0.0
    %3830 = vmatpush1.xpose.msra.mxu0 0.0
    %3831 = vmatprep.subr.mxu0 0.0
    %3832 = vmatpush1.xpose.msra.mxu0 %v666
    %3833 = vmatprep.subr.mxu0 0.0
    %3834 = vmatpush1.xpose.msra.mxu0 %v663
    %3835 = vmatprep.subr.mxu0 0.0
    %3836 = vmatpush2.xpose.msra.mxu0 0.0
    %3837 = vmatprep.subr.mxu0 0.0
    %3838 = vmatpush2.xpose.msra.mxu0 0.0
    %3839 = vmatprep.subr.mxu0 0.0
    %3840 = vmatpush2.xpose.msra.mxu0 0.0
    %3841 = vmatprep.subr.mxu0 0.0
    %3842 = vmatpush2.xpose.msra.mxu0 0.0
    %3843 = vmatprep.subr.mxu0 0.0
    %3844 = vmatpush2.xpose.msra.mxu0 0.0
    %3845 = vmatprep.subr.mxu0 0.0
    %3846 = vmatpush2.xpose.msra.mxu0 0.0
    %3847 = vmatprep.subr.mxu0 0.0
    %3848 = vmatpush2.xpose.msra.mxu0 0.0
    %3849 = vmatprep.subr.mxu0 0.0
    %3850 = vmatpush2.xpose.msra.mxu0 0.0
    %3851 = vmatprep.subr.mxu0 0.0
    %3852 = vmatpush2.xpose.msra.mxu0 0.0
    %3853 = vmatprep.subr.mxu0 0.0
    %3854 = vmatpush2.xpose.msra.mxu0 0.0
    %3855 = vmatprep.subr.mxu0 0.0
    %3856 = vmatpush2.xpose.msra.mxu0 0.0
    %3857 = vmatprep.subr.mxu0 0.0
    %3858 = vmatpush2.xpose.msra.mxu0 0.0
    %3859 = vmatprep.subr.mxu0 0.0
    %3860 = vmatpush2.xpose.msra.mxu0 0.0
    %3861 = vmatprep.subr.mxu0 0.0
    %3862 = vmatpush2.xpose.msra.mxu0 0.0
    %3863 = vmatprep.subr.mxu0 0.0
    %3864 = vmatpush2.xpose.msra.mxu0 0.0
    %3865 = vmatprep.subr.mxu0 0.0
    %3866 = vmatpush2.xpose.msra.mxu0 0.0
    %3867 = vmatprep.mubr.f32.mxu0 0.0
    %3868 = vmatmul.mubr.f32.gmra.mxu0 %v3801
    %v3869 = vpop.f32.mrf.mxu0
    %v3870 = vadd.f32 0.0, %v3869
    %v3871 = vpop.f32.mrf.mxu0
    %3872 = vdwg.mxu0
    %v3873 = vsel %vm309, %v3800, 0
    %3875 = vmatprep.subr.mxu0 0.0
    %3876 = vmatpush1.xpose.msra.mxu0 0.0
    %3877 = vmatprep.subr.mxu0 0.0
    %3878 = vmatpush1.xpose.msra.mxu0 0.0
    %3879 = vmatprep.subr.mxu0 0.0
    %3880 = vmatpush1.xpose.msra.mxu0 0.0
    %3881 = vmatprep.subr.mxu0 0.0
    %3882 = vmatpush1.xpose.msra.mxu0 0.0
    %3883 = vmatprep.subr.mxu0 0.0
    %3884 = vmatpush1.xpose.msra.mxu0 0.0
    %3885 = vmatprep.subr.mxu0 0.0
    %3886 = vmatpush1.xpose.msra.mxu0 0.0
    %3887 = vmatprep.subr.mxu0 0.0
    %3888 = vmatpush1.xpose.msra.mxu0 0.0
    %3889 = vmatprep.subr.mxu0 0.0
    %3890 = vmatpush1.xpose.msra.mxu0 0.0
    %3891 = vmatprep.subr.mxu0 0.0
    %3892 = vmatpush1.xpose.msra.mxu0 0.0
    %3893 = vmatprep.subr.mxu0 0.0
    %3894 = vmatpush1.xpose.msra.mxu0 0.0
    %3895 = vmatprep.subr.mxu0 0.0
    %3896 = vmatpush1.xpose.msra.mxu0 0.0
    %3897 = vmatprep.subr.mxu0 0.0
    %3898 = vmatpush1.xpose.msra.mxu0 0.0
    %3899 = vmatprep.subr.mxu0 0.0
    %3900 = vmatpush1.xpose.msra.mxu0 0.0
    %3901 = vmatprep.subr.mxu0 0.0
    %3902 = vmatpush1.xpose.msra.mxu0 0.0
    %3903 = vmatprep.subr.mxu0 0.0
    %3904 = vmatpush1.xpose.msra.mxu0 %v744
    %3905 = vmatprep.subr.mxu0 0.0
    %3906 = vmatpush1.xpose.msra.mxu0 %v741
    %3907 = vmatprep.subr.mxu0 0.0
    %3908 = vmatpush2.xpose.msra.mxu0 0.0
    %3909 = vmatprep.subr.mxu0 0.0
    %3910 = vmatpush2.xpose.msra.mxu0 0.0
    %3911 = vmatprep.subr.mxu0 0.0
    %3912 = vmatpush2.xpose.msra.mxu0 0.0
    %3913 = vmatprep.subr.mxu0 0.0
    %3914 = vmatpush2.xpose.msra.mxu0 0.0
    %3915 = vmatprep.subr.mxu0 0.0
    %3916 = vmatpush2.xpose.msra.mxu0 0.0
    %3917 = vmatprep.subr.mxu0 0.0
    %3918 = vmatpush2.xpose.msra.mxu0 0.0
    %3919 = vmatprep.subr.mxu0 0.0
    %3920 = vmatpush2.xpose.msra.mxu0 0.0
    %3921 = vmatprep.subr.mxu0 0.0
    %3922 = vmatpush2.xpose.msra.mxu0 0.0
    %3923 = vmatprep.subr.mxu0 0.0
    %3924 = vmatpush2.xpose.msra.mxu0 0.0
    %3925 = vmatprep.subr.mxu0 0.0
    %3926 = vmatpush2.xpose.msra.mxu0 0.0
    %3927 = vmatprep.subr.mxu0 0.0
    %3928 = vmatpush2.xpose.msra.mxu0 0.0
    %3929 = vmatprep.subr.mxu0 0.0
    %3930 = vmatpush2.xpose.msra.mxu0 0.0
    %3931 = vmatprep.subr.mxu0 0.0
    %3932 = vmatpush2.xpose.msra.mxu0 0.0
    %3933 = vmatprep.subr.mxu0 0.0
    %3934 = vmatpush2.xpose.msra.mxu0 0.0
    %3935 = vmatprep.subr.mxu0 0.0
    %3936 = vmatpush2.xpose.msra.mxu0 0.0
    %3937 = vmatprep.subr.mxu0 0.0
    %3938 = vmatpush2.xpose.msra.mxu0 0.0
    %3939 = vmatprep.mubr.f32.mxu0 0.0
    %3940 = vmatmul.mubr.f32.gmra.mxu0 %v3873
    %v3941 = vpop.f32.mrf.mxu0
    %v3942 = vadd.f32 0.0, %v3941
    %v3943 = vpop.f32.mrf.mxu0
    %3944 = vdwg.mxu0
    %v3945 = vadd.f32 %v3870, %v166
    %v3946 = vadd.f32 %v3942, %v817
    %v3949 = vrot.slane %v3946, 7
    %v3950 = vsel %vm825, %v3949, %v3945
    %v3952 = vsel %vm828, %v3950, -inf
    %3953 = vmax.xlane.f32.xlu0 %v3952
    %v3954 = vpop.xlane.xlu0 %3953
    %v3956 = vrot.slane %v3954, 1
    %v3959 = vsub.f32 %v3945, %v3954
    %v3960 = vsub.f32 %v3946, %v3956
    %v3961 = vmul.f32 %v3959, 1.442695
    %v3962 = vpow.pop %v3961
    %v3963 = vmul.f32 %v3960, 1.442695
    %v3964 = vpow.pop %v3963
    %v3967 = vrot.slane %v3964, 7
    %v3968 = vsel %vm825, %v3967, %v3962
    %v3970 = vsel %vm828, %v3968, 0.0
    %3971 = vadd.xlane.f32.xlu0 %v3970
    %v3972 = vpop.xlane.xlu0 %3971
    %v3973 = vadd.f32 %v3972, 1e-09
    %v3974 = vrcp.pop %v3973
    %v3976 = vrot.slane %v3974, 1
    %v3979 = vmul.f32 %v3962, %v3974
    %v3980 = vmul.f32 %v3964, %v3976
    %v3982 = vsel %vm221, %v3979, 0
    %3984 = vmatprep.subr.mxu0 0.0
    %3985 = vmatpush1.msra.mxu0 0.0
    %3986 = vmatprep.subr.mxu0 0.0
    %3987 = vmatpush1.msra.mxu0 0.0
    %3988 = vmatprep.subr.mxu0 0.0
    %3989 = vmatpush1.msra.mxu0 0.0
    %3990 = vmatprep.subr.mxu0 0.0
    %3991 = vmatpush1.msra.mxu0 0.0
    %3992 = vmatprep.subr.mxu0 0.0
    %3993 = vmatpush1.msra.mxu0 0.0
    %3994 = vmatprep.subr.mxu0 0.0
    %3995 = vmatpush1.msra.mxu0 0.0
    %3996 = vmatprep.subr.mxu0 0.0
    %3997 = vmatpush1.msra.mxu0 0.0
    %3998 = vmatprep.subr.mxu0 0.0
    %3999 = vmatpush1.msra.mxu0 0.0
    %4000 = vmatprep.subr.mxu0 0.0
    %4001 = vmatpush1.msra.mxu0 0.0
    %4002 = vmatprep.subr.mxu0 0.0
    %4003 = vmatpush1.msra.mxu0 0.0
    %4004 = vmatprep.subr.mxu0 0.0
    %4005 = vmatpush1.msra.mxu0 0.0
    %4006 = vmatprep.subr.mxu0 0.0
    %4007 = vmatpush1.msra.mxu0 0.0
    %4008 = vmatprep.subr.mxu0 0.0
    %4009 = vmatpush1.msra.mxu0 0.0
    %4010 = vmatprep.subr.mxu0 0.0
    %4011 = vmatpush1.msra.mxu0 0.0
    %4012 = vmatprep.subr.mxu0 0.0
    %4013 = vmatpush1.msra.mxu0 %v155
    %4014 = vmatprep.subr.mxu0 0.0
    %4015 = vmatpush1.msra.mxu0 %v154
    %4016 = vmatprep.subr.mxu0 0.0
    %4017 = vmatpush2.msra.mxu0 0.0
    %4018 = vmatprep.subr.mxu0 0.0
    %4019 = vmatpush2.msra.mxu0 0.0
    %4020 = vmatprep.subr.mxu0 0.0
    %4021 = vmatpush2.msra.mxu0 0.0
    %4022 = vmatprep.subr.mxu0 0.0
    %4023 = vmatpush2.msra.mxu0 0.0
    %4024 = vmatprep.subr.mxu0 0.0
    %4025 = vmatpush2.msra.mxu0 0.0
    %4026 = vmatprep.subr.mxu0 0.0
    %4027 = vmatpush2.msra.mxu0 0.0
    %4028 = vmatprep.subr.mxu0 0.0
    %4029 = vmatpush2.msra.mxu0 0.0
    %4030 = vmatprep.subr.mxu0 0.0
    %4031 = vmatpush2.msra.mxu0 0.0
    %4032 = vmatprep.subr.mxu0 0.0
    %4033 = vmatpush2.msra.mxu0 0.0
    %4034 = vmatprep.subr.mxu0 0.0
    %4035 = vmatpush2.msra.mxu0 0.0
    %4036 = vmatprep.subr.mxu0 0.0
    %4037 = vmatpush2.msra.mxu0 0.0
    %4038 = vmatprep.subr.mxu0 0.0
    %4039 = vmatpush2.msra.mxu0 0.0
    %4040 = vmatprep.subr.mxu0 0.0
    %4041 = vmatpush2.msra.mxu0 0.0
    %4042 = vmatprep.subr.mxu0 0.0
    %4043 = vmatpush2.msra.mxu0 0.0
    %4044 = vmatprep.subr.mxu0 0.0
    %4045 = vmatpush2.msra.mxu0 0.0
    %4046 = vmatprep.subr.mxu0 0.0
    %4047 = vmatpush2.msra.mxu0 0.0
    %4048 = vmatprep.mubr.f32.mxu0 0.0
    %4049 = vmatmul.mubr.f32.gmra.mxu0 %v3982
    %v4050 = vpop.f32.mrf.mxu0
    %v4051 = vadd.f32 0.0, %v4050
    %v4052 = vpop.f32.mrf.mxu0
    %4053 = vdwg.mxu0
    %v4055 = vsel %vm221, %v3980, 0
    %4057 = vmatprep.subr.mxu0 0.0
    %4058 = vmatpush1.msra.mxu0 0.0
    %4059 = vmatprep.subr.mxu0 0.0
    %4060 = vmatpush1.msra.mxu0 0.0
    %4061 = vmatprep.subr.mxu0 0.0
    %4062 = vmatpush1.msra.mxu0 0.0
    %4063 = vmatprep.subr.mxu0 0.0
    %4064 = vmatpush1.msra.mxu0 0.0
    %4065 = vmatprep.subr.mxu0 0.0
    %4066 = vmatpush1.msra.mxu0 0.0
    %4067 = vmatprep.subr.mxu0 0.0
    %4068 = vmatpush1.msra.mxu0 0.0
    %4069 = vmatprep.subr.mxu0 0.0
    %4070 = vmatpush1.msra.mxu0 0.0
    %4071 = vmatprep.subr.mxu0 0.0
    %4072 = vmatpush1.msra.mxu0 0.0
    %4073 = vmatprep.subr.mxu0 0.0
    %4074 = vmatpush1.msra.mxu0 0.0
    %4075 = vmatprep.subr.mxu0 0.0
    %4076 = vmatpush1.msra.mxu0 0.0
    %4077 = vmatprep.subr.mxu0 0.0
    %4078 = vmatpush1.msra.mxu0 0.0
    %4079 = vmatprep.subr.mxu0 0.0
    %4080 = vmatpush1.msra.mxu0 0.0
    %4081 = vmatprep.subr.mxu0 0.0
    %4082 = vmatpush1.msra.mxu0 0.0
    %4083 = vmatprep.subr.mxu0 0.0
    %4084 = vmatpush1.msra.mxu0 0.0
    %4085 = vmatprep.subr.mxu0 0.0
    %4086 = vmatpush1.msra.mxu0 %v157
    %4087 = vmatprep.subr.mxu0 0.0
    %4088 = vmatpush1.msra.mxu0 %v156
    %4089 = vmatprep.subr.mxu0 0.0
    %4090 = vmatpush2.msra.mxu0 0.0
    %4091 = vmatprep.subr.mxu0 0.0
    %4092 = vmatpush2.msra.mxu0 0.0
    %4093 = vmatprep.subr.mxu0 0.0
    %4094 = vmatpush2.msra.mxu0 0.0
    %4095 = vmatprep.subr.mxu0 0.0
    %4096 = vmatpush2.msra.mxu0 0.0
    %4097 = vmatprep.subr.mxu0 0.0
    %4098 = vmatpush2.msra.mxu0 0.0
    %4099 = vmatprep.subr.mxu0 0.0
    %4100 = vmatpush2.msra.mxu0 0.0
    %4101 = vmatprep.subr.mxu0 0.0
    %4102 = vmatpush2.msra.mxu0 0.0
    %4103 = vmatprep.subr.mxu0 0.0
    %4104 = vmatpush2.msra.mxu0 0.0
    %4105 = vmatprep.subr.mxu0 0.0
    %4106 = vmatpush2.msra.mxu0 0.0
    %4107 = vmatprep.subr.mxu0 0.0
    %4108 = vmatpush2.msra.mxu0 0.0
    %4109 = vmatprep.subr.mxu0 0.0
    %4110 = vmatpush2.msra.mxu0 0.0
    %4111 = vmatprep.subr.mxu0 0.0
    %4112 = vmatpush2.msra.mxu0 0.0
    %4113 = vmatprep.subr.mxu0 0.0
    %4114 = vmatpush2.msra.mxu0 0.0
    %4115 = vmatprep.subr.mxu0 0.0
    %4116 = vmatpush2.msra.mxu0 0.0
    %4117 = vmatprep.subr.mxu0 0.0
    %4118 = vmatpush2.msra.mxu0 0.0
    %4119 = vmatprep.subr.mxu0 0.0
    %4120 = vmatpush2.msra.mxu0 0.0
    %4121 = vmatprep.mubr.f32.mxu0 0.0
    %4122 = vmatmul.mubr.f32.gmra.mxu0 %v4055
    %v4123 = vpop.f32.mrf.mxu0
    %v4124 = vadd.f32 0.0, %v4123
    %v4125 = vpop.f32.mrf.mxu0
    %4126 = vdwg.mxu0
    %4127 = vmatprep.subr.mxu0 0.0
    %4128 = vmatpush1.xpose.msra.mxu0 0.0
    %4129 = vmatprep.subr.mxu0 0.0
    %4130 = vmatpush1.xpose.msra.mxu0 0.0
    %4131 = vmatprep.subr.mxu0 0.0
    %4132 = vmatpush1.xpose.msra.mxu0 0.0
    %4133 = vmatprep.subr.mxu0 0.0
    %4134 = vmatpush1.xpose.msra.mxu0 0.0
    %4135 = vmatprep.subr.mxu0 0.0
    %4136 = vmatpush1.xpose.msra.mxu0 0.0
    %4137 = vmatprep.subr.mxu0 0.0
    %4138 = vmatpush1.xpose.msra.mxu0 0.0
    %4139 = vmatprep.subr.mxu0 0.0
    %4140 = vmatpush1.xpose.msra.mxu0 0.0
    %4141 = vmatprep.subr.mxu0 0.0
    %4142 = vmatpush1.xpose.msra.mxu0 0.0
    %4143 = vmatprep.subr.mxu0 0.0
    %4144 = vmatpush1.xpose.msra.mxu0 0.0
    %4145 = vmatprep.subr.mxu0 0.0
    %4146 = vmatpush1.xpose.msra.mxu0 0.0
    %4147 = vmatprep.subr.mxu0 0.0
    %4148 = vmatpush1.xpose.msra.mxu0 0.0
    %4149 = vmatprep.subr.mxu0 0.0
    %4150 = vmatpush1.xpose.msra.mxu0 0.0
    %4151 = vmatprep.subr.mxu0 0.0
    %4152 = vmatpush1.xpose.msra.mxu0 0.0
    %4153 = vmatprep.subr.mxu0 0.0
    %4154 = vmatpush1.xpose.msra.mxu0 0.0
    %4155 = vmatprep.subr.mxu0 0.0
    %4156 = vmatpush1.xpose.msra.mxu0 %v1008
    %4157 = vmatprep.subr.mxu0 0.0
    %4158 = vmatpush1.xpose.msra.mxu0 %v1005
    %4159 = vmatprep.subr.mxu0 0.0
    %4160 = vmatpush2.xpose.msra.mxu0 0.0
    %4161 = vmatprep.subr.mxu0 0.0
    %4162 = vmatpush2.xpose.msra.mxu0 0.0
    %4163 = vmatprep.subr.mxu0 0.0
    %4164 = vmatpush2.xpose.msra.mxu0 0.0
    %4165 = vmatprep.subr.mxu0 0.0
    %4166 = vmatpush2.xpose.msra.mxu0 0.0
    %4167 = vmatprep.subr.mxu0 0.0
    %4168 = vmatpush2.xpose.msra.mxu0 0.0
    %4169 = vmatprep.subr.mxu0 0.0
    %4170 = vmatpush2.xpose.msra.mxu0 0.0
    %4171 = vmatprep.subr.mxu0 0.0
    %4172 = vmatpush2.xpose.msra.mxu0 0.0
    %4173 = vmatprep.subr.mxu0 0.0
    %4174 = vmatpush2.xpose.msra.mxu0 0.0
    %4175 = vmatprep.subr.mxu0 0.0
    %4176 = vmatpush2.xpose.msra.mxu0 0.0
    %4177 = vmatprep.subr.mxu0 0.0
    %4178 = vmatpush2.xpose.msra.mxu0 0.0
    %4179 = vmatprep.subr.mxu0 0.0
    %4180 = vmatpush2.xpose.msra.mxu0 0.0
    %4181 = vmatprep.subr.mxu0 0.0
    %4182 = vmatpush2.xpose.msra.mxu0 0.0
    %4183 = vmatprep.subr.mxu0 0.0
    %4184 = vmatpush2.xpose.msra.mxu0 0.0
    %4185 = vmatprep.subr.mxu0 0.0
    %4186 = vmatpush2.xpose.msra.mxu0 0.0
    %4187 = vmatprep.subr.mxu0 0.0
    %4188 = vmatpush2.xpose.msra.mxu0 0.0
    %4189 = vmatprep.subr.mxu0 0.0
    %4190 = vmatpush2.xpose.msra.mxu0 0.0
    %4191 = vmatprep.mubr.f32.mxu0 0.0
    %4192 = vmatmul.mubr.f32.gmra.mxu0 %v3801
    %v4193 = vpop.f32.mrf.mxu0
    %v4194 = vadd.f32 0.0, %v4193
    %v4195 = vpop.f32.mrf.mxu0
    %4196 = vdwg.mxu0
    %4197 = vmatprep.subr.mxu0 0.0
    %4198 = vmatpush1.xpose.msra.mxu0 0.0
    %4199 = vmatprep.subr.mxu0 0.0
    %4200 = vmatpush1.xpose.msra.mxu0 0.0
    %4201 = vmatprep.subr.mxu0 0.0
    %4202 = vmatpush1.xpose.msra.mxu0 0.0
    %4203 = vmatprep.subr.mxu0 0.0
    %4204 = vmatpush1.xpose.msra.mxu0 0.0
    %4205 = vmatprep.subr.mxu0 0.0
    %4206 = vmatpush1.xpose.msra.mxu0 0.0
    %4207 = vmatprep.subr.mxu0 0.0
    %4208 = vmatpush1.xpose.msra.mxu0 0.0
    %4209 = vmatprep.subr.mxu0 0.0
    %4210 = vmatpush1.xpose.msra.mxu0 0.0
    %4211 = vmatprep.subr.mxu0 0.0
    %4212 = vmatpush1.xpose.msra.mxu0 0.0
    %4213 = vmatprep.subr.mxu0 0.0
    %4214 = vmatpush1.xpose.msra.mxu0 0.0
    %4215 = vmatprep.subr.mxu0 0.0
    %4216 = vmatpush1.xpose.msra.mxu0 0.0
    %4217 = vmatprep.subr.mxu0 0.0
    %4218 = vmatpush1.xpose.msra.mxu0 0.0
    %4219 = vmatprep.subr.mxu0 0.0
    %4220 = vmatpush1.xpose.msra.mxu0 0.0
    %4221 = vmatprep.subr.mxu0 0.0
    %4222 = vmatpush1.xpose.msra.mxu0 0.0
    %4223 = vmatprep.subr.mxu0 0.0
    %4224 = vmatpush1.xpose.msra.mxu0 0.0
    %4225 = vmatprep.subr.mxu0 0.0
    %4226 = vmatpush1.xpose.msra.mxu0 %v1084
    %4227 = vmatprep.subr.mxu0 0.0
    %4228 = vmatpush1.xpose.msra.mxu0 %v1081
    %4229 = vmatprep.subr.mxu0 0.0
    %4230 = vmatpush2.xpose.msra.mxu0 0.0
    %4231 = vmatprep.subr.mxu0 0.0
    %4232 = vmatpush2.xpose.msra.mxu0 0.0
    %4233 = vmatprep.subr.mxu0 0.0
    %4234 = vmatpush2.xpose.msra.mxu0 0.0
    %4235 = vmatprep.subr.mxu0 0.0
    %4236 = vmatpush2.xpose.msra.mxu0 0.0
    %4237 = vmatprep.subr.mxu0 0.0
    %4238 = vmatpush2.xpose.msra.mxu0 0.0
    %4239 = vmatprep.subr.mxu0 0.0
    %4240 = vmatpush2.xpose.msra.mxu0 0.0
    %4241 = vmatprep.subr.mxu0 0.0
    %4242 = vmatpush2.xpose.msra.mxu0 0.0
    %4243 = vmatprep.subr.mxu0 0.0
    %4244 = vmatpush2.xpose.msra.mxu0 0.0
    %4245 = vmatprep.subr.mxu0 0.0
    %4246 = vmatpush2.xpose.msra.mxu0 0.0
    %4247 = vmatprep.subr.mxu0 0.0
    %4248 = vmatpush2.xpose.msra.mxu0 0.0
    %4249 = vmatprep.subr.mxu0 0.0
    %4250 = vmatpush2.xpose.msra.mxu0 0.0
    %4251 = vmatprep.subr.mxu0 0.0
    %4252 = vmatpush2.xpose.msra.mxu0 0.0
    %4253 = vmatprep.subr.mxu0 0.0
    %4254 = vmatpush2.xpose.msra.mxu0 0.0
    %4255 = vmatprep.subr.mxu0 0.0
    %4256 = vmatpush2.xpose.msra.mxu0 0.0
    %4257 = vmatprep.subr.mxu0 0.0
    %4258 = vmatpush2.xpose.msra.mxu0 0.0
    %4259 = vmatprep.subr.mxu0 0.0
    %4260 = vmatpush2.xpose.msra.mxu0 0.0
    %4261 = vmatprep.mubr.f32.mxu0 0.0
    %4262 = vmatmul.mubr.f32.gmra.mxu0 %v3873
    %v4263 = vpop.f32.mrf.mxu0
    %v4264 = vadd.f32 0.0, %v4263
    %v4265 = vpop.f32.mrf.mxu0
    %4266 = vdwg.mxu0
    %v4267 = vadd.f32 %v4194, %v167
    %v4268 = vadd.f32 %v4264, %v1157
    %v4271 = vrot.slane %v4268, 7
    %v4272 = vsel %vm825, %v4271, %v4267
    %v4274 = vsel %vm828, %v4272, -inf
    %4275 = vmax.xlane.f32.xlu0 %v4274
    %v4276 = vpop.xlane.xlu0 %4275
    %v4278 = vrot.slane %v4276, 1
    %v4281 = vsub.f32 %v4267, %v4276
    %v4282 = vsub.f32 %v4268, %v4278
    %v4283 = vmul.f32 %v4281, 1.442695
    %v4284 = vpow.pop %v4283
    %v4285 = vmul.f32 %v4282, 1.442695
    %v4286 = vpow.pop %v4285
    %v4289 = vrot.slane %v4286, 7
    %v4290 = vsel %vm825, %v4289, %v4284
    %v4292 = vsel %vm828, %v4290, 0.0
    %4293 = vadd.xlane.f32.xlu0 %v4292
    %v4294 = vpop.xlane.xlu0 %4293
    %v4295 = vadd.f32 %v4294, 1e-09
    %v4296 = vrcp.pop %v4295
    %v4298 = vrot.slane %v4296, 1
    %v4301 = vmul.f32 %v4284, %v4296
    %v4302 = vmul.f32 %v4286, %v4298
    %v4304 = vsel %vm221, %v4301, 0
    %4306 = vmatprep.subr.mxu0 0.0
    %4307 = vmatpush1.msra.mxu0 0.0
    %4308 = vmatprep.subr.mxu0 0.0
    %4309 = vmatpush1.msra.mxu0 0.0
    %4310 = vmatprep.subr.mxu0 0.0
    %4311 = vmatpush1.msra.mxu0 0.0
    %4312 = vmatprep.subr.mxu0 0.0
    %4313 = vmatpush1.msra.mxu0 0.0
    %4314 = vmatprep.subr.mxu0 0.0
    %4315 = vmatpush1.msra.mxu0 0.0
    %4316 = vmatprep.subr.mxu0 0.0
    %4317 = vmatpush1.msra.mxu0 0.0
    %4318 = vmatprep.subr.mxu0 0.0
    %4319 = vmatpush1.msra.mxu0 0.0
    %4320 = vmatprep.subr.mxu0 0.0
    %4321 = vmatpush1.msra.mxu0 0.0
    %4322 = vmatprep.subr.mxu0 0.0
    %4323 = vmatpush1.msra.mxu0 0.0
    %4324 = vmatprep.subr.mxu0 0.0
    %4325 = vmatpush1.msra.mxu0 0.0
    %4326 = vmatprep.subr.mxu0 0.0
    %4327 = vmatpush1.msra.mxu0 0.0
    %4328 = vmatprep.subr.mxu0 0.0
    %4329 = vmatpush1.msra.mxu0 0.0
    %4330 = vmatprep.subr.mxu0 0.0
    %4331 = vmatpush1.msra.mxu0 0.0
    %4332 = vmatprep.subr.mxu0 0.0
    %4333 = vmatpush1.msra.mxu0 0.0
    %4334 = vmatprep.subr.mxu0 0.0
    %4335 = vmatpush1.msra.mxu0 %v163
    %4336 = vmatprep.subr.mxu0 0.0
    %4337 = vmatpush1.msra.mxu0 %v162
    %4338 = vmatprep.subr.mxu0 0.0
    %4339 = vmatpush2.msra.mxu0 0.0
    %4340 = vmatprep.subr.mxu0 0.0
    %4341 = vmatpush2.msra.mxu0 0.0
    %4342 = vmatprep.subr.mxu0 0.0
    %4343 = vmatpush2.msra.mxu0 0.0
    %4344 = vmatprep.subr.mxu0 0.0
    %4345 = vmatpush2.msra.mxu0 0.0
    %4346 = vmatprep.subr.mxu0 0.0
    %4347 = vmatpush2.msra.mxu0 0.0
    %4348 = vmatprep.subr.mxu0 0.0
    %4349 = vmatpush2.msra.mxu0 0.0
    %4350 = vmatprep.subr.mxu0 0.0
    %4351 = vmatpush2.msra.mxu0 0.0
    %4352 = vmatprep.subr.mxu0 0.0
    %4353 = vmatpush2.msra.mxu0 0.0
    %4354 = vmatprep.subr.mxu0 0.0
    %4355 = vmatpush2.msra.mxu0 0.0
    %4356 = vmatprep.subr.mxu0 0.0
    %4357 = vmatpush2.msra.mxu0 0.0
    %4358 = vmatprep.subr.mxu0 0.0
    %4359 = vmatpush2.msra.mxu0 0.0
    %4360 = vmatprep.subr.mxu0 0.0
    %4361 = vmatpush2.msra.mxu0 0.0
    %4362 = vmatprep.subr.mxu0 0.0
    %4363 = vmatpush2.msra.mxu0 0.0
    %4364 = vmatprep.subr.mxu0 0.0
    %4365 = vmatpush2.msra.mxu0 0.0
    %4366 = vmatprep.subr.mxu0 0.0
    %4367 = vmatpush2.msra.mxu0 0.0
    %4368 = vmatprep.subr.mxu0 0.0
    %4369 = vmatpush2.msra.mxu0 0.0
    %4370 = vmatprep.mubr.f32.mxu0 0.0
    %4371 = vmatmul.mubr.f32.gmra.mxu0 %v4304
    %v4372 = vpop.f32.mrf.mxu0
    %v4373 = vadd.f32 0.0, %v4372
    %v4374 = vpop.f32.mrf.mxu0
    %4375 = vdwg.mxu0
    %v4377 = vsel %vm221, %v4302, 0
    %4379 = vmatprep.subr.mxu0 0.0
    %4380 = vmatpush1.msra.mxu0 0.0
    %4381 = vmatprep.subr.mxu0 0.0
    %4382 = vmatpush1.msra.mxu0 0.0
    %4383 = vmatprep.subr.mxu0 0.0
    %4384 = vmatpush1.msra.mxu0 0.0
    %4385 = vmatprep.subr.mxu0 0.0
    %4386 = vmatpush1.msra.mxu0 0.0
    %4387 = vmatprep.subr.mxu0 0.0
    %4388 = vmatpush1.msra.mxu0 0.0
    %4389 = vmatprep.subr.mxu0 0.0
    %4390 = vmatpush1.msra.mxu0 0.0
    %4391 = vmatprep.subr.mxu0 0.0
    %4392 = vmatpush1.msra.mxu0 0.0
    %4393 = vmatprep.subr.mxu0 0.0
    %4394 = vmatpush1.msra.mxu0 0.0
    %4395 = vmatprep.subr.mxu0 0.0
    %4396 = vmatpush1.msra.mxu0 0.0
    %4397 = vmatprep.subr.mxu0 0.0
    %4398 = vmatpush1.msra.mxu0 0.0
    %4399 = vmatprep.subr.mxu0 0.0
    %4400 = vmatpush1.msra.mxu0 0.0
    %4401 = vmatprep.subr.mxu0 0.0
    %4402 = vmatpush1.msra.mxu0 0.0
    %4403 = vmatprep.subr.mxu0 0.0
    %4404 = vmatpush1.msra.mxu0 0.0
    %4405 = vmatprep.subr.mxu0 0.0
    %4406 = vmatpush1.msra.mxu0 0.0
    %4407 = vmatprep.subr.mxu0 0.0
    %4408 = vmatpush1.msra.mxu0 %v165
    %4409 = vmatprep.subr.mxu0 0.0
    %4410 = vmatpush1.msra.mxu0 %v164
    %4411 = vmatprep.subr.mxu0 0.0
    %4412 = vmatpush2.msra.mxu0 0.0
    %4413 = vmatprep.subr.mxu0 0.0
    %4414 = vmatpush2.msra.mxu0 0.0
    %4415 = vmatprep.subr.mxu0 0.0
    %4416 = vmatpush2.msra.mxu0 0.0
    %4417 = vmatprep.subr.mxu0 0.0
    %4418 = vmatpush2.msra.mxu0 0.0
    %4419 = vmatprep.subr.mxu0 0.0
    %4420 = vmatpush2.msra.mxu0 0.0
    %4421 = vmatprep.subr.mxu0 0.0
    %4422 = vmatpush2.msra.mxu0 0.0
    %4423 = vmatprep.subr.mxu0 0.0
    %4424 = vmatpush2.msra.mxu0 0.0
    %4425 = vmatprep.subr.mxu0 0.0
    %4426 = vmatpush2.msra.mxu0 0.0
    %4427 = vmatprep.subr.mxu0 0.0
    %4428 = vmatpush2.msra.mxu0 0.0
    %4429 = vmatprep.subr.mxu0 0.0
    %4430 = vmatpush2.msra.mxu0 0.0
    %4431 = vmatprep.subr.mxu0 0.0
    %4432 = vmatpush2.msra.mxu0 0.0
    %4433 = vmatprep.subr.mxu0 0.0
    %4434 = vmatpush2.msra.mxu0 0.0
    %4435 = vmatprep.subr.mxu0 0.0
    %4436 = vmatpush2.msra.mxu0 0.0
    %4437 = vmatprep.subr.mxu0 0.0
    %4438 = vmatpush2.msra.mxu0 0.0
    %4439 = vmatprep.subr.mxu0 0.0
    %4440 = vmatpush2.msra.mxu0 0.0
    %4441 = vmatprep.subr.mxu0 0.0
    %4442 = vmatpush2.msra.mxu0 0.0
    %4443 = vmatprep.mubr.f32.mxu0 0.0
    %4444 = vmatmul.mubr.f32.gmra.mxu0 %v4377
    %v4445 = vpop.f32.mrf.mxu0
    %v4446 = vadd.f32 0.0, %v4445
    %v4447 = vpop.f32.mrf.mxu0
    %4448 = vdwg.mxu0
    %v4451 = vrot.slane %v4051, 2
    %v4452 = vrot.slane %v4124, 1
    %vm4453 = vcmask 1047559
    %v4454 = vsel %vm4453, %v4452, %v4451
    %4455 = vrot.lane.b32.xlu0 %v4454, 32
    %v4456 = vpop.permute.xlu0 %4455
    %v4460 = vrot.slane %v4373, 2
    %v4461 = vrot.slane %v4446, 1
    %v4462 = vsel %vm4453, %v4461, %v4460
    %4463 = vrot.lane.b32.xlu0 %v4462, 64
    %v4464 = vpop.permute.xlu0 %4463
    %v4466 = vsel %vm309, %v3774, %v4456
    %v4467 = vsel %vm392, %v4466, %v4464
    %v4469 = vrot.slane %v4467, 6
    %v4470 = vsel %vm1364, %v4469, 0
    %4472 = vmatprep.subr.mxu0 0.0
    %4473 = vmatpush1.msra.mxu0 0.0
    %4474 = vmatprep.subr.mxu0 0.0
    %4475 = vmatpush1.msra.mxu0 0.0
    %4476 = vmatprep.subr.mxu0 0.0
    %4477 = vmatpush1.msra.mxu0 0.0
    %4478 = vmatprep.subr.mxu0 0.0
    %4479 = vmatpush1.msra.mxu0 0.0
    %4480 = vmatprep.subr.mxu0 0.0
    %4481 = vmatpush1.msra.mxu0 %v202
    %4482 = vmatprep.subr.mxu0 0.0
    %4483 = vmatpush1.msra.mxu0 %v201
    %4484 = vmatprep.subr.mxu0 0.0
    %4485 = vmatpush1.msra.mxu0 %v200
    %4486 = vmatprep.subr.mxu0 0.0
    %4487 = vmatpush1.msra.mxu0 %v199
    %4488 = vmatprep.subr.mxu0 0.0
    %4489 = vmatpush1.msra.mxu0 %v198
    %4490 = vmatprep.subr.mxu0 0.0
    %4491 = vmatpush1.msra.mxu0 %v197
    %4492 = vmatprep.subr.mxu0 0.0
    %4493 = vmatpush1.msra.mxu0 %v196
    %4494 = vmatprep.subr.mxu0 0.0
    %4495 = vmatpush1.msra.mxu0 %v195
    %4496 = vmatprep.subr.mxu0 0.0
    %4497 = vmatpush1.msra.mxu0 %v194
    %4498 = vmatprep.subr.mxu0 0.0
    %4499 = vmatpush1.msra.mxu0 %v193
    %4500 = vmatprep.subr.mxu0 0.0
    %4501 = vmatpush1.msra.mxu0 %v192
    %4502 = vmatprep.subr.mxu0 0.0
    %4503 = vmatpush1.msra.mxu0 %v191
    %4504 = vmatprep.subr.mxu0 0.0
    %4505 = vmatpush2.msra.mxu0 0.0
    %4506 = vmatprep.subr.mxu0 0.0
    %4507 = vmatpush2.msra.mxu0 0.0
    %4508 = vmatprep.subr.mxu0 0.0
    %4509 = vmatpush2.msra.mxu0 0.0
    %4510 = vmatprep.subr.mxu0 0.0
    %4511 = vmatpush2.msra.mxu0 0.0
    %4512 = vmatprep.subr.mxu0 0.0
    %4513 = vmatpush2.msra.mxu0 0.0
    %4514 = vmatprep.subr.mxu0 0.0
    %4515 = vmatpush2.msra.mxu0 0.0
    %4516 = vmatprep.subr.mxu0 0.0
    %4517 = vmatpush2.msra.mxu0 0.0
    %4518 = vmatprep.subr.mxu0 0.0
    %4519 = vmatpush2.msra.mxu0 0.0
    %4520 = vmatprep.subr.mxu0 0.0
    %4521 = vmatpush2.msra.mxu0 0.0
    %4522 = vmatprep.subr.mxu0 0.0
    %4523 = vmatpush2.msra.mxu0 0.0
    %4524 = vmatprep.subr.mxu0 0.0
    %4525 = vmatpush2.msra.mxu0 0.0
    %4526 = vmatprep.subr.mxu0 0.0
    %4527 = vmatpush2.msra.mxu0 0.0
    %4528 = vmatprep.subr.mxu0 0.0
    %4529 = vmatpush2.msra.mxu0 0.0
    %4530 = vmatprep.subr.mxu0 0.0
    %4531 = vmatpush2.msra.mxu0 0.0
    %4532 = vmatprep.subr.mxu0 0.0
    %4533 = vmatpush2.msra.mxu0 0.0
    %4534 = vmatprep.subr.mxu0 0.0
    %4535 = vmatpush2.msra.mxu0 0.0
    %4536 = vmatprep.mubr.f32.mxu0 0.0
    %4537 = vmatmul.mubr.f32.gmra.mxu0 %v4470
    %v4538 = vpop.f32.mrf.mxu0
    %v4539 = vadd.f32 %v1362, %v4538
    %v4540 = vpop.f32.mrf.mxu0
    %4541 = vdwg.mxu0
    %4543 = vrot.lane.b32.xlu0 %v4539, 48
    %v4544 = vpop.permute.xlu0 %4543
    %vm4546 = vcmask 517504
    %4547 = vst.msk [vmem:[#allocation16] sm:$0x3] %vm4546, %v4544
    %v4548 = vrot.slane %v4124, 7
    %v4549 = vsel %vm825, %v4548, %v4051
    %v4551 = vrot.slane %v4446, 7
    %v4552 = vsel %vm825, %v4551, %v4373
    %4553 = vrot.lane.b32.xlu0 %v4552, 32
    %v4554 = vpop.permute.xlu0 %4553
    %v4556 = vsel %vm309, %v4549, %v4554
    %v4558 = vsel %vm392, %v4556, 0
    %4560 = vmatprep.subr.mxu0 0.0
    %4561 = vmatpush1.msra.mxu0 0.0
    %4562 = vmatprep.subr.mxu0 0.0
    %4563 = vmatpush1.msra.mxu0 0.0
    %4564 = vmatprep.subr.mxu0 0.0
    %4565 = vmatpush1.msra.mxu0 0.0
    %4566 = vmatprep.subr.mxu0 0.0
    %4567 = vmatpush1.msra.mxu0 0.0
    %4568 = vmatprep.subr.mxu0 0.0
    %4569 = vmatpush1.msra.mxu0 0.0
    %4570 = vmatprep.subr.mxu0 0.0
    %4571 = vmatpush1.msra.mxu0 0.0
    %4572 = vmatprep.subr.mxu0 0.0
    %4573 = vmatpush1.msra.mxu0 0.0
    %4574 = vmatprep.subr.mxu0 0.0
    %4575 = vmatpush1.msra.mxu0 0.0
    %4576 = vmatprep.subr.mxu0 0.0
    %4577 = vmatpush1.msra.mxu0 %v181
    %4578 = vmatprep.subr.mxu0 0.0
    %4579 = vmatpush1.msra.mxu0 %v180
    %4580 = vmatprep.subr.mxu0 0.0
    %4581 = vmatpush1.msra.mxu0 %v179
    %4582 = vmatprep.subr.mxu0 0.0
    %4583 = vmatpush1.msra.mxu0 %v178
    %4584 = vmatprep.subr.mxu0 0.0
    %4585 = vmatpush1.msra.mxu0 %v177
    %4586 = vmatprep.subr.mxu0 0.0
    %4587 = vmatpush1.msra.mxu0 %v176
    %4588 = vmatprep.subr.mxu0 0.0
    %4589 = vmatpush1.msra.mxu0 %v175
    %4590 = vmatprep.subr.mxu0 0.0
    %4591 = vmatpush1.msra.mxu0 %v174
    %4592 = vmatprep.subr.mxu0 0.0
    %4593 = vmatpush2.msra.mxu0 0.0
    %4594 = vmatprep.subr.mxu0 0.0
    %4595 = vmatpush2.msra.mxu0 0.0
    %4596 = vmatprep.subr.mxu0 0.0
    %4597 = vmatpush2.msra.mxu0 0.0
    %4598 = vmatprep.subr.mxu0 0.0
    %4599 = vmatpush2.msra.mxu0 0.0
    %4600 = vmatprep.subr.mxu0 0.0
    %4601 = vmatpush2.msra.mxu0 0.0
    %4602 = vmatprep.subr.mxu0 0.0
    %4603 = vmatpush2.msra.mxu0 0.0
    %4604 = vmatprep.subr.mxu0 0.0
    %4605 = vmatpush2.msra.mxu0 0.0
    %4606 = vmatprep.subr.mxu0 0.0
    %4607 = vmatpush2.msra.mxu0 0.0
    %4608 = vmatprep.subr.mxu0 0.0
    %4609 = vmatpush2.msra.mxu0 0.0
    %4610 = vmatprep.subr.mxu0 0.0
    %4611 = vmatpush2.msra.mxu0 0.0
    %4612 = vmatprep.subr.mxu0 0.0
    %4613 = vmatpush2.msra.mxu0 0.0
    %4614 = vmatprep.subr.mxu0 0.0
    %4615 = vmatpush2.msra.mxu0 0.0
    %4616 = vmatprep.subr.mxu0 0.0
    %4617 = vmatpush2.msra.mxu0 0.0
    %4618 = vmatprep.subr.mxu0 0.0
    %4619 = vmatpush2.msra.mxu0 0.0
    %4620 = vmatprep.subr.mxu0 0.0
    %4621 = vmatpush2.msra.mxu0 0.0
    %4622 = vmatprep.subr.mxu0 0.0
    %4623 = vmatpush2.msra.mxu0 0.0
    %4624 = vmatprep.mubr.f32.mxu0 0.0
    %4625 = vmatmul.mubr.f32.gmra.mxu0 %v4558
    %v4626 = vpop.f32.mrf.mxu0
    %v4627 = vadd.f32 0.0, %v4626
    %v4628 = vpop.f32.mrf.mxu0
    %4629 = vdwg.mxu0
    %v4630 = vadd.f32 %v388, %v4627
    %v4631 = vrot.slane %v3774, 6
    %v4632 = vsel %vm309, %v4631, 0
    %4634 = vmatprep.subr.mxu0 0.0
    %4635 = vmatpush1.msra.mxu0 0.0
    %4636 = vmatprep.subr.mxu0 0.0
    %4637 = vmatpush1.msra.mxu0 0.0
    %4638 = vmatprep.subr.mxu0 0.0
    %4639 = vmatpush1.msra.mxu0 0.0
    %4640 = vmatprep.subr.mxu0 0.0
    %4641 = vmatpush1.msra.mxu0 0.0
    %4642 = vmatprep.subr.mxu0 0.0
    %4643 = vmatpush1.msra.mxu0 0.0
    %4644 = vmatprep.subr.mxu0 0.0
    %4645 = vmatpush1.msra.mxu0 0.0
    %4646 = vmatprep.subr.mxu0 0.0
    %4647 = vmatpush1.msra.mxu0 0.0
    %4648 = vmatprep.subr.mxu0 0.0
    %4649 = vmatpush1.msra.mxu0 0.0
    %4650 = vmatprep.subr.mxu0 0.0
    %4651 = vmatpush1.msra.mxu0 0.0
    %4652 = vmatprep.subr.mxu0 0.0
    %4653 = vmatpush1.msra.mxu0 0.0
    %4654 = vmatprep.subr.mxu0 0.0
    %4655 = vmatpush1.msra.mxu0 0.0
    %4656 = vmatprep.subr.mxu0 0.0
    %4657 = vmatpush1.msra.mxu0 0.0
    %4658 = vmatprep.subr.mxu0 0.0
    %4659 = vmatpush1.msra.mxu0 %v185
    %4660 = vmatprep.subr.mxu0 0.0
    %4661 = vmatpush1.msra.mxu0 %v184
    %4662 = vmatprep.subr.mxu0 0.0
    %4663 = vmatpush1.msra.mxu0 %v183
    %4664 = vmatprep.subr.mxu0 0.0
    %4665 = vmatpush1.msra.mxu0 %v182
    %4666 = vmatprep.subr.mxu0 0.0
    %4667 = vmatpush2.msra.mxu0 0.0
    %4668 = vmatprep.subr.mxu0 0.0
    %4669 = vmatpush2.msra.mxu0 0.0
    %4670 = vmatprep.subr.mxu0 0.0
    %4671 = vmatpush2.msra.mxu0 0.0
    %4672 = vmatprep.subr.mxu0 0.0
    %4673 = vmatpush2.msra.mxu0 0.0
    %4674 = vmatprep.subr.mxu0 0.0
    %4675 = vmatpush2.msra.mxu0 0.0
    %4676 = vmatprep.subr.mxu0 0.0
    %4677 = vmatpush2.msra.mxu0 0.0
    %4678 = vmatprep.subr.mxu0 0.0
    %4679 = vmatpush2.msra.mxu0 0.0
    %4680 = vmatprep.subr.mxu0 0.0
    %4681 = vmatpush2.msra.mxu0 0.0
    %4682 = vmatprep.subr.mxu0 0.0
    %4683 = vmatpush2.msra.mxu0 0.0
    %4684 = vmatprep.subr.mxu0 0.0
    %4685 = vmatpush2.msra.mxu0 0.0
    %4686 = vmatprep.subr.mxu0 0.0
    %4687 = vmatpush2.msra.mxu0 0.0
    %4688 = vmatprep.subr.mxu0 0.0
    %4689 = vmatpush2.msra.mxu0 0.0
    %4690 = vmatprep.subr.mxu0 0.0
    %4691 = vmatpush2.msra.mxu0 0.0
    %4692 = vmatprep.subr.mxu0 0.0
    %4693 = vmatpush2.msra.mxu0 0.0
    %4694 = vmatprep.subr.mxu0 0.0
    %4695 = vmatpush2.msra.mxu0 0.0
    %4696 = vmatprep.subr.mxu0 0.0
    %4697 = vmatpush2.msra.mxu0 0.0
    %4698 = vmatprep.mubr.f32.mxu0 0.0
    %4699 = vmatmul.mubr.f32.gmra.mxu0 %v4632
    %v4700 = vpop.f32.mrf.mxu0
    %v4701 = vadd.f32 0.0, %v4700
    %v4702 = vpop.f32.mrf.mxu0
    %4703 = vdwg.mxu0
    %v4704 = vadd.f32 %v4630, %v4701
    %v4705 = vxor.u32 %v4704, 2147483648
    %v4706 = vmul.f32 %v4705, 1.442695
    %v4707 = vpow.pop %v4706
    %v4708 = vadd.f32 %v4707, 1.0
    %v4709 = vrcp.pop %v4708
    %v4710 = vmul.f32 1.0, %v4709
    %4711 = vrot.lane.b32.xlu0 %v4631, 32
    %v4712 = vpop.permute.xlu0 %4711
    %v4714 = vmul.f32 %v4710, %v4712
    %4716 = vrot.lane.b32.xlu0 %v4714, 96
    %v4717 = vpop.permute.xlu0 %4716
    %v4718 = vsel %vm309, %v4717, 0
    %4720 = vmatprep.subr.mxu0 0.0
    %4721 = vmatpush1.msra.mxu0 0.0
    %4722 = vmatprep.subr.mxu0 0.0
    %4723 = vmatpush1.msra.mxu0 0.0
    %4724 = vmatprep.subr.mxu0 0.0
    %4725 = vmatpush1.msra.mxu0 0.0
    %4726 = vmatprep.subr.mxu0 0.0
    %4727 = vmatpush1.msra.mxu0 0.0
    %4728 = vmatprep.subr.mxu0 0.0
    %4729 = vmatpush1.msra.mxu0 0.0
    %4730 = vmatprep.subr.mxu0 0.0
    %4731 = vmatpush1.msra.mxu0 0.0
    %4732 = vmatprep.subr.mxu0 0.0
    %4733 = vmatpush1.msra.mxu0 0.0
    %4734 = vmatprep.subr.mxu0 0.0
    %4735 = vmatpush1.msra.mxu0 0.0
    %4736 = vmatprep.subr.mxu0 0.0
    %4737 = vmatpush1.msra.mxu0 0.0
    %4738 = vmatprep.subr.mxu0 0.0
    %4739 = vmatpush1.msra.mxu0 0.0
    %4740 = vmatprep.subr.mxu0 0.0
    %4741 = vmatpush1.msra.mxu0 0.0
    %4742 = vmatprep.subr.mxu0 0.0
    %4743 = vmatpush1.msra.mxu0 0.0
    %4744 = vmatprep.subr.mxu0 0.0
    %4745 = vmatpush1.msra.mxu0 %v189
    %4746 = vmatprep.subr.mxu0 0.0
    %4747 = vmatpush1.msra.mxu0 %v188
    %4748 = vmatprep.subr.mxu0 0.0
    %4749 = vmatpush1.msra.mxu0 %v187
    %4750 = vmatprep.subr.mxu0 0.0
    %4751 = vmatpush1.msra.mxu0 %v186
    %4752 = vmatprep.subr.mxu0 0.0
    %4753 = vmatpush2.msra.mxu0 0.0
    %4754 = vmatprep.subr.mxu0 0.0
    %4755 = vmatpush2.msra.mxu0 0.0
    %4756 = vmatprep.subr.mxu0 0.0
    %4757 = vmatpush2.msra.mxu0 0.0
    %4758 = vmatprep.subr.mxu0 0.0
    %4759 = vmatpush2.msra.mxu0 0.0
    %4760 = vmatprep.subr.mxu0 0.0
    %4761 = vmatpush2.msra.mxu0 0.0
    %4762 = vmatprep.subr.mxu0 0.0
    %4763 = vmatpush2.msra.mxu0 0.0
    %4764 = vmatprep.subr.mxu0 0.0
    %4765 = vmatpush2.msra.mxu0 0.0
    %4766 = vmatprep.subr.mxu0 0.0
    %4767 = vmatpush2.msra.mxu0 0.0
    %4768 = vmatprep.subr.mxu0 0.0
    %4769 = vmatpush2.msra.mxu0 0.0
    %4770 = vmatprep.subr.mxu0 0.0
    %4771 = vmatpush2.msra.mxu0 0.0
    %4772 = vmatprep.subr.mxu0 0.0
    %4773 = vmatpush2.msra.mxu0 0.0
    %4774 = vmatprep.subr.mxu0 0.0
    %4775 = vmatpush2.msra.mxu0 0.0
    %4776 = vmatprep.subr.mxu0 0.0
    %4777 = vmatpush2.msra.mxu0 0.0
    %4778 = vmatprep.subr.mxu0 0.0
    %4779 = vmatpush2.msra.mxu0 0.0
    %4780 = vmatprep.subr.mxu0 0.0
    %4781 = vmatpush2.msra.mxu0 0.0
    %4782 = vmatprep.subr.mxu0 0.0
    %4783 = vmatpush2.msra.mxu0 0.0
    %4784 = vmatprep.mubr.f32.mxu0 0.0
    %4785 = vmatmul.mubr.f32.gmra.mxu0 %v4718
    %v4786 = vpop.f32.mrf.mxu0
    %v4787 = vadd.f32 0.0, %v4786
    %v4788 = vpop.f32.mrf.mxu0
    %4789 = vdwg.mxu0
    %4791 = vrot.lane.b32.xlu0 %v4787, 64
    %v4792 = vpop.permute.xlu0 %4791
    %v4794 = vadd.f32 %v4630, %v4792
    %v4795 = vtanh.pop %v4794
    %v4796 = vsub.f32 1.0, %v4710
    %v4798 = vmul.f32 %v4796, %v4631
    %4800 = vrot.lane.b32.xlu0 %v4795, 64
    %v4801 = vpop.permute.xlu0 %4800
    %v4803 = vmul.f32 %v4710, %v4801
    %v4804 = vadd.f32 %v4798, %v4803
    %v4807 = vunpack.c.l.s4 1966171168
    %v4808 = vunpack.c.0.s8 %v4807
    %v4809 = vlaneseq
    %v4810 = vshrl.u32 %v4809, 7
    %v4811 = vsub.s32 %v4808, %v4810
    %v4812 = vrot.slane %v4804, %v4811
    %v4813 = vcombine.high %v4812, %v4812
    %v4815 = vunpack.c.l.s4 1966171168
    %v4816 = vunpack.c.0.s8 %v4815
    %v4817 = vlaneseq
    %v4818 = vshrl.u32 %v4817, 7
    %v4819 = vsub.s32 %v4816, %v4818
    %v4820 = vrot.slane %v4812, %v4819
    %v4822 = vunpack.c.l.s4 1966171168
    %v4823 = vunpack.c.0.s8 %v4822
    %v4824 = vlaneseq
    %v4825 = vshrl.u32 %v4824, 7
    %v4826 = vsub.s32 %v4823, %v4825
    %v4827 = vrot.slane %v4813, %v4826
    %v4828 = vsel %vm309, %v4820, 0
    %4830 = vmatprep.subr.mxu0 0.0
    %4831 = vmatpush1.xpose.msra.mxu0 0.0
    %4832 = vmatprep.subr.mxu0 0.0
    %4833 = vmatpush1.xpose.msra.mxu0 0.0
    %4834 = vmatprep.subr.mxu0 0.0
    %4835 = vmatpush1.xpose.msra.mxu0 0.0
    %4836 = vmatprep.subr.mxu0 0.0
    %4837 = vmatpush1.xpose.msra.mxu0 0.0
    %4838 = vmatprep.subr.mxu0 0.0
    %4839 = vmatpush1.xpose.msra.mxu0 0.0
    %4840 = vmatprep.subr.mxu0 0.0
    %4841 = vmatpush1.xpose.msra.mxu0 0.0
    %4842 = vmatprep.subr.mxu0 0.0
    %4843 = vmatpush1.xpose.msra.mxu0 0.0
    %4844 = vmatprep.subr.mxu0 0.0
    %4845 = vmatpush1.xpose.msra.mxu0 0.0
    %4846 = vmatprep.subr.mxu0 0.0
    %4847 = vmatpush1.xpose.msra.mxu0 0.0
    %4848 = vmatprep.subr.mxu0 0.0
    %4849 = vmatpush1.xpose.msra.mxu0 0.0
    %4850 = vmatprep.subr.mxu0 0.0
    %4851 = vmatpush1.xpose.msra.mxu0 0.0
    %4852 = vmatprep.subr.mxu0 0.0
    %4853 = vmatpush1.xpose.msra.mxu0 0.0
    %4854 = vmatprep.subr.mxu0 0.0
    %4855 = vmatpush1.xpose.msra.mxu0 0.0
    %4856 = vmatprep.subr.mxu0 0.0
    %4857 = vmatpush1.xpose.msra.mxu0 0.0
    %4858 = vmatprep.subr.mxu0 0.0
    %4859 = vmatpush1.xpose.msra.mxu0 %v666
    %4860 = vmatprep.subr.mxu0 0.0
    %4861 = vmatpush1.xpose.msra.mxu0 %v663
    %4862 = vmatprep.subr.mxu0 0.0
    %4863 = vmatpush2.xpose.msra.mxu0 0.0
    %4864 = vmatprep.subr.mxu0 0.0
    %4865 = vmatpush2.xpose.msra.mxu0 0.0
    %4866 = vmatprep.subr.mxu0 0.0
    %4867 = vmatpush2.xpose.msra.mxu0 0.0
    %4868 = vmatprep.subr.mxu0 0.0
    %4869 = vmatpush2.xpose.msra.mxu0 0.0
    %4870 = vmatprep.subr.mxu0 0.0
    %4871 = vmatpush2.xpose.msra.mxu0 0.0
    %4872 = vmatprep.subr.mxu0 0.0
    %4873 = vmatpush2.xpose.msra.mxu0 0.0
    %4874 = vmatprep.subr.mxu0 0.0
    %4875 = vmatpush2.xpose.msra.mxu0 0.0
    %4876 = vmatprep.subr.mxu0 0.0
    %4877 = vmatpush2.xpose.msra.mxu0 0.0
    %4878 = vmatprep.subr.mxu0 0.0
    %4879 = vmatpush2.xpose.msra.mxu0 0.0
    %4880 = vmatprep.subr.mxu0 0.0
    %4881 = vmatpush2.xpose.msra.mxu0 0.0
    %4882 = vmatprep.subr.mxu0 0.0
    %4883 = vmatpush2.xpose.msra.mxu0 0.0
    %4884 = vmatprep.subr.mxu0 0.0
    %4885 = vmatpush2.xpose.msra.mxu0 0.0
    %4886 = vmatprep.subr.mxu0 0.0
    %4887 = vmatpush2.xpose.msra.mxu0 0.0
    %4888 = vmatprep.subr.mxu0 0.0
    %4889 = vmatpush2.xpose.msra.mxu0 0.0
    %4890 = vmatprep.subr.mxu0 0.0
    %4891 = vmatpush2.xpose.msra.mxu0 0.0
    %4892 = vmatprep.subr.mxu0 0.0
    %4893 = vmatpush2.xpose.msra.mxu0 0.0
    %4894 = vmatprep.mubr.f32.mxu0 0.0
    %4895 = vmatmul.mubr.f32.gmra.mxu0 %v4828
    %v4896 = vpop.f32.mrf.mxu0
    %v4897 = vadd.f32 0.0, %v4896
    %v4898 = vpop.f32.mrf.mxu0
    %4899 = vdwg.mxu0
    %v4900 = vsel %vm309, %v4827, 0
    %4902 = vmatprep.subr.mxu0 0.0
    %4903 = vmatpush1.xpose.msra.mxu0 0.0
    %4904 = vmatprep.subr.mxu0 0.0
    %4905 = vmatpush1.xpose.msra.mxu0 0.0
    %4906 = vmatprep.subr.mxu0 0.0
    %4907 = vmatpush1.xpose.msra.mxu0 0.0
    %4908 = vmatprep.subr.mxu0 0.0
    %4909 = vmatpush1.xpose.msra.mxu0 0.0
    %4910 = vmatprep.subr.mxu0 0.0
    %4911 = vmatpush1.xpose.msra.mxu0 0.0
    %4912 = vmatprep.subr.mxu0 0.0
    %4913 = vmatpush1.xpose.msra.mxu0 0.0
    %4914 = vmatprep.subr.mxu0 0.0
    %4915 = vmatpush1.xpose.msra.mxu0 0.0
    %4916 = vmatprep.subr.mxu0 0.0
    %4917 = vmatpush1.xpose.msra.mxu0 0.0
    %4918 = vmatprep.subr.mxu0 0.0
    %4919 = vmatpush1.xpose.msra.mxu0 0.0
    %4920 = vmatprep.subr.mxu0 0.0
    %4921 = vmatpush1.xpose.msra.mxu0 0.0
    %4922 = vmatprep.subr.mxu0 0.0
    %4923 = vmatpush1.xpose.msra.mxu0 0.0
    %4924 = vmatprep.subr.mxu0 0.0
    %4925 = vmatpush1.xpose.msra.mxu0 0.0
    %4926 = vmatprep.subr.mxu0 0.0
    %4927 = vmatpush1.xpose.msra.mxu0 0.0
    %4928 = vmatprep.subr.mxu0 0.0
    %4929 = vmatpush1.xpose.msra.mxu0 0.0
    %4930 = vmatprep.subr.mxu0 0.0
    %4931 = vmatpush1.xpose.msra.mxu0 %v744
    %4932 = vmatprep.subr.mxu0 0.0
    %4933 = vmatpush1.xpose.msra.mxu0 %v741
    %4934 = vmatprep.subr.mxu0 0.0
    %4935 = vmatpush2.xpose.msra.mxu0 0.0
    %4936 = vmatprep.subr.mxu0 0.0
    %4937 = vmatpush2.xpose.msra.mxu0 0.0
    %4938 = vmatprep.subr.mxu0 0.0
    %4939 = vmatpush2.xpose.msra.mxu0 0.0
    %4940 = vmatprep.subr.mxu0 0.0
    %4941 = vmatpush2.xpose.msra.mxu0 0.0
    %4942 = vmatprep.subr.mxu0 0.0
    %4943 = vmatpush2.xpose.msra.mxu0 0.0
    %4944 = vmatprep.subr.mxu0 0.0
    %4945 = vmatpush2.xpose.msra.mxu0 0.0
    %4946 = vmatprep.subr.mxu0 0.0
    %4947 = vmatpush2.xpose.msra.mxu0 0.0
    %4948 = vmatprep.subr.mxu0 0.0
    %4949 = vmatpush2.xpose.msra.mxu0 0.0
    %4950 = vmatprep.subr.mxu0 0.0
    %4951 = vmatpush2.xpose.msra.mxu0 0.0
    %4952 = vmatprep.subr.mxu0 0.0
    %4953 = vmatpush2.xpose.msra.mxu0 0.0
    %4954 = vmatprep.subr.mxu0 0.0
    %4955 = vmatpush2.xpose.msra.mxu0 0.0
    %4956 = vmatprep.subr.mxu0 0.0
    %4957 = vmatpush2.xpose.msra.mxu0 0.0
    %4958 = vmatprep.subr.mxu0 0.0
    %4959 = vmatpush2.xpose.msra.mxu0 0.0
    %4960 = vmatprep.subr.mxu0 0.0
    %4961 = vmatpush2.xpose.msra.mxu0 0.0
    %4962 = vmatprep.subr.mxu0 0.0
    %4963 = vmatpush2.xpose.msra.mxu0 0.0
    %4964 = vmatprep.subr.mxu0 0.0
    %4965 = vmatpush2.xpose.msra.mxu0 0.0
    %4966 = vmatprep.mubr.f32.mxu0 0.0
    %4967 = vmatmul.mubr.f32.gmra.mxu0 %v4900
    %v4968 = vpop.f32.mrf.mxu0
    %v4969 = vadd.f32 0.0, %v4968
    %v4970 = vpop.f32.mrf.mxu0
    %4971 = vdwg.mxu0
    %v4972 = vadd.f32 %v4897, %v166
    %v4973 = vadd.f32 %v4969, %v817
    %v4976 = vrot.slane %v4973, 7
    %v4977 = vsel %vm825, %v4976, %v4972
    %v4979 = vsel %vm828, %v4977, -inf
    %4980 = vmax.xlane.f32.xlu0 %v4979
    %v4981 = vpop.xlane.xlu0 %4980
    %v4983 = vrot.slane %v4981, 1
    %v4986 = vsub.f32 %v4972, %v4981
    %v4987 = vsub.f32 %v4973, %v4983
    %v4988 = vmul.f32 %v4986, 1.442695
    %v4989 = vpow.pop %v4988
    %v4990 = vmul.f32 %v4987, 1.442695
    %v4991 = vpow.pop %v4990
    %v4994 = vrot.slane %v4991, 7
    %v4995 = vsel %vm825, %v4994, %v4989
    %v4997 = vsel %vm828, %v4995, 0.0
    %4998 = vadd.xlane.f32.xlu0 %v4997
    %v4999 = vpop.xlane.xlu0 %4998
    %v5000 = vadd.f32 %v4999, 1e-09
    %v5001 = vrcp.pop %v5000
    %v5003 = vrot.slane %v5001, 1
    %v5006 = vmul.f32 %v4989, %v5001
    %v5007 = vmul.f32 %v4991, %v5003
    %v5009 = vsel %vm221, %v5006, 0
    %5011 = vmatprep.subr.mxu0 0.0
    %5012 = vmatpush1.msra.mxu0 0.0
    %5013 = vmatprep.subr.mxu0 0.0
    %5014 = vmatpush1.msra.mxu0 0.0
    %5015 = vmatprep.subr.mxu0 0.0
    %5016 = vmatpush1.msra.mxu0 0.0
    %5017 = vmatprep.subr.mxu0 0.0
    %5018 = vmatpush1.msra.mxu0 0.0
    %5019 = vmatprep.subr.mxu0 0.0
    %5020 = vmatpush1.msra.mxu0 0.0
    %5021 = vmatprep.subr.mxu0 0.0
    %5022 = vmatpush1.msra.mxu0 0.0
    %5023 = vmatprep.subr.mxu0 0.0
    %5024 = vmatpush1.msra.mxu0 0.0
    %5025 = vmatprep.subr.mxu0 0.0
    %5026 = vmatpush1.msra.mxu0 0.0
    %5027 = vmatprep.subr.mxu0 0.0
    %5028 = vmatpush1.msra.mxu0 0.0
    %5029 = vmatprep.subr.mxu0 0.0
    %5030 = vmatpush1.msra.mxu0 0.0
    %5031 = vmatprep.subr.mxu0 0.0
    %5032 = vmatpush1.msra.mxu0 0.0
    %5033 = vmatprep.subr.mxu0 0.0
    %5034 = vmatpush1.msra.mxu0 0.0
    %5035 = vmatprep.subr.mxu0 0.0
    %5036 = vmatpush1.msra.mxu0 0.0
    %5037 = vmatprep.subr.mxu0 0.0
    %5038 = vmatpush1.msra.mxu0 0.0
    %5039 = vmatprep.subr.mxu0 0.0
    %5040 = vmatpush1.msra.mxu0 %v155
    %5041 = vmatprep.subr.mxu0 0.0
    %5042 = vmatpush1.msra.mxu0 %v154
    %5043 = vmatprep.subr.mxu0 0.0
    %5044 = vmatpush2.msra.mxu0 0.0
    %5045 = vmatprep.subr.mxu0 0.0
    %5046 = vmatpush2.msra.mxu0 0.0
    %5047 = vmatprep.subr.mxu0 0.0
    %5048 = vmatpush2.msra.mxu0 0.0
    %5049 = vmatprep.subr.mxu0 0.0
    %5050 = vmatpush2.msra.mxu0 0.0
    %5051 = vmatprep.subr.mxu0 0.0
    %5052 = vmatpush2.msra.mxu0 0.0
    %5053 = vmatprep.subr.mxu0 0.0
    %5054 = vmatpush2.msra.mxu0 0.0
    %5055 = vmatprep.subr.mxu0 0.0
    %5056 = vmatpush2.msra.mxu0 0.0
    %5057 = vmatprep.subr.mxu0 0.0
    %5058 = vmatpush2.msra.mxu0 0.0
    %5059 = vmatprep.subr.mxu0 0.0
    %5060 = vmatpush2.msra.mxu0 0.0
    %5061 = vmatprep.subr.mxu0 0.0
    %5062 = vmatpush2.msra.mxu0 0.0
    %5063 = vmatprep.subr.mxu0 0.0
    %5064 = vmatpush2.msra.mxu0 0.0
    %5065 = vmatprep.subr.mxu0 0.0
    %5066 = vmatpush2.msra.mxu0 0.0
    %5067 = vmatprep.subr.mxu0 0.0
    %5068 = vmatpush2.msra.mxu0 0.0
    %5069 = vmatprep.subr.mxu0 0.0
    %5070 = vmatpush2.msra.mxu0 0.0
    %5071 = vmatprep.subr.mxu0 0.0
    %5072 = vmatpush2.msra.mxu0 0.0
    %5073 = vmatprep.subr.mxu0 0.0
    %5074 = vmatpush2.msra.mxu0 0.0
    %5075 = vmatprep.mubr.f32.mxu0 0.0
    %5076 = vmatmul.mubr.f32.gmra.mxu0 %v5009
    %v5077 = vpop.f32.mrf.mxu0
    %v5078 = vadd.f32 0.0, %v5077
    %v5079 = vpop.f32.mrf.mxu0
    %5080 = vdwg.mxu0
    %v5082 = vsel %vm221, %v5007, 0
    %5084 = vmatprep.subr.mxu0 0.0
    %5085 = vmatpush1.msra.mxu0 0.0
    %5086 = vmatprep.subr.mxu0 0.0
    %5087 = vmatpush1.msra.mxu0 0.0
    %5088 = vmatprep.subr.mxu0 0.0
    %5089 = vmatpush1.msra.mxu0 0.0
    %5090 = vmatprep.subr.mxu0 0.0
    %5091 = vmatpush1.msra.mxu0 0.0
    %5092 = vmatprep.subr.mxu0 0.0
    %5093 = vmatpush1.msra.mxu0 0.0
    %5094 = vmatprep.subr.mxu0 0.0
    %5095 = vmatpush1.msra.mxu0 0.0
    %5096 = vmatprep.subr.mxu0 0.0
    %5097 = vmatpush1.msra.mxu0 0.0
    %5098 = vmatprep.subr.mxu0 0.0
    %5099 = vmatpush1.msra.mxu0 0.0
    %5100 = vmatprep.subr.mxu0 0.0
    %5101 = vmatpush1.msra.mxu0 0.0
    %5102 = vmatprep.subr.mxu0 0.0
    %5103 = vmatpush1.msra.mxu0 0.0
    %5104 = vmatprep.subr.mxu0 0.0
    %5105 = vmatpush1.msra.mxu0 0.0
    %5106 = vmatprep.subr.mxu0 0.0
    %5107 = vmatpush1.msra.mxu0 0.0
    %5108 = vmatprep.subr.mxu0 0.0
    %5109 = vmatpush1.msra.mxu0 0.0
    %5110 = vmatprep.subr.mxu0 0.0
    %5111 = vmatpush1.msra.mxu0 0.0
    %5112 = vmatprep.subr.mxu0 0.0
    %5113 = vmatpush1.msra.mxu0 %v157
    %5114 = vmatprep.subr.mxu0 0.0
    %5115 = vmatpush1.msra.mxu0 %v156
    %5116 = vmatprep.subr.mxu0 0.0
    %5117 = vmatpush2.msra.mxu0 0.0
    %5118 = vmatprep.subr.mxu0 0.0
    %5119 = vmatpush2.msra.mxu0 0.0
    %5120 = vmatprep.subr.mxu0 0.0
    %5121 = vmatpush2.msra.mxu0 0.0
    %5122 = vmatprep.subr.mxu0 0.0
    %5123 = vmatpush2.msra.mxu0 0.0
    %5124 = vmatprep.subr.mxu0 0.0
    %5125 = vmatpush2.msra.mxu0 0.0
    %5126 = vmatprep.subr.mxu0 0.0
    %5127 = vmatpush2.msra.mxu0 0.0
    %5128 = vmatprep.subr.mxu0 0.0
    %5129 = vmatpush2.msra.mxu0 0.0
    %5130 = vmatprep.subr.mxu0 0.0
    %5131 = vmatpush2.msra.mxu0 0.0
    %5132 = vmatprep.subr.mxu0 0.0
    %5133 = vmatpush2.msra.mxu0 0.0
    %5134 = vmatprep.subr.mxu0 0.0
    %5135 = vmatpush2.msra.mxu0 0.0
    %5136 = vmatprep.subr.mxu0 0.0
    %5137 = vmatpush2.msra.mxu0 0.0
    %5138 = vmatprep.subr.mxu0 0.0
    %5139 = vmatpush2.msra.mxu0 0.0
    %5140 = vmatprep.subr.mxu0 0.0
    %5141 = vmatpush2.msra.mxu0 0.0
    %5142 = vmatprep.subr.mxu0 0.0
    %5143 = vmatpush2.msra.mxu0 0.0
    %5144 = vmatprep.subr.mxu0 0.0
    %5145 = vmatpush2.msra.mxu0 0.0
    %5146 = vmatprep.subr.mxu0 0.0
    %5147 = vmatpush2.msra.mxu0 0.0
    %5148 = vmatprep.mubr.f32.mxu0 0.0
    %5149 = vmatmul.mubr.f32.gmra.mxu0 %v5082
    %v5150 = vpop.f32.mrf.mxu0
    %v5151 = vadd.f32 0.0, %v5150
    %v5152 = vpop.f32.mrf.mxu0
    %5153 = vdwg.mxu0
    %5154 = vmatprep.subr.mxu0 0.0
    %5155 = vmatpush1.xpose.msra.mxu0 0.0
    %5156 = vmatprep.subr.mxu0 0.0
    %5157 = vmatpush1.xpose.msra.mxu0 0.0
    %5158 = vmatprep.subr.mxu0 0.0
    %5159 = vmatpush1.xpose.msra.mxu0 0.0
    %5160 = vmatprep.subr.mxu0 0.0
    %5161 = vmatpush1.xpose.msra.mxu0 0.0
    %5162 = vmatprep.subr.mxu0 0.0
    %5163 = vmatpush1.xpose.msra.mxu0 0.0
    %5164 = vmatprep.subr.mxu0 0.0
    %5165 = vmatpush1.xpose.msra.mxu0 0.0
    %5166 = vmatprep.subr.mxu0 0.0
    %5167 = vmatpush1.xpose.msra.mxu0 0.0
    %5168 = vmatprep.subr.mxu0 0.0
    %5169 = vmatpush1.xpose.msra.mxu0 0.0
    %5170 = vmatprep.subr.mxu0 0.0
    %5171 = vmatpush1.xpose.msra.mxu0 0.0
    %5172 = vmatprep.subr.mxu0 0.0
    %5173 = vmatpush1.xpose.msra.mxu0 0.0
    %5174 = vmatprep.subr.mxu0 0.0
    %5175 = vmatpush1.xpose.msra.mxu0 0.0
    %5176 = vmatprep.subr.mxu0 0.0
    %5177 = vmatpush1.xpose.msra.mxu0 0.0
    %5178 = vmatprep.subr.mxu0 0.0
    %5179 = vmatpush1.xpose.msra.mxu0 0.0
    %5180 = vmatprep.subr.mxu0 0.0
    %5181 = vmatpush1.xpose.msra.mxu0 0.0
    %5182 = vmatprep.subr.mxu0 0.0
    %5183 = vmatpush1.xpose.msra.mxu0 %v1008
    %5184 = vmatprep.subr.mxu0 0.0
    %5185 = vmatpush1.xpose.msra.mxu0 %v1005
    %5186 = vmatprep.subr.mxu0 0.0
    %5187 = vmatpush2.xpose.msra.mxu0 0.0
    %5188 = vmatprep.subr.mxu0 0.0
    %5189 = vmatpush2.xpose.msra.mxu0 0.0
    %5190 = vmatprep.subr.mxu0 0.0
    %5191 = vmatpush2.xpose.msra.mxu0 0.0
    %5192 = vmatprep.subr.mxu0 0.0
    %5193 = vmatpush2.xpose.msra.mxu0 0.0
    %5194 = vmatprep.subr.mxu0 0.0
    %5195 = vmatpush2.xpose.msra.mxu0 0.0
    %5196 = vmatprep.subr.mxu0 0.0
    %5197 = vmatpush2.xpose.msra.mxu0 0.0
    %5198 = vmatprep.subr.mxu0 0.0
    %5199 = vmatpush2.xpose.msra.mxu0 0.0
    %5200 = vmatprep.subr.mxu0 0.0
    %5201 = vmatpush2.xpose.msra.mxu0 0.0
    %5202 = vmatprep.subr.mxu0 0.0
    %5203 = vmatpush2.xpose.msra.mxu0 0.0
    %5204 = vmatprep.subr.mxu0 0.0
    %5205 = vmatpush2.xpose.msra.mxu0 0.0
    %5206 = vmatprep.subr.mxu0 0.0
    %5207 = vmatpush2.xpose.msra.mxu0 0.0
    %5208 = vmatprep.subr.mxu0 0.0
    %5209 = vmatpush2.xpose.msra.mxu0 0.0
    %5210 = vmatprep.subr.mxu0 0.0
    %5211 = vmatpush2.xpose.msra.mxu0 0.0
    %5212 = vmatprep.subr.mxu0 0.0
    %5213 = vmatpush2.xpose.msra.mxu0 0.0
    %5214 = vmatprep.subr.mxu0 0.0
    %5215 = vmatpush2.xpose.msra.mxu0 0.0
    %5216 = vmatprep.subr.mxu0 0.0
    %5217 = vmatpush2.xpose.msra.mxu0 0.0
    %5218 = vmatprep.mubr.f32.mxu0 0.0
    %5219 = vmatmul.mubr.f32.gmra.mxu0 %v4828
    %v5220 = vpop.f32.mrf.mxu0
    %v5221 = vadd.f32 0.0, %v5220
    %v5222 = vpop.f32.mrf.mxu0
    %5223 = vdwg.mxu0
    %5224 = vmatprep.subr.mxu0 0.0
    %5225 = vmatpush1.xpose.msra.mxu0 0.0
    %5226 = vmatprep.subr.mxu0 0.0
    %5227 = vmatpush1.xpose.msra.mxu0 0.0
    %5228 = vmatprep.subr.mxu0 0.0
    %5229 = vmatpush1.xpose.msra.mxu0 0.0
    %5230 = vmatprep.subr.mxu0 0.0
    %5231 = vmatpush1.xpose.msra.mxu0 0.0
    %5232 = vmatprep.subr.mxu0 0.0
    %5233 = vmatpush1.xpose.msra.mxu0 0.0
    %5234 = vmatprep.subr.mxu0 0.0
    %5235 = vmatpush1.xpose.msra.mxu0 0.0
    %5236 = vmatprep.subr.mxu0 0.0
    %5237 = vmatpush1.xpose.msra.mxu0 0.0
    %5238 = vmatprep.subr.mxu0 0.0
    %5239 = vmatpush1.xpose.msra.mxu0 0.0
    %5240 = vmatprep.subr.mxu0 0.0
    %5241 = vmatpush1.xpose.msra.mxu0 0.0
    %5242 = vmatprep.subr.mxu0 0.0
    %5243 = vmatpush1.xpose.msra.mxu0 0.0
    %5244 = vmatprep.subr.mxu0 0.0
    %5245 = vmatpush1.xpose.msra.mxu0 0.0
    %5246 = vmatprep.subr.mxu0 0.0
    %5247 = vmatpush1.xpose.msra.mxu0 0.0
    %5248 = vmatprep.subr.mxu0 0.0
    %5249 = vmatpush1.xpose.msra.mxu0 0.0
    %5250 = vmatprep.subr.mxu0 0.0
    %5251 = vmatpush1.xpose.msra.mxu0 0.0
    %5252 = vmatprep.subr.mxu0 0.0
    %5253 = vmatpush1.xpose.msra.mxu0 %v1084
    %5254 = vmatprep.subr.mxu0 0.0
    %5255 = vmatpush1.xpose.msra.mxu0 %v1081
    %5256 = vmatprep.subr.mxu0 0.0
    %5257 = vmatpush2.xpose.msra.mxu0 0.0
    %5258 = vmatprep.subr.mxu0 0.0
    %5259 = vmatpush2.xpose.msra.mxu0 0.0
    %5260 = vmatprep.subr.mxu0 0.0
    %5261 = vmatpush2.xpose.msra.mxu0 0.0
    %5262 = vmatprep.subr.mxu0 0.0
    %5263 = vmatpush2.xpose.msra.mxu0 0.0
    %5264 = vmatprep.subr.mxu0 0.0
    %5265 = vmatpush2.xpose.msra.mxu0 0.0
    %5266 = vmatprep.subr.mxu0 0.0
    %5267 = vmatpush2.xpose.msra.mxu0 0.0
    %5268 = vmatprep.subr.mxu0 0.0
    %5269 = vmatpush2.xpose.msra.mxu0 0.0
    %5270 = vmatprep.subr.mxu0 0.0
    %5271 = vmatpush2.xpose.msra.mxu0 0.0
    %5272 = vmatprep.subr.mxu0 0.0
    %5273 = vmatpush2.xpose.msra.mxu0 0.0
    %5274 = vmatprep.subr.mxu0 0.0
    %5275 = vmatpush2.xpose.msra.mxu0 0.0
    %5276 = vmatprep.subr.mxu0 0.0
    %5277 = vmatpush2.xpose.msra.mxu0 0.0
    %5278 = vmatprep.subr.mxu0 0.0
    %5279 = vmatpush2.xpose.msra.mxu0 0.0
    %5280 = vmatprep.subr.mxu0 0.0
    %5281 = vmatpush2.xpose.msra.mxu0 0.0
    %5282 = vmatprep.subr.mxu0 0.0
    %5283 = vmatpush2.xpose.msra.mxu0 0.0
    %5284 = vmatprep.subr.mxu0 0.0
    %5285 = vmatpush2.xpose.msra.mxu0 0.0
    %5286 = vmatprep.subr.mxu0 0.0
    %5287 = vmatpush2.xpose.msra.mxu0 0.0
    %5288 = vmatprep.mubr.f32.mxu0 0.0
    %5289 = vmatmul.mubr.f32.gmra.mxu0 %v4900
    %v5290 = vpop.f32.mrf.mxu0
    %v5291 = vadd.f32 0.0, %v5290
    %v5292 = vpop.f32.mrf.mxu0
    %5293 = vdwg.mxu0
    %v5294 = vadd.f32 %v5221, %v167
    %v5295 = vadd.f32 %v5291, %v1157
    %v5298 = vrot.slane %v5295, 7
    %v5299 = vsel %vm825, %v5298, %v5294
    %v5301 = vsel %vm828, %v5299, -inf
    %5302 = vmax.xlane.f32.xlu0 %v5301
    %v5303 = vpop.xlane.xlu0 %5302
    %v5305 = vrot.slane %v5303, 1
    %v5308 = vsub.f32 %v5294, %v5303
    %v5309 = vsub.f32 %v5295, %v5305
    %v5310 = vmul.f32 %v5308, 1.442695
    %v5311 = vpow.pop %v5310
    %v5312 = vmul.f32 %v5309, 1.442695
    %v5313 = vpow.pop %v5312
    %v5316 = vrot.slane %v5313, 7
    %v5317 = vsel %vm825, %v5316, %v5311
    %v5319 = vsel %vm828, %v5317, 0.0
    %5320 = vadd.xlane.f32.xlu0 %v5319
    %v5321 = vpop.xlane.xlu0 %5320
    %v5322 = vadd.f32 %v5321, 1e-09
    %v5323 = vrcp.pop %v5322
    %v5325 = vrot.slane %v5323, 1
    %v5328 = vmul.f32 %v5311, %v5323
    %v5329 = vmul.f32 %v5313, %v5325
    %v5331 = vsel %vm221, %v5328, 0
    %5333 = vmatprep.subr.mxu0 0.0
    %5334 = vmatpush1.msra.mxu0 0.0
    %5335 = vmatprep.subr.mxu0 0.0
    %5336 = vmatpush1.msra.mxu0 0.0
    %5337 = vmatprep.subr.mxu0 0.0
    %5338 = vmatpush1.msra.mxu0 0.0
    %5339 = vmatprep.subr.mxu0 0.0
    %5340 = vmatpush1.msra.mxu0 0.0
    %5341 = vmatprep.subr.mxu0 0.0
    %5342 = vmatpush1.msra.mxu0 0.0
    %5343 = vmatprep.subr.mxu0 0.0
    %5344 = vmatpush1.msra.mxu0 0.0
    %5345 = vmatprep.subr.mxu0 0.0
    %5346 = vmatpush1.msra.mxu0 0.0
    %5347 = vmatprep.subr.mxu0 0.0
    %5348 = vmatpush1.msra.mxu0 0.0
    %5349 = vmatprep.subr.mxu0 0.0
    %5350 = vmatpush1.msra.mxu0 0.0
    %5351 = vmatprep.subr.mxu0 0.0
    %5352 = vmatpush1.msra.mxu0 0.0
    %5353 = vmatprep.subr.mxu0 0.0
    %5354 = vmatpush1.msra.mxu0 0.0
    %5355 = vmatprep.subr.mxu0 0.0
    %5356 = vmatpush1.msra.mxu0 0.0
    %5357 = vmatprep.subr.mxu0 0.0
    %5358 = vmatpush1.msra.mxu0 0.0
    %5359 = vmatprep.subr.mxu0 0.0
    %5360 = vmatpush1.msra.mxu0 0.0
    %5361 = vmatprep.subr.mxu0 0.0
    %5362 = vmatpush1.msra.mxu0 %v163
    %5363 = vmatprep.subr.mxu0 0.0
    %5364 = vmatpush1.msra.mxu0 %v162
    %5365 = vmatprep.subr.mxu0 0.0
    %5366 = vmatpush2.msra.mxu0 0.0
    %5367 = vmatprep.subr.mxu0 0.0
    %5368 = vmatpush2.msra.mxu0 0.0
    %5369 = vmatprep.subr.mxu0 0.0
    %5370 = vmatpush2.msra.mxu0 0.0
    %5371 = vmatprep.subr.mxu0 0.0
    %5372 = vmatpush2.msra.mxu0 0.0
    %5373 = vmatprep.subr.mxu0 0.0
    %5374 = vmatpush2.msra.mxu0 0.0
    %5375 = vmatprep.subr.mxu0 0.0
    %5376 = vmatpush2.msra.mxu0 0.0
    %5377 = vmatprep.subr.mxu0 0.0
    %5378 = vmatpush2.msra.mxu0 0.0
    %5379 = vmatprep.subr.mxu0 0.0
    %5380 = vmatpush2.msra.mxu0 0.0
    %5381 = vmatprep.subr.mxu0 0.0
    %5382 = vmatpush2.msra.mxu0 0.0
    %5383 = vmatprep.subr.mxu0 0.0
    %5384 = vmatpush2.msra.mxu0 0.0
    %5385 = vmatprep.subr.mxu0 0.0
    %5386 = vmatpush2.msra.mxu0 0.0
    %5387 = vmatprep.subr.mxu0 0.0
    %5388 = vmatpush2.msra.mxu0 0.0
    %5389 = vmatprep.subr.mxu0 0.0
    %5390 = vmatpush2.msra.mxu0 0.0
    %5391 = vmatprep.subr.mxu0 0.0
    %5392 = vmatpush2.msra.mxu0 0.0
    %5393 = vmatprep.subr.mxu0 0.0
    %5394 = vmatpush2.msra.mxu0 0.0
    %5395 = vmatprep.subr.mxu0 0.0
    %5396 = vmatpush2.msra.mxu0 0.0
    %5397 = vmatprep.mubr.f32.mxu0 0.0
    %5398 = vmatmul.mubr.f32.gmra.mxu0 %v5331
    %v5399 = vpop.f32.mrf.mxu0
    %v5400 = vadd.f32 0.0, %v5399
    %v5401 = vpop.f32.mrf.mxu0
    %5402 = vdwg.mxu0
    %v5404 = vsel %vm221, %v5329, 0
    %5406 = vmatprep.subr.mxu0 0.0
    %5407 = vmatpush1.msra.mxu0 0.0
    %5408 = vmatprep.subr.mxu0 0.0
    %5409 = vmatpush1.msra.mxu0 0.0
    %5410 = vmatprep.subr.mxu0 0.0
    %5411 = vmatpush1.msra.mxu0 0.0
    %5412 = vmatprep.subr.mxu0 0.0
    %5413 = vmatpush1.msra.mxu0 0.0
    %5414 = vmatprep.subr.mxu0 0.0
    %5415 = vmatpush1.msra.mxu0 0.0
    %5416 = vmatprep.subr.mxu0 0.0
    %5417 = vmatpush1.msra.mxu0 0.0
    %5418 = vmatprep.subr.mxu0 0.0
    %5419 = vmatpush1.msra.mxu0 0.0
    %5420 = vmatprep.subr.mxu0 0.0
    %5421 = vmatpush1.msra.mxu0 0.0
    %5422 = vmatprep.subr.mxu0 0.0
    %5423 = vmatpush1.msra.mxu0 0.0
    %5424 = vmatprep.subr.mxu0 0.0
    %5425 = vmatpush1.msra.mxu0 0.0
    %5426 = vmatprep.subr.mxu0 0.0
    %5427 = vmatpush1.msra.mxu0 0.0
    %5428 = vmatprep.subr.mxu0 0.0
    %5429 = vmatpush1.msra.mxu0 0.0
    %5430 = vmatprep.subr.mxu0 0.0
    %5431 = vmatpush1.msra.mxu0 0.0
    %5432 = vmatprep.subr.mxu0 0.0
    %5433 = vmatpush1.msra.mxu0 0.0
    %5434 = vmatprep.subr.mxu0 0.0
    %5435 = vmatpush1.msra.mxu0 %v165
    %5436 = vmatprep.subr.mxu0 0.0
    %5437 = vmatpush1.msra.mxu0 %v164
    %5438 = vmatprep.subr.mxu0 0.0
    %5439 = vmatpush2.msra.mxu0 0.0
    %5440 = vmatprep.subr.mxu0 0.0
    %5441 = vmatpush2.msra.mxu0 0.0
    %5442 = vmatprep.subr.mxu0 0.0
    %5443 = vmatpush2.msra.mxu0 0.0
    %5444 = vmatprep.subr.mxu0 0.0
    %5445 = vmatpush2.msra.mxu0 0.0
    %5446 = vmatprep.subr.mxu0 0.0
    %5447 = vmatpush2.msra.mxu0 0.0
    %5448 = vmatprep.subr.mxu0 0.0
    %5449 = vmatpush2.msra.mxu0 0.0
    %5450 = vmatprep.subr.mxu0 0.0
    %5451 = vmatpush2.msra.mxu0 0.0
    %5452 = vmatprep.subr.mxu0 0.0
    %5453 = vmatpush2.msra.mxu0 0.0
    %5454 = vmatprep.subr.mxu0 0.0
    %5455 = vmatpush2.msra.mxu0 0.0
    %5456 = vmatprep.subr.mxu0 0.0
    %5457 = vmatpush2.msra.mxu0 0.0
    %5458 = vmatprep.subr.mxu0 0.0
    %5459 = vmatpush2.msra.mxu0 0.0
    %5460 = vmatprep.subr.mxu0 0.0
    %5461 = vmatpush2.msra.mxu0 0.0
    %5462 = vmatprep.subr.mxu0 0.0
    %5463 = vmatpush2.msra.mxu0 0.0
    %5464 = vmatprep.subr.mxu0 0.0
    %5465 = vmatpush2.msra.mxu0 0.0
    %5466 = vmatprep.subr.mxu0 0.0
    %5467 = vmatpush2.msra.mxu0 0.0
    %5468 = vmatprep.subr.mxu0 0.0
    %5469 = vmatpush2.msra.mxu0 0.0
    %5470 = vmatprep.mubr.f32.mxu0 0.0
    %5471 = vmatmul.mubr.f32.gmra.mxu0 %v5404
    %v5472 = vpop.f32.mrf.mxu0
    %v5473 = vadd.f32 0.0, %v5472
    %v5474 = vpop.f32.mrf.mxu0
    %5475 = vdwg.mxu0
    %v5478 = vrot.slane %v5151, 7
    %v5479 = vsel %vm825, %v5478, %v5078
    %5480 = vrot.lane.b32.xlu0 %v5479, 32
    %v5481 = vpop.permute.xlu0 %5480
    %v5485 = vrot.slane %v5473, 7
    %v5486 = vsel %vm825, %v5485, %v5400
    %5487 = vrot.lane.b32.xlu0 %v5486, 64
    %v5488 = vpop.permute.xlu0 %5487
    %v5490 = vsel %vm309, %v4804, %v5481
    %v5491 = vsel %vm392, %v5490, %v5488
    %v5493 = vsel %vm1364, %v5491, 0
    %5495 = vmatprep.subr.mxu0 0.0
    %5496 = vmatpush1.msra.mxu0 0.0
    %5497 = vmatprep.subr.mxu0 0.0
    %5498 = vmatpush1.msra.mxu0 0.0
    %5499 = vmatprep.subr.mxu0 0.0
    %5500 = vmatpush1.msra.mxu0 0.0
    %5501 = vmatprep.subr.mxu0 0.0
    %5502 = vmatpush1.msra.mxu0 0.0
    %5503 = vmatprep.subr.mxu0 0.0
    %5504 = vmatpush1.msra.mxu0 %v202
    %5505 = vmatprep.subr.mxu0 0.0
    %5506 = vmatpush1.msra.mxu0 %v201
    %5507 = vmatprep.subr.mxu0 0.0
    %5508 = vmatpush1.msra.mxu0 %v200
    %5509 = vmatprep.subr.mxu0 0.0
    %5510 = vmatpush1.msra.mxu0 %v199
    %5511 = vmatprep.subr.mxu0 0.0
    %5512 = vmatpush1.msra.mxu0 %v198
    %5513 = vmatprep.subr.mxu0 0.0
    %5514 = vmatpush1.msra.mxu0 %v197
    %5515 = vmatprep.subr.mxu0 0.0
    %5516 = vmatpush1.msra.mxu0 %v196
    %5517 = vmatprep.subr.mxu0 0.0
    %5518 = vmatpush1.msra.mxu0 %v195
    %5519 = vmatprep.subr.mxu0 0.0
    %5520 = vmatpush1.msra.mxu0 %v194
    %5521 = vmatprep.subr.mxu0 0.0
    %5522 = vmatpush1.msra.mxu0 %v193
    %5523 = vmatprep.subr.mxu0 0.0
    %5524 = vmatpush1.msra.mxu0 %v192
    %5525 = vmatprep.subr.mxu0 0.0
    %5526 = vmatpush1.msra.mxu0 %v191
    %5527 = vmatprep.subr.mxu0 0.0
    %5528 = vmatpush2.msra.mxu0 0.0
    %5529 = vmatprep.subr.mxu0 0.0
    %5530 = vmatpush2.msra.mxu0 0.0
    %5531 = vmatprep.subr.mxu0 0.0
    %5532 = vmatpush2.msra.mxu0 0.0
    %5533 = vmatprep.subr.mxu0 0.0
    %5534 = vmatpush2.msra.mxu0 0.0
    %5535 = vmatprep.subr.mxu0 0.0
    %5536 = vmatpush2.msra.mxu0 0.0
    %5537 = vmatprep.subr.mxu0 0.0
    %5538 = vmatpush2.msra.mxu0 0.0
    %5539 = vmatprep.subr.mxu0 0.0
    %5540 = vmatpush2.msra.mxu0 0.0
    %5541 = vmatprep.subr.mxu0 0.0
    %5542 = vmatpush2.msra.mxu0 0.0
    %5543 = vmatprep.subr.mxu0 0.0
    %5544 = vmatpush2.msra.mxu0 0.0
    %5545 = vmatprep.subr.mxu0 0.0
    %5546 = vmatpush2.msra.mxu0 0.0
    %5547 = vmatprep.subr.mxu0 0.0
    %5548 = vmatpush2.msra.mxu0 0.0
    %5549 = vmatprep.subr.mxu0 0.0
    %5550 = vmatpush2.msra.mxu0 0.0
    %5551 = vmatprep.subr.mxu0 0.0
    %5552 = vmatpush2.msra.mxu0 0.0
    %5553 = vmatprep.subr.mxu0 0.0
    %5554 = vmatpush2.msra.mxu0 0.0
    %5555 = vmatprep.subr.mxu0 0.0
    %5556 = vmatpush2.msra.mxu0 0.0
    %5557 = vmatprep.subr.mxu0 0.0
    %5558 = vmatpush2.msra.mxu0 0.0
    %5559 = vmatprep.mubr.f32.mxu0 0.0
    %5560 = vmatmul.mubr.f32.gmra.mxu0 %v5493
    %v5561 = vpop.f32.mrf.mxu0
    %v5562 = vadd.f32 %v1362, %v5561
    %v5563 = vpop.f32.mrf.mxu0
    %5564 = vdwg.mxu0
    %5566 = vrot.lane.b32.xlu0 %v5562, 64
    %v5567 = vpop.permute.xlu0 %5566
    %vm5569 = vcmask 648704
    %5570 = vst.msk [vmem:[#allocation16] sm:$0x3] %vm5569, %v5567
    %5572 = vrot.lane.b32.xlu0 %v5486, 32
    %v5573 = vpop.permute.xlu0 %5572
    %v5575 = vsel %vm309, %v5479, %v5573
    %v5577 = vsel %vm392, %v5575, 0
    %5579 = vmatprep.subr.mxu0 0.0
    %5580 = vmatpush1.msra.mxu0 0.0
    %5581 = vmatprep.subr.mxu0 0.0
    %5582 = vmatpush1.msra.mxu0 0.0
    %5583 = vmatprep.subr.mxu0 0.0
    %5584 = vmatpush1.msra.mxu0 0.0
    %5585 = vmatprep.subr.mxu0 0.0
    %5586 = vmatpush1.msra.mxu0 0.0
    %5587 = vmatprep.subr.mxu0 0.0
    %5588 = vmatpush1.msra.mxu0 0.0
    %5589 = vmatprep.subr.mxu0 0.0
    %5590 = vmatpush1.msra.mxu0 0.0
    %5591 = vmatprep.subr.mxu0 0.0
    %5592 = vmatpush1.msra.mxu0 0.0
    %5593 = vmatprep.subr.mxu0 0.0
    %5594 = vmatpush1.msra.mxu0 0.0
    %5595 = vmatprep.subr.mxu0 0.0
    %5596 = vmatpush1.msra.mxu0 %v181
    %5597 = vmatprep.subr.mxu0 0.0
    %5598 = vmatpush1.msra.mxu0 %v180
    %5599 = vmatprep.subr.mxu0 0.0
    %5600 = vmatpush1.msra.mxu0 %v179
    %5601 = vmatprep.subr.mxu0 0.0
    %5602 = vmatpush1.msra.mxu0 %v178
    %5603 = vmatprep.subr.mxu0 0.0
    %5604 = vmatpush1.msra.mxu0 %v177
    %5605 = vmatprep.subr.mxu0 0.0
    %5606 = vmatpush1.msra.mxu0 %v176
    %5607 = vmatprep.subr.mxu0 0.0
    %5608 = vmatpush1.msra.mxu0 %v175
    %5609 = vmatprep.subr.mxu0 0.0
    %5610 = vmatpush1.msra.mxu0 %v174
    %5611 = vmatprep.subr.mxu0 0.0
    %5612 = vmatpush2.msra.mxu0 0.0
    %5613 = vmatprep.subr.mxu0 0.0
    %5614 = vmatpush2.msra.mxu0 0.0
    %5615 = vmatprep.subr.mxu0 0.0
    %5616 = vmatpush2.msra.mxu0 0.0
    %5617 = vmatprep.subr.mxu0 0.0
    %5618 = vmatpush2.msra.mxu0 0.0
    %5619 = vmatprep.subr.mxu0 0.0
    %5620 = vmatpush2.msra.mxu0 0.0
    %5621 = vmatprep.subr.mxu0 0.0
    %5622 = vmatpush2.msra.mxu0 0.0
    %5623 = vmatprep.subr.mxu0 0.0
    %5624 = vmatpush2.msra.mxu0 0.0
    %5625 = vmatprep.subr.mxu0 0.0
    %5626 = vmatpush2.msra.mxu0 0.0
    %5627 = vmatprep.subr.mxu0 0.0
    %5628 = vmatpush2.msra.mxu0 0.0
    %5629 = vmatprep.subr.mxu0 0.0
    %5630 = vmatpush2.msra.mxu0 0.0
    %5631 = vmatprep.subr.mxu0 0.0
    %5632 = vmatpush2.msra.mxu0 0.0
    %5633 = vmatprep.subr.mxu0 0.0
    %5634 = vmatpush2.msra.mxu0 0.0
    %5635 = vmatprep.subr.mxu0 0.0
    %5636 = vmatpush2.msra.mxu0 0.0
    %5637 = vmatprep.subr.mxu0 0.0
    %5638 = vmatpush2.msra.mxu0 0.0
    %5639 = vmatprep.subr.mxu0 0.0
    %5640 = vmatpush2.msra.mxu0 0.0
    %5641 = vmatprep.subr.mxu0 0.0
    %5642 = vmatpush2.msra.mxu0 0.0
    %5643 = vmatprep.mubr.f32.mxu0 0.0
    %5644 = vmatmul.mubr.f32.gmra.mxu0 %v5577
    %v5645 = vpop.f32.mrf.mxu0
    %v5646 = vadd.f32 0.0, %v5645
    %v5647 = vpop.f32.mrf.mxu0
    %5648 = vdwg.mxu0
    %v5650 = vrot.slane %v5646, 6
    %v5652 = vadd.f32 %v388, %v5650
    %v5653 = vsel %vm309, %v4804, 0
    %5655 = vmatprep.subr.mxu0 0.0
    %5656 = vmatpush1.msra.mxu0 0.0
    %5657 = vmatprep.subr.mxu0 0.0
    %5658 = vmatpush1.msra.mxu0 0.0
    %5659 = vmatprep.subr.mxu0 0.0
    %5660 = vmatpush1.msra.mxu0 0.0
    %5661 = vmatprep.subr.mxu0 0.0
    %5662 = vmatpush1.msra.mxu0 0.0
    %5663 = vmatprep.subr.mxu0 0.0
    %5664 = vmatpush1.msra.mxu0 0.0
    %5665 = vmatprep.subr.mxu0 0.0
    %5666 = vmatpush1.msra.mxu0 0.0
    %5667 = vmatprep.subr.mxu0 0.0
    %5668 = vmatpush1.msra.mxu0 0.0
    %5669 = vmatprep.subr.mxu0 0.0
    %5670 = vmatpush1.msra.mxu0 0.0
    %5671 = vmatprep.subr.mxu0 0.0
    %5672 = vmatpush1.msra.mxu0 0.0
    %5673 = vmatprep.subr.mxu0 0.0
    %5674 = vmatpush1.msra.mxu0 0.0
    %5675 = vmatprep.subr.mxu0 0.0
    %5676 = vmatpush1.msra.mxu0 0.0
    %5677 = vmatprep.subr.mxu0 0.0
    %5678 = vmatpush1.msra.mxu0 0.0
    %5679 = vmatprep.subr.mxu0 0.0
    %5680 = vmatpush1.msra.mxu0 %v185
    %5681 = vmatprep.subr.mxu0 0.0
    %5682 = vmatpush1.msra.mxu0 %v184
    %5683 = vmatprep.subr.mxu0 0.0
    %5684 = vmatpush1.msra.mxu0 %v183
    %5685 = vmatprep.subr.mxu0 0.0
    %5686 = vmatpush1.msra.mxu0 %v182
    %5687 = vmatprep.subr.mxu0 0.0
    %5688 = vmatpush2.msra.mxu0 0.0
    %5689 = vmatprep.subr.mxu0 0.0
    %5690 = vmatpush2.msra.mxu0 0.0
    %5691 = vmatprep.subr.mxu0 0.0
    %5692 = vmatpush2.msra.mxu0 0.0
    %5693 = vmatprep.subr.mxu0 0.0
    %5694 = vmatpush2.msra.mxu0 0.0
    %5695 = vmatprep.subr.mxu0 0.0
    %5696 = vmatpush2.msra.mxu0 0.0
    %5697 = vmatprep.subr.mxu0 0.0
    %5698 = vmatpush2.msra.mxu0 0.0
    %5699 = vmatprep.subr.mxu0 0.0
    %5700 = vmatpush2.msra.mxu0 0.0
    %5701 = vmatprep.subr.mxu0 0.0
    %5702 = vmatpush2.msra.mxu0 0.0
    %5703 = vmatprep.subr.mxu0 0.0
    %5704 = vmatpush2.msra.mxu0 0.0
    %5705 = vmatprep.subr.mxu0 0.0
    %5706 = vmatpush2.msra.mxu0 0.0
    %5707 = vmatprep.subr.mxu0 0.0
    %5708 = vmatpush2.msra.mxu0 0.0
    %5709 = vmatprep.subr.mxu0 0.0
    %5710 = vmatpush2.msra.mxu0 0.0
    %5711 = vmatprep.subr.mxu0 0.0
    %5712 = vmatpush2.msra.mxu0 0.0
    %5713 = vmatprep.subr.mxu0 0.0
    %5714 = vmatpush2.msra.mxu0 0.0
    %5715 = vmatprep.subr.mxu0 0.0
    %5716 = vmatpush2.msra.mxu0 0.0
    %5717 = vmatprep.subr.mxu0 0.0
    %5718 = vmatpush2.msra.mxu0 0.0
    %5719 = vmatprep.mubr.f32.mxu0 0.0
    %5720 = vmatmul.mubr.f32.gmra.mxu0 %v5653
    %v5721 = vpop.f32.mrf.mxu0
    %v5722 = vadd.f32 0.0, %v5721
    %v5723 = vpop.f32.mrf.mxu0
    %5724 = vdwg.mxu0
    %v5726 = vrot.slane %v5722, 6
    %v5728 = vadd.f32 %v5652, %v5726
    %v5729 = vxor.u32 %v5728, 2147483648
    %v5730 = vmul.f32 %v5729, 1.442695
    %v5731 = vpow.pop %v5730
    %v5732 = vadd.f32 %v5731, 1.0
    %v5733 = vrcp.pop %v5732
    %v5734 = vmul.f32 1.0, %v5733
    %v5735 = vrot.slane %v4804, 6
    %5736 = vrot.lane.b32.xlu0 %v5735, 32
    %v5737 = vpop.permute.xlu0 %5736
    %v5739 = vmul.f32 %v5734, %v5737
    %v5741 = vrot.slane %v5739, 2
    %5742 = vrot.lane.b32.xlu0 %v5741, 96
    %v5743 = vpop.permute.xlu0 %5742
    %v5744 = vsel %vm309, %v5743, 0
    %5746 = vmatprep.subr.mxu0 0.0
    %5747 = vmatpush1.msra.mxu0 0.0
    %5748 = vmatprep.subr.mxu0 0.0
    %5749 = vmatpush1.msra.mxu0 0.0
    %5750 = vmatprep.subr.mxu0 0.0
    %5751 = vmatpush1.msra.mxu0 0.0
    %5752 = vmatprep.subr.mxu0 0.0
    %5753 = vmatpush1.msra.mxu0 0.0
    %5754 = vmatprep.subr.mxu0 0.0
    %5755 = vmatpush1.msra.mxu0 0.0
    %5756 = vmatprep.subr.mxu0 0.0
    %5757 = vmatpush1.msra.mxu0 0.0
    %5758 = vmatprep.subr.mxu0 0.0
    %5759 = vmatpush1.msra.mxu0 0.0
    %5760 = vmatprep.subr.mxu0 0.0
    %5761 = vmatpush1.msra.mxu0 0.0
    %5762 = vmatprep.subr.mxu0 0.0
    %5763 = vmatpush1.msra.mxu0 0.0
    %5764 = vmatprep.subr.mxu0 0.0
    %5765 = vmatpush1.msra.mxu0 0.0
    %5766 = vmatprep.subr.mxu0 0.0
    %5767 = vmatpush1.msra.mxu0 0.0
    %5768 = vmatprep.subr.mxu0 0.0
    %5769 = vmatpush1.msra.mxu0 0.0
    %5770 = vmatprep.subr.mxu0 0.0
    %5771 = vmatpush1.msra.mxu0 %v189
    %5772 = vmatprep.subr.mxu0 0.0
    %5773 = vmatpush1.msra.mxu0 %v188
    %5774 = vmatprep.subr.mxu0 0.0
    %5775 = vmatpush1.msra.mxu0 %v187
    %5776 = vmatprep.subr.mxu0 0.0
    %5777 = vmatpush1.msra.mxu0 %v186
    %5778 = vmatprep.subr.mxu0 0.0
    %5779 = vmatpush2.msra.mxu0 0.0
    %5780 = vmatprep.subr.mxu0 0.0
    %5781 = vmatpush2.msra.mxu0 0.0
    %5782 = vmatprep.subr.mxu0 0.0
    %5783 = vmatpush2.msra.mxu0 0.0
    %5784 = vmatprep.subr.mxu0 0.0
    %5785 = vmatpush2.msra.mxu0 0.0
    %5786 = vmatprep.subr.mxu0 0.0
    %5787 = vmatpush2.msra.mxu0 0.0
    %5788 = vmatprep.subr.mxu0 0.0
    %5789 = vmatpush2.msra.mxu0 0.0
    %5790 = vmatprep.subr.mxu0 0.0
    %5791 = vmatpush2.msra.mxu0 0.0
    %5792 = vmatprep.subr.mxu0 0.0
    %5793 = vmatpush2.msra.mxu0 0.0
    %5794 = vmatprep.subr.mxu0 0.0
    %5795 = vmatpush2.msra.mxu0 0.0
    %5796 = vmatprep.subr.mxu0 0.0
    %5797 = vmatpush2.msra.mxu0 0.0
    %5798 = vmatprep.subr.mxu0 0.0
    %5799 = vmatpush2.msra.mxu0 0.0
    %5800 = vmatprep.subr.mxu0 0.0
    %5801 = vmatpush2.msra.mxu0 0.0
    %5802 = vmatprep.subr.mxu0 0.0
    %5803 = vmatpush2.msra.mxu0 0.0
    %5804 = vmatprep.subr.mxu0 0.0
    %5805 = vmatpush2.msra.mxu0 0.0
    %5806 = vmatprep.subr.mxu0 0.0
    %5807 = vmatpush2.msra.mxu0 0.0
    %5808 = vmatprep.subr.mxu0 0.0
    %5809 = vmatpush2.msra.mxu0 0.0
    %5810 = vmatprep.mubr.f32.mxu0 0.0
    %5811 = vmatmul.mubr.f32.gmra.mxu0 %v5744
    %v5812 = vpop.f32.mrf.mxu0
    %v5813 = vadd.f32 0.0, %v5812
    %v5814 = vpop.f32.mrf.mxu0
    %5815 = vdwg.mxu0
    %v5817 = vrot.slane %v5813, 6
    %5818 = vrot.lane.b32.xlu0 %v5817, 64
    %v5819 = vpop.permute.xlu0 %5818
    %v5821 = vadd.f32 %v5652, %v5819
    %v5822 = vtanh.pop %v5821
    %v5823 = vsub.f32 1.0, %v5734
    %v5825 = vmul.f32 %v5823, %v5735
    %5827 = vrot.lane.b32.xlu0 %v5822, 64
    %v5828 = vpop.permute.xlu0 %5827
    %v5830 = vmul.f32 %v5734, %v5828
    %v5831 = vadd.f32 %v5825, %v5830
    %v5834 = vunpack.c.l.s4 1966171168
    %v5835 = vunpack.c.0.s8 %v5834
    %v5836 = vlaneseq
    %v5837 = vshrl.u32 %v5836, 7
    %v5838 = vsub.s32 %v5835, %v5837
    %v5839 = vrot.slane %v5831, %v5838
    %v5840 = vcombine.high %v5839, %v5839
    %v5842 = vunpack.c.l.s4 1966171168
    %v5843 = vunpack.c.0.s8 %v5842
    %v5844 = vlaneseq
    %v5845 = vshrl.u32 %v5844, 7
    %v5846 = vsub.s32 %v5843, %v5845
    %v5847 = vrot.slane %v5839, %v5846
    %v5849 = vunpack.c.l.s4 1966171168
    %v5850 = vunpack.c.0.s8 %v5849
    %v5851 = vlaneseq
    %v5852 = vshrl.u32 %v5851, 7
    %v5853 = vsub.s32 %v5850, %v5852
    %v5854 = vrot.slane %v5840, %v5853
    %v5855 = vcombine.high %v5847, %v5847
    %v5856 = vcombine.high %v5854, %v5854
    %v5857 = vsel %vm309, %v5855, 0
    %5859 = vmatprep.subr.mxu0 0.0
    %5860 = vmatpush1.xpose.msra.mxu0 0.0
    %5861 = vmatprep.subr.mxu0 0.0
    %5862 = vmatpush1.xpose.msra.mxu0 0.0
    %5863 = vmatprep.subr.mxu0 0.0
    %5864 = vmatpush1.xpose.msra.mxu0 0.0
    %5865 = vmatprep.subr.mxu0 0.0
    %5866 = vmatpush1.xpose.msra.mxu0 0.0
    %5867 = vmatprep.subr.mxu0 0.0
    %5868 = vmatpush1.xpose.msra.mxu0 0.0
    %5869 = vmatprep.subr.mxu0 0.0
    %5870 = vmatpush1.xpose.msra.mxu0 0.0
    %5871 = vmatprep.subr.mxu0 0.0
    %5872 = vmatpush1.xpose.msra.mxu0 0.0
    %5873 = vmatprep.subr.mxu0 0.0
    %5874 = vmatpush1.xpose.msra.mxu0 0.0
    %5875 = vmatprep.subr.mxu0 0.0
    %5876 = vmatpush1.xpose.msra.mxu0 0.0
    %5877 = vmatprep.subr.mxu0 0.0
    %5878 = vmatpush1.xpose.msra.mxu0 0.0
    %5879 = vmatprep.subr.mxu0 0.0
    %5880 = vmatpush1.xpose.msra.mxu0 0.0
    %5881 = vmatprep.subr.mxu0 0.0
    %5882 = vmatpush1.xpose.msra.mxu0 0.0
    %5883 = vmatprep.subr.mxu0 0.0
    %5884 = vmatpush1.xpose.msra.mxu0 0.0
    %5885 = vmatprep.subr.mxu0 0.0
    %5886 = vmatpush1.xpose.msra.mxu0 0.0
    %5887 = vmatprep.subr.mxu0 0.0
    %5888 = vmatpush1.xpose.msra.mxu0 %v666
    %5889 = vmatprep.subr.mxu0 0.0
    %5890 = vmatpush1.xpose.msra.mxu0 %v663
    %5891 = vmatprep.subr.mxu0 0.0
    %5892 = vmatpush2.xpose.msra.mxu0 0.0
    %5893 = vmatprep.subr.mxu0 0.0
    %5894 = vmatpush2.xpose.msra.mxu0 0.0
    %5895 = vmatprep.subr.mxu0 0.0
    %5896 = vmatpush2.xpose.msra.mxu0 0.0
    %5897 = vmatprep.subr.mxu0 0.0
    %5898 = vmatpush2.xpose.msra.mxu0 0.0
    %5899 = vmatprep.subr.mxu0 0.0
    %5900 = vmatpush2.xpose.msra.mxu0 0.0
    %5901 = vmatprep.subr.mxu0 0.0
    %5902 = vmatpush2.xpose.msra.mxu0 0.0
    %5903 = vmatprep.subr.mxu0 0.0
    %5904 = vmatpush2.xpose.msra.mxu0 0.0
    %5905 = vmatprep.subr.mxu0 0.0
    %5906 = vmatpush2.xpose.msra.mxu0 0.0
    %5907 = vmatprep.subr.mxu0 0.0
    %5908 = vmatpush2.xpose.msra.mxu0 0.0
    %5909 = vmatprep.subr.mxu0 0.0
    %5910 = vmatpush2.xpose.msra.mxu0 0.0
    %5911 = vmatprep.subr.mxu0 0.0
    %5912 = vmatpush2.xpose.msra.mxu0 0.0
    %5913 = vmatprep.subr.mxu0 0.0
    %5914 = vmatpush2.xpose.msra.mxu0 0.0
    %5915 = vmatprep.subr.mxu0 0.0
    %5916 = vmatpush2.xpose.msra.mxu0 0.0
    %5917 = vmatprep.subr.mxu0 0.0
    %5918 = vmatpush2.xpose.msra.mxu0 0.0
    %5919 = vmatprep.subr.mxu0 0.0
    %5920 = vmatpush2.xpose.msra.mxu0 0.0
    %5921 = vmatprep.subr.mxu0 0.0
    %5922 = vmatpush2.xpose.msra.mxu0 0.0
    %5923 = vmatprep.mubr.f32.mxu0 0.0
    %5924 = vmatmul.mubr.f32.gmra.mxu0 %v5857
    %v5925 = vpop.f32.mrf.mxu0
    %v5926 = vadd.f32 0.0, %v5925
    %v5927 = vpop.f32.mrf.mxu0
    %5928 = vdwg.mxu0
    %v5929 = vsel %vm309, %v5856, 0
    %5931 = vmatprep.subr.mxu0 0.0
    %5932 = vmatpush1.xpose.msra.mxu0 0.0
    %5933 = vmatprep.subr.mxu0 0.0
    %5934 = vmatpush1.xpose.msra.mxu0 0.0
    %5935 = vmatprep.subr.mxu0 0.0
    %5936 = vmatpush1.xpose.msra.mxu0 0.0
    %5937 = vmatprep.subr.mxu0 0.0
    %5938 = vmatpush1.xpose.msra.mxu0 0.0
    %5939 = vmatprep.subr.mxu0 0.0
    %5940 = vmatpush1.xpose.msra.mxu0 0.0
    %5941 = vmatprep.subr.mxu0 0.0
    %5942 = vmatpush1.xpose.msra.mxu0 0.0
    %5943 = vmatprep.subr.mxu0 0.0
    %5944 = vmatpush1.xpose.msra.mxu0 0.0
    %5945 = vmatprep.subr.mxu0 0.0
    %5946 = vmatpush1.xpose.msra.mxu0 0.0
    %5947 = vmatprep.subr.mxu0 0.0
    %5948 = vmatpush1.xpose.msra.mxu0 0.0
    %5949 = vmatprep.subr.mxu0 0.0
    %5950 = vmatpush1.xpose.msra.mxu0 0.0
    %5951 = vmatprep.subr.mxu0 0.0
    %5952 = vmatpush1.xpose.msra.mxu0 0.0
    %5953 = vmatprep.subr.mxu0 0.0
    %5954 = vmatpush1.xpose.msra.mxu0 0.0
    %5955 = vmatprep.subr.mxu0 0.0
    %5956 = vmatpush1.xpose.msra.mxu0 0.0
    %5957 = vmatprep.subr.mxu0 0.0
    %5958 = vmatpush1.xpose.msra.mxu0 0.0
    %5959 = vmatprep.subr.mxu0 0.0
    %5960 = vmatpush1.xpose.msra.mxu0 %v744
    %5961 = vmatprep.subr.mxu0 0.0
    %5962 = vmatpush1.xpose.msra.mxu0 %v741
    %5963 = vmatprep.subr.mxu0 0.0
    %5964 = vmatpush2.xpose.msra.mxu0 0.0
    %5965 = vmatprep.subr.mxu0 0.0
    %5966 = vmatpush2.xpose.msra.mxu0 0.0
    %5967 = vmatprep.subr.mxu0 0.0
    %5968 = vmatpush2.xpose.msra.mxu0 0.0
    %5969 = vmatprep.subr.mxu0 0.0
    %5970 = vmatpush2.xpose.msra.mxu0 0.0
    %5971 = vmatprep.subr.mxu0 0.0
    %5972 = vmatpush2.xpose.msra.mxu0 0.0
    %5973 = vmatprep.subr.mxu0 0.0
    %5974 = vmatpush2.xpose.msra.mxu0 0.0
    %5975 = vmatprep.subr.mxu0 0.0
    %5976 = vmatpush2.xpose.msra.mxu0 0.0
    %5977 = vmatprep.subr.mxu0 0.0
    %5978 = vmatpush2.xpose.msra.mxu0 0.0
    %5979 = vmatprep.subr.mxu0 0.0
    %5980 = vmatpush2.xpose.msra.mxu0 0.0
    %5981 = vmatprep.subr.mxu0 0.0
    %5982 = vmatpush2.xpose.msra.mxu0 0.0
    %5983 = vmatprep.subr.mxu0 0.0
    %5984 = vmatpush2.xpose.msra.mxu0 0.0
    %5985 = vmatprep.subr.mxu0 0.0
    %5986 = vmatpush2.xpose.msra.mxu0 0.0
    %5987 = vmatprep.subr.mxu0 0.0
    %5988 = vmatpush2.xpose.msra.mxu0 0.0
    %5989 = vmatprep.subr.mxu0 0.0
    %5990 = vmatpush2.xpose.msra.mxu0 0.0
    %5991 = vmatprep.subr.mxu0 0.0
    %5992 = vmatpush2.xpose.msra.mxu0 0.0
    %5993 = vmatprep.subr.mxu0 0.0
    %5994 = vmatpush2.xpose.msra.mxu0 0.0
    %5995 = vmatprep.mubr.f32.mxu0 0.0
    %5996 = vmatmul.mubr.f32.gmra.mxu0 %v5929
    %v5997 = vpop.f32.mrf.mxu0
    %v5998 = vadd.f32 0.0, %v5997
    %v5999 = vpop.f32.mrf.mxu0
    %6000 = vdwg.mxu0
    %v6001 = vadd.f32 %v5926, %v166
    %v6002 = vadd.f32 %v5998, %v817
    %v6005 = vrot.slane %v6002, 7
    %v6006 = vsel %vm825, %v6005, %v6001
    %v6008 = vsel %vm828, %v6006, -inf
    %6009 = vmax.xlane.f32.xlu0 %v6008
    %v6010 = vpop.xlane.xlu0 %6009
    %v6012 = vrot.slane %v6010, 1
    %v6015 = vsub.f32 %v6001, %v6010
    %v6016 = vsub.f32 %v6002, %v6012
    %v6017 = vmul.f32 %v6015, 1.442695
    %v6018 = vpow.pop %v6017
    %v6019 = vmul.f32 %v6016, 1.442695
    %v6020 = vpow.pop %v6019
    %v6023 = vrot.slane %v6020, 7
    %v6024 = vsel %vm825, %v6023, %v6018
    %v6026 = vsel %vm828, %v6024, 0.0
    %6027 = vadd.xlane.f32.xlu0 %v6026
    %v6028 = vpop.xlane.xlu0 %6027
    %v6029 = vadd.f32 %v6028, 1e-09
    %v6030 = vrcp.pop %v6029
    %v6032 = vrot.slane %v6030, 1
    %v6035 = vmul.f32 %v6018, %v6030
    %v6036 = vmul.f32 %v6020, %v6032
    %v6038 = vsel %vm221, %v6035, 0
    %6040 = vmatprep.subr.mxu0 0.0
    %6041 = vmatpush1.msra.mxu0 0.0
    %6042 = vmatprep.subr.mxu0 0.0
    %6043 = vmatpush1.msra.mxu0 0.0
    %6044 = vmatprep.subr.mxu0 0.0
    %6045 = vmatpush1.msra.mxu0 0.0
    %6046 = vmatprep.subr.mxu0 0.0
    %6047 = vmatpush1.msra.mxu0 0.0
    %6048 = vmatprep.subr.mxu0 0.0
    %6049 = vmatpush1.msra.mxu0 0.0
    %6050 = vmatprep.subr.mxu0 0.0
    %6051 = vmatpush1.msra.mxu0 0.0
    %6052 = vmatprep.subr.mxu0 0.0
    %6053 = vmatpush1.msra.mxu0 0.0
    %6054 = vmatprep.subr.mxu0 0.0
    %6055 = vmatpush1.msra.mxu0 0.0
    %6056 = vmatprep.subr.mxu0 0.0
    %6057 = vmatpush1.msra.mxu0 0.0
    %6058 = vmatprep.subr.mxu0 0.0
    %6059 = vmatpush1.msra.mxu0 0.0
    %6060 = vmatprep.subr.mxu0 0.0
    %6061 = vmatpush1.msra.mxu0 0.0
    %6062 = vmatprep.subr.mxu0 0.0
    %6063 = vmatpush1.msra.mxu0 0.0
    %6064 = vmatprep.subr.mxu0 0.0
    %6065 = vmatpush1.msra.mxu0 0.0
    %6066 = vmatprep.subr.mxu0 0.0
    %6067 = vmatpush1.msra.mxu0 0.0
    %6068 = vmatprep.subr.mxu0 0.0
    %6069 = vmatpush1.msra.mxu0 %v155
    %6070 = vmatprep.subr.mxu0 0.0
    %6071 = vmatpush1.msra.mxu0 %v154
    %6072 = vmatprep.subr.mxu0 0.0
    %6073 = vmatpush2.msra.mxu0 0.0
    %6074 = vmatprep.subr.mxu0 0.0
    %6075 = vmatpush2.msra.mxu0 0.0
    %6076 = vmatprep.subr.mxu0 0.0
    %6077 = vmatpush2.msra.mxu0 0.0
    %6078 = vmatprep.subr.mxu0 0.0
    %6079 = vmatpush2.msra.mxu0 0.0
    %6080 = vmatprep.subr.mxu0 0.0
    %6081 = vmatpush2.msra.mxu0 0.0
    %6082 = vmatprep.subr.mxu0 0.0
    %6083 = vmatpush2.msra.mxu0 0.0
    %6084 = vmatprep.subr.mxu0 0.0
    %6085 = vmatpush2.msra.mxu0 0.0
    %6086 = vmatprep.subr.mxu0 0.0
    %6087 = vmatpush2.msra.mxu0 0.0
    %6088 = vmatprep.subr.mxu0 0.0
    %6089 = vmatpush2.msra.mxu0 0.0
    %6090 = vmatprep.subr.mxu0 0.0
    %6091 = vmatpush2.msra.mxu0 0.0
    %6092 = vmatprep.subr.mxu0 0.0
    %6093 = vmatpush2.msra.mxu0 0.0
    %6094 = vmatprep.subr.mxu0 0.0
    %6095 = vmatpush2.msra.mxu0 0.0
    %6096 = vmatprep.subr.mxu0 0.0
    %6097 = vmatpush2.msra.mxu0 0.0
    %6098 = vmatprep.subr.mxu0 0.0
    %6099 = vmatpush2.msra.mxu0 0.0
    %6100 = vmatprep.subr.mxu0 0.0
    %6101 = vmatpush2.msra.mxu0 0.0
    %6102 = vmatprep.subr.mxu0 0.0
    %6103 = vmatpush2.msra.mxu0 0.0
    %6104 = vmatprep.mubr.f32.mxu0 0.0
    %6105 = vmatmul.mubr.f32.gmra.mxu0 %v6038
    %v6106 = vpop.f32.mrf.mxu0
    %v6107 = vadd.f32 0.0, %v6106
    %v6108 = vpop.f32.mrf.mxu0
    %6109 = vdwg.mxu0
    %v6111 = vsel %vm221, %v6036, 0
    %6113 = vmatprep.subr.mxu0 0.0
    %6114 = vmatpush1.msra.mxu0 0.0
    %6115 = vmatprep.subr.mxu0 0.0
    %6116 = vmatpush1.msra.mxu0 0.0
    %6117 = vmatprep.subr.mxu0 0.0
    %6118 = vmatpush1.msra.mxu0 0.0
    %6119 = vmatprep.subr.mxu0 0.0
    %6120 = vmatpush1.msra.mxu0 0.0
    %6121 = vmatprep.subr.mxu0 0.0
    %6122 = vmatpush1.msra.mxu0 0.0
    %6123 = vmatprep.subr.mxu0 0.0
    %6124 = vmatpush1.msra.mxu0 0.0
    %6125 = vmatprep.subr.mxu0 0.0
    %6126 = vmatpush1.msra.mxu0 0.0
    %6127 = vmatprep.subr.mxu0 0.0
    %6128 = vmatpush1.msra.mxu0 0.0
    %6129 = vmatprep.subr.mxu0 0.0
    %6130 = vmatpush1.msra.mxu0 0.0
    %6131 = vmatprep.subr.mxu0 0.0
    %6132 = vmatpush1.msra.mxu0 0.0
    %6133 = vmatprep.subr.mxu0 0.0
    %6134 = vmatpush1.msra.mxu0 0.0
    %6135 = vmatprep.subr.mxu0 0.0
    %6136 = vmatpush1.msra.mxu0 0.0
    %6137 = vmatprep.subr.mxu0 0.0
    %6138 = vmatpush1.msra.mxu0 0.0
    %6139 = vmatprep.subr.mxu0 0.0
    %6140 = vmatpush1.msra.mxu0 0.0
    %6141 = vmatprep.subr.mxu0 0.0
    %6142 = vmatpush1.msra.mxu0 %v157
    %6143 = vmatprep.subr.mxu0 0.0
    %6144 = vmatpush1.msra.mxu0 %v156
    %6145 = vmatprep.subr.mxu0 0.0
    %6146 = vmatpush2.msra.mxu0 0.0
    %6147 = vmatprep.subr.mxu0 0.0
    %6148 = vmatpush2.msra.mxu0 0.0
    %6149 = vmatprep.subr.mxu0 0.0
    %6150 = vmatpush2.msra.mxu0 0.0
    %6151 = vmatprep.subr.mxu0 0.0
    %6152 = vmatpush2.msra.mxu0 0.0
    %6153 = vmatprep.subr.mxu0 0.0
    %6154 = vmatpush2.msra.mxu0 0.0
    %6155 = vmatprep.subr.mxu0 0.0
    %6156 = vmatpush2.msra.mxu0 0.0
    %6157 = vmatprep.subr.mxu0 0.0
    %6158 = vmatpush2.msra.mxu0 0.0
    %6159 = vmatprep.subr.mxu0 0.0
    %6160 = vmatpush2.msra.mxu0 0.0
    %6161 = vmatprep.subr.mxu0 0.0
    %6162 = vmatpush2.msra.mxu0 0.0
    %6163 = vmatprep.subr.mxu0 0.0
    %6164 = vmatpush2.msra.mxu0 0.0
    %6165 = vmatprep.subr.mxu0 0.0
    %6166 = vmatpush2.msra.mxu0 0.0
    %6167 = vmatprep.subr.mxu0 0.0
    %6168 = vmatpush2.msra.mxu0 0.0
    %6169 = vmatprep.subr.mxu0 0.0
    %6170 = vmatpush2.msra.mxu0 0.0
    %6171 = vmatprep.subr.mxu0 0.0
    %6172 = vmatpush2.msra.mxu0 0.0
    %6173 = vmatprep.subr.mxu0 0.0
    %6174 = vmatpush2.msra.mxu0 0.0
    %6175 = vmatprep.subr.mxu0 0.0
    %6176 = vmatpush2.msra.mxu0 0.0
    %6177 = vmatprep.mubr.f32.mxu0 0.0
    %6178 = vmatmul.mubr.f32.gmra.mxu0 %v6111
    %v6179 = vpop.f32.mrf.mxu0
    %v6180 = vadd.f32 0.0, %v6179
    %v6181 = vpop.f32.mrf.mxu0
    %6182 = vdwg.mxu0
    %6183 = vmatprep.subr.mxu0 0.0
    %6184 = vmatpush1.xpose.msra.mxu0 0.0
    %6185 = vmatprep.subr.mxu0 0.0
    %6186 = vmatpush1.xpose.msra.mxu0 0.0
    %6187 = vmatprep.subr.mxu0 0.0
    %6188 = vmatpush1.xpose.msra.mxu0 0.0
    %6189 = vmatprep.subr.mxu0 0.0
    %6190 = vmatpush1.xpose.msra.mxu0 0.0
    %6191 = vmatprep.subr.mxu0 0.0
    %6192 = vmatpush1.xpose.msra.mxu0 0.0
    %6193 = vmatprep.subr.mxu0 0.0
    %6194 = vmatpush1.xpose.msra.mxu0 0.0
    %6195 = vmatprep.subr.mxu0 0.0
    %6196 = vmatpush1.xpose.msra.mxu0 0.0
    %6197 = vmatprep.subr.mxu0 0.0
    %6198 = vmatpush1.xpose.msra.mxu0 0.0
    %6199 = vmatprep.subr.mxu0 0.0
    %6200 = vmatpush1.xpose.msra.mxu0 0.0
    %6201 = vmatprep.subr.mxu0 0.0
    %6202 = vmatpush1.xpose.msra.mxu0 0.0
    %6203 = vmatprep.subr.mxu0 0.0
    %6204 = vmatpush1.xpose.msra.mxu0 0.0
    %6205 = vmatprep.subr.mxu0 0.0
    %6206 = vmatpush1.xpose.msra.mxu0 0.0
    %6207 = vmatprep.subr.mxu0 0.0
    %6208 = vmatpush1.xpose.msra.mxu0 0.0
    %6209 = vmatprep.subr.mxu0 0.0
    %6210 = vmatpush1.xpose.msra.mxu0 0.0
    %6211 = vmatprep.subr.mxu0 0.0
    %6212 = vmatpush1.xpose.msra.mxu0 %v1008
    %6213 = vmatprep.subr.mxu0 0.0
    %6214 = vmatpush1.xpose.msra.mxu0 %v1005
    %6215 = vmatprep.subr.mxu0 0.0
    %6216 = vmatpush2.xpose.msra.mxu0 0.0
    %6217 = vmatprep.subr.mxu0 0.0
    %6218 = vmatpush2.xpose.msra.mxu0 0.0
    %6219 = vmatprep.subr.mxu0 0.0
    %6220 = vmatpush2.xpose.msra.mxu0 0.0
    %6221 = vmatprep.subr.mxu0 0.0
    %6222 = vmatpush2.xpose.msra.mxu0 0.0
    %6223 = vmatprep.subr.mxu0 0.0
    %6224 = vmatpush2.xpose.msra.mxu0 0.0
    %6225 = vmatprep.subr.mxu0 0.0
    %6226 = vmatpush2.xpose.msra.mxu0 0.0
    %6227 = vmatprep.subr.mxu0 0.0
    %6228 = vmatpush2.xpose.msra.mxu0 0.0
    %6229 = vmatprep.subr.mxu0 0.0
    %6230 = vmatpush2.xpose.msra.mxu0 0.0
    %6231 = vmatprep.subr.mxu0 0.0
    %6232 = vmatpush2.xpose.msra.mxu0 0.0
    %6233 = vmatprep.subr.mxu0 0.0
    %6234 = vmatpush2.xpose.msra.mxu0 0.0
    %6235 = vmatprep.subr.mxu0 0.0
    %6236 = vmatpush2.xpose.msra.mxu0 0.0
    %6237 = vmatprep.subr.mxu0 0.0
    %6238 = vmatpush2.xpose.msra.mxu0 0.0
    %6239 = vmatprep.subr.mxu0 0.0
    %6240 = vmatpush2.xpose.msra.mxu0 0.0
    %6241 = vmatprep.subr.mxu0 0.0
    %6242 = vmatpush2.xpose.msra.mxu0 0.0
    %6243 = vmatprep.subr.mxu0 0.0
    %6244 = vmatpush2.xpose.msra.mxu0 0.0
    %6245 = vmatprep.subr.mxu0 0.0
    %6246 = vmatpush2.xpose.msra.mxu0 0.0
    %6247 = vmatprep.mubr.f32.mxu0 0.0
    %6248 = vmatmul.mubr.f32.gmra.mxu0 %v5857
    %v6249 = vpop.f32.mrf.mxu0
    %v6250 = vadd.f32 0.0, %v6249
    %v6251 = vpop.f32.mrf.mxu0
    %6252 = vdwg.mxu0
    %6253 = vmatprep.subr.mxu0 0.0
    %6254 = vmatpush1.xpose.msra.mxu0 0.0
    %6255 = vmatprep.subr.mxu0 0.0
    %6256 = vmatpush1.xpose.msra.mxu0 0.0
    %6257 = vmatprep.subr.mxu0 0.0
    %6258 = vmatpush1.xpose.msra.mxu0 0.0
    %6259 = vmatprep.subr.mxu0 0.0
    %6260 = vmatpush1.xpose.msra.mxu0 0.0
    %6261 = vmatprep.subr.mxu0 0.0
    %6262 = vmatpush1.xpose.msra.mxu0 0.0
    %6263 = vmatprep.subr.mxu0 0.0
    %6264 = vmatpush1.xpose.msra.mxu0 0.0
    %6265 = vmatprep.subr.mxu0 0.0
    %6266 = vmatpush1.xpose.msra.mxu0 0.0
    %6267 = vmatprep.subr.mxu0 0.0
    %6268 = vmatpush1.xpose.msra.mxu0 0.0
    %6269 = vmatprep.subr.mxu0 0.0
    %6270 = vmatpush1.xpose.msra.mxu0 0.0
    %6271 = vmatprep.subr.mxu0 0.0
    %6272 = vmatpush1.xpose.msra.mxu0 0.0
    %6273 = vmatprep.subr.mxu0 0.0
    %6274 = vmatpush1.xpose.msra.mxu0 0.0
    %6275 = vmatprep.subr.mxu0 0.0
    %6276 = vmatpush1.xpose.msra.mxu0 0.0
    %6277 = vmatprep.subr.mxu0 0.0
    %6278 = vmatpush1.xpose.msra.mxu0 0.0
    %6279 = vmatprep.subr.mxu0 0.0
    %6280 = vmatpush1.xpose.msra.mxu0 0.0
    %6281 = vmatprep.subr.mxu0 0.0
    %6282 = vmatpush1.xpose.msra.mxu0 %v1084
    %6283 = vmatprep.subr.mxu0 0.0
    %6284 = vmatpush1.xpose.msra.mxu0 %v1081
    %6285 = vmatprep.subr.mxu0 0.0
    %6286 = vmatpush2.xpose.msra.mxu0 0.0
    %6287 = vmatprep.subr.mxu0 0.0
    %6288 = vmatpush2.xpose.msra.mxu0 0.0
    %6289 = vmatprep.subr.mxu0 0.0
    %6290 = vmatpush2.xpose.msra.mxu0 0.0
    %6291 = vmatprep.subr.mxu0 0.0
    %6292 = vmatpush2.xpose.msra.mxu0 0.0
    %6293 = vmatprep.subr.mxu0 0.0
    %6294 = vmatpush2.xpose.msra.mxu0 0.0
    %6295 = vmatprep.subr.mxu0 0.0
    %6296 = vmatpush2.xpose.msra.mxu0 0.0
    %6297 = vmatprep.subr.mxu0 0.0
    %6298 = vmatpush2.xpose.msra.mxu0 0.0
    %6299 = vmatprep.subr.mxu0 0.0
    %6300 = vmatpush2.xpose.msra.mxu0 0.0
    %6301 = vmatprep.subr.mxu0 0.0
    %6302 = vmatpush2.xpose.msra.mxu0 0.0
    %6303 = vmatprep.subr.mxu0 0.0
    %6304 = vmatpush2.xpose.msra.mxu0 0.0
    %6305 = vmatprep.subr.mxu0 0.0
    %6306 = vmatpush2.xpose.msra.mxu0 0.0
    %6307 = vmatprep.subr.mxu0 0.0
    %6308 = vmatpush2.xpose.msra.mxu0 0.0
    %6309 = vmatprep.subr.mxu0 0.0
    %6310 = vmatpush2.xpose.msra.mxu0 0.0
    %6311 = vmatprep.subr.mxu0 0.0
    %6312 = vmatpush2.xpose.msra.mxu0 0.0
    %6313 = vmatprep.subr.mxu0 0.0
    %6314 = vmatpush2.xpose.msra.mxu0 0.0
    %6315 = vmatprep.subr.mxu0 0.0
    %6316 = vmatpush2.xpose.msra.mxu0 0.0
    %6317 = vmatprep.mubr.f32.mxu0 0.0
    %6318 = vmatmul.mubr.f32.gmra.mxu0 %v5929
    %v6319 = vpop.f32.mrf.mxu0
    %v6320 = vadd.f32 0.0, %v6319
    %v6321 = vpop.f32.mrf.mxu0
    %6322 = vdwg.mxu0
    %v6323 = vadd.f32 %v6250, %v167
    %v6324 = vadd.f32 %v6320, %v1157
    %v6327 = vrot.slane %v6324, 7
    %v6328 = vsel %vm825, %v6327, %v6323
    %v6330 = vsel %vm828, %v6328, -inf
    %6331 = vmax.xlane.f32.xlu0 %v6330
    %v6332 = vpop.xlane.xlu0 %6331
    %v6334 = vrot.slane %v6332, 1
    %v6337 = vsub.f32 %v6323, %v6332
    %v6338 = vsub.f32 %v6324, %v6334
    %v6339 = vmul.f32 %v6337, 1.442695
    %v6340 = vpow.pop %v6339
    %v6341 = vmul.f32 %v6338, 1.442695
    %v6342 = vpow.pop %v6341
    %v6345 = vrot.slane %v6342, 7
    %v6346 = vsel %vm825, %v6345, %v6340
    %v6348 = vsel %vm828, %v6346, 0.0
    %6349 = vadd.xlane.f32.xlu0 %v6348
    %v6350 = vpop.xlane.xlu0 %6349
    %v6351 = vadd.f32 %v6350, 1e-09
    %v6352 = vrcp.pop %v6351
    %v6354 = vrot.slane %v6352, 1
    %v6357 = vmul.f32 %v6340, %v6352
    %v6358 = vmul.f32 %v6342, %v6354
    %v6360 = vsel %vm221, %v6357, 0
    %6362 = vmatprep.subr.mxu0 0.0
    %6363 = vmatpush1.msra.mxu0 0.0
    %6364 = vmatprep.subr.mxu0 0.0
    %6365 = vmatpush1.msra.mxu0 0.0
    %6366 = vmatprep.subr.mxu0 0.0
    %6367 = vmatpush1.msra.mxu0 0.0
    %6368 = vmatprep.subr.mxu0 0.0
    %6369 = vmatpush1.msra.mxu0 0.0
    %6370 = vmatprep.subr.mxu0 0.0
    %6371 = vmatpush1.msra.mxu0 0.0
    %6372 = vmatprep.subr.mxu0 0.0
    %6373 = vmatpush1.msra.mxu0 0.0
    %6374 = vmatprep.subr.mxu0 0.0
    %6375 = vmatpush1.msra.mxu0 0.0
    %6376 = vmatprep.subr.mxu0 0.0
    %6377 = vmatpush1.msra.mxu0 0.0
    %6378 = vmatprep.subr.mxu0 0.0
    %6379 = vmatpush1.msra.mxu0 0.0
    %6380 = vmatprep.subr.mxu0 0.0
    %6381 = vmatpush1.msra.mxu0 0.0
    %6382 = vmatprep.subr.mxu0 0.0
    %6383 = vmatpush1.msra.mxu0 0.0
    %6384 = vmatprep.subr.mxu0 0.0
    %6385 = vmatpush1.msra.mxu0 0.0
    %6386 = vmatprep.subr.mxu0 0.0
    %6387 = vmatpush1.msra.mxu0 0.0
    %6388 = vmatprep.subr.mxu0 0.0
    %6389 = vmatpush1.msra.mxu0 0.0
    %6390 = vmatprep.subr.mxu0 0.0
    %6391 = vmatpush1.msra.mxu0 %v163
    %6392 = vmatprep.subr.mxu0 0.0
    %6393 = vmatpush1.msra.mxu0 %v162
    %6394 = vmatprep.subr.mxu0 0.0
    %6395 = vmatpush2.msra.mxu0 0.0
    %6396 = vmatprep.subr.mxu0 0.0
    %6397 = vmatpush2.msra.mxu0 0.0
    %6398 = vmatprep.subr.mxu0 0.0
    %6399 = vmatpush2.msra.mxu0 0.0
    %6400 = vmatprep.subr.mxu0 0.0
    %6401 = vmatpush2.msra.mxu0 0.0
    %6402 = vmatprep.subr.mxu0 0.0
    %6403 = vmatpush2.msra.mxu0 0.0
    %6404 = vmatprep.subr.mxu0 0.0
    %6405 = vmatpush2.msra.mxu0 0.0
    %6406 = vmatprep.subr.mxu0 0.0
    %6407 = vmatpush2.msra.mxu0 0.0
    %6408 = vmatprep.subr.mxu0 0.0
    %6409 = vmatpush2.msra.mxu0 0.0
    %6410 = vmatprep.subr.mxu0 0.0
    %6411 = vmatpush2.msra.mxu0 0.0
    %6412 = vmatprep.subr.mxu0 0.0
    %6413 = vmatpush2.msra.mxu0 0.0
    %6414 = vmatprep.subr.mxu0 0.0
    %6415 = vmatpush2.msra.mxu0 0.0
    %6416 = vmatprep.subr.mxu0 0.0
    %6417 = vmatpush2.msra.mxu0 0.0
    %6418 = vmatprep.subr.mxu0 0.0
    %6419 = vmatpush2.msra.mxu0 0.0
    %6420 = vmatprep.subr.mxu0 0.0
    %6421 = vmatpush2.msra.mxu0 0.0
    %6422 = vmatprep.subr.mxu0 0.0
    %6423 = vmatpush2.msra.mxu0 0.0
    %6424 = vmatprep.subr.mxu0 0.0
    %6425 = vmatpush2.msra.mxu0 0.0
    %6426 = vmatprep.mubr.f32.mxu0 0.0
    %6427 = vmatmul.mubr.f32.gmra.mxu0 %v6360
    %v6428 = vpop.f32.mrf.mxu0
    %v6429 = vadd.f32 0.0, %v6428
    %v6430 = vpop.f32.mrf.mxu0
    %6431 = vdwg.mxu0
    %v6433 = vsel %vm221, %v6358, 0
    %6435 = vmatprep.subr.mxu0 0.0
    %6436 = vmatpush1.msra.mxu0 0.0
    %6437 = vmatprep.subr.mxu0 0.0
    %6438 = vmatpush1.msra.mxu0 0.0
    %6439 = vmatprep.subr.mxu0 0.0
    %6440 = vmatpush1.msra.mxu0 0.0
    %6441 = vmatprep.subr.mxu0 0.0
    %6442 = vmatpush1.msra.mxu0 0.0
    %6443 = vmatprep.subr.mxu0 0.0
    %6444 = vmatpush1.msra.mxu0 0.0
    %6445 = vmatprep.subr.mxu0 0.0
    %6446 = vmatpush1.msra.mxu0 0.0
    %6447 = vmatprep.subr.mxu0 0.0
    %6448 = vmatpush1.msra.mxu0 0.0
    %6449 = vmatprep.subr.mxu0 0.0
    %6450 = vmatpush1.msra.mxu0 0.0
    %6451 = vmatprep.subr.mxu0 0.0
    %6452 = vmatpush1.msra.mxu0 0.0
    %6453 = vmatprep.subr.mxu0 0.0
    %6454 = vmatpush1.msra.mxu0 0.0
    %6455 = vmatprep.subr.mxu0 0.0
    %6456 = vmatpush1.msra.mxu0 0.0
    %6457 = vmatprep.subr.mxu0 0.0
    %6458 = vmatpush1.msra.mxu0 0.0
    %6459 = vmatprep.subr.mxu0 0.0
    %6460 = vmatpush1.msra.mxu0 0.0
    %6461 = vmatprep.subr.mxu0 0.0
    %6462 = vmatpush1.msra.mxu0 0.0
    %6463 = vmatprep.subr.mxu0 0.0
    %6464 = vmatpush1.msra.mxu0 %v165
    %6465 = vmatprep.subr.mxu0 0.0
    %6466 = vmatpush1.msra.mxu0 %v164
    %6467 = vmatprep.subr.mxu0 0.0
    %6468 = vmatpush2.msra.mxu0 0.0
    %6469 = vmatprep.subr.mxu0 0.0
    %6470 = vmatpush2.msra.mxu0 0.0
    %6471 = vmatprep.subr.mxu0 0.0
    %6472 = vmatpush2.msra.mxu0 0.0
    %6473 = vmatprep.subr.mxu0 0.0
    %6474 = vmatpush2.msra.mxu0 0.0
    %6475 = vmatprep.subr.mxu0 0.0
    %6476 = vmatpush2.msra.mxu0 0.0
    %6477 = vmatprep.subr.mxu0 0.0
    %6478 = vmatpush2.msra.mxu0 0.0
    %6479 = vmatprep.subr.mxu0 0.0
    %6480 = vmatpush2.msra.mxu0 0.0
    %6481 = vmatprep.subr.mxu0 0.0
    %6482 = vmatpush2.msra.mxu0 0.0
    %6483 = vmatprep.subr.mxu0 0.0
    %6484 = vmatpush2.msra.mxu0 0.0
    %6485 = vmatprep.subr.mxu0 0.0
    %6486 = vmatpush2.msra.mxu0 0.0
    %6487 = vmatprep.subr.mxu0 0.0
    %6488 = vmatpush2.msra.mxu0 0.0
    %6489 = vmatprep.subr.mxu0 0.0
    %6490 = vmatpush2.msra.mxu0 0.0
    %6491 = vmatprep.subr.mxu0 0.0
    %6492 = vmatpush2.msra.mxu0 0.0
    %6493 = vmatprep.subr.mxu0 0.0
    %6494 = vmatpush2.msra.mxu0 0.0
    %6495 = vmatprep.subr.mxu0 0.0
    %6496 = vmatpush2.msra.mxu0 0.0
    %6497 = vmatprep.subr.mxu0 0.0
    %6498 = vmatpush2.msra.mxu0 0.0
    %6499 = vmatprep.mubr.f32.mxu0 0.0
    %6500 = vmatmul.mubr.f32.gmra.mxu0 %v6433
    %v6501 = vpop.f32.mrf.mxu0
    %v6502 = vadd.f32 0.0, %v6501
    %v6503 = vpop.f32.mrf.mxu0
    %6504 = vdwg.mxu0
    %v6507 = vrot.slane %v6107, 6
    %v6508 = vrot.slane %v6180, 5
    %v6509 = vsel %vm2377, %v6508, %v6507
    %6510 = vrot.lane.b32.xlu0 %v6509, 32
    %v6511 = vpop.permute.xlu0 %6510
    %v6515 = vrot.slane %v6429, 6
    %v6516 = vrot.slane %v6502, 5
    %v6517 = vsel %vm2377, %v6516, %v6515
    %6518 = vrot.lane.b32.xlu0 %v6517, 64
    %v6519 = vpop.permute.xlu0 %6518
    %v6521 = vsel %vm309, %v5831, %v6511
    %v6522 = vsel %vm392, %v6521, %v6519
    %v6524 = vrot.slane %v6522, 2
    %v6525 = vsel %vm1364, %v6524, 0
    %6527 = vmatprep.subr.mxu0 0.0
    %6528 = vmatpush1.msra.mxu0 0.0
    %6529 = vmatprep.subr.mxu0 0.0
    %6530 = vmatpush1.msra.mxu0 0.0
    %6531 = vmatprep.subr.mxu0 0.0
    %6532 = vmatpush1.msra.mxu0 0.0
    %6533 = vmatprep.subr.mxu0 0.0
    %6534 = vmatpush1.msra.mxu0 0.0
    %6535 = vmatprep.subr.mxu0 0.0
    %6536 = vmatpush1.msra.mxu0 %v202
    %6537 = vmatprep.subr.mxu0 0.0
    %6538 = vmatpush1.msra.mxu0 %v201
    %6539 = vmatprep.subr.mxu0 0.0
    %6540 = vmatpush1.msra.mxu0 %v200
    %6541 = vmatprep.subr.mxu0 0.0
    %6542 = vmatpush1.msra.mxu0 %v199
    %6543 = vmatprep.subr.mxu0 0.0
    %6544 = vmatpush1.msra.mxu0 %v198
    %6545 = vmatprep.subr.mxu0 0.0
    %6546 = vmatpush1.msra.mxu0 %v197
    %6547 = vmatprep.subr.mxu0 0.0
    %6548 = vmatpush1.msra.mxu0 %v196
    %6549 = vmatprep.subr.mxu0 0.0
    %6550 = vmatpush1.msra.mxu0 %v195
    %6551 = vmatprep.subr.mxu0 0.0
    %6552 = vmatpush1.msra.mxu0 %v194
    %6553 = vmatprep.subr.mxu0 0.0
    %6554 = vmatpush1.msra.mxu0 %v193
    %6555 = vmatprep.subr.mxu0 0.0
    %6556 = vmatpush1.msra.mxu0 %v192
    %6557 = vmatprep.subr.mxu0 0.0
    %6558 = vmatpush1.msra.mxu0 %v191
    %6559 = vmatprep.subr.mxu0 0.0
    %6560 = vmatpush2.msra.mxu0 0.0
    %6561 = vmatprep.subr.mxu0 0.0
    %6562 = vmatpush2.msra.mxu0 0.0
    %6563 = vmatprep.subr.mxu0 0.0
    %6564 = vmatpush2.msra.mxu0 0.0
    %6565 = vmatprep.subr.mxu0 0.0
    %6566 = vmatpush2.msra.mxu0 0.0
    %6567 = vmatprep.subr.mxu0 0.0
    %6568 = vmatpush2.msra.mxu0 0.0
    %6569 = vmatprep.subr.mxu0 0.0
    %6570 = vmatpush2.msra.mxu0 0.0
    %6571 = vmatprep.subr.mxu0 0.0
    %6572 = vmatpush2.msra.mxu0 0.0
    %6573 = vmatprep.subr.mxu0 0.0
    %6574 = vmatpush2.msra.mxu0 0.0
    %6575 = vmatprep.subr.mxu0 0.0
    %6576 = vmatpush2.msra.mxu0 0.0
    %6577 = vmatprep.subr.mxu0 0.0
    %6578 = vmatpush2.msra.mxu0 0.0
    %6579 = vmatprep.subr.mxu0 0.0
    %6580 = vmatpush2.msra.mxu0 0.0
    %6581 = vmatprep.subr.mxu0 0.0
    %6582 = vmatpush2.msra.mxu0 0.0
    %6583 = vmatprep.subr.mxu0 0.0
    %6584 = vmatpush2.msra.mxu0 0.0
    %6585 = vmatprep.subr.mxu0 0.0
    %6586 = vmatpush2.msra.mxu0 0.0
    %6587 = vmatprep.subr.mxu0 0.0
    %6588 = vmatpush2.msra.mxu0 0.0
    %6589 = vmatprep.subr.mxu0 0.0
    %6590 = vmatpush2.msra.mxu0 0.0
    %6591 = vmatprep.mubr.f32.mxu0 0.0
    %6592 = vmatmul.mubr.f32.gmra.mxu0 %v6525
    %v6593 = vpop.f32.mrf.mxu0
    %v6594 = vadd.f32 %v1362, %v6593
    %v6595 = vpop.f32.mrf.mxu0
    %6596 = vdwg.mxu0
    %6598 = vrot.lane.b32.xlu0 %v6594, 80
    %v6599 = vpop.permute.xlu0 %6598
    %vm6601 = vcmask 779904
    %6602 = vst.msk [vmem:[#allocation16] sm:$0x3] %vm6601, %v6599
    %v6603 = vrot.slane %v6180, 7
    %v6604 = vsel %vm825, %v6603, %v6107
    %v6606 = vrot.slane %v6502, 7
    %v6607 = vsel %vm825, %v6606, %v6429
    %6608 = vrot.lane.b32.xlu0 %v6607, 32
    %v6609 = vpop.permute.xlu0 %6608
    %v6611 = vsel %vm309, %v6604, %v6609
    %v6613 = vsel %vm392, %v6611, 0
    %6615 = vmatprep.subr.mxu0 0.0
    %6616 = vmatpush1.msra.mxu0 0.0
    %6617 = vmatprep.subr.mxu0 0.0
    %6618 = vmatpush1.msra.mxu0 0.0
    %6619 = vmatprep.subr.mxu0 0.0
    %6620 = vmatpush1.msra.mxu0 0.0
    %6621 = vmatprep.subr.mxu0 0.0
    %6622 = vmatpush1.msra.mxu0 0.0
    %6623 = vmatprep.subr.mxu0 0.0
    %6624 = vmatpush1.msra.mxu0 0.0
    %6625 = vmatprep.subr.mxu0 0.0
    %6626 = vmatpush1.msra.mxu0 0.0
    %6627 = vmatprep.subr.mxu0 0.0
    %6628 = vmatpush1.msra.mxu0 0.0
    %6629 = vmatprep.subr.mxu0 0.0
    %6630 = vmatpush1.msra.mxu0 0.0
    %6631 = vmatprep.subr.mxu0 0.0
    %6632 = vmatpush1.msra.mxu0 %v181
    %6633 = vmatprep.subr.mxu0 0.0
    %6634 = vmatpush1.msra.mxu0 %v180
    %6635 = vmatprep.subr.mxu0 0.0
    %6636 = vmatpush1.msra.mxu0 %v179
    %6637 = vmatprep.subr.mxu0 0.0
    %6638 = vmatpush1.msra.mxu0 %v178
    %6639 = vmatprep.subr.mxu0 0.0
    %6640 = vmatpush1.msra.mxu0 %v177
    %6641 = vmatprep.subr.mxu0 0.0
    %6642 = vmatpush1.msra.mxu0 %v176
    %6643 = vmatprep.subr.mxu0 0.0
    %6644 = vmatpush1.msra.mxu0 %v175
    %6645 = vmatprep.subr.mxu0 0.0
    %6646 = vmatpush1.msra.mxu0 %v174
    %6647 = vmatprep.subr.mxu0 0.0
    %6648 = vmatpush2.msra.mxu0 0.0
    %6649 = vmatprep.subr.mxu0 0.0
    %6650 = vmatpush2.msra.mxu0 0.0
    %6651 = vmatprep.subr.mxu0 0.0
    %6652 = vmatpush2.msra.mxu0 0.0
    %6653 = vmatprep.subr.mxu0 0.0
    %6654 = vmatpush2.msra.mxu0 0.0
    %6655 = vmatprep.subr.mxu0 0.0
    %6656 = vmatpush2.msra.mxu0 0.0
    %6657 = vmatprep.subr.mxu0 0.0
    %6658 = vmatpush2.msra.mxu0 0.0
    %6659 = vmatprep.subr.mxu0 0.0
    %6660 = vmatpush2.msra.mxu0 0.0
    %6661 = vmatprep.subr.mxu0 0.0
    %6662 = vmatpush2.msra.mxu0 0.0
    %6663 = vmatprep.subr.mxu0 0.0
    %6664 = vmatpush2.msra.mxu0 0.0
    %6665 = vmatprep.subr.mxu0 0.0
    %6666 = vmatpush2.msra.mxu0 0.0
    %6667 = vmatprep.subr.mxu0 0.0
    %6668 = vmatpush2.msra.mxu0 0.0
    %6669 = vmatprep.subr.mxu0 0.0
    %6670 = vmatpush2.msra.mxu0 0.0
    %6671 = vmatprep.subr.mxu0 0.0
    %6672 = vmatpush2.msra.mxu0 0.0
    %6673 = vmatprep.subr.mxu0 0.0
    %6674 = vmatpush2.msra.mxu0 0.0
    %6675 = vmatprep.subr.mxu0 0.0
    %6676 = vmatpush2.msra.mxu0 0.0
    %6677 = vmatprep.subr.mxu0 0.0
    %6678 = vmatpush2.msra.mxu0 0.0
    %6679 = vmatprep.mubr.f32.mxu0 0.0
    %6680 = vmatmul.mubr.f32.gmra.mxu0 %v6613
    %v6681 = vpop.f32.mrf.mxu0
    %v6682 = vadd.f32 0.0, %v6681
    %v6683 = vpop.f32.mrf.mxu0
    %6684 = vdwg.mxu0
    %v6686 = vrot.slane %v6682, 4
    %v6688 = vadd.f32 %v388, %v6686
    %v6689 = vrot.slane %v5831, 2
    %v6690 = vsel %vm309, %v6689, 0
    %6692 = vmatprep.subr.mxu0 0.0
    %6693 = vmatpush1.msra.mxu0 0.0
    %6694 = vmatprep.subr.mxu0 0.0
    %6695 = vmatpush1.msra.mxu0 0.0
    %6696 = vmatprep.subr.mxu0 0.0
    %6697 = vmatpush1.msra.mxu0 0.0
    %6698 = vmatprep.subr.mxu0 0.0
    %6699 = vmatpush1.msra.mxu0 0.0
    %6700 = vmatprep.subr.mxu0 0.0
    %6701 = vmatpush1.msra.mxu0 0.0
    %6702 = vmatprep.subr.mxu0 0.0
    %6703 = vmatpush1.msra.mxu0 0.0
    %6704 = vmatprep.subr.mxu0 0.0
    %6705 = vmatpush1.msra.mxu0 0.0
    %6706 = vmatprep.subr.mxu0 0.0
    %6707 = vmatpush1.msra.mxu0 0.0
    %6708 = vmatprep.subr.mxu0 0.0
    %6709 = vmatpush1.msra.mxu0 0.0
    %6710 = vmatprep.subr.mxu0 0.0
    %6711 = vmatpush1.msra.mxu0 0.0
    %6712 = vmatprep.subr.mxu0 0.0
    %6713 = vmatpush1.msra.mxu0 0.0
    %6714 = vmatprep.subr.mxu0 0.0
    %6715 = vmatpush1.msra.mxu0 0.0
    %6716 = vmatprep.subr.mxu0 0.0
    %6717 = vmatpush1.msra.mxu0 %v185
    %6718 = vmatprep.subr.mxu0 0.0
    %6719 = vmatpush1.msra.mxu0 %v184
    %6720 = vmatprep.subr.mxu0 0.0
    %6721 = vmatpush1.msra.mxu0 %v183
    %6722 = vmatprep.subr.mxu0 0.0
    %6723 = vmatpush1.msra.mxu0 %v182
    %6724 = vmatprep.subr.mxu0 0.0
    %6725 = vmatpush2.msra.mxu0 0.0
    %6726 = vmatprep.subr.mxu0 0.0
    %6727 = vmatpush2.msra.mxu0 0.0
    %6728 = vmatprep.subr.mxu0 0.0
    %6729 = vmatpush2.msra.mxu0 0.0
    %6730 = vmatprep.subr.mxu0 0.0
    %6731 = vmatpush2.msra.mxu0 0.0
    %6732 = vmatprep.subr.mxu0 0.0
    %6733 = vmatpush2.msra.mxu0 0.0
    %6734 = vmatprep.subr.mxu0 0.0
    %6735 = vmatpush2.msra.mxu0 0.0
    %6736 = vmatprep.subr.mxu0 0.0
    %6737 = vmatpush2.msra.mxu0 0.0
    %6738 = vmatprep.subr.mxu0 0.0
    %6739 = vmatpush2.msra.mxu0 0.0
    %6740 = vmatprep.subr.mxu0 0.0
    %6741 = vmatpush2.msra.mxu0 0.0
    %6742 = vmatprep.subr.mxu0 0.0
    %6743 = vmatpush2.msra.mxu0 0.0
    %6744 = vmatprep.subr.mxu0 0.0
    %6745 = vmatpush2.msra.mxu0 0.0
    %6746 = vmatprep.subr.mxu0 0.0
    %6747 = vmatpush2.msra.mxu0 0.0
    %6748 = vmatprep.subr.mxu0 0.0
    %6749 = vmatpush2.msra.mxu0 0.0
    %6750 = vmatprep.subr.mxu0 0.0
    %6751 = vmatpush2.msra.mxu0 0.0
    %6752 = vmatprep.subr.mxu0 0.0
    %6753 = vmatpush2.msra.mxu0 0.0
    %6754 = vmatprep.subr.mxu0 0.0
    %6755 = vmatpush2.msra.mxu0 0.0
    %6756 = vmatprep.mubr.f32.mxu0 0.0
    %6757 = vmatmul.mubr.f32.gmra.mxu0 %v6690
    %v6758 = vpop.f32.mrf.mxu0
    %v6759 = vadd.f32 0.0, %v6758
    %v6760 = vpop.f32.mrf.mxu0
    %6761 = vdwg.mxu0
    %v6763 = vrot.slane %v6759, 4
    %v6765 = vadd.f32 %v6688, %v6763
    %v6766 = vxor.u32 %v6765, 2147483648
    %v6767 = vmul.f32 %v6766, 1.442695
    %v6768 = vpow.pop %v6767
    %v6769 = vadd.f32 %v6768, 1.0
    %v6770 = vrcp.pop %v6769
    %v6771 = vmul.f32 1.0, %v6770
    %v6772 = vrot.slane %v5831, 6
    %6773 = vrot.lane.b32.xlu0 %v6772, 32
    %v6774 = vpop.permute.xlu0 %6773
    %v6776 = vmul.f32 %v6771, %v6774
    %v6778 = vrot.slane %v6776, 4
    %6779 = vrot.lane.b32.xlu0 %v6778, 96
    %v6780 = vpop.permute.xlu0 %6779
    %v6781 = vsel %vm309, %v6780, 0
    %6783 = vmatprep.subr.mxu0 0.0
    %6784 = vmatpush1.msra.mxu0 0.0
    %6785 = vmatprep.subr.mxu0 0.0
    %6786 = vmatpush1.msra.mxu0 0.0
    %6787 = vmatprep.subr.mxu0 0.0
    %6788 = vmatpush1.msra.mxu0 0.0
    %6789 = vmatprep.subr.mxu0 0.0
    %6790 = vmatpush1.msra.mxu0 0.0
    %6791 = vmatprep.subr.mxu0 0.0
    %6792 = vmatpush1.msra.mxu0 0.0
    %6793 = vmatprep.subr.mxu0 0.0
    %6794 = vmatpush1.msra.mxu0 0.0
    %6795 = vmatprep.subr.mxu0 0.0
    %6796 = vmatpush1.msra.mxu0 0.0
    %6797 = vmatprep.subr.mxu0 0.0
    %6798 = vmatpush1.msra.mxu0 0.0
    %6799 = vmatprep.subr.mxu0 0.0
    %6800 = vmatpush1.msra.mxu0 0.0
    %6801 = vmatprep.subr.mxu0 0.0
    %6802 = vmatpush1.msra.mxu0 0.0
    %6803 = vmatprep.subr.mxu0 0.0
    %6804 = vmatpush1.msra.mxu0 0.0
    %6805 = vmatprep.subr.mxu0 0.0
    %6806 = vmatpush1.msra.mxu0 0.0
    %6807 = vmatprep.subr.mxu0 0.0
    %6808 = vmatpush1.msra.mxu0 %v189
    %6809 = vmatprep.subr.mxu0 0.0
    %6810 = vmatpush1.msra.mxu0 %v188
    %6811 = vmatprep.subr.mxu0 0.0
    %6812 = vmatpush1.msra.mxu0 %v187
    %6813 = vmatprep.subr.mxu0 0.0
    %6814 = vmatpush1.msra.mxu0 %v186
    %6815 = vmatprep.subr.mxu0 0.0
    %6816 = vmatpush2.msra.mxu0 0.0
    %6817 = vmatprep.subr.mxu0 0.0
    %6818 = vmatpush2.msra.mxu0 0.0
    %6819 = vmatprep.subr.mxu0 0.0
    %6820 = vmatpush2.msra.mxu0 0.0
    %6821 = vmatprep.subr.mxu0 0.0
    %6822 = vmatpush2.msra.mxu0 0.0
    %6823 = vmatprep.subr.mxu0 0.0
    %6824 = vmatpush2.msra.mxu0 0.0
    %6825 = vmatprep.subr.mxu0 0.0
    %6826 = vmatpush2.msra.mxu0 0.0
    %6827 = vmatprep.subr.mxu0 0.0
    %6828 = vmatpush2.msra.mxu0 0.0
    %6829 = vmatprep.subr.mxu0 0.0
    %6830 = vmatpush2.msra.mxu0 0.0
    %6831 = vmatprep.subr.mxu0 0.0
    %6832 = vmatpush2.msra.mxu0 0.0
    %6833 = vmatprep.subr.mxu0 0.0
    %6834 = vmatpush2.msra.mxu0 0.0
    %6835 = vmatprep.subr.mxu0 0.0
    %6836 = vmatpush2.msra.mxu0 0.0
    %6837 = vmatprep.subr.mxu0 0.0
    %6838 = vmatpush2.msra.mxu0 0.0
    %6839 = vmatprep.subr.mxu0 0.0
    %6840 = vmatpush2.msra.mxu0 0.0
    %6841 = vmatprep.subr.mxu0 0.0
    %6842 = vmatpush2.msra.mxu0 0.0
    %6843 = vmatprep.subr.mxu0 0.0
    %6844 = vmatpush2.msra.mxu0 0.0
    %6845 = vmatprep.subr.mxu0 0.0
    %6846 = vmatpush2.msra.mxu0 0.0
    %6847 = vmatprep.mubr.f32.mxu0 0.0
    %6848 = vmatmul.mubr.f32.gmra.mxu0 %v6781
    %v6849 = vpop.f32.mrf.mxu0
    %v6850 = vadd.f32 0.0, %v6849
    %v6851 = vpop.f32.mrf.mxu0
    %6852 = vdwg.mxu0
    %v6854 = vrot.slane %v6850, 4
    %6855 = vrot.lane.b32.xlu0 %v6854, 64
    %v6856 = vpop.permute.xlu0 %6855
    %v6858 = vadd.f32 %v6688, %v6856
    %v6859 = vtanh.pop %v6858
    %v6860 = vsub.f32 1.0, %v6771
    %v6862 = vmul.f32 %v6860, %v6772
    %6864 = vrot.lane.b32.xlu0 %v6859, 64
    %v6865 = vpop.permute.xlu0 %6864
    %v6867 = vmul.f32 %v6771, %v6865
    %v6868 = vadd.f32 %v6862, %v6867
    %v6870 = vcombine.high %v6868, %v6868
    %v6872 = vunpack.c.l.s4 1966171168
    %v6873 = vunpack.c.0.s8 %v6872
    %v6874 = vlaneseq
    %v6875 = vshrl.u32 %v6874, 7
    %v6876 = vsub.s32 %v6873, %v6875
    %v6877 = vrot.slane %v6870, %v6876
    %v6878 = vcombine.high %v6877, %v6877
    %v6880 = vunpack.c.l.s4 1966171168
    %v6881 = vunpack.c.0.s8 %v6880
    %v6882 = vlaneseq
    %v6883 = vshrl.u32 %v6882, 7
    %v6884 = vsub.s32 %v6881, %v6883
    %v6885 = vrot.slane %v6877, %v6884
    %v6887 = vunpack.c.l.s4 1966171168
    %v6888 = vunpack.c.0.s8 %v6887
    %v6889 = vlaneseq
    %v6890 = vshrl.u32 %v6889, 7
    %v6891 = vsub.s32 %v6888, %v6890
    %v6892 = vrot.slane %v6878, %v6891
    %v6893 = vsel %vm309, %v6885, 0
    %6895 = vmatprep.subr.mxu0 0.0
    %6896 = vmatpush1.xpose.msra.mxu0 0.0
    %6897 = vmatprep.subr.mxu0 0.0
    %6898 = vmatpush1.xpose.msra.mxu0 0.0
    %6899 = vmatprep.subr.mxu0 0.0
    %6900 = vmatpush1.xpose.msra.mxu0 0.0
    %6901 = vmatprep.subr.mxu0 0.0
    %6902 = vmatpush1.xpose.msra.mxu0 0.0
    %6903 = vmatprep.subr.mxu0 0.0
    %6904 = vmatpush1.xpose.msra.mxu0 0.0
    %6905 = vmatprep.subr.mxu0 0.0
    %6906 = vmatpush1.xpose.msra.mxu0 0.0
    %6907 = vmatprep.subr.mxu0 0.0
    %6908 = vmatpush1.xpose.msra.mxu0 0.0
    %6909 = vmatprep.subr.mxu0 0.0
    %6910 = vmatpush1.xpose.msra.mxu0 0.0
    %6911 = vmatprep.subr.mxu0 0.0
    %6912 = vmatpush1.xpose.msra.mxu0 0.0
    %6913 = vmatprep.subr.mxu0 0.0
    %6914 = vmatpush1.xpose.msra.mxu0 0.0
    %6915 = vmatprep.subr.mxu0 0.0
    %6916 = vmatpush1.xpose.msra.mxu0 0.0
    %6917 = vmatprep.subr.mxu0 0.0
    %6918 = vmatpush1.xpose.msra.mxu0 0.0
    %6919 = vmatprep.subr.mxu0 0.0
    %6920 = vmatpush1.xpose.msra.mxu0 0.0
    %6921 = vmatprep.subr.mxu0 0.0
    %6922 = vmatpush1.xpose.msra.mxu0 0.0
    %6923 = vmatprep.subr.mxu0 0.0
    %6924 = vmatpush1.xpose.msra.mxu0 %v666
    %6925 = vmatprep.subr.mxu0 0.0
    %6926 = vmatpush1.xpose.msra.mxu0 %v663
    %6927 = vmatprep.subr.mxu0 0.0
    %6928 = vmatpush2.xpose.msra.mxu0 0.0
    %6929 = vmatprep.subr.mxu0 0.0
    %6930 = vmatpush2.xpose.msra.mxu0 0.0
    %6931 = vmatprep.subr.mxu0 0.0
    %6932 = vmatpush2.xpose.msra.mxu0 0.0
    %6933 = vmatprep.subr.mxu0 0.0
    %6934 = vmatpush2.xpose.msra.mxu0 0.0
    %6935 = vmatprep.subr.mxu0 0.0
    %6936 = vmatpush2.xpose.msra.mxu0 0.0
    %6937 = vmatprep.subr.mxu0 0.0
    %6938 = vmatpush2.xpose.msra.mxu0 0.0
    %6939 = vmatprep.subr.mxu0 0.0
    %6940 = vmatpush2.xpose.msra.mxu0 0.0
    %6941 = vmatprep.subr.mxu0 0.0
    %6942 = vmatpush2.xpose.msra.mxu0 0.0
    %6943 = vmatprep.subr.mxu0 0.0
    %6944 = vmatpush2.xpose.msra.mxu0 0.0
    %6945 = vmatprep.subr.mxu0 0.0
    %6946 = vmatpush2.xpose.msra.mxu0 0.0
    %6947 = vmatprep.subr.mxu0 0.0
    %6948 = vmatpush2.xpose.msra.mxu0 0.0
    %6949 = vmatprep.subr.mxu0 0.0
    %6950 = vmatpush2.xpose.msra.mxu0 0.0
    %6951 = vmatprep.subr.mxu0 0.0
    %6952 = vmatpush2.xpose.msra.mxu0 0.0
    %6953 = vmatprep.subr.mxu0 0.0
    %6954 = vmatpush2.xpose.msra.mxu0 0.0
    %6955 = vmatprep.subr.mxu0 0.0
    %6956 = vmatpush2.xpose.msra.mxu0 0.0
    %6957 = vmatprep.subr.mxu0 0.0
    %6958 = vmatpush2.xpose.msra.mxu0 0.0
    %6959 = vmatprep.mubr.f32.mxu0 0.0
    %6960 = vmatmul.mubr.f32.gmra.mxu0 %v6893
    %v6961 = vpop.f32.mrf.mxu0
    %v6962 = vadd.f32 0.0, %v6961
    %v6963 = vpop.f32.mrf.mxu0
    %6964 = vdwg.mxu0
    %v6965 = vsel %vm309, %v6892, 0
    %6967 = vmatprep.subr.mxu0 0.0
    %6968 = vmatpush1.xpose.msra.mxu0 0.0
    %6969 = vmatprep.subr.mxu0 0.0
    %6970 = vmatpush1.xpose.msra.mxu0 0.0
    %6971 = vmatprep.subr.mxu0 0.0
    %6972 = vmatpush1.xpose.msra.mxu0 0.0
    %6973 = vmatprep.subr.mxu0 0.0
    %6974 = vmatpush1.xpose.msra.mxu0 0.0
    %6975 = vmatprep.subr.mxu0 0.0
    %6976 = vmatpush1.xpose.msra.mxu0 0.0
    %6977 = vmatprep.subr.mxu0 0.0
    %6978 = vmatpush1.xpose.msra.mxu0 0.0
    %6979 = vmatprep.subr.mxu0 0.0
    %6980 = vmatpush1.xpose.msra.mxu0 0.0
    %6981 = vmatprep.subr.mxu0 0.0
    %6982 = vmatpush1.xpose.msra.mxu0 0.0
    %6983 = vmatprep.subr.mxu0 0.0
    %6984 = vmatpush1.xpose.msra.mxu0 0.0
    %6985 = vmatprep.subr.mxu0 0.0
    %6986 = vmatpush1.xpose.msra.mxu0 0.0
    %6987 = vmatprep.subr.mxu0 0.0
    %6988 = vmatpush1.xpose.msra.mxu0 0.0
    %6989 = vmatprep.subr.mxu0 0.0
    %6990 = vmatpush1.xpose.msra.mxu0 0.0
    %6991 = vmatprep.subr.mxu0 0.0
    %6992 = vmatpush1.xpose.msra.mxu0 0.0
    %6993 = vmatprep.subr.mxu0 0.0
    %6994 = vmatpush1.xpose.msra.mxu0 0.0
    %6995 = vmatprep.subr.mxu0 0.0
    %6996 = vmatpush1.xpose.msra.mxu0 %v744
    %6997 = vmatprep.subr.mxu0 0.0
    %6998 = vmatpush1.xpose.msra.mxu0 %v741
    %6999 = vmatprep.subr.mxu0 0.0
    %7000 = vmatpush2.xpose.msra.mxu0 0.0
    %7001 = vmatprep.subr.mxu0 0.0
    %7002 = vmatpush2.xpose.msra.mxu0 0.0
    %7003 = vmatprep.subr.mxu0 0.0
    %7004 = vmatpush2.xpose.msra.mxu0 0.0
    %7005 = vmatprep.subr.mxu0 0.0
    %7006 = vmatpush2.xpose.msra.mxu0 0.0
    %7007 = vmatprep.subr.mxu0 0.0
    %7008 = vmatpush2.xpose.msra.mxu0 0.0
    %7009 = vmatprep.subr.mxu0 0.0
    %7010 = vmatpush2.xpose.msra.mxu0 0.0
    %7011 = vmatprep.subr.mxu0 0.0
    %7012 = vmatpush2.xpose.msra.mxu0 0.0
    %7013 = vmatprep.subr.mxu0 0.0
    %7014 = vmatpush2.xpose.msra.mxu0 0.0
    %7015 = vmatprep.subr.mxu0 0.0
    %7016 = vmatpush2.xpose.msra.mxu0 0.0
    %7017 = vmatprep.subr.mxu0 0.0
    %7018 = vmatpush2.xpose.msra.mxu0 0.0
    %7019 = vmatprep.subr.mxu0 0.0
    %7020 = vmatpush2.xpose.msra.mxu0 0.0
    %7021 = vmatprep.subr.mxu0 0.0
    %7022 = vmatpush2.xpose.msra.mxu0 0.0
    %7023 = vmatprep.subr.mxu0 0.0
    %7024 = vmatpush2.xpose.msra.mxu0 0.0
    %7025 = vmatprep.subr.mxu0 0.0
    %7026 = vmatpush2.xpose.msra.mxu0 0.0
    %7027 = vmatprep.subr.mxu0 0.0
    %7028 = vmatpush2.xpose.msra.mxu0 0.0
    %7029 = vmatprep.subr.mxu0 0.0
    %7030 = vmatpush2.xpose.msra.mxu0 0.0
    %7031 = vmatprep.mubr.f32.mxu0 0.0
    %7032 = vmatmul.mubr.f32.gmra.mxu0 %v6965
    %v7033 = vpop.f32.mrf.mxu0
    %v7034 = vadd.f32 0.0, %v7033
    %v7035 = vpop.f32.mrf.mxu0
    %7036 = vdwg.mxu0
    %v7037 = vadd.f32 %v6962, %v166
    %v7038 = vadd.f32 %v7034, %v817
    %v7041 = vrot.slane %v7038, 7
    %v7042 = vsel %vm825, %v7041, %v7037
    %v7044 = vsel %vm828, %v7042, -inf
    %7045 = vmax.xlane.f32.xlu0 %v7044
    %v7046 = vpop.xlane.xlu0 %7045
    %v7048 = vrot.slane %v7046, 1
    %v7051 = vsub.f32 %v7037, %v7046
    %v7052 = vsub.f32 %v7038, %v7048
    %v7053 = vmul.f32 %v7051, 1.442695
    %v7054 = vpow.pop %v7053
    %v7055 = vmul.f32 %v7052, 1.442695
    %v7056 = vpow.pop %v7055
    %v7059 = vrot.slane %v7056, 7
    %v7060 = vsel %vm825, %v7059, %v7054
    %v7062 = vsel %vm828, %v7060, 0.0
    %7063 = vadd.xlane.f32.xlu0 %v7062
    %v7064 = vpop.xlane.xlu0 %7063
    %v7065 = vadd.f32 %v7064, 1e-09
    %v7066 = vrcp.pop %v7065
    %v7068 = vrot.slane %v7066, 1
    %v7071 = vmul.f32 %v7054, %v7066
    %v7072 = vmul.f32 %v7056, %v7068
    %v7074 = vsel %vm221, %v7071, 0
    %7076 = vmatprep.subr.mxu0 0.0
    %7077 = vmatpush1.msra.mxu0 0.0
    %7078 = vmatprep.subr.mxu0 0.0
    %7079 = vmatpush1.msra.mxu0 0.0
    %7080 = vmatprep.subr.mxu0 0.0
    %7081 = vmatpush1.msra.mxu0 0.0
    %7082 = vmatprep.subr.mxu0 0.0
    %7083 = vmatpush1.msra.mxu0 0.0
    %7084 = vmatprep.subr.mxu0 0.0
    %7085 = vmatpush1.msra.mxu0 0.0
    %7086 = vmatprep.subr.mxu0 0.0
    %7087 = vmatpush1.msra.mxu0 0.0
    %7088 = vmatprep.subr.mxu0 0.0
    %7089 = vmatpush1.msra.mxu0 0.0
    %7090 = vmatprep.subr.mxu0 0.0
    %7091 = vmatpush1.msra.mxu0 0.0
    %7092 = vmatprep.subr.mxu0 0.0
    %7093 = vmatpush1.msra.mxu0 0.0
    %7094 = vmatprep.subr.mxu0 0.0
    %7095 = vmatpush1.msra.mxu0 0.0
    %7096 = vmatprep.subr.mxu0 0.0
    %7097 = vmatpush1.msra.mxu0 0.0
    %7098 = vmatprep.subr.mxu0 0.0
    %7099 = vmatpush1.msra.mxu0 0.0
    %7100 = vmatprep.subr.mxu0 0.0
    %7101 = vmatpush1.msra.mxu0 0.0
    %7102 = vmatprep.subr.mxu0 0.0
    %7103 = vmatpush1.msra.mxu0 0.0
    %7104 = vmatprep.subr.mxu0 0.0
    %7105 = vmatpush1.msra.mxu0 %v155
    %7106 = vmatprep.subr.mxu0 0.0
    %7107 = vmatpush1.msra.mxu0 %v154
    %7108 = vmatprep.subr.mxu0 0.0
    %7109 = vmatpush2.msra.mxu0 0.0
    %7110 = vmatprep.subr.mxu0 0.0
    %7111 = vmatpush2.msra.mxu0 0.0
    %7112 = vmatprep.subr.mxu0 0.0
    %7113 = vmatpush2.msra.mxu0 0.0
    %7114 = vmatprep.subr.mxu0 0.0
    %7115 = vmatpush2.msra.mxu0 0.0
    %7116 = vmatprep.subr.mxu0 0.0
    %7117 = vmatpush2.msra.mxu0 0.0
    %7118 = vmatprep.subr.mxu0 0.0
    %7119 = vmatpush2.msra.mxu0 0.0
    %7120 = vmatprep.subr.mxu0 0.0
    %7121 = vmatpush2.msra.mxu0 0.0
    %7122 = vmatprep.subr.mxu0 0.0
    %7123 = vmatpush2.msra.mxu0 0.0
    %7124 = vmatprep.subr.mxu0 0.0
    %7125 = vmatpush2.msra.mxu0 0.0
    %7126 = vmatprep.subr.mxu0 0.0
    %7127 = vmatpush2.msra.mxu0 0.0
    %7128 = vmatprep.subr.mxu0 0.0
    %7129 = vmatpush2.msra.mxu0 0.0
    %7130 = vmatprep.subr.mxu0 0.0
    %7131 = vmatpush2.msra.mxu0 0.0
    %7132 = vmatprep.subr.mxu0 0.0
    %7133 = vmatpush2.msra.mxu0 0.0
    %7134 = vmatprep.subr.mxu0 0.0
    %7135 = vmatpush2.msra.mxu0 0.0
    %7136 = vmatprep.subr.mxu0 0.0
    %7137 = vmatpush2.msra.mxu0 0.0
    %7138 = vmatprep.subr.mxu0 0.0
    %7139 = vmatpush2.msra.mxu0 0.0
    %7140 = vmatprep.mubr.f32.mxu0 0.0
    %7141 = vmatmul.mubr.f32.gmra.mxu0 %v7074
    %v7142 = vpop.f32.mrf.mxu0
    %v7143 = vadd.f32 0.0, %v7142
    %v7144 = vpop.f32.mrf.mxu0
    %7145 = vdwg.mxu0
    %v7147 = vsel %vm221, %v7072, 0
    %7149 = vmatprep.subr.mxu0 0.0
    %7150 = vmatpush1.msra.mxu0 0.0
    %7151 = vmatprep.subr.mxu0 0.0
    %7152 = vmatpush1.msra.mxu0 0.0
    %7153 = vmatprep.subr.mxu0 0.0
    %7154 = vmatpush1.msra.mxu0 0.0
    %7155 = vmatprep.subr.mxu0 0.0
    %7156 = vmatpush1.msra.mxu0 0.0
    %7157 = vmatprep.subr.mxu0 0.0
    %7158 = vmatpush1.msra.mxu0 0.0
    %7159 = vmatprep.subr.mxu0 0.0
    %7160 = vmatpush1.msra.mxu0 0.0
    %7161 = vmatprep.subr.mxu0 0.0
    %7162 = vmatpush1.msra.mxu0 0.0
    %7163 = vmatprep.subr.mxu0 0.0
    %7164 = vmatpush1.msra.mxu0 0.0
    %7165 = vmatprep.subr.mxu0 0.0
    %7166 = vmatpush1.msra.mxu0 0.0
    %7167 = vmatprep.subr.mxu0 0.0
    %7168 = vmatpush1.msra.mxu0 0.0
    %7169 = vmatprep.subr.mxu0 0.0
    %7170 = vmatpush1.msra.mxu0 0.0
    %7171 = vmatprep.subr.mxu0 0.0
    %7172 = vmatpush1.msra.mxu0 0.0
    %7173 = vmatprep.subr.mxu0 0.0
    %7174 = vmatpush1.msra.mxu0 0.0
    %7175 = vmatprep.subr.mxu0 0.0
    %7176 = vmatpush1.msra.mxu0 0.0
    %7177 = vmatprep.subr.mxu0 0.0
    %7178 = vmatpush1.msra.mxu0 %v157
    %7179 = vmatprep.subr.mxu0 0.0
    %7180 = vmatpush1.msra.mxu0 %v156
    %7181 = vmatprep.subr.mxu0 0.0
    %7182 = vmatpush2.msra.mxu0 0.0
    %7183 = vmatprep.subr.mxu0 0.0
    %7184 = vmatpush2.msra.mxu0 0.0
    %7185 = vmatprep.subr.mxu0 0.0
    %7186 = vmatpush2.msra.mxu0 0.0
    %7187 = vmatprep.subr.mxu0 0.0
    %7188 = vmatpush2.msra.mxu0 0.0
    %7189 = vmatprep.subr.mxu0 0.0
    %7190 = vmatpush2.msra.mxu0 0.0
    %7191 = vmatprep.subr.mxu0 0.0
    %7192 = vmatpush2.msra.mxu0 0.0
    %7193 = vmatprep.subr.mxu0 0.0
    %7194 = vmatpush2.msra.mxu0 0.0
    %7195 = vmatprep.subr.mxu0 0.0
    %7196 = vmatpush2.msra.mxu0 0.0
    %7197 = vmatprep.subr.mxu0 0.0
    %7198 = vmatpush2.msra.mxu0 0.0
    %7199 = vmatprep.subr.mxu0 0.0
    %7200 = vmatpush2.msra.mxu0 0.0
    %7201 = vmatprep.subr.mxu0 0.0
    %7202 = vmatpush2.msra.mxu0 0.0
    %7203 = vmatprep.subr.mxu0 0.0
    %7204 = vmatpush2.msra.mxu0 0.0
    %7205 = vmatprep.subr.mxu0 0.0
    %7206 = vmatpush2.msra.mxu0 0.0
    %7207 = vmatprep.subr.mxu0 0.0
    %7208 = vmatpush2.msra.mxu0 0.0
    %7209 = vmatprep.subr.mxu0 0.0
    %7210 = vmatpush2.msra.mxu0 0.0
    %7211 = vmatprep.subr.mxu0 0.0
    %7212 = vmatpush2.msra.mxu0 0.0
    %7213 = vmatprep.mubr.f32.mxu0 0.0
    %7214 = vmatmul.mubr.f32.gmra.mxu0 %v7147
    %v7215 = vpop.f32.mrf.mxu0
    %v7216 = vadd.f32 0.0, %v7215
    %v7217 = vpop.f32.mrf.mxu0
    %7218 = vdwg.mxu0
    %7219 = vmatprep.subr.mxu0 0.0
    %7220 = vmatpush1.xpose.msra.mxu0 0.0
    %7221 = vmatprep.subr.mxu0 0.0
    %7222 = vmatpush1.xpose.msra.mxu0 0.0
    %7223 = vmatprep.subr.mxu0 0.0
    %7224 = vmatpush1.xpose.msra.mxu0 0.0
    %7225 = vmatprep.subr.mxu0 0.0
    %7226 = vmatpush1.xpose.msra.mxu0 0.0
    %7227 = vmatprep.subr.mxu0 0.0
    %7228 = vmatpush1.xpose.msra.mxu0 0.0
    %7229 = vmatprep.subr.mxu0 0.0
    %7230 = vmatpush1.xpose.msra.mxu0 0.0
    %7231 = vmatprep.subr.mxu0 0.0
    %7232 = vmatpush1.xpose.msra.mxu0 0.0
    %7233 = vmatprep.subr.mxu0 0.0
    %7234 = vmatpush1.xpose.msra.mxu0 0.0
    %7235 = vmatprep.subr.mxu0 0.0
    %7236 = vmatpush1.xpose.msra.mxu0 0.0
    %7237 = vmatprep.subr.mxu0 0.0
    %7238 = vmatpush1.xpose.msra.mxu0 0.0
    %7239 = vmatprep.subr.mxu0 0.0
    %7240 = vmatpush1.xpose.msra.mxu0 0.0
    %7241 = vmatprep.subr.mxu0 0.0
    %7242 = vmatpush1.xpose.msra.mxu0 0.0
    %7243 = vmatprep.subr.mxu0 0.0
    %7244 = vmatpush1.xpose.msra.mxu0 0.0
    %7245 = vmatprep.subr.mxu0 0.0
    %7246 = vmatpush1.xpose.msra.mxu0 0.0
    %7247 = vmatprep.subr.mxu0 0.0
    %7248 = vmatpush1.xpose.msra.mxu0 %v1008
    %7249 = vmatprep.subr.mxu0 0.0
    %7250 = vmatpush1.xpose.msra.mxu0 %v1005
    %7251 = vmatprep.subr.mxu0 0.0
    %7252 = vmatpush2.xpose.msra.mxu0 0.0
    %7253 = vmatprep.subr.mxu0 0.0
    %7254 = vmatpush2.xpose.msra.mxu0 0.0
    %7255 = vmatprep.subr.mxu0 0.0
    %7256 = vmatpush2.xpose.msra.mxu0 0.0
    %7257 = vmatprep.subr.mxu0 0.0
    %7258 = vmatpush2.xpose.msra.mxu0 0.0
    %7259 = vmatprep.subr.mxu0 0.0
    %7260 = vmatpush2.xpose.msra.mxu0 0.0
    %7261 = vmatprep.subr.mxu0 0.0
    %7262 = vmatpush2.xpose.msra.mxu0 0.0
    %7263 = vmatprep.subr.mxu0 0.0
    %7264 = vmatpush2.xpose.msra.mxu0 0.0
    %7265 = vmatprep.subr.mxu0 0.0
    %7266 = vmatpush2.xpose.msra.mxu0 0.0
    %7267 = vmatprep.subr.mxu0 0.0
    %7268 = vmatpush2.xpose.msra.mxu0 0.0
    %7269 = vmatprep.subr.mxu0 0.0
    %7270 = vmatpush2.xpose.msra.mxu0 0.0
    %7271 = vmatprep.subr.mxu0 0.0
    %7272 = vmatpush2.xpose.msra.mxu0 0.0
    %7273 = vmatprep.subr.mxu0 0.0
    %7274 = vmatpush2.xpose.msra.mxu0 0.0
    %7275 = vmatprep.subr.mxu0 0.0
    %7276 = vmatpush2.xpose.msra.mxu0 0.0
    %7277 = vmatprep.subr.mxu0 0.0
    %7278 = vmatpush2.xpose.msra.mxu0 0.0
    %7279 = vmatprep.subr.mxu0 0.0
    %7280 = vmatpush2.xpose.msra.mxu0 0.0
    %7281 = vmatprep.subr.mxu0 0.0
    %7282 = vmatpush2.xpose.msra.mxu0 0.0
    %7283 = vmatprep.mubr.f32.mxu0 0.0
    %7284 = vmatmul.mubr.f32.gmra.mxu0 %v6893
    %v7285 = vpop.f32.mrf.mxu0
    %v7286 = vadd.f32 0.0, %v7285
    %v7287 = vpop.f32.mrf.mxu0
    %7288 = vdwg.mxu0
    %7289 = vmatprep.subr.mxu0 0.0
    %7290 = vmatpush1.xpose.msra.mxu0 0.0
    %7291 = vmatprep.subr.mxu0 0.0
    %7292 = vmatpush1.xpose.msra.mxu0 0.0
    %7293 = vmatprep.subr.mxu0 0.0
    %7294 = vmatpush1.xpose.msra.mxu0 0.0
    %7295 = vmatprep.subr.mxu0 0.0
    %7296 = vmatpush1.xpose.msra.mxu0 0.0
    %7297 = vmatprep.subr.mxu0 0.0
    %7298 = vmatpush1.xpose.msra.mxu0 0.0
    %7299 = vmatprep.subr.mxu0 0.0
    %7300 = vmatpush1.xpose.msra.mxu0 0.0
    %7301 = vmatprep.subr.mxu0 0.0
    %7302 = vmatpush1.xpose.msra.mxu0 0.0
    %7303 = vmatprep.subr.mxu0 0.0
    %7304 = vmatpush1.xpose.msra.mxu0 0.0
    %7305 = vmatprep.subr.mxu0 0.0
    %7306 = vmatpush1.xpose.msra.mxu0 0.0
    %7307 = vmatprep.subr.mxu0 0.0
    %7308 = vmatpush1.xpose.msra.mxu0 0.0
    %7309 = vmatprep.subr.mxu0 0.0
    %7310 = vmatpush1.xpose.msra.mxu0 0.0
    %7311 = vmatprep.subr.mxu0 0.0
    %7312 = vmatpush1.xpose.msra.mxu0 0.0
    %7313 = vmatprep.subr.mxu0 0.0
    %7314 = vmatpush1.xpose.msra.mxu0 0.0
    %7315 = vmatprep.subr.mxu0 0.0
    %7316 = vmatpush1.xpose.msra.mxu0 0.0
    %7317 = vmatprep.subr.mxu0 0.0
    %7318 = vmatpush1.xpose.msra.mxu0 %v1084
    %7319 = vmatprep.subr.mxu0 0.0
    %7320 = vmatpush1.xpose.msra.mxu0 %v1081
    %7321 = vmatprep.subr.mxu0 0.0
    %7322 = vmatpush2.xpose.msra.mxu0 0.0
    %7323 = vmatprep.subr.mxu0 0.0
    %7324 = vmatpush2.xpose.msra.mxu0 0.0
    %7325 = vmatprep.subr.mxu0 0.0
    %7326 = vmatpush2.xpose.msra.mxu0 0.0
    %7327 = vmatprep.subr.mxu0 0.0
    %7328 = vmatpush2.xpose.msra.mxu0 0.0
    %7329 = vmatprep.subr.mxu0 0.0
    %7330 = vmatpush2.xpose.msra.mxu0 0.0
    %7331 = vmatprep.subr.mxu0 0.0
    %7332 = vmatpush2.xpose.msra.mxu0 0.0
    %7333 = vmatprep.subr.mxu0 0.0
    %7334 = vmatpush2.xpose.msra.mxu0 0.0
    %7335 = vmatprep.subr.mxu0 0.0
    %7336 = vmatpush2.xpose.msra.mxu0 0.0
    %7337 = vmatprep.subr.mxu0 0.0
    %7338 = vmatpush2.xpose.msra.mxu0 0.0
    %7339 = vmatprep.subr.mxu0 0.0
    %7340 = vmatpush2.xpose.msra.mxu0 0.0
    %7341 = vmatprep.subr.mxu0 0.0
    %7342 = vmatpush2.xpose.msra.mxu0 0.0
    %7343 = vmatprep.subr.mxu0 0.0
    %7344 = vmatpush2.xpose.msra.mxu0 0.0
    %7345 = vmatprep.subr.mxu0 0.0
    %7346 = vmatpush2.xpose.msra.mxu0 0.0
    %7347 = vmatprep.subr.mxu0 0.0
    %7348 = vmatpush2.xpose.msra.mxu0 0.0
    %7349 = vmatprep.subr.mxu0 0.0
    %7350 = vmatpush2.xpose.msra.mxu0 0.0
    %7351 = vmatprep.subr.mxu0 0.0
    %7352 = vmatpush2.xpose.msra.mxu0 0.0
    %7353 = vmatprep.mubr.f32.mxu0 0.0
    %7354 = vmatmul.mubr.f32.gmra.mxu0 %v6965
    %v7355 = vpop.f32.mrf.mxu0
    %v7356 = vadd.f32 0.0, %v7355
    %v7357 = vpop.f32.mrf.mxu0
    %7358 = vdwg.mxu0
    %v7359 = vadd.f32 %v7286, %v167
    %v7360 = vadd.f32 %v7356, %v1157
    %v7363 = vrot.slane %v7360, 7
    %v7364 = vsel %vm825, %v7363, %v7359
    %v7366 = vsel %vm828, %v7364, -inf
    %7367 = vmax.xlane.f32.xlu0 %v7366
    %v7368 = vpop.xlane.xlu0 %7367
    %v7370 = vrot.slane %v7368, 1
    %v7373 = vsub.f32 %v7359, %v7368
    %v7374 = vsub.f32 %v7360, %v7370
    %v7375 = vmul.f32 %v7373, 1.442695
    %v7376 = vpow.pop %v7375
    %v7377 = vmul.f32 %v7374, 1.442695
    %v7378 = vpow.pop %v7377
    %v7381 = vrot.slane %v7378, 7
    %v7382 = vsel %vm825, %v7381, %v7376
    %v7384 = vsel %vm828, %v7382, 0.0
    %7385 = vadd.xlane.f32.xlu0 %v7384
    %v7386 = vpop.xlane.xlu0 %7385
    %v7387 = vadd.f32 %v7386, 1e-09
    %v7388 = vrcp.pop %v7387
    %v7390 = vrot.slane %v7388, 1
    %v7393 = vmul.f32 %v7376, %v7388
    %v7394 = vmul.f32 %v7378, %v7390
    %v7396 = vsel %vm221, %v7393, 0
    %7398 = vmatprep.subr.mxu0 0.0
    %7399 = vmatpush1.msra.mxu0 0.0
    %7400 = vmatprep.subr.mxu0 0.0
    %7401 = vmatpush1.msra.mxu0 0.0
    %7402 = vmatprep.subr.mxu0 0.0
    %7403 = vmatpush1.msra.mxu0 0.0
    %7404 = vmatprep.subr.mxu0 0.0
    %7405 = vmatpush1.msra.mxu0 0.0
    %7406 = vmatprep.subr.mxu0 0.0
    %7407 = vmatpush1.msra.mxu0 0.0
    %7408 = vmatprep.subr.mxu0 0.0
    %7409 = vmatpush1.msra.mxu0 0.0
    %7410 = vmatprep.subr.mxu0 0.0
    %7411 = vmatpush1.msra.mxu0 0.0
    %7412 = vmatprep.subr.mxu0 0.0
    %7413 = vmatpush1.msra.mxu0 0.0
    %7414 = vmatprep.subr.mxu0 0.0
    %7415 = vmatpush1.msra.mxu0 0.0
    %7416 = vmatprep.subr.mxu0 0.0
    %7417 = vmatpush1.msra.mxu0 0.0
    %7418 = vmatprep.subr.mxu0 0.0
    %7419 = vmatpush1.msra.mxu0 0.0
    %7420 = vmatprep.subr.mxu0 0.0
    %7421 = vmatpush1.msra.mxu0 0.0
    %7422 = vmatprep.subr.mxu0 0.0
    %7423 = vmatpush1.msra.mxu0 0.0
    %7424 = vmatprep.subr.mxu0 0.0
    %7425 = vmatpush1.msra.mxu0 0.0
    %7426 = vmatprep.subr.mxu0 0.0
    %7427 = vmatpush1.msra.mxu0 %v163
    %7428 = vmatprep.subr.mxu0 0.0
    %7429 = vmatpush1.msra.mxu0 %v162
    %7430 = vmatprep.subr.mxu0 0.0
    %7431 = vmatpush2.msra.mxu0 0.0
    %7432 = vmatprep.subr.mxu0 0.0
    %7433 = vmatpush2.msra.mxu0 0.0
    %7434 = vmatprep.subr.mxu0 0.0
    %7435 = vmatpush2.msra.mxu0 0.0
    %7436 = vmatprep.subr.mxu0 0.0
    %7437 = vmatpush2.msra.mxu0 0.0
    %7438 = vmatprep.subr.mxu0 0.0
    %7439 = vmatpush2.msra.mxu0 0.0
    %7440 = vmatprep.subr.mxu0 0.0
    %7441 = vmatpush2.msra.mxu0 0.0
    %7442 = vmatprep.subr.mxu0 0.0
    %7443 = vmatpush2.msra.mxu0 0.0
    %7444 = vmatprep.subr.mxu0 0.0
    %7445 = vmatpush2.msra.mxu0 0.0
    %7446 = vmatprep.subr.mxu0 0.0
    %7447 = vmatpush2.msra.mxu0 0.0
    %7448 = vmatprep.subr.mxu0 0.0
    %7449 = vmatpush2.msra.mxu0 0.0
    %7450 = vmatprep.subr.mxu0 0.0
    %7451 = vmatpush2.msra.mxu0 0.0
    %7452 = vmatprep.subr.mxu0 0.0
    %7453 = vmatpush2.msra.mxu0 0.0
    %7454 = vmatprep.subr.mxu0 0.0
    %7455 = vmatpush2.msra.mxu0 0.0
    %7456 = vmatprep.subr.mxu0 0.0
    %7457 = vmatpush2.msra.mxu0 0.0
    %7458 = vmatprep.subr.mxu0 0.0
    %7459 = vmatpush2.msra.mxu0 0.0
    %7460 = vmatprep.subr.mxu0 0.0
    %7461 = vmatpush2.msra.mxu0 0.0
    %7462 = vmatprep.mubr.f32.mxu0 0.0
    %7463 = vmatmul.mubr.f32.gmra.mxu0 %v7396
    %v7464 = vpop.f32.mrf.mxu0
    %v7465 = vadd.f32 0.0, %v7464
    %v7466 = vpop.f32.mrf.mxu0
    %7467 = vdwg.mxu0
    %v7469 = vsel %vm221, %v7394, 0
    %7471 = vmatprep.subr.mxu0 0.0
    %7472 = vmatpush1.msra.mxu0 0.0
    %7473 = vmatprep.subr.mxu0 0.0
    %7474 = vmatpush1.msra.mxu0 0.0
    %7475 = vmatprep.subr.mxu0 0.0
    %7476 = vmatpush1.msra.mxu0 0.0
    %7477 = vmatprep.subr.mxu0 0.0
    %7478 = vmatpush1.msra.mxu0 0.0
    %7479 = vmatprep.subr.mxu0 0.0
    %7480 = vmatpush1.msra.mxu0 0.0
    %7481 = vmatprep.subr.mxu0 0.0
    %7482 = vmatpush1.msra.mxu0 0.0
    %7483 = vmatprep.subr.mxu0 0.0
    %7484 = vmatpush1.msra.mxu0 0.0
    %7485 = vmatprep.subr.mxu0 0.0
    %7486 = vmatpush1.msra.mxu0 0.0
    %7487 = vmatprep.subr.mxu0 0.0
    %7488 = vmatpush1.msra.mxu0 0.0
    %7489 = vmatprep.subr.mxu0 0.0
    %7490 = vmatpush1.msra.mxu0 0.0
    %7491 = vmatprep.subr.mxu0 0.0
    %7492 = vmatpush1.msra.mxu0 0.0
    %7493 = vmatprep.subr.mxu0 0.0
    %7494 = vmatpush1.msra.mxu0 0.0
    %7495 = vmatprep.subr.mxu0 0.0
    %7496 = vmatpush1.msra.mxu0 0.0
    %7497 = vmatprep.subr.mxu0 0.0
    %7498 = vmatpush1.msra.mxu0 0.0
    %7499 = vmatprep.subr.mxu0 0.0
    %7500 = vmatpush1.msra.mxu0 %v165
    %7501 = vmatprep.subr.mxu0 0.0
    %7502 = vmatpush1.msra.mxu0 %v164
    %7503 = vmatprep.subr.mxu0 0.0
    %7504 = vmatpush2.msra.mxu0 0.0
    %7505 = vmatprep.subr.mxu0 0.0
    %7506 = vmatpush2.msra.mxu0 0.0
    %7507 = vmatprep.subr.mxu0 0.0
    %7508 = vmatpush2.msra.mxu0 0.0
    %7509 = vmatprep.subr.mxu0 0.0
    %7510 = vmatpush2.msra.mxu0 0.0
    %7511 = vmatprep.subr.mxu0 0.0
    %7512 = vmatpush2.msra.mxu0 0.0
    %7513 = vmatprep.subr.mxu0 0.0
    %7514 = vmatpush2.msra.mxu0 0.0
    %7515 = vmatprep.subr.mxu0 0.0
    %7516 = vmatpush2.msra.mxu0 0.0
    %7517 = vmatprep.subr.mxu0 0.0
    %7518 = vmatpush2.msra.mxu0 0.0
    %7519 = vmatprep.subr.mxu0 0.0
    %7520 = vmatpush2.msra.mxu0 0.0
    %7521 = vmatprep.subr.mxu0 0.0
    %7522 = vmatpush2.msra.mxu0 0.0
    %7523 = vmatprep.subr.mxu0 0.0
    %7524 = vmatpush2.msra.mxu0 0.0
    %7525 = vmatprep.subr.mxu0 0.0
    %7526 = vmatpush2.msra.mxu0 0.0
    %7527 = vmatprep.subr.mxu0 0.0
    %7528 = vmatpush2.msra.mxu0 0.0
    %7529 = vmatprep.subr.mxu0 0.0
    %7530 = vmatpush2.msra.mxu0 0.0
    %7531 = vmatprep.subr.mxu0 0.0
    %7532 = vmatpush2.msra.mxu0 0.0
    %7533 = vmatprep.subr.mxu0 0.0
    %7534 = vmatpush2.msra.mxu0 0.0
    %7535 = vmatprep.mubr.f32.mxu0 0.0
    %7536 = vmatmul.mubr.f32.gmra.mxu0 %v7469
    %v7537 = vpop.f32.mrf.mxu0
    %v7538 = vadd.f32 0.0, %v7537
    %v7539 = vpop.f32.mrf.mxu0
    %7540 = vdwg.mxu0
    %v7543 = vrot.slane %v7143, 4
    %v7544 = vrot.slane %v7216, 3
    %v7545 = vsel %vm3414, %v7544, %v7543
    %7546 = vrot.lane.b32.xlu0 %v7545, 32
    %v7547 = vpop.permute.xlu0 %7546
    %v7551 = vrot.slane %v7465, 4
    %v7552 = vrot.slane %v7538, 3
    %v7553 = vsel %vm3414, %v7552, %v7551
    %7554 = vrot.lane.b32.xlu0 %v7553, 64
    %v7555 = vpop.permute.xlu0 %7554
    %v7557 = vsel %vm309, %v6868, %v7547
    %v7558 = vsel %vm392, %v7557, %v7555
    %v7560 = vrot.slane %v7558, 4
    %v7561 = vsel %vm1364, %v7560, 0
    %7563 = vmatprep.subr.mxu0 0.0
    %7564 = vmatpush1.msra.mxu0 0.0
    %7565 = vmatprep.subr.mxu0 0.0
    %7566 = vmatpush1.msra.mxu0 0.0
    %7567 = vmatprep.subr.mxu0 0.0
    %7568 = vmatpush1.msra.mxu0 0.0
    %7569 = vmatprep.subr.mxu0 0.0
    %7570 = vmatpush1.msra.mxu0 0.0
    %7571 = vmatprep.subr.mxu0 0.0
    %7572 = vmatpush1.msra.mxu0 %v202
    %7573 = vmatprep.subr.mxu0 0.0
    %7574 = vmatpush1.msra.mxu0 %v201
    %7575 = vmatprep.subr.mxu0 0.0
    %7576 = vmatpush1.msra.mxu0 %v200
    %7577 = vmatprep.subr.mxu0 0.0
    %7578 = vmatpush1.msra.mxu0 %v199
    %7579 = vmatprep.subr.mxu0 0.0
    %7580 = vmatpush1.msra.mxu0 %v198
    %7581 = vmatprep.subr.mxu0 0.0
    %7582 = vmatpush1.msra.mxu0 %v197
    %7583 = vmatprep.subr.mxu0 0.0
    %7584 = vmatpush1.msra.mxu0 %v196
    %7585 = vmatprep.subr.mxu0 0.0
    %7586 = vmatpush1.msra.mxu0 %v195
    %7587 = vmatprep.subr.mxu0 0.0
    %7588 = vmatpush1.msra.mxu0 %v194
    %7589 = vmatprep.subr.mxu0 0.0
    %7590 = vmatpush1.msra.mxu0 %v193
    %7591 = vmatprep.subr.mxu0 0.0
    %7592 = vmatpush1.msra.mxu0 %v192
    %7593 = vmatprep.subr.mxu0 0.0
    %7594 = vmatpush1.msra.mxu0 %v191
    %7595 = vmatprep.subr.mxu0 0.0
    %7596 = vmatpush2.msra.mxu0 0.0
    %7597 = vmatprep.subr.mxu0 0.0
    %7598 = vmatpush2.msra.mxu0 0.0
    %7599 = vmatprep.subr.mxu0 0.0
    %7600 = vmatpush2.msra.mxu0 0.0
    %7601 = vmatprep.subr.mxu0 0.0
    %7602 = vmatpush2.msra.mxu0 0.0
    %7603 = vmatprep.subr.mxu0 0.0
    %7604 = vmatpush2.msra.mxu0 0.0
    %7605 = vmatprep.subr.mxu0 0.0
    %7606 = vmatpush2.msra.mxu0 0.0
    %7607 = vmatprep.subr.mxu0 0.0
    %7608 = vmatpush2.msra.mxu0 0.0
    %7609 = vmatprep.subr.mxu0 0.0
    %7610 = vmatpush2.msra.mxu0 0.0
    %7611 = vmatprep.subr.mxu0 0.0
    %7612 = vmatpush2.msra.mxu0 0.0
    %7613 = vmatprep.subr.mxu0 0.0
    %7614 = vmatpush2.msra.mxu0 0.0
    %7615 = vmatprep.subr.mxu0 0.0
    %7616 = vmatpush2.msra.mxu0 0.0
    %7617 = vmatprep.subr.mxu0 0.0
    %7618 = vmatpush2.msra.mxu0 0.0
    %7619 = vmatprep.subr.mxu0 0.0
    %7620 = vmatpush2.msra.mxu0 0.0
    %7621 = vmatprep.subr.mxu0 0.0
    %7622 = vmatpush2.msra.mxu0 0.0
    %7623 = vmatprep.subr.mxu0 0.0
    %7624 = vmatpush2.msra.mxu0 0.0
    %7625 = vmatprep.subr.mxu0 0.0
    %7626 = vmatpush2.msra.mxu0 0.0
    %7627 = vmatprep.mubr.f32.mxu0 0.0
    %7628 = vmatmul.mubr.f32.gmra.mxu0 %v7561
    %v7629 = vpop.f32.mrf.mxu0
    %v7630 = vadd.f32 %v1362, %v7629
    %v7631 = vpop.f32.mrf.mxu0
    %7632 = vdwg.mxu0
    %7634 = vrot.lane.b32.xlu0 %v7630, 96
    %v7635 = vpop.permute.xlu0 %7634
    %vm7637 = vcmask 911104
    %7638 = vst.msk [vmem:[#allocation16] sm:$0x3] %vm7637, %v7635
    %v7639 = vrot.slane %v7216, 7
    %v7640 = vsel %vm825, %v7639, %v7143
    %v7642 = vrot.slane %v7538, 7
    %v7643 = vsel %vm825, %v7642, %v7465
    %7644 = vrot.lane.b32.xlu0 %v7643, 32
    %v7645 = vpop.permute.xlu0 %7644
    %v7647 = vsel %vm309, %v7640, %v7645
    %v7649 = vsel %vm392, %v7647, 0
    %7651 = vmatprep.subr.mxu0 0.0
    %7652 = vmatpush1.msra.mxu0 0.0
    %7653 = vmatprep.subr.mxu0 0.0
    %7654 = vmatpush1.msra.mxu0 0.0
    %7655 = vmatprep.subr.mxu0 0.0
    %7656 = vmatpush1.msra.mxu0 0.0
    %7657 = vmatprep.subr.mxu0 0.0
    %7658 = vmatpush1.msra.mxu0 0.0
    %7659 = vmatprep.subr.mxu0 0.0
    %7660 = vmatpush1.msra.mxu0 0.0
    %7661 = vmatprep.subr.mxu0 0.0
    %7662 = vmatpush1.msra.mxu0 0.0
    %7663 = vmatprep.subr.mxu0 0.0
    %7664 = vmatpush1.msra.mxu0 0.0
    %7665 = vmatprep.subr.mxu0 0.0
    %7666 = vmatpush1.msra.mxu0 0.0
    %7667 = vmatprep.subr.mxu0 0.0
    %7668 = vmatpush1.msra.mxu0 %v181
    %7669 = vmatprep.subr.mxu0 0.0
    %7670 = vmatpush1.msra.mxu0 %v180
    %7671 = vmatprep.subr.mxu0 0.0
    %7672 = vmatpush1.msra.mxu0 %v179
    %7673 = vmatprep.subr.mxu0 0.0
    %7674 = vmatpush1.msra.mxu0 %v178
    %7675 = vmatprep.subr.mxu0 0.0
    %7676 = vmatpush1.msra.mxu0 %v177
    %7677 = vmatprep.subr.mxu0 0.0
    %7678 = vmatpush1.msra.mxu0 %v176
    %7679 = vmatprep.subr.mxu0 0.0
    %7680 = vmatpush1.msra.mxu0 %v175
    %7681 = vmatprep.subr.mxu0 0.0
    %7682 = vmatpush1.msra.mxu0 %v174
    %7683 = vmatprep.subr.mxu0 0.0
    %7684 = vmatpush2.msra.mxu0 0.0
    %7685 = vmatprep.subr.mxu0 0.0
    %7686 = vmatpush2.msra.mxu0 0.0
    %7687 = vmatprep.subr.mxu0 0.0
    %7688 = vmatpush2.msra.mxu0 0.0
    %7689 = vmatprep.subr.mxu0 0.0
    %7690 = vmatpush2.msra.mxu0 0.0
    %7691 = vmatprep.subr.mxu0 0.0
    %7692 = vmatpush2.msra.mxu0 0.0
    %7693 = vmatprep.subr.mxu0 0.0
    %7694 = vmatpush2.msra.mxu0 0.0
    %7695 = vmatprep.subr.mxu0 0.0
    %7696 = vmatpush2.msra.mxu0 0.0
    %7697 = vmatprep.subr.mxu0 0.0
    %7698 = vmatpush2.msra.mxu0 0.0
    %7699 = vmatprep.subr.mxu0 0.0
    %7700 = vmatpush2.msra.mxu0 0.0
    %7701 = vmatprep.subr.mxu0 0.0
    %7702 = vmatpush2.msra.mxu0 0.0
    %7703 = vmatprep.subr.mxu0 0.0
    %7704 = vmatpush2.msra.mxu0 0.0
    %7705 = vmatprep.subr.mxu0 0.0
    %7706 = vmatpush2.msra.mxu0 0.0
    %7707 = vmatprep.subr.mxu0 0.0
    %7708 = vmatpush2.msra.mxu0 0.0
    %7709 = vmatprep.subr.mxu0 0.0
    %7710 = vmatpush2.msra.mxu0 0.0
    %7711 = vmatprep.subr.mxu0 0.0
    %7712 = vmatpush2.msra.mxu0 0.0
    %7713 = vmatprep.subr.mxu0 0.0
    %7714 = vmatpush2.msra.mxu0 0.0
    %7715 = vmatprep.mubr.f32.mxu0 0.0
    %7716 = vmatmul.mubr.f32.gmra.mxu0 %v7649
    %v7717 = vpop.f32.mrf.mxu0
    %v7718 = vadd.f32 0.0, %v7717
    %v7719 = vpop.f32.mrf.mxu0
    %7720 = vdwg.mxu0
    %v7722 = vrot.slane %v7718, 2
    %v7724 = vadd.f32 %v388, %v7722
    %v7725 = vrot.slane %v6868, 4
    %v7726 = vsel %vm309, %v7725, 0
    %7728 = vmatprep.subr.mxu0 0.0
    %7729 = vmatpush1.msra.mxu0 0.0
    %7730 = vmatprep.subr.mxu0 0.0
    %7731 = vmatpush1.msra.mxu0 0.0
    %7732 = vmatprep.subr.mxu0 0.0
    %7733 = vmatpush1.msra.mxu0 0.0
    %7734 = vmatprep.subr.mxu0 0.0
    %7735 = vmatpush1.msra.mxu0 0.0
    %7736 = vmatprep.subr.mxu0 0.0
    %7737 = vmatpush1.msra.mxu0 0.0
    %7738 = vmatprep.subr.mxu0 0.0
    %7739 = vmatpush1.msra.mxu0 0.0
    %7740 = vmatprep.subr.mxu0 0.0
    %7741 = vmatpush1.msra.mxu0 0.0
    %7742 = vmatprep.subr.mxu0 0.0
    %7743 = vmatpush1.msra.mxu0 0.0
    %7744 = vmatprep.subr.mxu0 0.0
    %7745 = vmatpush1.msra.mxu0 0.0
    %7746 = vmatprep.subr.mxu0 0.0
    %7747 = vmatpush1.msra.mxu0 0.0
    %7748 = vmatprep.subr.mxu0 0.0
    %7749 = vmatpush1.msra.mxu0 0.0
    %7750 = vmatprep.subr.mxu0 0.0
    %7751 = vmatpush1.msra.mxu0 0.0
    %7752 = vmatprep.subr.mxu0 0.0
    %7753 = vmatpush1.msra.mxu0 %v185
    %7754 = vmatprep.subr.mxu0 0.0
    %7755 = vmatpush1.msra.mxu0 %v184
    %7756 = vmatprep.subr.mxu0 0.0
    %7757 = vmatpush1.msra.mxu0 %v183
    %7758 = vmatprep.subr.mxu0 0.0
    %7759 = vmatpush1.msra.mxu0 %v182
    %7760 = vmatprep.subr.mxu0 0.0
    %7761 = vmatpush2.msra.mxu0 0.0
    %7762 = vmatprep.subr.mxu0 0.0
    %7763 = vmatpush2.msra.mxu0 0.0
    %7764 = vmatprep.subr.mxu0 0.0
    %7765 = vmatpush2.msra.mxu0 0.0
    %7766 = vmatprep.subr.mxu0 0.0
    %7767 = vmatpush2.msra.mxu0 0.0
    %7768 = vmatprep.subr.mxu0 0.0
    %7769 = vmatpush2.msra.mxu0 0.0
    %7770 = vmatprep.subr.mxu0 0.0
    %7771 = vmatpush2.msra.mxu0 0.0
    %7772 = vmatprep.subr.mxu0 0.0
    %7773 = vmatpush2.msra.mxu0 0.0
    %7774 = vmatprep.subr.mxu0 0.0
    %7775 = vmatpush2.msra.mxu0 0.0
    %7776 = vmatprep.subr.mxu0 0.0
    %7777 = vmatpush2.msra.mxu0 0.0
    %7778 = vmatprep.subr.mxu0 0.0
    %7779 = vmatpush2.msra.mxu0 0.0
    %7780 = vmatprep.subr.mxu0 0.0
    %7781 = vmatpush2.msra.mxu0 0.0
    %7782 = vmatprep.subr.mxu0 0.0
    %7783 = vmatpush2.msra.mxu0 0.0
    %7784 = vmatprep.subr.mxu0 0.0
    %7785 = vmatpush2.msra.mxu0 0.0
    %7786 = vmatprep.subr.mxu0 0.0
    %7787 = vmatpush2.msra.mxu0 0.0
    %7788 = vmatprep.subr.mxu0 0.0
    %7789 = vmatpush2.msra.mxu0 0.0
    %7790 = vmatprep.subr.mxu0 0.0
    %7791 = vmatpush2.msra.mxu0 0.0
    %7792 = vmatprep.mubr.f32.mxu0 0.0
    %7793 = vmatmul.mubr.f32.gmra.mxu0 %v7726
    %v7794 = vpop.f32.mrf.mxu0
    %v7795 = vadd.f32 0.0, %v7794
    %v7796 = vpop.f32.mrf.mxu0
    %7797 = vdwg.mxu0
    %v7799 = vrot.slane %v7795, 2
    %v7801 = vadd.f32 %v7724, %v7799
    %v7802 = vxor.u32 %v7801, 2147483648
    %v7803 = vmul.f32 %v7802, 1.442695
    %v7804 = vpow.pop %v7803
    %v7805 = vadd.f32 %v7804, 1.0
    %v7806 = vrcp.pop %v7805
    %v7807 = vmul.f32 1.0, %v7806
    %v7808 = vrot.slane %v6868, 6
    %7809 = vrot.lane.b32.xlu0 %v7808, 32
    %v7810 = vpop.permute.xlu0 %7809
    %v7812 = vmul.f32 %v7807, %v7810
    %v7814 = vrot.slane %v7812, 6
    %7815 = vrot.lane.b32.xlu0 %v7814, 96
    %v7816 = vpop.permute.xlu0 %7815
    %v7817 = vsel %vm309, %v7816, 0
    %7819 = vmatprep.subr.mxu0 0.0
    %7820 = vmatpush1.msra.mxu0 0.0
    %7821 = vmatprep.subr.mxu0 0.0
    %7822 = vmatpush1.msra.mxu0 0.0
    %7823 = vmatprep.subr.mxu0 0.0
    %7824 = vmatpush1.msra.mxu0 0.0
    %7825 = vmatprep.subr.mxu0 0.0
    %7826 = vmatpush1.msra.mxu0 0.0
    %7827 = vmatprep.subr.mxu0 0.0
    %7828 = vmatpush1.msra.mxu0 0.0
    %7829 = vmatprep.subr.mxu0 0.0
    %7830 = vmatpush1.msra.mxu0 0.0
    %7831 = vmatprep.subr.mxu0 0.0
    %7832 = vmatpush1.msra.mxu0 0.0
    %7833 = vmatprep.subr.mxu0 0.0
    %7834 = vmatpush1.msra.mxu0 0.0
    %7835 = vmatprep.subr.mxu0 0.0
    %7836 = vmatpush1.msra.mxu0 0.0
    %7837 = vmatprep.subr.mxu0 0.0
    %7838 = vmatpush1.msra.mxu0 0.0
    %7839 = vmatprep.subr.mxu0 0.0
    %7840 = vmatpush1.msra.mxu0 0.0
    %7841 = vmatprep.subr.mxu0 0.0
    %7842 = vmatpush1.msra.mxu0 0.0
    %7843 = vmatprep.subr.mxu0 0.0
    %7844 = vmatpush1.msra.mxu0 %v189
    %7845 = vmatprep.subr.mxu0 0.0
    %7846 = vmatpush1.msra.mxu0 %v188
    %7847 = vmatprep.subr.mxu0 0.0
    %7848 = vmatpush1.msra.mxu0 %v187
    %7849 = vmatprep.subr.mxu0 0.0
    %7850 = vmatpush1.msra.mxu0 %v186
    %7851 = vmatprep.subr.mxu0 0.0
    %7852 = vmatpush2.msra.mxu0 0.0
    %7853 = vmatprep.subr.mxu0 0.0
    %7854 = vmatpush2.msra.mxu0 0.0
    %7855 = vmatprep.subr.mxu0 0.0
    %7856 = vmatpush2.msra.mxu0 0.0
    %7857 = vmatprep.subr.mxu0 0.0
    %7858 = vmatpush2.msra.mxu0 0.0
    %7859 = vmatprep.subr.mxu0 0.0
    %7860 = vmatpush2.msra.mxu0 0.0
    %7861 = vmatprep.subr.mxu0 0.0
    %7862 = vmatpush2.msra.mxu0 0.0
    %7863 = vmatprep.subr.mxu0 0.0
    %7864 = vmatpush2.msra.mxu0 0.0
    %7865 = vmatprep.subr.mxu0 0.0
    %7866 = vmatpush2.msra.mxu0 0.0
    %7867 = vmatprep.subr.mxu0 0.0
    %7868 = vmatpush2.msra.mxu0 0.0
    %7869 = vmatprep.subr.mxu0 0.0
    %7870 = vmatpush2.msra.mxu0 0.0
    %7871 = vmatprep.subr.mxu0 0.0
    %7872 = vmatpush2.msra.mxu0 0.0
    %7873 = vmatprep.subr.mxu0 0.0
    %7874 = vmatpush2.msra.mxu0 0.0
    %7875 = vmatprep.subr.mxu0 0.0
    %7876 = vmatpush2.msra.mxu0 0.0
    %7877 = vmatprep.subr.mxu0 0.0
    %7878 = vmatpush2.msra.mxu0 0.0
    %7879 = vmatprep.subr.mxu0 0.0
    %7880 = vmatpush2.msra.mxu0 0.0
    %7881 = vmatprep.subr.mxu0 0.0
    %7882 = vmatpush2.msra.mxu0 0.0
    %7883 = vmatprep.mubr.f32.mxu0 0.0
    %7884 = vmatmul.mubr.f32.gmra.mxu0 %v7817
    %v7885 = vpop.f32.mrf.mxu0
    %v7886 = vadd.f32 0.0, %v7885
    %v7887 = vpop.f32.mrf.mxu0
    %7888 = vdwg.mxu0
    %v7890 = vrot.slane %v7886, 2
    %7891 = vrot.lane.b32.xlu0 %v7890, 64
    %v7892 = vpop.permute.xlu0 %7891
    %v7894 = vadd.f32 %v7724, %v7892
    %v7895 = vtanh.pop %v7894
    %v7896 = vsub.f32 1.0, %v7807
    %v7898 = vmul.f32 %v7896, %v7808
    %7900 = vrot.lane.b32.xlu0 %v7895, 64
    %v7901 = vpop.permute.xlu0 %7900
    %v7903 = vmul.f32 %v7807, %v7901
    %v7904 = vadd.f32 %v7898, %v7903
    %v7906 = vcombine.high %v7904, %v7904
    %v7908 = vunpack.c.l.s4 1966171168
    %v7909 = vunpack.c.0.s8 %v7908
    %v7910 = vlaneseq
    %v7911 = vshrl.u32 %v7910, 7
    %v7912 = vsub.s32 %v7909, %v7911
    %v7913 = vrot.slane %v7906, %v7912
    %v7914 = vcombine.high %v7913, %v7913
    %v7916 = vunpack.c.l.s4 1966171168
    %v7917 = vunpack.c.0.s8 %v7916
    %v7918 = vlaneseq
    %v7919 = vshrl.u32 %v7918, 7
    %v7920 = vsub.s32 %v7917, %v7919
    %v7921 = vrot.slane %v7913, %v7920
    %v7923 = vunpack.c.l.s4 1966171168
    %v7924 = vunpack.c.0.s8 %v7923
    %v7925 = vlaneseq
    %v7926 = vshrl.u32 %v7925, 7
    %v7927 = vsub.s32 %v7924, %v7926
    %v7928 = vrot.slane %v7914, %v7927
    %v7929 = vcombine.high %v7921, %v7921
    %v7930 = vcombine.high %v7928, %v7928
    %v7931 = vsel %vm309, %v7929, 0
    %7933 = vmatprep.subr.mxu0 0.0
    %7934 = vmatpush1.xpose.msra.mxu0 0.0
    %7935 = vmatprep.subr.mxu0 0.0
    %7936 = vmatpush1.xpose.msra.mxu0 0.0
    %7937 = vmatprep.subr.mxu0 0.0
    %7938 = vmatpush1.xpose.msra.mxu0 0.0
    %7939 = vmatprep.subr.mxu0 0.0
    %7940 = vmatpush1.xpose.msra.mxu0 0.0
    %7941 = vmatprep.subr.mxu0 0.0
    %7942 = vmatpush1.xpose.msra.mxu0 0.0
    %7943 = vmatprep.subr.mxu0 0.0
    %7944 = vmatpush1.xpose.msra.mxu0 0.0
    %7945 = vmatprep.subr.mxu0 0.0
    %7946 = vmatpush1.xpose.msra.mxu0 0.0
    %7947 = vmatprep.subr.mxu0 0.0
    %7948 = vmatpush1.xpose.msra.mxu0 0.0
    %7949 = vmatprep.subr.mxu0 0.0
    %7950 = vmatpush1.xpose.msra.mxu0 0.0
    %7951 = vmatprep.subr.mxu0 0.0
    %7952 = vmatpush1.xpose.msra.mxu0 0.0
    %7953 = vmatprep.subr.mxu0 0.0
    %7954 = vmatpush1.xpose.msra.mxu0 0.0
    %7955 = vmatprep.subr.mxu0 0.0
    %7956 = vmatpush1.xpose.msra.mxu0 0.0
    %7957 = vmatprep.subr.mxu0 0.0
    %7958 = vmatpush1.xpose.msra.mxu0 0.0
    %7959 = vmatprep.subr.mxu0 0.0
    %7960 = vmatpush1.xpose.msra.mxu0 0.0
    %7961 = vmatprep.subr.mxu0 0.0
    %7962 = vmatpush1.xpose.msra.mxu0 %v666
    %7963 = vmatprep.subr.mxu0 0.0
    %7964 = vmatpush1.xpose.msra.mxu0 %v663
    %7965 = vmatprep.subr.mxu0 0.0
    %7966 = vmatpush2.xpose.msra.mxu0 0.0
    %7967 = vmatprep.subr.mxu0 0.0
    %7968 = vmatpush2.xpose.msra.mxu0 0.0
    %7969 = vmatprep.subr.mxu0 0.0
    %7970 = vmatpush2.xpose.msra.mxu0 0.0
    %7971 = vmatprep.subr.mxu0 0.0
    %7972 = vmatpush2.xpose.msra.mxu0 0.0
    %7973 = vmatprep.subr.mxu0 0.0
    %7974 = vmatpush2.xpose.msra.mxu0 0.0
    %7975 = vmatprep.subr.mxu0 0.0
    %7976 = vmatpush2.xpose.msra.mxu0 0.0
    %7977 = vmatprep.subr.mxu0 0.0
    %7978 = vmatpush2.xpose.msra.mxu0 0.0
    %7979 = vmatprep.subr.mxu0 0.0
    %7980 = vmatpush2.xpose.msra.mxu0 0.0
    %7981 = vmatprep.subr.mxu0 0.0
    %7982 = vmatpush2.xpose.msra.mxu0 0.0
    %7983 = vmatprep.subr.mxu0 0.0
    %7984 = vmatpush2.xpose.msra.mxu0 0.0
    %7985 = vmatprep.subr.mxu0 0.0
    %7986 = vmatpush2.xpose.msra.mxu0 0.0
    %7987 = vmatprep.subr.mxu0 0.0
    %7988 = vmatpush2.xpose.msra.mxu0 0.0
    %7989 = vmatprep.subr.mxu0 0.0
    %7990 = vmatpush2.xpose.msra.mxu0 0.0
    %7991 = vmatprep.subr.mxu0 0.0
    %7992 = vmatpush2.xpose.msra.mxu0 0.0
    %7993 = vmatprep.subr.mxu0 0.0
    %7994 = vmatpush2.xpose.msra.mxu0 0.0
    %7995 = vmatprep.subr.mxu0 0.0
    %7996 = vmatpush2.xpose.msra.mxu0 0.0
    %7997 = vmatprep.mubr.f32.mxu0 0.0
    %7998 = vmatmul.mubr.f32.gmra.mxu0 %v7931
    %v7999 = vpop.f32.mrf.mxu0
    %v8000 = vadd.f32 0.0, %v7999
    %v8001 = vpop.f32.mrf.mxu0
    %8002 = vdwg.mxu0
    %v8003 = vsel %vm309, %v7930, 0
    %8005 = vmatprep.subr.mxu0 0.0
    %8006 = vmatpush1.xpose.msra.mxu0 0.0
    %8007 = vmatprep.subr.mxu0 0.0
    %8008 = vmatpush1.xpose.msra.mxu0 0.0
    %8009 = vmatprep.subr.mxu0 0.0
    %8010 = vmatpush1.xpose.msra.mxu0 0.0
    %8011 = vmatprep.subr.mxu0 0.0
    %8012 = vmatpush1.xpose.msra.mxu0 0.0
    %8013 = vmatprep.subr.mxu0 0.0
    %8014 = vmatpush1.xpose.msra.mxu0 0.0
    %8015 = vmatprep.subr.mxu0 0.0
    %8016 = vmatpush1.xpose.msra.mxu0 0.0
    %8017 = vmatprep.subr.mxu0 0.0
    %8018 = vmatpush1.xpose.msra.mxu0 0.0
    %8019 = vmatprep.subr.mxu0 0.0
    %8020 = vmatpush1.xpose.msra.mxu0 0.0
    %8021 = vmatprep.subr.mxu0 0.0
    %8022 = vmatpush1.xpose.msra.mxu0 0.0
    %8023 = vmatprep.subr.mxu0 0.0
    %8024 = vmatpush1.xpose.msra.mxu0 0.0
    %8025 = vmatprep.subr.mxu0 0.0
    %8026 = vmatpush1.xpose.msra.mxu0 0.0
    %8027 = vmatprep.subr.mxu0 0.0
    %8028 = vmatpush1.xpose.msra.mxu0 0.0
    %8029 = vmatprep.subr.mxu0 0.0
    %8030 = vmatpush1.xpose.msra.mxu0 0.0
    %8031 = vmatprep.subr.mxu0 0.0
    %8032 = vmatpush1.xpose.msra.mxu0 0.0
    %8033 = vmatprep.subr.mxu0 0.0
    %8034 = vmatpush1.xpose.msra.mxu0 %v744
    %8035 = vmatprep.subr.mxu0 0.0
    %8036 = vmatpush1.xpose.msra.mxu0 %v741
    %8037 = vmatprep.subr.mxu0 0.0
    %8038 = vmatpush2.xpose.msra.mxu0 0.0
    %8039 = vmatprep.subr.mxu0 0.0
    %8040 = vmatpush2.xpose.msra.mxu0 0.0
    %8041 = vmatprep.subr.mxu0 0.0
    %8042 = vmatpush2.xpose.msra.mxu0 0.0
    %8043 = vmatprep.subr.mxu0 0.0
    %8044 = vmatpush2.xpose.msra.mxu0 0.0
    %8045 = vmatprep.subr.mxu0 0.0
    %8046 = vmatpush2.xpose.msra.mxu0 0.0
    %8047 = vmatprep.subr.mxu0 0.0
    %8048 = vmatpush2.xpose.msra.mxu0 0.0
    %8049 = vmatprep.subr.mxu0 0.0
    %8050 = vmatpush2.xpose.msra.mxu0 0.0
    %8051 = vmatprep.subr.mxu0 0.0
    %8052 = vmatpush2.xpose.msra.mxu0 0.0
    %8053 = vmatprep.subr.mxu0 0.0
    %8054 = vmatpush2.xpose.msra.mxu0 0.0
    %8055 = vmatprep.subr.mxu0 0.0
    %8056 = vmatpush2.xpose.msra.mxu0 0.0
    %8057 = vmatprep.subr.mxu0 0.0
    %8058 = vmatpush2.xpose.msra.mxu0 0.0
    %8059 = vmatprep.subr.mxu0 0.0
    %8060 = vmatpush2.xpose.msra.mxu0 0.0
    %8061 = vmatprep.subr.mxu0 0.0
    %8062 = vmatpush2.xpose.msra.mxu0 0.0
    %8063 = vmatprep.subr.mxu0 0.0
    %8064 = vmatpush2.xpose.msra.mxu0 0.0
    %8065 = vmatprep.subr.mxu0 0.0
    %8066 = vmatpush2.xpose.msra.mxu0 0.0
    %8067 = vmatprep.subr.mxu0 0.0
    %8068 = vmatpush2.xpose.msra.mxu0 0.0
    %8069 = vmatprep.mubr.f32.mxu0 0.0
    %8070 = vmatmul.mubr.f32.gmra.mxu0 %v8003
    %v8071 = vpop.f32.mrf.mxu0
    %v8072 = vadd.f32 0.0, %v8071
    %v8073 = vpop.f32.mrf.mxu0
    %8074 = vdwg.mxu0
    %v8075 = vadd.f32 %v8000, %v166
    %v8076 = vadd.f32 %v8072, %v817
    %v8079 = vrot.slane %v8076, 7
    %v8080 = vsel %vm825, %v8079, %v8075
    %v8082 = vsel %vm828, %v8080, -inf
    %8083 = vmax.xlane.f32.xlu0 %v8082
    %v8084 = vpop.xlane.xlu0 %8083
    %v8086 = vrot.slane %v8084, 1
    %v8089 = vsub.f32 %v8075, %v8084
    %v8090 = vsub.f32 %v8076, %v8086
    %v8091 = vmul.f32 %v8089, 1.442695
    %v8092 = vpow.pop %v8091
    %v8093 = vmul.f32 %v8090, 1.442695
    %v8094 = vpow.pop %v8093
    %v8097 = vrot.slane %v8094, 7
    %v8098 = vsel %vm825, %v8097, %v8092
    %v8100 = vsel %vm828, %v8098, 0.0
    %8101 = vadd.xlane.f32.xlu0 %v8100
    %v8102 = vpop.xlane.xlu0 %8101
    %v8103 = vadd.f32 %v8102, 1e-09
    %v8104 = vrcp.pop %v8103
    %v8106 = vrot.slane %v8104, 1
    %v8109 = vmul.f32 %v8092, %v8104
    %v8110 = vmul.f32 %v8094, %v8106
    %v8112 = vsel %vm221, %v8109, 0
    %8114 = vmatprep.subr.mxu0 0.0
    %8115 = vmatpush1.msra.mxu0 0.0
    %8116 = vmatprep.subr.mxu0 0.0
    %8117 = vmatpush1.msra.mxu0 0.0
    %8118 = vmatprep.subr.mxu0 0.0
    %8119 = vmatpush1.msra.mxu0 0.0
    %8120 = vmatprep.subr.mxu0 0.0
    %8121 = vmatpush1.msra.mxu0 0.0
    %8122 = vmatprep.subr.mxu0 0.0
    %8123 = vmatpush1.msra.mxu0 0.0
    %8124 = vmatprep.subr.mxu0 0.0
    %8125 = vmatpush1.msra.mxu0 0.0
    %8126 = vmatprep.subr.mxu0 0.0
    %8127 = vmatpush1.msra.mxu0 0.0
    %8128 = vmatprep.subr.mxu0 0.0
    %8129 = vmatpush1.msra.mxu0 0.0
    %8130 = vmatprep.subr.mxu0 0.0
    %8131 = vmatpush1.msra.mxu0 0.0
    %8132 = vmatprep.subr.mxu0 0.0
    %8133 = vmatpush1.msra.mxu0 0.0
    %8134 = vmatprep.subr.mxu0 0.0
    %8135 = vmatpush1.msra.mxu0 0.0
    %8136 = vmatprep.subr.mxu0 0.0
    %8137 = vmatpush1.msra.mxu0 0.0
    %8138 = vmatprep.subr.mxu0 0.0
    %8139 = vmatpush1.msra.mxu0 0.0
    %8140 = vmatprep.subr.mxu0 0.0
    %8141 = vmatpush1.msra.mxu0 0.0
    %8142 = vmatprep.subr.mxu0 0.0
    %8143 = vmatpush1.msra.mxu0 %v155
    %8144 = vmatprep.subr.mxu0 0.0
    %8145 = vmatpush1.msra.mxu0 %v154
    %8146 = vmatprep.subr.mxu0 0.0
    %8147 = vmatpush2.msra.mxu0 0.0
    %8148 = vmatprep.subr.mxu0 0.0
    %8149 = vmatpush2.msra.mxu0 0.0
    %8150 = vmatprep.subr.mxu0 0.0
    %8151 = vmatpush2.msra.mxu0 0.0
    %8152 = vmatprep.subr.mxu0 0.0
    %8153 = vmatpush2.msra.mxu0 0.0
    %8154 = vmatprep.subr.mxu0 0.0
    %8155 = vmatpush2.msra.mxu0 0.0
    %8156 = vmatprep.subr.mxu0 0.0
    %8157 = vmatpush2.msra.mxu0 0.0
    %8158 = vmatprep.subr.mxu0 0.0
    %8159 = vmatpush2.msra.mxu0 0.0
    %8160 = vmatprep.subr.mxu0 0.0
    %8161 = vmatpush2.msra.mxu0 0.0
    %8162 = vmatprep.subr.mxu0 0.0
    %8163 = vmatpush2.msra.mxu0 0.0
    %8164 = vmatprep.subr.mxu0 0.0
    %8165 = vmatpush2.msra.mxu0 0.0
    %8166 = vmatprep.subr.mxu0 0.0
    %8167 = vmatpush2.msra.mxu0 0.0
    %8168 = vmatprep.subr.mxu0 0.0
    %8169 = vmatpush2.msra.mxu0 0.0
    %8170 = vmatprep.subr.mxu0 0.0
    %8171 = vmatpush2.msra.mxu0 0.0
    %8172 = vmatprep.subr.mxu0 0.0
    %8173 = vmatpush2.msra.mxu0 0.0
    %8174 = vmatprep.subr.mxu0 0.0
    %8175 = vmatpush2.msra.mxu0 0.0
    %8176 = vmatprep.subr.mxu0 0.0
    %8177 = vmatpush2.msra.mxu0 0.0
    %8178 = vmatprep.mubr.f32.mxu0 0.0
    %8179 = vmatmul.mubr.f32.gmra.mxu0 %v8112
    %v8180 = vpop.f32.mrf.mxu0
    %v8181 = vadd.f32 0.0, %v8180
    %v8182 = vpop.f32.mrf.mxu0
    %8183 = vdwg.mxu0
    %v8185 = vsel %vm221, %v8110, 0
    %8187 = vmatprep.subr.mxu0 0.0
    %8188 = vmatpush1.msra.mxu0 0.0
    %8189 = vmatprep.subr.mxu0 0.0
    %8190 = vmatpush1.msra.mxu0 0.0
    %8191 = vmatprep.subr.mxu0 0.0
    %8192 = vmatpush1.msra.mxu0 0.0
    %8193 = vmatprep.subr.mxu0 0.0
    %8194 = vmatpush1.msra.mxu0 0.0
    %8195 = vmatprep.subr.mxu0 0.0
    %8196 = vmatpush1.msra.mxu0 0.0
    %8197 = vmatprep.subr.mxu0 0.0
    %8198 = vmatpush1.msra.mxu0 0.0
    %8199 = vmatprep.subr.mxu0 0.0
    %8200 = vmatpush1.msra.mxu0 0.0
    %8201 = vmatprep.subr.mxu0 0.0
    %8202 = vmatpush1.msra.mxu0 0.0
    %8203 = vmatprep.subr.mxu0 0.0
    %8204 = vmatpush1.msra.mxu0 0.0
    %8205 = vmatprep.subr.mxu0 0.0
    %8206 = vmatpush1.msra.mxu0 0.0
    %8207 = vmatprep.subr.mxu0 0.0
    %8208 = vmatpush1.msra.mxu0 0.0
    %8209 = vmatprep.subr.mxu0 0.0
    %8210 = vmatpush1.msra.mxu0 0.0
    %8211 = vmatprep.subr.mxu0 0.0
    %8212 = vmatpush1.msra.mxu0 0.0
    %8213 = vmatprep.subr.mxu0 0.0
    %8214 = vmatpush1.msra.mxu0 0.0
    %8215 = vmatprep.subr.mxu0 0.0
    %8216 = vmatpush1.msra.mxu0 %v157
    %8217 = vmatprep.subr.mxu0 0.0
    %8218 = vmatpush1.msra.mxu0 %v156
    %8219 = vmatprep.subr.mxu0 0.0
    %8220 = vmatpush2.msra.mxu0 0.0
    %8221 = vmatprep.subr.mxu0 0.0
    %8222 = vmatpush2.msra.mxu0 0.0
    %8223 = vmatprep.subr.mxu0 0.0
    %8224 = vmatpush2.msra.mxu0 0.0
    %8225 = vmatprep.subr.mxu0 0.0
    %8226 = vmatpush2.msra.mxu0 0.0
    %8227 = vmatprep.subr.mxu0 0.0
    %8228 = vmatpush2.msra.mxu0 0.0
    %8229 = vmatprep.subr.mxu0 0.0
    %8230 = vmatpush2.msra.mxu0 0.0
    %8231 = vmatprep.subr.mxu0 0.0
    %8232 = vmatpush2.msra.mxu0 0.0
    %8233 = vmatprep.subr.mxu0 0.0
    %8234 = vmatpush2.msra.mxu0 0.0
    %8235 = vmatprep.subr.mxu0 0.0
    %8236 = vmatpush2.msra.mxu0 0.0
    %8237 = vmatprep.subr.mxu0 0.0
    %8238 = vmatpush2.msra.mxu0 0.0
    %8239 = vmatprep.subr.mxu0 0.0
    %8240 = vmatpush2.msra.mxu0 0.0
    %8241 = vmatprep.subr.mxu0 0.0
    %8242 = vmatpush2.msra.mxu0 0.0
    %8243 = vmatprep.subr.mxu0 0.0
    %8244 = vmatpush2.msra.mxu0 0.0
    %8245 = vmatprep.subr.mxu0 0.0
    %8246 = vmatpush2.msra.mxu0 0.0
    %8247 = vmatprep.subr.mxu0 0.0
    %8248 = vmatpush2.msra.mxu0 0.0
    %8249 = vmatprep.subr.mxu0 0.0
    %8250 = vmatpush2.msra.mxu0 0.0
    %8251 = vmatprep.mubr.f32.mxu0 0.0
    %8252 = vmatmul.mubr.f32.gmra.mxu0 %v8185
    %v8253 = vpop.f32.mrf.mxu0
    %v8254 = vadd.f32 0.0, %v8253
    %v8255 = vpop.f32.mrf.mxu0
    %8256 = vdwg.mxu0
    %8257 = vmatprep.subr.mxu0 0.0
    %8258 = vmatpush1.xpose.msra.mxu0 0.0
    %8259 = vmatprep.subr.mxu0 0.0
    %8260 = vmatpush1.xpose.msra.mxu0 0.0
    %8261 = vmatprep.subr.mxu0 0.0
    %8262 = vmatpush1.xpose.msra.mxu0 0.0
    %8263 = vmatprep.subr.mxu0 0.0
    %8264 = vmatpush1.xpose.msra.mxu0 0.0
    %8265 = vmatprep.subr.mxu0 0.0
    %8266 = vmatpush1.xpose.msra.mxu0 0.0
    %8267 = vmatprep.subr.mxu0 0.0
    %8268 = vmatpush1.xpose.msra.mxu0 0.0
    %8269 = vmatprep.subr.mxu0 0.0
    %8270 = vmatpush1.xpose.msra.mxu0 0.0
    %8271 = vmatprep.subr.mxu0 0.0
    %8272 = vmatpush1.xpose.msra.mxu0 0.0
    %8273 = vmatprep.subr.mxu0 0.0
    %8274 = vmatpush1.xpose.msra.mxu0 0.0
    %8275 = vmatprep.subr.mxu0 0.0
    %8276 = vmatpush1.xpose.msra.mxu0 0.0
    %8277 = vmatprep.subr.mxu0 0.0
    %8278 = vmatpush1.xpose.msra.mxu0 0.0
    %8279 = vmatprep.subr.mxu0 0.0
    %8280 = vmatpush1.xpose.msra.mxu0 0.0
    %8281 = vmatprep.subr.mxu0 0.0
    %8282 = vmatpush1.xpose.msra.mxu0 0.0
    %8283 = vmatprep.subr.mxu0 0.0
    %8284 = vmatpush1.xpose.msra.mxu0 0.0
    %8285 = vmatprep.subr.mxu0 0.0
    %8286 = vmatpush1.xpose.msra.mxu0 %v1008
    %8287 = vmatprep.subr.mxu0 0.0
    %8288 = vmatpush1.xpose.msra.mxu0 %v1005
    %8289 = vmatprep.subr.mxu0 0.0
    %8290 = vmatpush2.xpose.msra.mxu0 0.0
    %8291 = vmatprep.subr.mxu0 0.0
    %8292 = vmatpush2.xpose.msra.mxu0 0.0
    %8293 = vmatprep.subr.mxu0 0.0
    %8294 = vmatpush2.xpose.msra.mxu0 0.0
    %8295 = vmatprep.subr.mxu0 0.0
    %8296 = vmatpush2.xpose.msra.mxu0 0.0
    %8297 = vmatprep.subr.mxu0 0.0
    %8298 = vmatpush2.xpose.msra.mxu0 0.0
    %8299 = vmatprep.subr.mxu0 0.0
    %8300 = vmatpush2.xpose.msra.mxu0 0.0
    %8301 = vmatprep.subr.mxu0 0.0
    %8302 = vmatpush2.xpose.msra.mxu0 0.0
    %8303 = vmatprep.subr.mxu0 0.0
    %8304 = vmatpush2.xpose.msra.mxu0 0.0
    %8305 = vmatprep.subr.mxu0 0.0
    %8306 = vmatpush2.xpose.msra.mxu0 0.0
    %8307 = vmatprep.subr.mxu0 0.0
    %8308 = vmatpush2.xpose.msra.mxu0 0.0
    %8309 = vmatprep.subr.mxu0 0.0
    %8310 = vmatpush2.xpose.msra.mxu0 0.0
    %8311 = vmatprep.subr.mxu0 0.0
    %8312 = vmatpush2.xpose.msra.mxu0 0.0
    %8313 = vmatprep.subr.mxu0 0.0
    %8314 = vmatpush2.xpose.msra.mxu0 0.0
    %8315 = vmatprep.subr.mxu0 0.0
    %8316 = vmatpush2.xpose.msra.mxu0 0.0
    %8317 = vmatprep.subr.mxu0 0.0
    %8318 = vmatpush2.xpose.msra.mxu0 0.0
    %8319 = vmatprep.subr.mxu0 0.0
    %8320 = vmatpush2.xpose.msra.mxu0 0.0
    %8321 = vmatprep.mubr.f32.mxu0 0.0
    %8322 = vmatmul.mubr.f32.gmra.mxu0 %v7931
    %v8323 = vpop.f32.mrf.mxu0
    %v8324 = vadd.f32 0.0, %v8323
    %v8325 = vpop.f32.mrf.mxu0
    %8326 = vdwg.mxu0
    %8327 = vmatprep.subr.mxu0 0.0
    %8328 = vmatpush1.xpose.msra.mxu0 0.0
    %8329 = vmatprep.subr.mxu0 0.0
    %8330 = vmatpush1.xpose.msra.mxu0 0.0
    %8331 = vmatprep.subr.mxu0 0.0
    %8332 = vmatpush1.xpose.msra.mxu0 0.0
    %8333 = vmatprep.subr.mxu0 0.0
    %8334 = vmatpush1.xpose.msra.mxu0 0.0
    %8335 = vmatprep.subr.mxu0 0.0
    %8336 = vmatpush1.xpose.msra.mxu0 0.0
    %8337 = vmatprep.subr.mxu0 0.0
    %8338 = vmatpush1.xpose.msra.mxu0 0.0
    %8339 = vmatprep.subr.mxu0 0.0
    %8340 = vmatpush1.xpose.msra.mxu0 0.0
    %8341 = vmatprep.subr.mxu0 0.0
    %8342 = vmatpush1.xpose.msra.mxu0 0.0
    %8343 = vmatprep.subr.mxu0 0.0
    %8344 = vmatpush1.xpose.msra.mxu0 0.0
    %8345 = vmatprep.subr.mxu0 0.0
    %8346 = vmatpush1.xpose.msra.mxu0 0.0
    %8347 = vmatprep.subr.mxu0 0.0
    %8348 = vmatpush1.xpose.msra.mxu0 0.0
    %8349 = vmatprep.subr.mxu0 0.0
    %8350 = vmatpush1.xpose.msra.mxu0 0.0
    %8351 = vmatprep.subr.mxu0 0.0
    %8352 = vmatpush1.xpose.msra.mxu0 0.0
    %8353 = vmatprep.subr.mxu0 0.0
    %8354 = vmatpush1.xpose.msra.mxu0 0.0
    %8355 = vmatprep.subr.mxu0 0.0
    %8356 = vmatpush1.xpose.msra.mxu0 %v1084
    %8357 = vmatprep.subr.mxu0 0.0
    %8358 = vmatpush1.xpose.msra.mxu0 %v1081
    %8359 = vmatprep.subr.mxu0 0.0
    %8360 = vmatpush2.xpose.msra.mxu0 0.0
    %8361 = vmatprep.subr.mxu0 0.0
    %8362 = vmatpush2.xpose.msra.mxu0 0.0
    %8363 = vmatprep.subr.mxu0 0.0
    %8364 = vmatpush2.xpose.msra.mxu0 0.0
    %8365 = vmatprep.subr.mxu0 0.0
    %8366 = vmatpush2.xpose.msra.mxu0 0.0
    %8367 = vmatprep.subr.mxu0 0.0
    %8368 = vmatpush2.xpose.msra.mxu0 0.0
    %8369 = vmatprep.subr.mxu0 0.0
    %8370 = vmatpush2.xpose.msra.mxu0 0.0
    %8371 = vmatprep.subr.mxu0 0.0
    %8372 = vmatpush2.xpose.msra.mxu0 0.0
    %8373 = vmatprep.subr.mxu0 0.0
    %8374 = vmatpush2.xpose.msra.mxu0 0.0
    %8375 = vmatprep.subr.mxu0 0.0
    %8376 = vmatpush2.xpose.msra.mxu0 0.0
    %8377 = vmatprep.subr.mxu0 0.0
    %8378 = vmatpush2.xpose.msra.mxu0 0.0
    %8379 = vmatprep.subr.mxu0 0.0
    %8380 = vmatpush2.xpose.msra.mxu0 0.0
    %8381 = vmatprep.subr.mxu0 0.0
    %8382 = vmatpush2.xpose.msra.mxu0 0.0
    %8383 = vmatprep.subr.mxu0 0.0
    %8384 = vmatpush2.xpose.msra.mxu0 0.0
    %8385 = vmatprep.subr.mxu0 0.0
    %8386 = vmatpush2.xpose.msra.mxu0 0.0
    %8387 = vmatprep.subr.mxu0 0.0
    %8388 = vmatpush2.xpose.msra.mxu0 0.0
    %8389 = vmatprep.subr.mxu0 0.0
    %8390 = vmatpush2.xpose.msra.mxu0 0.0
    %8391 = vmatprep.mubr.f32.mxu0 0.0
    %8392 = vmatmul.mubr.f32.gmra.mxu0 %v8003
    %v8393 = vpop.f32.mrf.mxu0
    %v8394 = vadd.f32 0.0, %v8393
    %v8395 = vpop.f32.mrf.mxu0
    %8396 = vdwg.mxu0
    %v8397 = vadd.f32 %v8324, %v167
    %v8398 = vadd.f32 %v8394, %v1157
    %v8401 = vrot.slane %v8398, 7
    %v8402 = vsel %vm825, %v8401, %v8397
    %v8404 = vsel %vm828, %v8402, -inf
    %8405 = vmax.xlane.f32.xlu0 %v8404
    %v8406 = vpop.xlane.xlu0 %8405
    %v8408 = vrot.slane %v8406, 1
    %v8411 = vsub.f32 %v8397, %v8406
    %v8412 = vsub.f32 %v8398, %v8408
    %v8413 = vmul.f32 %v8411, 1.442695
    %v8414 = vpow.pop %v8413
    %v8415 = vmul.f32 %v8412, 1.442695
    %v8416 = vpow.pop %v8415
    %v8419 = vrot.slane %v8416, 7
    %v8420 = vsel %vm825, %v8419, %v8414
    %v8422 = vsel %vm828, %v8420, 0.0
    %8423 = vadd.xlane.f32.xlu0 %v8422
    %v8424 = vpop.xlane.xlu0 %8423
    %v8425 = vadd.f32 %v8424, 1e-09
    %v8426 = vrcp.pop %v8425
    %v8428 = vrot.slane %v8426, 1
    %v8431 = vmul.f32 %v8414, %v8426
    %v8432 = vmul.f32 %v8416, %v8428
    %v8434 = vsel %vm221, %v8431, 0
    %8436 = vmatprep.subr.mxu0 0.0
    %8437 = vmatpush1.msra.mxu0 0.0
    %8438 = vmatprep.subr.mxu0 0.0
    %8439 = vmatpush1.msra.mxu0 0.0
    %8440 = vmatprep.subr.mxu0 0.0
    %8441 = vmatpush1.msra.mxu0 0.0
    %8442 = vmatprep.subr.mxu0 0.0
    %8443 = vmatpush1.msra.mxu0 0.0
    %8444 = vmatprep.subr.mxu0 0.0
    %8445 = vmatpush1.msra.mxu0 0.0
    %8446 = vmatprep.subr.mxu0 0.0
    %8447 = vmatpush1.msra.mxu0 0.0
    %8448 = vmatprep.subr.mxu0 0.0
    %8449 = vmatpush1.msra.mxu0 0.0
    %8450 = vmatprep.subr.mxu0 0.0
    %8451 = vmatpush1.msra.mxu0 0.0
    %8452 = vmatprep.subr.mxu0 0.0
    %8453 = vmatpush1.msra.mxu0 0.0
    %8454 = vmatprep.subr.mxu0 0.0
    %8455 = vmatpush1.msra.mxu0 0.0
    %8456 = vmatprep.subr.mxu0 0.0
    %8457 = vmatpush1.msra.mxu0 0.0
    %8458 = vmatprep.subr.mxu0 0.0
    %8459 = vmatpush1.msra.mxu0 0.0
    %8460 = vmatprep.subr.mxu0 0.0
    %8461 = vmatpush1.msra.mxu0 0.0
    %8462 = vmatprep.subr.mxu0 0.0
    %8463 = vmatpush1.msra.mxu0 0.0
    %8464 = vmatprep.subr.mxu0 0.0
    %8465 = vmatpush1.msra.mxu0 %v163
    %8466 = vmatprep.subr.mxu0 0.0
    %8467 = vmatpush1.msra.mxu0 %v162
    %8468 = vmatprep.subr.mxu0 0.0
    %8469 = vmatpush2.msra.mxu0 0.0
    %8470 = vmatprep.subr.mxu0 0.0
    %8471 = vmatpush2.msra.mxu0 0.0
    %8472 = vmatprep.subr.mxu0 0.0
    %8473 = vmatpush2.msra.mxu0 0.0
    %8474 = vmatprep.subr.mxu0 0.0
    %8475 = vmatpush2.msra.mxu0 0.0
    %8476 = vmatprep.subr.mxu0 0.0
    %8477 = vmatpush2.msra.mxu0 0.0
    %8478 = vmatprep.subr.mxu0 0.0
    %8479 = vmatpush2.msra.mxu0 0.0
    %8480 = vmatprep.subr.mxu0 0.0
    %8481 = vmatpush2.msra.mxu0 0.0
    %8482 = vmatprep.subr.mxu0 0.0
    %8483 = vmatpush2.msra.mxu0 0.0
    %8484 = vmatprep.subr.mxu0 0.0
    %8485 = vmatpush2.msra.mxu0 0.0
    %8486 = vmatprep.subr.mxu0 0.0
    %8487 = vmatpush2.msra.mxu0 0.0
    %8488 = vmatprep.subr.mxu0 0.0
    %8489 = vmatpush2.msra.mxu0 0.0
    %8490 = vmatprep.subr.mxu0 0.0
    %8491 = vmatpush2.msra.mxu0 0.0
    %8492 = vmatprep.subr.mxu0 0.0
    %8493 = vmatpush2.msra.mxu0 0.0
    %8494 = vmatprep.subr.mxu0 0.0
    %8495 = vmatpush2.msra.mxu0 0.0
    %8496 = vmatprep.subr.mxu0 0.0
    %8497 = vmatpush2.msra.mxu0 0.0
    %8498 = vmatprep.subr.mxu0 0.0
    %8499 = vmatpush2.msra.mxu0 0.0
    %8500 = vmatprep.mubr.f32.mxu0 0.0
    %8501 = vmatmul.mubr.f32.gmra.mxu0 %v8434
    %v8502 = vpop.f32.mrf.mxu0
    %v8503 = vadd.f32 0.0, %v8502
    %v8504 = vpop.f32.mrf.mxu0
    %8505 = vdwg.mxu0
    %v8507 = vsel %vm221, %v8432, 0
    %8509 = vmatprep.subr.mxu0 0.0
    %8510 = vmatpush1.msra.mxu0 0.0
    %8511 = vmatprep.subr.mxu0 0.0
    %8512 = vmatpush1.msra.mxu0 0.0
    %8513 = vmatprep.subr.mxu0 0.0
    %8514 = vmatpush1.msra.mxu0 0.0
    %8515 = vmatprep.subr.mxu0 0.0
    %8516 = vmatpush1.msra.mxu0 0.0
    %8517 = vmatprep.subr.mxu0 0.0
    %8518 = vmatpush1.msra.mxu0 0.0
    %8519 = vmatprep.subr.mxu0 0.0
    %8520 = vmatpush1.msra.mxu0 0.0
    %8521 = vmatprep.subr.mxu0 0.0
    %8522 = vmatpush1.msra.mxu0 0.0
    %8523 = vmatprep.subr.mxu0 0.0
    %8524 = vmatpush1.msra.mxu0 0.0
    %8525 = vmatprep.subr.mxu0 0.0
    %8526 = vmatpush1.msra.mxu0 0.0
    %8527 = vmatprep.subr.mxu0 0.0
    %8528 = vmatpush1.msra.mxu0 0.0
    %8529 = vmatprep.subr.mxu0 0.0
    %8530 = vmatpush1.msra.mxu0 0.0
    %8531 = vmatprep.subr.mxu0 0.0
    %8532 = vmatpush1.msra.mxu0 0.0
    %8533 = vmatprep.subr.mxu0 0.0
    %8534 = vmatpush1.msra.mxu0 0.0
    %8535 = vmatprep.subr.mxu0 0.0
    %8536 = vmatpush1.msra.mxu0 0.0
    %8537 = vmatprep.subr.mxu0 0.0
    %8538 = vmatpush1.msra.mxu0 %v165
    %8539 = vmatprep.subr.mxu0 0.0
    %8540 = vmatpush1.msra.mxu0 %v164
    %8541 = vmatprep.subr.mxu0 0.0
    %8542 = vmatpush2.msra.mxu0 0.0
    %8543 = vmatprep.subr.mxu0 0.0
    %8544 = vmatpush2.msra.mxu0 0.0
    %8545 = vmatprep.subr.mxu0 0.0
    %8546 = vmatpush2.msra.mxu0 0.0
    %8547 = vmatprep.subr.mxu0 0.0
    %8548 = vmatpush2.msra.mxu0 0.0
    %8549 = vmatprep.subr.mxu0 0.0
    %8550 = vmatpush2.msra.mxu0 0.0
    %8551 = vmatprep.subr.mxu0 0.0
    %8552 = vmatpush2.msra.mxu0 0.0
    %8553 = vmatprep.subr.mxu0 0.0
    %8554 = vmatpush2.msra.mxu0 0.0
    %8555 = vmatprep.subr.mxu0 0.0
    %8556 = vmatpush2.msra.mxu0 0.0
    %8557 = vmatprep.subr.mxu0 0.0
    %8558 = vmatpush2.msra.mxu0 0.0
    %8559 = vmatprep.subr.mxu0 0.0
    %8560 = vmatpush2.msra.mxu0 0.0
    %8561 = vmatprep.subr.mxu0 0.0
    %8562 = vmatpush2.msra.mxu0 0.0
    %8563 = vmatprep.subr.mxu0 0.0
    %8564 = vmatpush2.msra.mxu0 0.0
    %8565 = vmatprep.subr.mxu0 0.0
    %8566 = vmatpush2.msra.mxu0 0.0
    %8567 = vmatprep.subr.mxu0 0.0
    %8568 = vmatpush2.msra.mxu0 0.0
    %8569 = vmatprep.subr.mxu0 0.0
    %8570 = vmatpush2.msra.mxu0 0.0
    %8571 = vmatprep.subr.mxu0 0.0
    %8572 = vmatpush2.msra.mxu0 0.0
    %8573 = vmatprep.mubr.f32.mxu0 0.0
    %8574 = vmatmul.mubr.f32.gmra.mxu0 %v8507
    %v8575 = vpop.f32.mrf.mxu0
    %v8576 = vadd.f32 0.0, %v8575
    %v8577 = vpop.f32.mrf.mxu0
    %8578 = vdwg.mxu0
    %v8581 = vrot.slane %v8181, 2
    %v8582 = vrot.slane %v8254, 1
    %v8583 = vsel %vm4453, %v8582, %v8581
    %8584 = vrot.lane.b32.xlu0 %v8583, 32
    %v8585 = vpop.permute.xlu0 %8584
    %v8589 = vrot.slane %v8503, 2
    %v8590 = vrot.slane %v8576, 1
    %v8591 = vsel %vm4453, %v8590, %v8589
    %8592 = vrot.lane.b32.xlu0 %v8591, 64
    %v8593 = vpop.permute.xlu0 %8592
    %v8595 = vsel %vm309, %v7904, %v8585
    %v8596 = vsel %vm392, %v8595, %v8593
    %v8598 = vrot.slane %v8596, 6
    %v8599 = vsel %vm1364, %v8598, 0
    %8601 = vmatprep.subr.mxu0 0.0
    %8602 = vmatpush1.msra.mxu0 0.0
    %8603 = vmatprep.subr.mxu0 0.0
    %8604 = vmatpush1.msra.mxu0 0.0
    %8605 = vmatprep.subr.mxu0 0.0
    %8606 = vmatpush1.msra.mxu0 0.0
    %8607 = vmatprep.subr.mxu0 0.0
    %8608 = vmatpush1.msra.mxu0 0.0
    %8609 = vmatprep.subr.mxu0 0.0
    %8610 = vmatpush1.msra.mxu0 %v202
    %8611 = vmatprep.subr.mxu0 0.0
    %8612 = vmatpush1.msra.mxu0 %v201
    %8613 = vmatprep.subr.mxu0 0.0
    %8614 = vmatpush1.msra.mxu0 %v200
    %8615 = vmatprep.subr.mxu0 0.0
    %8616 = vmatpush1.msra.mxu0 %v199
    %8617 = vmatprep.subr.mxu0 0.0
    %8618 = vmatpush1.msra.mxu0 %v198
    %8619 = vmatprep.subr.mxu0 0.0
    %8620 = vmatpush1.msra.mxu0 %v197
    %8621 = vmatprep.subr.mxu0 0.0
    %8622 = vmatpush1.msra.mxu0 %v196
    %8623 = vmatprep.subr.mxu0 0.0
    %8624 = vmatpush1.msra.mxu0 %v195
    %8625 = vmatprep.subr.mxu0 0.0
    %8626 = vmatpush1.msra.mxu0 %v194
    %8627 = vmatprep.subr.mxu0 0.0
    %8628 = vmatpush1.msra.mxu0 %v193
    %8629 = vmatprep.subr.mxu0 0.0
    %8630 = vmatpush1.msra.mxu0 %v192
    %8631 = vmatprep.subr.mxu0 0.0
    %8632 = vmatpush1.msra.mxu0 %v191
    %8633 = vmatprep.subr.mxu0 0.0
    %8634 = vmatpush2.msra.mxu0 0.0
    %8635 = vmatprep.subr.mxu0 0.0
    %8636 = vmatpush2.msra.mxu0 0.0
    %8637 = vmatprep.subr.mxu0 0.0
    %8638 = vmatpush2.msra.mxu0 0.0
    %8639 = vmatprep.subr.mxu0 0.0
    %8640 = vmatpush2.msra.mxu0 0.0
    %8641 = vmatprep.subr.mxu0 0.0
    %8642 = vmatpush2.msra.mxu0 0.0
    %8643 = vmatprep.subr.mxu0 0.0
    %8644 = vmatpush2.msra.mxu0 0.0
    %8645 = vmatprep.subr.mxu0 0.0
    %8646 = vmatpush2.msra.mxu0 0.0
    %8647 = vmatprep.subr.mxu0 0.0
    %8648 = vmatpush2.msra.mxu0 0.0
    %8649 = vmatprep.subr.mxu0 0.0
    %8650 = vmatpush2.msra.mxu0 0.0
    %8651 = vmatprep.subr.mxu0 0.0
    %8652 = vmatpush2.msra.mxu0 0.0
    %8653 = vmatprep.subr.mxu0 0.0
    %8654 = vmatpush2.msra.mxu0 0.0
    %8655 = vmatprep.subr.mxu0 0.0
    %8656 = vmatpush2.msra.mxu0 0.0
    %8657 = vmatprep.subr.mxu0 0.0
    %8658 = vmatpush2.msra.mxu0 0.0
    %8659 = vmatprep.subr.mxu0 0.0
    %8660 = vmatpush2.msra.mxu0 0.0
    %8661 = vmatprep.subr.mxu0 0.0
    %8662 = vmatpush2.msra.mxu0 0.0
    %8663 = vmatprep.subr.mxu0 0.0
    %8664 = vmatpush2.msra.mxu0 0.0
    %8665 = vmatprep.mubr.f32.mxu0 0.0
    %8666 = vmatmul.mubr.f32.gmra.mxu0 %v8599
    %v8667 = vpop.f32.mrf.mxu0
    %v8668 = vadd.f32 %v1362, %v8667
    %v8669 = vpop.f32.mrf.mxu0
    %8670 = vdwg.mxu0
    %8672 = vrot.lane.b32.xlu0 %v8668, 112
    %v8673 = vpop.permute.xlu0 %8672
    %vm8675 = vcmask 1042304
    %8676 = vst.msk [vmem:[#allocation16] sm:$0x3] %vm8675, %v8673
    // Predicated region
    $region94: #{tpu_custom_call.1} parent=1 // pred_check
      _
    $region95: #{tpu_custom_call.1} parent=1 // pred_check_branch
      %8678 = sbr.rel (0) target = $region97
    $region96: #{tpu_custom_call.1} parent=1 // pred_region
      %s8680 = ssub.s32 32, 32
      %8681 = vsyncadd [#allocation4], %s8680
      %s8683 = sshll.u32 [#allocation16], 4
      %s8684 = int_to_ptr.vmem [resolvable:$true] %s8683
      %8686 = dma.vmem_to_hbm [thread:$0]  %s8684, 32, %s15, [#allocation4]
    $region97: #{tpu_custom_call.1} parent=1 // pred_fallthru
      _
    // Predicated region
    $region98: #{tpu_custom_call.1} parent=1 // pred_check
      _
    $region99: #{tpu_custom_call.1} parent=1 // pred_check_branch
      %8688 = sbr.rel (0) target = $region101
    $region100: #{tpu_custom_call.1} parent=1 // pred_region
      %8689 = dma.done [#allocation4], 32
    $region101: #{tpu_custom_call.1} parent=1 // pred_fallthru
      _
    %8690 = vsyncpa [#allocation3], 1
    %8691 = vsyncpa [#allocation6], 1
    %8692 = vsyncpa [#allocation9], 1
    %8693 = vsyncpa [#allocation12], 1
    %8694 = vsyncpa [#allocation15], 1
    %8695 = vsyncpa [#allocation4], 1

</llo_original>
